<compile_context>
chip_gen: v5e
topology: v5e:2x2
jax: 0.10.0
libtpu: 0.0.40
codegen_flags: <defaults>
</compile_context>

<pallas_src>
import numpy as np

import jax
import jax.numpy as jnp
from jax import lax
from jax.experimental import pallas as pl
from jax.experimental.pallas import tpu as pltpu


# Conv stack fixed by the PyTorch module: (kh, kw, stride, Cout)
_CONV_CFG = (
    (8, 8, 4, 32),
    (4, 4, 2, 64),
    (3, 3, 1, 64),
)


def _conv_out_hw(h, w, k, s):
    return (h - k) // s + 1, (w - k) // s + 1


def _conv_stack_dims(n_in_channels, image_dim):
    """(H, W, C) after the input and after each conv layer."""
    h, w = image_dim
    dims = [(h, w, n_in_channels)]
    for kh, _kw, s, cout in _CONV_CFG:
        h, w = _conv_out_hw(h, w, kh, s)
        dims.append((h, w, cout))
    return dims


# ---------------------------------------------------------------------------
# Canonical (PyTorch-like) parameter init
# ---------------------------------------------------------------------------
def init_dqn_cnn_params(key, n_in_channels, image_dim, num_actions, hidden_dim=128):
    dims = _conv_stack_dims(n_in_channels, image_dim)
    h3, w3, c3 = dims[3]
    im_feature_size = c3 * h3 * w3
    keys = jax.random.split(key, 6 + 4 * len(num_actions))
    s = 0.05
    params = {
        "conv1_w": s * jax.random.normal(keys[0], (32, n_in_channels, 8, 8), jnp.float32),
        "conv1_b": s * jax.random.normal(keys[1], (32,), jnp.float32),
        "conv2_w": s * jax.random.normal(keys[2], (64, 32, 4, 4), jnp.float32),
        "conv2_b": s * jax.random.normal(keys[3], (64,), jnp.float32),
        "conv3_w": s * jax.random.normal(keys[4], (64, 64, 3, 3), jnp.float32),
        "conv3_b": s * jax.random.normal(keys[5], (64,), jnp.float32),
        "heads": [],
    }
    for idx, num_action in enumerate(num_actions):
        k = keys[6 + 4 * idx: 6 + 4 * (idx + 1)]
        params["heads"].append({
            # stored as (in_features, hidden), i.e. already x @ w layout
            "w1": s * jax.random.normal(k[0], (im_feature_size, hidden_dim), jnp.float32),
            "b1": s * jax.random.normal(k[1], (hidden_dim,), jnp.float32),
            "w2": s * jax.random.normal(k[2], (hidden_dim, num_action), jnp.float32),
            # DQNCNN.init(): last linear bias of every head is constant 0.0
            "b2": jnp.zeros((num_action,), jnp.float32),
        })
    return params


# ---------------------------------------------------------------------------
# One-time packing into kernel-ready layouts (hoisted out of the forward pass)
# ---------------------------------------------------------------------------
def _stacked_selection_matrix(hin, win, k, stride):
    """(kk*P_out, P_in) 0/1 gather matrix with offset-major row ordering."""
    ho, wo = _conv_out_hw(hin, win, k, stride)
    sel = np.zeros((k * k, ho * wo, hin * win), np.float32)
    for i in range(k):
        for j in range(k):
            for oh in range(ho):
                for ow in range(wo):
                    sel[i * k + j, oh * wo + ow,
                        (oh * stride + i) * win + (ow * stride + j)] = 1.0
    return sel.reshape(k * k * ho * wo, hin * win)


def pack_dqn_cnn_params(params, image_dim, dtype=jnp.float32):
    """One-time re-layout of DQNCNN params into MXU-ready layouts."""
    n_in_channels = params["conv1_w"].shape[1]
    dims = _conv_stack_dims(n_in_channels, image_dim)
    (h1, w1s, c1), (h2, w2s, c2), (h3, w3s, c3) = dims[1], dims[2], dims[3]
    p1, p2, p3 = h1 * w1s, h2 * w2s, h3 * w3s
    kk2 = _CONV_CFG[1][0] * _CONV_CFG[1][1]
    kk3 = _CONV_CFG[2][0] * _CONV_CFG[2][1]

    def conv_w_flat(w):
        # (Cout, Cin, kh, kw) -> (kh*kw*Cin, Cout): rows offset-major, cin-minor.
        cout, cin, kh_, kw_ = w.shape
        return jnp.transpose(w, (2, 3, 1, 0)).reshape(kh_ * kw_ * cin, cout)

    sel2 = _stacked_selection_matrix(h1, w1s, _CONV_CFG[1][0], _CONV_CFG[1][2])
    sel3 = _stacked_selection_matrix(h2, w2s, _CONV_CFG[2][0], _CONV_CFG[2][2])

    heads = params["heads"]
    hidden = int(heads[0]["w1"].shape[1])
    num_actions = tuple(int(h["w2"].shape[1]) for h in heads)
    nh = len(heads) * hidden
    total_actions = sum(num_actions)
    npad = max(128, ((total_actions + 127) // 128) * 128)

    # Stack all heads' first linears into one (P3*C3, NH) weight whose row
    # order (p-major, c-minor) matches the kernel's a3 flatten; PyTorch's NCHW
    # flatten has feature f = c*(H3*W3) + p, remapped here at pack time.
    wh1 = np.zeros((p3 * c3, nh), np.float32)
    bh1 = np.zeros((1, nh), np.float32)
    # Merge all heads' second linears into one block-diagonal lane-dense weight.
    wh2 = np.zeros((nh, npad), np.float32)
    bh2 = np.zeros((1, npad), np.float32)
    head_offsets = []
    off = 0
    for l, head in enumerate(heads):
        w1h = np.asarray(head["w1"]).reshape(c3, p3, hidden)
        wh1[:, l * hidden:(l + 1) * hidden] = (
            w1h.transpose(1, 0, 2).reshape(p3 * c3, hidden))
        bh1[0, l * hidden:(l + 1) * hidden] = np.asarray(head["b1"])
        n_a = num_actions[l]
        wh2[l * hidden:(l + 1) * hidden, off:off + n_a] = np.asarray(head["w2"])
        bh2[0, off:off + n_a] = np.asarray(head["b2"])
        head_offsets.append(off)
        off += n_a

    packed = {
        # MXU operands in `dtype` (bf16 is exact for the 0/1 selections and
        # safe for 0.05-scale weights); biases stay f32 (bias add / ReLU on VPU).
        "w1m": conv_w_flat(params["conv1_w"]).astype(dtype),
        "b1": params["conv1_b"].reshape(1, -1).astype(jnp.float32),
        "s2": jnp.asarray(sel2, dtype),
        "w2m": conv_w_flat(params["conv2_w"]).astype(dtype),
        "b2": params["conv2_b"].reshape(1, -1).astype(jnp.float32),
        "s3": jnp.asarray(sel3, dtype),
        "w3m": conv_w_flat(params["conv3_w"]).astype(dtype),
        "b3": params["conv3_b"].reshape(1, -1).astype(jnp.float32),
        "wh1": jnp.asarray(wh1, dtype),
        "bh1": jnp.asarray(bh1, jnp.float32),
        "wh2": jnp.asarray(wh2, dtype),
        "bh2": jnp.asarray(bh2, jnp.float32),
    }
    meta = {
        "p1": p1, "p2": p2, "p3": p3, "kk2": kk2, "kk3": kk3,
        "c1": c1, "c2": c2, "c3": c3,
        "k1": _CONV_CFG[0][0] * _CONV_CFG[0][1] * n_in_channels,
        "nh": nh, "npad": npad,
        "num_actions": num_actions,
        "head_offsets": tuple(head_offsets),
    }
    return packed, meta


# ---------------------------------------------------------------------------
# The fused Pallas kernel: one grid step == TB batch elements, all in VMEM
# ---------------------------------------------------------------------------
def _make_dqn_kernel(tb, p1, p2, p3, kk2, kk3):
    f32 = jnp.float32

    def kernel(patches_ref, w1_ref, b1_ref,
               s2_ref, w2_ref, b2_ref,
               s3_ref, w3_ref, b3_ref,
               wh1_ref, bh1_ref, wh2_ref, bh2_ref,
               out_ref, pat2_scr, pat3_scr):
        cd = w1_ref.dtype  # MXU operand dtype (f32 or bf16); accumulation is f32.

        # ---- conv1: one MXU matmul over all TB samples (M = TB*P1) ----------
        a1 = jnp.dot(patches_ref[...], w1_ref[...], preferred_element_type=f32)
        a1 = jnp.maximum(a1 + b1_ref[...], 0.0)                  # (TB*P1, C1) f32

        def conv_via_selection(a_prev, p_in, p_out, kk, sel_ref, w_ref, b_ref, scr):
            # One stacked 0/1-selection matmul per sample gathers all kernel
            # offsets at once (rows = offset-major), written into the VMEM
            # patch scratch; then ONE big weight matmul for the whole tile.
            c_in = a_prev.shape[1]
            sel = sel_ref[...]                                   # (kk*p_out, p_in)
            a_cd = a_prev.astype(cd)
            for b in range(tb):                                  # static unroll
                g = jnp.dot(sel, a_cd[b * p_in:(b + 1) * p_in, :],
                            preferred_element_type=f32).astype(cd)
                for o in range(kk):                              # static unroll
                    scr[b * p_out:(b + 1) * p_out, o * c_in:(o + 1) * c_in] = (
                        g[o * p_out:(o + 1) * p_out, :])
            y = jnp.dot(scr[...], w_ref[...], preferred_element_type=f32)
            return jnp.maximum(y + b_ref[...], 0.0)              # (TB*p_out, Cout)

        a2 = conv_via_selection(a1, p1, p2, kk2, s2_ref, w2_ref, b2_ref, pat2_scr)
        a3 = conv_via_selection(a2, p2, p3, kk3, s3_ref, w3_ref, b3_ref, pat3_scr)

        # ---- all Q heads: one stacked first linear + block-diag second ------
        c3 = a3.shape[1]
        feat = a3.reshape(tb, p3 * c3).astype(cd)                # (TB, P3*C3)
        hid = jnp.dot(feat, wh1_ref[...], preferred_element_type=f32) + bh1_ref[...]
        hid = jnp.maximum(hid, 0.0).astype(cd)                   # (TB, NH)
        q = jnp.dot(hid, wh2_ref[...], preferred_element_type=f32) + bh2_ref[...]
        out_ref[...] = q                                         # (TB, NPAD) f32

    return kernel


# ---------------------------------------------------------------------------
# Forward pass
# ---------------------------------------------------------------------------
def _im2col_conv1(state_nchw, k, stride):
    """Input-side im2col (XLA): (B,C,H,W) -> (B, Ho*Wo, k*k*C), offset-major."""
    x = jnp.transpose(state_nchw, (0, 2, 3, 1))                  # NHWC
    b, h, w, c = x.shape
    ho, wo = _conv_out_hw(h, w, k, stride)
    cols = []
    for i in range(k):
        for j in range(k):
            cols.append(x[:, i:i + stride * ho:stride, j:j + stride * wo:stride, :])
    patches = jnp.stack(cols, axis=3)                            # (B, Ho, Wo, k*k, C)
    return patches.reshape(b, ho * wo, k * k * c)


def dqn_cnn_forward(packed, meta, state_nchw, training=False, batch_tile=8):
    """state_nchw: (B, C, H, W) float32, PyTorch NCHW convention."""
    cd = packed["w1m"].dtype
    p1, k1, npad = meta["p1"], meta["k1"], meta["npad"]
    p2, p3 = meta["p2"], meta["p3"]
    kk2, kk3 = meta["kk2"], meta["kk3"]
    c1, c2, c3 = meta["c1"], meta["c2"], meta["c3"]

    k, _, stride, _ = _CONV_CFG[0]
    patches = _im2col_conv1(state_nchw, k, stride)               # (B, P1, K1) f32
    batch = patches.shape[0]

    # Batch tile: a multiple of 8 (sublane-aligned output block) unless it
    # covers the whole (possibly tiny) batch.
    tb = min(batch_tile, batch)
    if tb != batch:
        tb = max(8, (tb // 8) * 8)
    b_pad = ((batch + tb - 1) // tb) * tb
    if b_pad != batch:
        patches = jnp.pad(patches, ((0, b_pad - batch), (0, 0), (0, 0)))
    # Flatten host-side to a lane-dense 2-D slab (no in-kernel reshape) and
    # narrow the only large HBM operand when running with bf16 MXU operands.
    patches2d = patches.reshape(b_pad * p1, k1).astype(cd)
    grid = (b_pad // tb,)

    weight_keys = ("w1m", "b1", "s2", "w2m", "b2", "s3", "w3m", "b3",
                   "wh1", "bh1", "wh2", "bh2")
    weights = [packed[name] for name in weight_keys]

    def const_spec(arr):
        # Full-array block whose index never changes -> single buffer.
        return pl.BlockSpec(arr.shape, lambda i: (0, 0),
                            pipeline_mode=pl.Buffered(1))

    scratch_shapes = [
        pltpu.VMEM((tb * p2, kk2 * c1), cd),
        pltpu.VMEM((tb * p3, kk3 * c2), cd),
    ]

    # Explicit VMEM budget (resident single-buffered weights + 2x double
    # buffered patches/out blocks + patch scratch + activation headroom).
    itemsize = jnp.dtype(cd).itemsize
    weight_bytes = sum(int(w.size) * jnp.dtype(w.dtype).itemsize for w in weights)
    patches_block_bytes = tb * p1 * k1 * itemsize
    out_block_bytes = tb * npad * 4
    scratch_bytes = (tb * p2 * kk2 * c1 + tb * p3 * kk3 * c2) * itemsize
    act_bytes = tb * (p1 * c1 + p2 * c2 + p3 * c3) * 4
    vmem_limit = int(weight_bytes + 2 * (patches_block_bytes + out_block_bytes)
                     + scratch_bytes + 4 * act_bytes + (8 << 20))
    vmem_limit = max(16 << 20, min(vmem_limit, 64 << 20))        # fits v7x too

    flops = 2 * b_pad * (
        p1 * k1 * c1
        + kk2 * p2 * p1 * c1 + p2 * kk2 * c1 * c2
        + kk3 * p3 * p2 * c2 + p3 * kk3 * c2 * c3
        + p3 * c3 * meta["nh"] + meta["nh"] * npad)
    bytes_accessed = (int(patches2d.size) * itemsize + b_pad * npad * 4
                      + weight_bytes)

    kernel = _make_dqn_kernel(tb, p1, p2, p3, kk2, kk3)

    q_slab = pl.pallas_call(
        kernel,
        out_shape=jax.ShapeDtypeStruct((b_pad, npad), jnp.float32),
        grid=grid,
        in_specs=[pl.BlockSpec((tb * p1, k1), lambda i: (i, 0))]
                 + [const_spec(w) for w in weights],
        out_specs=pl.BlockSpec((tb, npad), lambda i: (i, 0)),
        scratch_shapes=scratch_shapes,
        compiler_params=pltpu.CompilerParams(
            dimension_semantics=("parallel",),
            vmem_limit_bytes=vmem_limit),
        cost_estimate=pl.CostEstimate(flops=int(flops), transcendentals=0,
                                      bytes_accessed=int(bytes_accessed)),
    )(patches2d, *weights)

    q_slab = q_slab[:batch]                                      # drop batch pad
    outs = [q_slab[:, off:off + n_a]
            for off, n_a in zip(meta["head_offsets"], meta["num_actions"])]
    if training:
        return outs, {}
    return outs


# ---------------------------------------------------------------------------
# Pure-JAX (XLA) reference for correctness checking
# ---------------------------------------------------------------------------
def _reference_forward(params, state_nchw):
    def conv(x, w, bias, stride):
        y = lax.conv_general_dilated(
            x, w, window_strides=(stride, stride), padding="VALID",
            dimension_numbers=("NCHW", "OIHW", "NCHW"))
        return jnp.maximum(y + bias[None, :, None, None], 0.0)

    x = conv(state_nchw, params["conv1_w"], params["conv1_b"], 4)
    x = conv(x, params["conv2_w"], params["conv2_b"], 2)
    x = conv(x, params["conv3_w"], params["conv3_b"], 1)
    x = x.reshape(x.shape[0], -1)                                # NCHW .view(B, -1)
    outs = []
    for head in params["heads"]:
        h = jnp.maximum(x @ head["w1"] + head["b1"], 0.0)
        outs.append(h @ head["w2"] + head["b2"])
    return outs


if __name__ == "__main__":
    key = jax.random.PRNGKey(0)
    k_param, k_state = jax.random.split(key)

    batch = 16                    # TB=8 -> grid=(2,): even & >=2 (feeds both v7x TCs)
    n_in_channels = 3
    image_dim = (36, 36)          # conv stack: 36 -> 8 -> 3 -> 1 spatial
    num_actions = (4, 2)          # two Q heads
    hidden_dim = 32

    params = init_dqn_cnn_params(
        k_param, n_in_channels, image_dim, num_actions, hidden_dim=hidden_dim)
    state = jax.random.normal(
        k_state, (batch, n_in_channels, *image_dim), jnp.float32)

    q_ref = _reference_forward(params, state)

    # f32 MXU operands: strict check against the XLA reference.
    packed_f32, meta_f32 = pack_dqn_cnn_params(params, image_dim, dtype=jnp.float32)
    fwd_f32 = jax.jit(lambda s: dqn_cnn_forward(packed_f32, meta_f32, s, batch_tile=8))
    q_values = jax.block_until_ready(fwd_f32(state))
    for got, ref in zip(q_values, q_ref):
        assert got.shape == ref.shape, (got.shape, ref.shape)
        err = float(jnp.max(jnp.abs(got - ref)))
        assert err < 5e-4, f"f32 mismatch: {err}"

    # bf16 MXU operands (f32 accumulation, f32 bias/ReLU): loose check.
    packed_bf16, meta_bf16 = pack_dqn_cnn_params(params, image_dim, dtype=jnp.bfloat16)
    fwd_bf16 = jax.jit(lambda s: dqn_cnn_forward(packed_bf16, meta_bf16, s, batch_tile=8))
    q16 = jax.block_until_ready(fwd_bf16(state))
    for got, ref in zip(q16, q_ref):
        assert got.shape == ref.shape, (got.shape, ref.shape)
        err = float(jnp.max(jnp.abs(got - ref)))
        assert err < 2e-2, f"bf16 mismatch: {err}"

    print("KERNEL_OK")
</pallas_src>

<mosaic_0001>
module attributes {stable_mosaic.version = 11 : i64} {
  func.func @kernel(%arg0: i32, %arg1: memref<512x192xf32, #tpu.memory_space<vmem>>, %arg2: memref<192x32xf32, #tpu.memory_space<vmem>>, %arg3: memref<1x32xf32, #tpu.memory_space<vmem>>, %arg4: memref<144x64xf32, #tpu.memory_space<vmem>>, %arg5: memref<512x64xf32, #tpu.memory_space<vmem>>, %arg6: memref<1x64xf32, #tpu.memory_space<vmem>>, %arg7: memref<9x9xf32, #tpu.memory_space<vmem>>, %arg8: memref<576x64xf32, #tpu.memory_space<vmem>>, %arg9: memref<1x64xf32, #tpu.memory_space<vmem>>, %arg10: memref<64x64xf32, #tpu.memory_space<vmem>>, %arg11: memref<1x64xf32, #tpu.memory_space<vmem>>, %arg12: memref<64x128xf32, #tpu.memory_space<vmem>>, %arg13: memref<1x128xf32, #tpu.memory_space<vmem>>, %arg14: memref<8x128xf32, #tpu.memory_space<vmem>>, %arg15: memref<72x512xf32, #tpu.memory_space<vmem>>, %arg16: memref<8x576xf32, #tpu.memory_space<vmem>>) attributes {dimension_semantics = [#tpu.dimension_semantics<parallel>], iteration_bounds = array<i64: 2>, scalar_prefetch = 0 : i64, scratch_operands = 2 : i64, tpu.core_type = #tpu.core_type<tc>, window_params = [{transform_indices = @transform_0, window_bounds = array<i64: 512, 192>}, {pipeline_mode = #tpu.pipeline_mode<synchronous>, transform_indices = @transform_1, window_bounds = array<i64: 192, 32>}, {pipeline_mode = #tpu.pipeline_mode<synchronous>, transform_indices = @transform_2, window_bounds = array<i64: 1, 32>}, {pipeline_mode = #tpu.pipeline_mode<synchronous>, transform_indices = @transform_3, window_bounds = array<i64: 144, 64>}, {pipeline_mode = #tpu.pipeline_mode<synchronous>, transform_indices = @transform_4, window_bounds = array<i64: 512, 64>}, {pipeline_mode = #tpu.pipeline_mode<synchronous>, transform_indices = @transform_5, window_bounds = array<i64: 1, 64>}, {pipeline_mode = #tpu.pipeline_mode<synchronous>, transform_indices = @transform_6, window_bounds = array<i64: 9, 9>}, {pipeline_mode = #tpu.pipeline_mode<synchronous>, transform_indices = @transform_7, window_bounds = array<i64: 576, 64>}, {pipeline_mode = #tpu.pipeline_mode<synchronous>, transform_indices = @transform_8, window_bounds = array<i64: 1, 64>}, {pipeline_mode = #tpu.pipeline_mode<synchronous>, transform_indices = @transform_9, window_bounds = array<i64: 64, 64>}, {pipeline_mode = #tpu.pipeline_mode<synchronous>, transform_indices = @transform_10, window_bounds = array<i64: 1, 64>}, {pipeline_mode = #tpu.pipeline_mode<synchronous>, transform_indices = @transform_11, window_bounds = array<i64: 64, 128>}, {pipeline_mode = #tpu.pipeline_mode<synchronous>, transform_indices = @transform_12, window_bounds = array<i64: 1, 128>}, {transform_indices = @transform_13, window_bounds = array<i64: 8, 128>}]} {
    %c0 = arith.constant 0 : index
    %c0_0 = arith.constant 0 : index
    %0 = vector.load %arg1[%c0, %c0_0] : memref<512x192xf32, #tpu.memory_space<vmem>>, vector<512x192xf32>
    %c0_1 = arith.constant 0 : index
    %c0_2 = arith.constant 0 : index
    %1 = vector.load %arg2[%c0_1, %c0_2] : memref<192x32xf32, #tpu.memory_space<vmem>>, vector<192x32xf32>
    %cst = arith.constant dense<0.000000e+00> : vector<512x32xf32>
    %2 = tpu.matmul %0, %1, %cst {dimension_numbers = #tpu.dot_dimension_numbers<[1], [0], [0], [1], [0, 0, 1, 1], [], []>} : vector<512x192xf32>, vector<192x32xf32>, vector<512x32xf32> -> vector<512x32xf32>
    %c0_3 = arith.constant 0 : index
    %c0_4 = arith.constant 0 : index
    %3 = vector.load %arg3[%c0_3, %c0_4] : memref<1x32xf32, #tpu.memory_space<vmem>>, vector<1x32xf32>
    %4 = vector.broadcast %3 : vector<1x32xf32> to vector<512x32xf32>
    %5 = arith.addf %2, %4 : vector<512x32xf32>
    %cst_5 = arith.constant 0.000000e+00 : f32
    %6 = vector.broadcast %cst_5 : f32 to vector<512x32xf32>
    %7 = arith.maximumf %5, %6 : vector<512x32xf32>
    %c0_6 = arith.constant 0 : index
    %c0_7 = arith.constant 0 : index
    %8 = vector.load %arg4[%c0_6, %c0_7] : memref<144x64xf32, #tpu.memory_space<vmem>>, vector<144x64xf32>
    %9 = vector.extract_strided_slice %7 {offsets = [0, 0], sizes = [64, 32], strides = [1, 1]} : vector<512x32xf32> to vector<64x32xf32>
    %cst_8 = arith.constant dense<0.000000e+00> : vector<144x32xf32>
    %10 = tpu.matmul %8, %9, %cst_8 {dimension_numbers = #tpu.dot_dimension_numbers<[1], [0], [0], [1], [0, 0, 1, 1], [], []>} : vector<144x64xf32>, vector<64x32xf32>, vector<144x32xf32> -> vector<144x32xf32>
    %11 = vector.extract_strided_slice %10 {offsets = [0, 0], sizes = [9, 32], strides = [1, 1]} : vector<144x32xf32> to vector<9x32xf32>
    %c0_9 = arith.constant 0 : index
    %c0_10 = arith.constant 0 : index
    %12 = vector.load %arg15[%c0_9, %c0_10] : memref<72x512xf32, #tpu.memory_space<vmem>>, vector<9x32xf32>
    tpu.vector_store %arg15[%c0_9, %c0_10], %11 {strides = array<i32>} : memref<72x512xf32, #tpu.memory_space<vmem>>, vector<9x32xf32>,
    %13 = vector.extract_strided_slice %10 {offsets = [9, 0], sizes = [9, 32], strides = [1, 1]} : vector<144x32xf32> to vector<9x32xf32>
    %c0_11 = arith.constant 0 : index
    %c32 = arith.constant 32 : index
    %14 = vector.load %arg15[%c0_11, %c32] : memref<72x512xf32, #tpu.memory_space<vmem>>, vector<9x32xf32>
    tpu.vector_store %arg15[%c0_11, %c32], %13 {strides = array<i32>} : memref<72x512xf32, #tpu.memory_space<vmem>>, vector<9x32xf32>,
    %15 = vector.extract_strided_slice %10 {offsets = [18, 0], sizes = [9, 32], strides = [1, 1]} : vector<144x32xf32> to vector<9x32xf32>
    %c0_12 = arith.constant 0 : index
    %c64 = arith.constant 64 : index
    %16 = vector.load %arg15[%c0_12, %c64] : memref<72x512xf32, #tpu.memory_space<vmem>>, vector<9x32xf32>
    tpu.vector_store %arg15[%c0_12, %c64], %15 {strides = array<i32>} : memref<72x512xf32, #tpu.memory_space<vmem>>, vector<9x32xf32>,
    %17 = vector.extract_strided_slice %10 {offsets = [27, 0], sizes = [9, 32], strides = [1, 1]} : vector<144x32xf32> to vector<9x32xf32>
    %c0_13 = arith.constant 0 : index
    %c96 = arith.constant 96 : index
    %18 = vector.load %arg15[%c0_13, %c96] : memref<72x512xf32, #tpu.memory_space<vmem>>, vector<9x32xf32>
    tpu.vector_store %arg15[%c0_13, %c96], %17 {strides = array<i32>} : memref<72x512xf32, #tpu.memory_space<vmem>>, vector<9x32xf32>,
    %19 = vector.extract_strided_slice %10 {offsets = [36, 0], sizes = [9, 32], strides = [1, 1]} : vector<144x32xf32> to vector<9x32xf32>
    %c0_14 = arith.constant 0 : index
    %c128 = arith.constant 128 : index
    %20 = vector.load %arg15[%c0_14, %c128] : memref<72x512xf32, #tpu.memory_space<vmem>>, vector<9x32xf32>
    tpu.vector_store %arg15[%c0_14, %c128], %19 {strides = array<i32>} : memref<72x512xf32, #tpu.memory_space<vmem>>, vector<9x32xf32>,
    %21 = vector.extract_strided_slice %10 {offsets = [45, 0], sizes = [9, 32], strides = [1, 1]} : vector<144x32xf32> to vector<9x32xf32>
    %c0_15 = arith.constant 0 : index
    %c160 = arith.constant 160 : index
    %22 = vector.load %arg15[%c0_15, %c160] : memref<72x512xf32, #tpu.memory_space<vmem>>, vector<9x32xf32>
    tpu.vector_store %arg15[%c0_15, %c160], %21 {strides = array<i32>} : memref<72x512xf32, #tpu.memory_space<vmem>>, vector<9x32xf32>,
    %23 = vector.extract_strided_slice %10 {offsets = [54, 0], sizes = [9, 32], strides = [1, 1]} : vector<144x32xf32> to vector<9x32xf32>
    %c0_16 = arith.constant 0 : index
    %c192 = arith.constant 192 : index
    %24 = vector.load %arg15[%c0_16, %c192] : memref<72x512xf32, #tpu.memory_space<vmem>>, vector<9x32xf32>
    tpu.vector_store %arg15[%c0_16, %c192], %23 {strides = array<i32>} : memref<72x512xf32, #tpu.memory_space<vmem>>, vector<9x32xf32>,
    %25 = vector.extract_strided_slice %10 {offsets = [63, 0], sizes = [9, 32], strides = [1, 1]} : vector<144x32xf32> to vector<9x32xf32>
    %c0_17 = arith.constant 0 : index
    %c224 = arith.constant 224 : index
    %26 = vector.load %arg15[%c0_17, %c224] : memref<72x512xf32, #tpu.memory_space<vmem>>, vector<9x32xf32>
    tpu.vector_store %arg15[%c0_17, %c224], %25 {strides = array<i32>} : memref<72x512xf32, #tpu.memory_space<vmem>>, vector<9x32xf32>,
    %27 = vector.extract_strided_slice %10 {offsets = [72, 0], sizes = [9, 32], strides = [1, 1]} : vector<144x32xf32> to vector<9x32xf32>
    %c0_18 = arith.constant 0 : index
    %c256 = arith.constant 256 : index
    %28 = vector.load %arg15[%c0_18, %c256] : memref<72x512xf32, #tpu.memory_space<vmem>>, vector<9x32xf32>
    tpu.vector_store %arg15[%c0_18, %c256], %27 {strides = array<i32>} : memref<72x512xf32, #tpu.memory_space<vmem>>, vector<9x32xf32>,
    %29 = vector.extract_strided_slice %10 {offsets = [81, 0], sizes = [9, 32], strides = [1, 1]} : vector<144x32xf32> to vector<9x32xf32>
    %c0_19 = arith.constant 0 : index
    %c288 = arith.constant 288 : index
    %30 = vector.load %arg15[%c0_19, %c288] : memref<72x512xf32, #tpu.memory_space<vmem>>, vector<9x32xf32>
    tpu.vector_store %arg15[%c0_19, %c288], %29 {strides = array<i32>} : memref<72x512xf32, #tpu.memory_space<vmem>>, vector<9x32xf32>,
    %31 = vector.extract_strided_slice %10 {offsets = [90, 0], sizes = [9, 32], strides = [1, 1]} : vector<144x32xf32> to vector<9x32xf32>
    %c0_20 = arith.constant 0 : index
    %c320 = arith.constant 320 : index
    %32 = vector.load %arg15[%c0_20, %c320] : memref<72x512xf32, #tpu.memory_space<vmem>>, vector<9x32xf32>
    tpu.vector_store %arg15[%c0_20, %c320], %31 {strides = array<i32>} : memref<72x512xf32, #tpu.memory_space<vmem>>, vector<9x32xf32>,
    %33 = vector.extract_strided_slice %10 {offsets = [99, 0], sizes = [9, 32], strides = [1, 1]} : vector<144x32xf32> to vector<9x32xf32>
    %c0_21 = arith.constant 0 : index
    %c352 = arith.constant 352 : index
    %34 = vector.load %arg15[%c0_21, %c352] : memref<72x512xf32, #tpu.memory_space<vmem>>, vector<9x32xf32>
    tpu.vector_store %arg15[%c0_21, %c352], %33 {strides = array<i32>} : memref<72x512xf32, #tpu.memory_space<vmem>>, vector<9x32xf32>,
    %35 = vector.extract_strided_slice %10 {offsets = [108, 0], sizes = [9, 32], strides = [1, 1]} : vector<144x32xf32> to vector<9x32xf32>
    %c0_22 = arith.constant 0 : index
    %c384 = arith.constant 384 : index
    %36 = vector.load %arg15[%c0_22, %c384] : memref<72x512xf32, #tpu.memory_space<vmem>>, vector<9x32xf32>
    tpu.vector_store %arg15[%c0_22, %c384], %35 {strides = array<i32>} : memref<72x512xf32, #tpu.memory_space<vmem>>, vector<9x32xf32>,
    %37 = vector.extract_strided_slice %10 {offsets = [117, 0], sizes = [9, 32], strides = [1, 1]} : vector<144x32xf32> to vector<9x32xf32>
    %c0_23 = arith.constant 0 : index
    %c416 = arith.constant 416 : index
    %38 = vector.load %arg15[%c0_23, %c416] : memref<72x512xf32, #tpu.memory_space<vmem>>, vector<9x32xf32>
    tpu.vector_store %arg15[%c0_23, %c416], %37 {strides = array<i32>} : memref<72x512xf32, #tpu.memory_space<vmem>>, vector<9x32xf32>,
    %39 = vector.extract_strided_slice %10 {offsets = [126, 0], sizes = [9, 32], strides = [1, 1]} : vector<144x32xf32> to vector<9x32xf32>
    %c0_24 = arith.constant 0 : index
    %c448 = arith.constant 448 : index
    %40 = vector.load %arg15[%c0_24, %c448] : memref<72x512xf32, #tpu.memory_space<vmem>>, vector<9x32xf32>
    tpu.vector_store %arg15[%c0_24, %c448], %39 {strides = array<i32>} : memref<72x512xf32, #tpu.memory_space<vmem>>, vector<9x32xf32>,
    %41 = vector.extract_strided_slice %10 {offsets = [135, 0], sizes = [9, 32], strides = [1, 1]} : vector<144x32xf32> to vector<9x32xf32>
    %c0_25 = arith.constant 0 : index
    %c480 = arith.constant 480 : index
    %42 = vector.load %arg15[%c0_25, %c480] : memref<72x512xf32, #tpu.memory_space<vmem>>, vector<9x32xf32>
    tpu.vector_store %arg15[%c0_25, %c480], %41 {strides = array<i32>} : memref<72x512xf32, #tpu.memory_space<vmem>>, vector<9x32xf32>,
    %43 = vector.extract_strided_slice %7 {offsets = [64, 0], sizes = [64, 32], strides = [1, 1]} : vector<512x32xf32> to vector<64x32xf32>
    %cst_26 = arith.constant dense<0.000000e+00> : vector<144x32xf32>
    %44 = tpu.matmul %8, %43, %cst_26 {dimension_numbers = #tpu.dot_dimension_numbers<[1], [0], [0], [1], [0, 0, 1, 1], [], []>} : vector<144x64xf32>, vector<64x32xf32>, vector<144x32xf32> -> vector<144x32xf32>
    %45 = vector.extract_strided_slice %44 {offsets = [0, 0], sizes = [9, 32], strides = [1, 1]} : vector<144x32xf32> to vector<9x32xf32>
    %c9 = arith.constant 9 : index
    %c0_27 = arith.constant 0 : index
    %46 = vector.load %arg15[%c9, %c0_27] : memref<72x512xf32, #tpu.memory_space<vmem>>, vector<9x32xf32>
    tpu.vector_store %arg15[%c9, %c0_27], %45 {strides = array<i32>} : memref<72x512xf32, #tpu.memory_space<vmem>>, vector<9x32xf32>,
    %47 = vector.extract_strided_slice %44 {offsets = [9, 0], sizes = [9, 32], strides = [1, 1]} : vector<144x32xf32> to vector<9x32xf32>
    %c9_28 = arith.constant 9 : index
    %c32_29 = arith.constant 32 : index
    %48 = vector.load %arg15[%c9_28, %c32_29] : memref<72x512xf32, #tpu.memory_space<vmem>>, vector<9x32xf32>
    tpu.vector_store %arg15[%c9_28, %c32_29], %47 {strides = array<i32>} : memref<72x512xf32, #tpu.memory_space<vmem>>, vector<9x32xf32>,
    %49 = vector.extract_strided_slice %44 {offsets = [18, 0], sizes = [9, 32], strides = [1, 1]} : vector<144x32xf32> to vector<9x32xf32>
    %c9_30 = arith.constant 9 : index
    %c64_31 = arith.constant 64 : index
    %50 = vector.load %arg15[%c9_30, %c64_31] : memref<72x512xf32, #tpu.memory_space<vmem>>, vector<9x32xf32>
    tpu.vector_store %arg15[%c9_30, %c64_31], %49 {strides = array<i32>} : memref<72x512xf32, #tpu.memory_space<vmem>>, vector<9x32xf32>,
    %51 = vector.extract_strided_slice %44 {offsets = [27, 0], sizes = [9, 32], strides = [1, 1]} : vector<144x32xf32> to vector<9x32xf32>
    %c9_32 = arith.constant 9 : index
    %c96_33 = arith.constant 96 : index
    %52 = vector.load %arg15[%c9_32, %c96_33] : memref<72x512xf32, #tpu.memory_space<vmem>>, vector<9x32xf32>
    tpu.vector_store %arg15[%c9_32, %c96_33], %51 {strides = array<i32>} : memref<72x512xf32, #tpu.memory_space<vmem>>, vector<9x32xf32>,
    %53 = vector.extract_strided_slice %44 {offsets = [36, 0], sizes = [9, 32], strides = [1, 1]} : vector<144x32xf32> to vector<9x32xf32>
    %c9_34 = arith.constant 9 : index
    %c128_35 = arith.constant 128 : index
    %54 = vector.load %arg15[%c9_34, %c128_35] : memref<72x512xf32, #tpu.memory_space<vmem>>, vector<9x32xf32>
    tpu.vector_store %arg15[%c9_34, %c128_35], %53 {strides = array<i32>} : memref<72x512xf32, #tpu.memory_space<vmem>>, vector<9x32xf32>,
    %55 = vector.extract_strided_slice %44 {offsets = [45, 0], sizes = [9, 32], strides = [1, 1]} : vector<144x32xf32> to vector<9x32xf32>
    %c9_36 = arith.constant 9 : index
    %c160_37 = arith.constant 160 : index
    %56 = vector.load %arg15[%c9_36, %c160_37] : memref<72x512xf32, #tpu.memory_space<vmem>>, vector<9x32xf32>
    tpu.vector_store %arg15[%c9_36, %c160_37], %55 {strides = array<i32>} : memref<72x512xf32, #tpu.memory_space<vmem>>, vector<9x32xf32>,
    %57 = vector.extract_strided_slice %44 {offsets = [54, 0], sizes = [9, 32], strides = [1, 1]} : vector<144x32xf32> to vector<9x32xf32>
    %c9_38 = arith.constant 9 : index
    %c192_39 = arith.constant 192 : index
    %58 = vector.load %arg15[%c9_38, %c192_39] : memref<72x512xf32, #tpu.memory_space<vmem>>, vector<9x32xf32>
    tpu.vector_store %arg15[%c9_38, %c192_39], %57 {strides = array<i32>} : memref<72x512xf32, #tpu.memory_space<vmem>>, vector<9x32xf32>,
    %59 = vector.extract_strided_slice %44 {offsets = [63, 0], sizes = [9, 32], strides = [1, 1]} : vector<144x32xf32> to vector<9x32xf32>
    %c9_40 = arith.constant 9 : index
    %c224_41 = arith.constant 224 : index
    %60 = vector.load %arg15[%c9_40, %c224_41] : memref<72x512xf32, #tpu.memory_space<vmem>>, vector<9x32xf32>
    tpu.vector_store %arg15[%c9_40, %c224_41], %59 {strides = array<i32>} : memref<72x512xf32, #tpu.memory_space<vmem>>, vector<9x32xf32>,
    %61 = vector.extract_strided_slice %44 {offsets = [72, 0], sizes = [9, 32], strides = [1, 1]} : vector<144x32xf32> to vector<9x32xf32>
    %c9_42 = arith.constant 9 : index
    %c256_43 = arith.constant 256 : index
    %62 = vector.load %arg15[%c9_42, %c256_43] : memref<72x512xf32, #tpu.memory_space<vmem>>, vector<9x32xf32>
    tpu.vector_store %arg15[%c9_42, %c256_43], %61 {strides = array<i32>} : memref<72x512xf32, #tpu.memory_space<vmem>>, vector<9x32xf32>,
    %63 = vector.extract_strided_slice %44 {offsets = [81, 0], sizes = [9, 32], strides = [1, 1]} : vector<144x32xf32> to vector<9x32xf32>
    %c9_44 = arith.constant 9 : index
    %c288_45 = arith.constant 288 : index
    %64 = vector.load %arg15[%c9_44, %c288_45] : memref<72x512xf32, #tpu.memory_space<vmem>>, vector<9x32xf32>
    tpu.vector_store %arg15[%c9_44, %c288_45], %63 {strides = array<i32>} : memref<72x512xf32, #tpu.memory_space<vmem>>, vector<9x32xf32>,
    %65 = vector.extract_strided_slice %44 {offsets = [90, 0], sizes = [9, 32], strides = [1, 1]} : vector<144x32xf32> to vector<9x32xf32>
    %c9_46 = arith.constant 9 : index
    %c320_47 = arith.constant 320 : index
    %66 = vector.load %arg15[%c9_46, %c320_47] : memref<72x512xf32, #tpu.memory_space<vmem>>, vector<9x32xf32>
    tpu.vector_store %arg15[%c9_46, %c320_47], %65 {strides = array<i32>} : memref<72x512xf32, #tpu.memory_space<vmem>>, vector<9x32xf32>,
    %67 = vector.extract_strided_slice %44 {offsets = [99, 0], sizes = [9, 32], strides = [1, 1]} : vector<144x32xf32> to vector<9x32xf32>
    %c9_48 = arith.constant 9 : index
    %c352_49 = arith.constant 352 : index
    %68 = vector.load %arg15[%c9_48, %c352_49] : memref<72x512xf32, #tpu.memory_space<vmem>>, vector<9x32xf32>
    tpu.vector_store %arg15[%c9_48, %c352_49], %67 {strides = array<i32>} : memref<72x512xf32, #tpu.memory_space<vmem>>, vector<9x32xf32>,
    %69 = vector.extract_strided_slice %44 {offsets = [108, 0], sizes = [9, 32], strides = [1, 1]} : vector<144x32xf32> to vector<9x32xf32>
    %c9_50 = arith.constant 9 : index
    %c384_51 = arith.constant 384 : index
    %70 = vector.load %arg15[%c9_50, %c384_51] : memref<72x512xf32, #tpu.memory_space<vmem>>, vector<9x32xf32>
    tpu.vector_store %arg15[%c9_50, %c384_51], %69 {strides = array<i32>} : memref<72x512xf32, #tpu.memory_space<vmem>>, vector<9x32xf32>,
    %71 = vector.extract_strided_slice %44 {offsets = [117, 0], sizes = [9, 32], strides = [1, 1]} : vector<144x32xf32> to vector<9x32xf32>
    %c9_52 = arith.constant 9 : index
    %c416_53 = arith.constant 416 : index
    %72 = vector.load %arg15[%c9_52, %c416_53] : memref<72x512xf32, #tpu.memory_space<vmem>>, vector<9x32xf32>
    tpu.vector_store %arg15[%c9_52, %c416_53], %71 {strides = array<i32>} : memref<72x512xf32, #tpu.memory_space<vmem>>, vector<9x32xf32>,
    %73 = vector.extract_strided_slice %44 {offsets = [126, 0], sizes = [9, 32], strides = [1, 1]} : vector<144x32xf32> to vector<9x32xf32>
    %c9_54 = arith.constant 9 : index
    %c448_55 = arith.constant 448 : index
    %74 = vector.load %arg15[%c9_54, %c448_55] : memref<72x512xf32, #tpu.memory_space<vmem>>, vector<9x32xf32>
    tpu.vector_store %arg15[%c9_54, %c448_55], %73 {strides = array<i32>} : memref<72x512xf32, #tpu.memory_space<vmem>>, vector<9x32xf32>,
    %75 = vector.extract_strided_slice %44 {offsets = [135, 0], sizes = [9, 32], strides = [1, 1]} : vector<144x32xf32> to vector<9x32xf32>
    %c9_56 = arith.constant 9 : index
    %c480_57 = arith.constant 480 : index
    %76 = vector.load %arg15[%c9_56, %c480_57] : memref<72x512xf32, #tpu.memory_space<vmem>>, vector<9x32xf32>
    tpu.vector_store %arg15[%c9_56, %c480_57], %75 {strides = array<i32>} : memref<72x512xf32, #tpu.memory_space<vmem>>, vector<9x32xf32>,
    %77 = vector.extract_strided_slice %7 {offsets = [128, 0], sizes = [64, 32], strides = [1, 1]} : vector<512x32xf32> to vector<64x32xf32>
    %cst_58 = arith.constant dense<0.000000e+00> : vector<144x32xf32>
    %78 = tpu.matmul %8, %77, %cst_58 {dimension_numbers = #tpu.dot_dimension_numbers<[1], [0], [0], [1], [0, 0, 1, 1], [], []>} : vector<144x64xf32>, vector<64x32xf32>, vector<144x32xf32> -> vector<144x32xf32>
    %79 = vector.extract_strided_slice %78 {offsets = [0, 0], sizes = [9, 32], strides = [1, 1]} : vector<144x32xf32> to vector<9x32xf32>
    %c18 = arith.constant 18 : index
    %c0_59 = arith.constant 0 : index
    %80 = vector.load %arg15[%c18, %c0_59] : memref<72x512xf32, #tpu.memory_space<vmem>>, vector<9x32xf32>
    tpu.vector_store %arg15[%c18, %c0_59], %79 {strides = array<i32>} : memref<72x512xf32, #tpu.memory_space<vmem>>, vector<9x32xf32>,
    %81 = vector.extract_strided_slice %78 {offsets = [9, 0], sizes = [9, 32], strides = [1, 1]} : vector<144x32xf32> to vector<9x32xf32>
    %c18_60 = arith.constant 18 : index
    %c32_61 = arith.constant 32 : index
    %82 = vector.load %arg15[%c18_60, %c32_61] : memref<72x512xf32, #tpu.memory_space<vmem>>, vector<9x32xf32>
    tpu.vector_store %arg15[%c18_60, %c32_61], %81 {strides = array<i32>} : memref<72x512xf32, #tpu.memory_space<vmem>>, vector<9x32xf32>,
    %83 = vector.extract_strided_slice %78 {offsets = [18, 0], sizes = [9, 32], strides = [1, 1]} : vector<144x32xf32> to vector<9x32xf32>
    %c18_62 = arith.constant 18 : index
    %c64_63 = arith.constant 64 : index
    %84 = vector.load %arg15[%c18_62, %c64_63] : memref<72x512xf32, #tpu.memory_space<vmem>>, vector<9x32xf32>
    tpu.vector_store %arg15[%c18_62, %c64_63], %83 {strides = array<i32>} : memref<72x512xf32, #tpu.memory_space<vmem>>, vector<9x32xf32>,
    %85 = vector.extract_strided_slice %78 {offsets = [27, 0], sizes = [9, 32], strides = [1, 1]} : vector<144x32xf32> to vector<9x32xf32>
    %c18_64 = arith.constant 18 : index
    %c96_65 = arith.constant 96 : index
    %86 = vector.load %arg15[%c18_64, %c96_65] : memref<72x512xf32, #tpu.memory_space<vmem>>, vector<9x32xf32>
    tpu.vector_store %arg15[%c18_64, %c96_65], %85 {strides = array<i32>} : memref<72x512xf32, #tpu.memory_space<vmem>>, vector<9x32xf32>,
    %87 = vector.extract_strided_slice %78 {offsets = [36, 0], sizes = [9, 32], strides = [1, 1]} : vector<144x32xf32> to vector<9x32xf32>
    %c18_66 = arith.constant 18 : index
    %c128_67 = arith.constant 128 : index
    %88 = vector.load %arg15[%c18_66, %c128_67] : memref<72x512xf32, #tpu.memory_space<vmem>>, vector<9x32xf32>
    tpu.vector_store %arg15[%c18_66, %c128_67], %87 {strides = array<i32>} : memref<72x512xf32, #tpu.memory_space<vmem>>, vector<9x32xf32>,
    %89 = vector.extract_strided_slice %78 {offsets = [45, 0], sizes = [9, 32], strides = [1, 1]} : vector<144x32xf32> to vector<9x32xf32>
    %c18_68 = arith.constant 18 : index
    %c160_69 = arith.constant 160 : index
    %90 = vector.load %arg15[%c18_68, %c160_69] : memref<72x512xf32, #tpu.memory_space<vmem>>, vector<9x32xf32>
    tpu.vector_store %arg15[%c18_68, %c160_69], %89 {strides = array<i32>} : memref<72x512xf32, #tpu.memory_space<vmem>>, vector<9x32xf32>,
    %91 = vector.extract_strided_slice %78 {offsets = [54, 0], sizes = [9, 32], strides = [1, 1]} : vector<144x32xf32> to vector<9x32xf32>
    %c18_70 = arith.constant 18 : index
    %c192_71 = arith.constant 192 : index
    %92 = vector.load %arg15[%c18_70, %c192_71] : memref<72x512xf32, #tpu.memory_space<vmem>>, vector<9x32xf32>
    tpu.vector_store %arg15[%c18_70, %c192_71], %91 {strides = array<i32>} : memref<72x512xf32, #tpu.memory_space<vmem>>, vector<9x32xf32>,
    %93 = vector.extract_strided_slice %78 {offsets = [63, 0], sizes = [9, 32], strides = [1, 1]} : vector<144x32xf32> to vector<9x32xf32>
    %c18_72 = arith.constant 18 : index
    %c224_73 = arith.constant 224 : index
    %94 = vector.load %arg15[%c18_72, %c224_73] : memref<72x512xf32, #tpu.memory_space<vmem>>, vector<9x32xf32>
    tpu.vector_store %arg15[%c18_72, %c224_73], %93 {strides = array<i32>} : memref<72x512xf32, #tpu.memory_space<vmem>>, vector<9x32xf32>,
    %95 = vector.extract_strided_slice %78 {offsets = [72, 0], sizes = [9, 32], strides = [1, 1]} : vector<144x32xf32> to vector<9x32xf32>
    %c18_74 = arith.constant 18 : index
    %c256_75 = arith.constant 256 : index
    %96 = vector.load %arg15[%c18_74, %c256_75] : memref<72x512xf32, #tpu.memory_space<vmem>>, vector<9x32xf32>
    tpu.vector_store %arg15[%c18_74, %c256_75], %95 {strides = array<i32>} : memref<72x512xf32, #tpu.memory_space<vmem>>, vector<9x32xf32>,
    %97 = vector.extract_strided_slice %78 {offsets = [81, 0], sizes = [9, 32], strides = [1, 1]} : vector<144x32xf32> to vector<9x32xf32>
    %c18_76 = arith.constant 18 : index
    %c288_77 = arith.constant 288 : index
    %98 = vector.load %arg15[%c18_76, %c288_77] : memref<72x512xf32, #tpu.memory_space<vmem>>, vector<9x32xf32>
    tpu.vector_store %arg15[%c18_76, %c288_77], %97 {strides = array<i32>} : memref<72x512xf32, #tpu.memory_space<vmem>>, vector<9x32xf32>,
    %99 = vector.extract_strided_slice %78 {offsets = [90, 0], sizes = [9, 32], strides = [1, 1]} : vector<144x32xf32> to vector<9x32xf32>
    %c18_78 = arith.constant 18 : index
    %c320_79 = arith.constant 320 : index
    %100 = vector.load %arg15[%c18_78, %c320_79] : memref<72x512xf32, #tpu.memory_space<vmem>>, vector<9x32xf32>
    tpu.vector_store %arg15[%c18_78, %c320_79], %99 {strides = array<i32>} : memref<72x512xf32, #tpu.memory_space<vmem>>, vector<9x32xf32>,
    %101 = vector.extract_strided_slice %78 {offsets = [99, 0], sizes = [9, 32], strides = [1, 1]} : vector<144x32xf32> to vector<9x32xf32>
    %c18_80 = arith.constant 18 : index
    %c352_81 = arith.constant 352 : index
    %102 = vector.load %arg15[%c18_80, %c352_81] : memref<72x512xf32, #tpu.memory_space<vmem>>, vector<9x32xf32>
    tpu.vector_store %arg15[%c18_80, %c352_81], %101 {strides = array<i32>} : memref<72x512xf32, #tpu.memory_space<vmem>>, vector<9x32xf32>,
    %103 = vector.extract_strided_slice %78 {offsets = [108, 0], sizes = [9, 32], strides = [1, 1]} : vector<144x32xf32> to vector<9x32xf32>
    %c18_82 = arith.constant 18 : index
    %c384_83 = arith.constant 384 : index
    %104 = vector.load %arg15[%c18_82, %c384_83] : memref<72x512xf32, #tpu.memory_space<vmem>>, vector<9x32xf32>
    tpu.vector_store %arg15[%c18_82, %c384_83], %103 {strides = array<i32>} : memref<72x512xf32, #tpu.memory_space<vmem>>, vector<9x32xf32>,
    %105 = vector.extract_strided_slice %78 {offsets = [117, 0], sizes = [9, 32], strides = [1, 1]} : vector<144x32xf32> to vector<9x32xf32>
    %c18_84 = arith.constant 18 : index
    %c416_85 = arith.constant 416 : index
    %106 = vector.load %arg15[%c18_84, %c416_85] : memref<72x512xf32, #tpu.memory_space<vmem>>, vector<9x32xf32>
    tpu.vector_store %arg15[%c18_84, %c416_85], %105 {strides = array<i32>} : memref<72x512xf32, #tpu.memory_space<vmem>>, vector<9x32xf32>,
    %107 = vector.extract_strided_slice %78 {offsets = [126, 0], sizes = [9, 32], strides = [1, 1]} : vector<144x32xf32> to vector<9x32xf32>
    %c18_86 = arith.constant 18 : index
    %c448_87 = arith.constant 448 : index
    %108 = vector.load %arg15[%c18_86, %c448_87] : memref<72x512xf32, #tpu.memory_space<vmem>>, vector<9x32xf32>
    tpu.vector_store %arg15[%c18_86, %c448_87], %107 {strides = array<i32>} : memref<72x512xf32, #tpu.memory_space<vmem>>, vector<9x32xf32>,
    %109 = vector.extract_strided_slice %78 {offsets = [135, 0], sizes = [9, 32], strides = [1, 1]} : vector<144x32xf32> to vector<9x32xf32>
    %c18_88 = arith.constant 18 : index
    %c480_89 = arith.constant 480 : index
    %110 = vector.load %arg15[%c18_88, %c480_89] : memref<72x512xf32, #tpu.memory_space<vmem>>, vector<9x32xf32>
    tpu.vector_store %arg15[%c18_88, %c480_89], %109 {strides = array<i32>} : memref<72x512xf32, #tpu.memory_space<vmem>>, vector<9x32xf32>,
    %111 = vector.extract_strided_slice %7 {offsets = [192, 0], sizes = [64, 32], strides = [1, 1]} : vector<512x32xf32> to vector<64x32xf32>
    %cst_90 = arith.constant dense<0.000000e+00> : vector<144x32xf32>
    %112 = tpu.matmul %8, %111, %cst_90 {dimension_numbers = #tpu.dot_dimension_numbers<[1], [0], [0], [1], [0, 0, 1, 1], [], []>} : vector<144x64xf32>, vector<64x32xf32>, vector<144x32xf32> -> vector<144x32xf32>
    %113 = vector.extract_strided_slice %112 {offsets = [0, 0], sizes = [9, 32], strides = [1, 1]} : vector<144x32xf32> to vector<9x32xf32>
    %c27 = arith.constant 27 : index
    %c0_91 = arith.constant 0 : index
    %114 = vector.load %arg15[%c27, %c0_91] : memref<72x512xf32, #tpu.memory_space<vmem>>, vector<9x32xf32>
    tpu.vector_store %arg15[%c27, %c0_91], %113 {strides = array<i32>} : memref<72x512xf32, #tpu.memory_space<vmem>>, vector<9x32xf32>,
    %115 = vector.extract_strided_slice %112 {offsets = [9, 0], sizes = [9, 32], strides = [1, 1]} : vector<144x32xf32> to vector<9x32xf32>
    %c27_92 = arith.constant 27 : index
    %c32_93 = arith.constant 32 : index
    %116 = vector.load %arg15[%c27_92, %c32_93] : memref<72x512xf32, #tpu.memory_space<vmem>>, vector<9x32xf32>
    tpu.vector_store %arg15[%c27_92, %c32_93], %115 {strides = array<i32>} : memref<72x512xf32, #tpu.memory_space<vmem>>, vector<9x32xf32>,
    %117 = vector.extract_strided_slice %112 {offsets = [18, 0], sizes = [9, 32], strides = [1, 1]} : vector<144x32xf32> to vector<9x32xf32>
    %c27_94 = arith.constant 27 : index
    %c64_95 = arith.constant 64 : index
    %118 = vector.load %arg15[%c27_94, %c64_95] : memref<72x512xf32, #tpu.memory_space<vmem>>, vector<9x32xf32>
    tpu.vector_store %arg15[%c27_94, %c64_95], %117 {strides = array<i32>} : memref<72x512xf32, #tpu.memory_space<vmem>>, vector<9x32xf32>,
    %119 = vector.extract_strided_slice %112 {offsets = [27, 0], sizes = [9, 32], strides = [1, 1]} : vector<144x32xf32> to vector<9x32xf32>
    %c27_96 = arith.constant 27 : index
    %c96_97 = arith.constant 96 : index
    %120 = vector.load %arg15[%c27_96, %c96_97] : memref<72x512xf32, #tpu.memory_space<vmem>>, vector<9x32xf32>
    tpu.vector_store %arg15[%c27_96, %c96_97], %119 {strides = array<i32>} : memref<72x512xf32, #tpu.memory_space<vmem>>, vector<9x32xf32>,
    %121 = vector.extract_strided_slice %112 {offsets = [36, 0], sizes = [9, 32], strides = [1, 1]} : vector<144x32xf32> to vector<9x32xf32>
    %c27_98 = arith.constant 27 : index
    %c128_99 = arith.constant 128 : index
    %122 = vector.load %arg15[%c27_98, %c128_99] : memref<72x512xf32, #tpu.memory_space<vmem>>, vector<9x32xf32>
    tpu.vector_store %arg15[%c27_98, %c128_99], %121 {strides = array<i32>} : memref<72x512xf32, #tpu.memory_space<vmem>>, vector<9x32xf32>,
    %123 = vector.extract_strided_slice %112 {offsets = [45, 0], sizes = [9, 32], strides = [1, 1]} : vector<144x32xf32> to vector<9x32xf32>
    %c27_100 = arith.constant 27 : index
    %c160_101 = arith.constant 160 : index
    %124 = vector.load %arg15[%c27_100, %c160_101] : memref<72x512xf32, #tpu.memory_space<vmem>>, vector<9x32xf32>
    tpu.vector_store %arg15[%c27_100, %c160_101], %123 {strides = array<i32>} : memref<72x512xf32, #tpu.memory_space<vmem>>, vector<9x32xf32>,
    %125 = vector.extract_strided_slice %112 {offsets = [54, 0], sizes = [9, 32], strides = [1, 1]} : vector<144x32xf32> to vector<9x32xf32>
    %c27_102 = arith.constant 27 : index
    %c192_103 = arith.constant 192 : index
    %126 = vector.load %arg15[%c27_102, %c192_103] : memref<72x512xf32, #tpu.memory_space<vmem>>, vector<9x32xf32>
    tpu.vector_store %arg15[%c27_102, %c192_103], %125 {strides = array<i32>} : memref<72x512xf32, #tpu.memory_space<vmem>>, vector<9x32xf32>,
    %127 = vector.extract_strided_slice %112 {offsets = [63, 0], sizes = [9, 32], strides = [1, 1]} : vector<144x32xf32> to vector<9x32xf32>
    %c27_104 = arith.constant 27 : index
    %c224_105 = arith.constant 224 : index
    %128 = vector.load %arg15[%c27_104, %c224_105] : memref<72x512xf32, #tpu.memory_space<vmem>>, vector<9x32xf32>
    tpu.vector_store %arg15[%c27_104, %c224_105], %127 {strides = array<i32>} : memref<72x512xf32, #tpu.memory_space<vmem>>, vector<9x32xf32>,
    %129 = vector.extract_strided_slice %112 {offsets = [72, 0], sizes = [9, 32], strides = [1, 1]} : vector<144x32xf32> to vector<9x32xf32>
    %c27_106 = arith.constant 27 : index
    %c256_107 = arith.constant 256 : index
    %130 = vector.load %arg15[%c27_106, %c256_107] : memref<72x512xf32, #tpu.memory_space<vmem>>, vector<9x32xf32>
    tpu.vector_store %arg15[%c27_106, %c256_107], %129 {strides = array<i32>} : memref<72x512xf32, #tpu.memory_space<vmem>>, vector<9x32xf32>,
    %131 = vector.extract_strided_slice %112 {offsets = [81, 0], sizes = [9, 32], strides = [1, 1]} : vector<144x32xf32> to vector<9x32xf32>
    %c27_108 = arith.constant 27 : index
    %c288_109 = arith.constant 288 : index
    %132 = vector.load %arg15[%c27_108, %c288_109] : memref<72x512xf32, #tpu.memory_space<vmem>>, vector<9x32xf32>
    tpu.vector_store %arg15[%c27_108, %c288_109], %131 {strides = array<i32>} : memref<72x512xf32, #tpu.memory_space<vmem>>, vector<9x32xf32>,
    %133 = vector.extract_strided_slice %112 {offsets = [90, 0], sizes = [9, 32], strides = [1, 1]} : vector<144x32xf32> to vector<9x32xf32>
    %c27_110 = arith.constant 27 : index
    %c320_111 = arith.constant 320 : index
    %134 = vector.load %arg15[%c27_110, %c320_111] : memref<72x512xf32, #tpu.memory_space<vmem>>, vector<9x32xf32>
    tpu.vector_store %arg15[%c27_110, %c320_111], %133 {strides = array<i32>} : memref<72x512xf32, #tpu.memory_space<vmem>>, vector<9x32xf32>,
    %135 = vector.extract_strided_slice %112 {offsets = [99, 0], sizes = [9, 32], strides = [1, 1]} : vector<144x32xf32> to vector<9x32xf32>
    %c27_112 = arith.constant 27 : index
    %c352_113 = arith.constant 352 : index
    %136 = vector.load %arg15[%c27_112, %c352_113] : memref<72x512xf32, #tpu.memory_space<vmem>>, vector<9x32xf32>
    tpu.vector_store %arg15[%c27_112, %c352_113], %135 {strides = array<i32>} : memref<72x512xf32, #tpu.memory_space<vmem>>, vector<9x32xf32>,
    %137 = vector.extract_strided_slice %112 {offsets = [108, 0], sizes = [9, 32], strides = [1, 1]} : vector<144x32xf32> to vector<9x32xf32>
    %c27_114 = arith.constant 27 : index
    %c384_115 = arith.constant 384 : index
    %138 = vector.load %arg15[%c27_114, %c384_115] : memref<72x512xf32, #tpu.memory_space<vmem>>, vector<9x32xf32>
    tpu.vector_store %arg15[%c27_114, %c384_115], %137 {strides = array<i32>} : memref<72x512xf32, #tpu.memory_space<vmem>>, vector<9x32xf32>,
    %139 = vector.extract_strided_slice %112 {offsets = [117, 0], sizes = [9, 32], strides = [1, 1]} : vector<144x32xf32> to vector<9x32xf32>
    %c27_116 = arith.constant 27 : index
    %c416_117 = arith.constant 416 : index
    %140 = vector.load %arg15[%c27_116, %c416_117] : memref<72x512xf32, #tpu.memory_space<vmem>>, vector<9x32xf32>
    tpu.vector_store %arg15[%c27_116, %c416_117], %139 {strides = array<i32>} : memref<72x512xf32, #tpu.memory_space<vmem>>, vector<9x32xf32>,
    %141 = vector.extract_strided_slice %112 {offsets = [126, 0], sizes = [9, 32], strides = [1, 1]} : vector<144x32xf32> to vector<9x32xf32>
    %c27_118 = arith.constant 27 : index
    %c448_119 = arith.constant 448 : index
    %142 = vector.load %arg15[%c27_118, %c448_119] : memref<72x512xf32, #tpu.memory_space<vmem>>, vector<9x32xf32>
    tpu.vector_store %arg15[%c27_118, %c448_119], %141 {strides = array<i32>} : memref<72x512xf32, #tpu.memory_space<vmem>>, vector<9x32xf32>,
    %143 = vector.extract_strided_slice %112 {offsets = [135, 0], sizes = [9, 32], strides = [1, 1]} : vector<144x32xf32> to vector<9x32xf32>
    %c27_120 = arith.constant 27 : index
    %c480_121 = arith.constant 480 : index
    %144 = vector.load %arg15[%c27_120, %c480_121] : memref<72x512xf32, #tpu.memory_space<vmem>>, vector<9x32xf32>
    tpu.vector_store %arg15[%c27_120, %c480_121], %143 {strides = array<i32>} : memref<72x512xf32, #tpu.memory_space<vmem>>, vector<9x32xf32>,
    %145 = vector.extract_strided_slice %7 {offsets = [256, 0], sizes = [64, 32], strides = [1, 1]} : vector<512x32xf32> to vector<64x32xf32>
    %cst_122 = arith.constant dense<0.000000e+00> : vector<144x32xf32>
    %146 = tpu.matmul %8, %145, %cst_122 {dimension_numbers = #tpu.dot_dimension_numbers<[1], [0], [0], [1], [0, 0, 1, 1], [], []>} : vector<144x64xf32>, vector<64x32xf32>, vector<144x32xf32> -> vector<144x32xf32>
    %147 = vector.extract_strided_slice %146 {offsets = [0, 0], sizes = [9, 32], strides = [1, 1]} : vector<144x32xf32> to vector<9x32xf32>
    %c36 = arith.constant 36 : index
    %c0_123 = arith.constant 0 : index
    %148 = vector.load %arg15[%c36, %c0_123] : memref<72x512xf32, #tpu.memory_space<vmem>>, vector<9x32xf32>
    tpu.vector_store %arg15[%c36, %c0_123], %147 {strides = array<i32>} : memref<72x512xf32, #tpu.memory_space<vmem>>, vector<9x32xf32>,
    %149 = vector.extract_strided_slice %146 {offsets = [9, 0], sizes = [9, 32], strides = [1, 1]} : vector<144x32xf32> to vector<9x32xf32>
    %c36_124 = arith.constant 36 : index
    %c32_125 = arith.constant 32 : index
    %150 = vector.load %arg15[%c36_124, %c32_125] : memref<72x512xf32, #tpu.memory_space<vmem>>, vector<9x32xf32>
    tpu.vector_store %arg15[%c36_124, %c32_125], %149 {strides = array<i32>} : memref<72x512xf32, #tpu.memory_space<vmem>>, vector<9x32xf32>,
    %151 = vector.extract_strided_slice %146 {offsets = [18, 0], sizes = [9, 32], strides = [1, 1]} : vector<144x32xf32> to vector<9x32xf32>
    %c36_126 = arith.constant 36 : index
    %c64_127 = arith.constant 64 : index
    %152 = vector.load %arg15[%c36_126, %c64_127] : memref<72x512xf32, #tpu.memory_space<vmem>>, vector<9x32xf32>
    tpu.vector_store %arg15[%c36_126, %c64_127], %151 {strides = array<i32>} : memref<72x512xf32, #tpu.memory_space<vmem>>, vector<9x32xf32>,
    %153 = vector.extract_strided_slice %146 {offsets = [27, 0], sizes = [9, 32], strides = [1, 1]} : vector<144x32xf32> to vector<9x32xf32>
    %c36_128 = arith.constant 36 : index
    %c96_129 = arith.constant 96 : index
    %154 = vector.load %arg15[%c36_128, %c96_129] : memref<72x512xf32, #tpu.memory_space<vmem>>, vector<9x32xf32>
    tpu.vector_store %arg15[%c36_128, %c96_129], %153 {strides = array<i32>} : memref<72x512xf32, #tpu.memory_space<vmem>>, vector<9x32xf32>,
    %155 = vector.extract_strided_slice %146 {offsets = [36, 0], sizes = [9, 32], strides = [1, 1]} : vector<144x32xf32> to vector<9x32xf32>
    %c36_130 = arith.constant 36 : index
    %c128_131 = arith.constant 128 : index
    %156 = vector.load %arg15[%c36_130, %c128_131] : memref<72x512xf32, #tpu.memory_space<vmem>>, vector<9x32xf32>
    tpu.vector_store %arg15[%c36_130, %c128_131], %155 {strides = array<i32>} : memref<72x512xf32, #tpu.memory_space<vmem>>, vector<9x32xf32>,
    %157 = vector.extract_strided_slice %146 {offsets = [45, 0], sizes = [9, 32], strides = [1, 1]} : vector<144x32xf32> to vector<9x32xf32>
    %c36_132 = arith.constant 36 : index
    %c160_133 = arith.constant 160 : index
    %158 = vector.load %arg15[%c36_132, %c160_133] : memref<72x512xf32, #tpu.memory_space<vmem>>, vector<9x32xf32>
    tpu.vector_store %arg15[%c36_132, %c160_133], %157 {strides = array<i32>} : memref<72x512xf32, #tpu.memory_space<vmem>>, vector<9x32xf32>,
    %159 = vector.extract_strided_slice %146 {offsets = [54, 0], sizes = [9, 32], strides = [1, 1]} : vector<144x32xf32> to vector<9x32xf32>
    %c36_134 = arith.constant 36 : index
    %c192_135 = arith.constant 192 : index
    %160 = vector.load %arg15[%c36_134, %c192_135] : memref<72x512xf32, #tpu.memory_space<vmem>>, vector<9x32xf32>
    tpu.vector_store %arg15[%c36_134, %c192_135], %159 {strides = array<i32>} : memref<72x512xf32, #tpu.memory_space<vmem>>, vector<9x32xf32>,
    %161 = vector.extract_strided_slice %146 {offsets = [63, 0], sizes = [9, 32], strides = [1, 1]} : vector<144x32xf32> to vector<9x32xf32>
    %c36_136 = arith.constant 36 : index
    %c224_137 = arith.constant 224 : index
    %162 = vector.load %arg15[%c36_136, %c224_137] : memref<72x512xf32, #tpu.memory_space<vmem>>, vector<9x32xf32>
    tpu.vector_store %arg15[%c36_136, %c224_137], %161 {strides = array<i32>} : memref<72x512xf32, #tpu.memory_space<vmem>>, vector<9x32xf32>,
    %163 = vector.extract_strided_slice %146 {offsets = [72, 0], sizes = [9, 32], strides = [1, 1]} : vector<144x32xf32> to vector<9x32xf32>
    %c36_138 = arith.constant 36 : index
    %c256_139 = arith.constant 256 : index
    %164 = vector.load %arg15[%c36_138, %c256_139] : memref<72x512xf32, #tpu.memory_space<vmem>>, vector<9x32xf32>
    tpu.vector_store %arg15[%c36_138, %c256_139], %163 {strides = array<i32>} : memref<72x512xf32, #tpu.memory_space<vmem>>, vector<9x32xf32>,
    %165 = vector.extract_strided_slice %146 {offsets = [81, 0], sizes = [9, 32], strides = [1, 1]} : vector<144x32xf32> to vector<9x32xf32>
    %c36_140 = arith.constant 36 : index
    %c288_141 = arith.constant 288 : index
    %166 = vector.load %arg15[%c36_140, %c288_141] : memref<72x512xf32, #tpu.memory_space<vmem>>, vector<9x32xf32>
    tpu.vector_store %arg15[%c36_140, %c288_141], %165 {strides = array<i32>} : memref<72x512xf32, #tpu.memory_space<vmem>>, vector<9x32xf32>,
    %167 = vector.extract_strided_slice %146 {offsets = [90, 0], sizes = [9, 32], strides = [1, 1]} : vector<144x32xf32> to vector<9x32xf32>
    %c36_142 = arith.constant 36 : index
    %c320_143 = arith.constant 320 : index
    %168 = vector.load %arg15[%c36_142, %c320_143] : memref<72x512xf32, #tpu.memory_space<vmem>>, vector<9x32xf32>
    tpu.vector_store %arg15[%c36_142, %c320_143], %167 {strides = array<i32>} : memref<72x512xf32, #tpu.memory_space<vmem>>, vector<9x32xf32>,
    %169 = vector.extract_strided_slice %146 {offsets = [99, 0], sizes = [9, 32], strides = [1, 1]} : vector<144x32xf32> to vector<9x32xf32>
    %c36_144 = arith.constant 36 : index
    %c352_145 = arith.constant 352 : index
    %170 = vector.load %arg15[%c36_144, %c352_145] : memref<72x512xf32, #tpu.memory_space<vmem>>, vector<9x32xf32>
    tpu.vector_store %arg15[%c36_144, %c352_145], %169 {strides = array<i32>} : memref<72x512xf32, #tpu.memory_space<vmem>>, vector<9x32xf32>,
    %171 = vector.extract_strided_slice %146 {offsets = [108, 0], sizes = [9, 32], strides = [1, 1]} : vector<144x32xf32> to vector<9x32xf32>
    %c36_146 = arith.constant 36 : index
    %c384_147 = arith.constant 384 : index
    %172 = vector.load %arg15[%c36_146, %c384_147] : memref<72x512xf32, #tpu.memory_space<vmem>>, vector<9x32xf32>
    tpu.vector_store %arg15[%c36_146, %c384_147], %171 {strides = array<i32>} : memref<72x512xf32, #tpu.memory_space<vmem>>, vector<9x32xf32>,
    %173 = vector.extract_strided_slice %146 {offsets = [117, 0], sizes = [9, 32], strides = [1, 1]} : vector<144x32xf32> to vector<9x32xf32>
    %c36_148 = arith.constant 36 : index
    %c416_149 = arith.constant 416 : index
    %174 = vector.load %arg15[%c36_148, %c416_149] : memref<72x512xf32, #tpu.memory_space<vmem>>, vector<9x32xf32>
    tpu.vector_store %arg15[%c36_148, %c416_149], %173 {strides = array<i32>} : memref<72x512xf32, #tpu.memory_space<vmem>>, vector<9x32xf32>,
    %175 = vector.extract_strided_slice %146 {offsets = [126, 0], sizes = [9, 32], strides = [1, 1]} : vector<144x32xf32> to vector<9x32xf32>
    %c36_150 = arith.constant 36 : index
    %c448_151 = arith.constant 448 : index
    %176 = vector.load %arg15[%c36_150, %c448_151] : memref<72x512xf32, #tpu.memory_space<vmem>>, vector<9x32xf32>
    tpu.vector_store %arg15[%c36_150, %c448_151], %175 {strides = array<i32>} : memref<72x512xf32, #tpu.memory_space<vmem>>, vector<9x32xf32>,
    %177 = vector.extract_strided_slice %146 {offsets = [135, 0], sizes = [9, 32], strides = [1, 1]} : vector<144x32xf32> to vector<9x32xf32>
    %c36_152 = arith.constant 36 : index
    %c480_153 = arith.constant 480 : index
    %178 = vector.load %arg15[%c36_152, %c480_153] : memref<72x512xf32, #tpu.memory_space<vmem>>, vector<9x32xf32>
    tpu.vector_store %arg15[%c36_152, %c480_153], %177 {strides = array<i32>} : memref<72x512xf32, #tpu.memory_space<vmem>>, vector<9x32xf32>,
    %179 = vector.extract_strided_slice %7 {offsets = [320, 0], sizes = [64, 32], strides = [1, 1]} : vector<512x32xf32> to vector<64x32xf32>
    %cst_154 = arith.constant dense<0.000000e+00> : vector<144x32xf32>
    %180 = tpu.matmul %8, %179, %cst_154 {dimension_numbers = #tpu.dot_dimension_numbers<[1], [0], [0], [1], [0, 0, 1, 1], [], []>} : vector<144x64xf32>, vector<64x32xf32>, vector<144x32xf32> -> vector<144x32xf32>
    %181 = vector.extract_strided_slice %180 {offsets = [0, 0], sizes = [9, 32], strides = [1, 1]} : vector<144x32xf32> to vector<9x32xf32>
    %c45 = arith.constant 45 : index
    %c0_155 = arith.constant 0 : index
    %182 = vector.load %arg15[%c45, %c0_155] : memref<72x512xf32, #tpu.memory_space<vmem>>, vector<9x32xf32>
    tpu.vector_store %arg15[%c45, %c0_155], %181 {strides = array<i32>} : memref<72x512xf32, #tpu.memory_space<vmem>>, vector<9x32xf32>,
    %183 = vector.extract_strided_slice %180 {offsets = [9, 0], sizes = [9, 32], strides = [1, 1]} : vector<144x32xf32> to vector<9x32xf32>
    %c45_156 = arith.constant 45 : index
    %c32_157 = arith.constant 32 : index
    %184 = vector.load %arg15[%c45_156, %c32_157] : memref<72x512xf32, #tpu.memory_space<vmem>>, vector<9x32xf32>
    tpu.vector_store %arg15[%c45_156, %c32_157], %183 {strides = array<i32>} : memref<72x512xf32, #tpu.memory_space<vmem>>, vector<9x32xf32>,
    %185 = vector.extract_strided_slice %180 {offsets = [18, 0], sizes = [9, 32], strides = [1, 1]} : vector<144x32xf32> to vector<9x32xf32>
    %c45_158 = arith.constant 45 : index
    %c64_159 = arith.constant 64 : index
    %186 = vector.load %arg15[%c45_158, %c64_159] : memref<72x512xf32, #tpu.memory_space<vmem>>, vector<9x32xf32>
    tpu.vector_store %arg15[%c45_158, %c64_159], %185 {strides = array<i32>} : memref<72x512xf32, #tpu.memory_space<vmem>>, vector<9x32xf32>,
    %187 = vector.extract_strided_slice %180 {offsets = [27, 0], sizes = [9, 32], strides = [1, 1]} : vector<144x32xf32> to vector<9x32xf32>
    %c45_160 = arith.constant 45 : index
    %c96_161 = arith.constant 96 : index
    %188 = vector.load %arg15[%c45_160, %c96_161] : memref<72x512xf32, #tpu.memory_space<vmem>>, vector<9x32xf32>
    tpu.vector_store %arg15[%c45_160, %c96_161], %187 {strides = array<i32>} : memref<72x512xf32, #tpu.memory_space<vmem>>, vector<9x32xf32>,
    %189 = vector.extract_strided_slice %180 {offsets = [36, 0], sizes = [9, 32], strides = [1, 1]} : vector<144x32xf32> to vector<9x32xf32>
    %c45_162 = arith.constant 45 : index
    %c128_163 = arith.constant 128 : index
    %190 = vector.load %arg15[%c45_162, %c128_163] : memref<72x512xf32, #tpu.memory_space<vmem>>, vector<9x32xf32>
    tpu.vector_store %arg15[%c45_162, %c128_163], %189 {strides = array<i32>} : memref<72x512xf32, #tpu.memory_space<vmem>>, vector<9x32xf32>,
    %191 = vector.extract_strided_slice %180 {offsets = [45, 0], sizes = [9, 32], strides = [1, 1]} : vector<144x32xf32> to vector<9x32xf32>
    %c45_164 = arith.constant 45 : index
    %c160_165 = arith.constant 160 : index
    %192 = vector.load %arg15[%c45_164, %c160_165] : memref<72x512xf32, #tpu.memory_space<vmem>>, vector<9x32xf32>
    tpu.vector_store %arg15[%c45_164, %c160_165], %191 {strides = array<i32>} : memref<72x512xf32, #tpu.memory_space<vmem>>, vector<9x32xf32>,
    %193 = vector.extract_strided_slice %180 {offsets = [54, 0], sizes = [9, 32], strides = [1, 1]} : vector<144x32xf32> to vector<9x32xf32>
    %c45_166 = arith.constant 45 : index
    %c192_167 = arith.constant 192 : index
    %194 = vector.load %arg15[%c45_166, %c192_167] : memref<72x512xf32, #tpu.memory_space<vmem>>, vector<9x32xf32>
    tpu.vector_store %arg15[%c45_166, %c192_167], %193 {strides = array<i32>} : memref<72x512xf32, #tpu.memory_space<vmem>>, vector<9x32xf32>,
    %195 = vector.extract_strided_slice %180 {offsets = [63, 0], sizes = [9, 32], strides = [1, 1]} : vector<144x32xf32> to vector<9x32xf32>
    %c45_168 = arith.constant 45 : index
    %c224_169 = arith.constant 224 : index
    %196 = vector.load %arg15[%c45_168, %c224_169] : memref<72x512xf32, #tpu.memory_space<vmem>>, vector<9x32xf32>
    tpu.vector_store %arg15[%c45_168, %c224_169], %195 {strides = array<i32>} : memref<72x512xf32, #tpu.memory_space<vmem>>, vector<9x32xf32>,
    %197 = vector.extract_strided_slice %180 {offsets = [72, 0], sizes = [9, 32], strides = [1, 1]} : vector<144x32xf32> to vector<9x32xf32>
    %c45_170 = arith.constant 45 : index
    %c256_171 = arith.constant 256 : index
    %198 = vector.load %arg15[%c45_170, %c256_171] : memref<72x512xf32, #tpu.memory_space<vmem>>, vector<9x32xf32>
    tpu.vector_store %arg15[%c45_170, %c256_171], %197 {strides = array<i32>} : memref<72x512xf32, #tpu.memory_space<vmem>>, vector<9x32xf32>,
    %199 = vector.extract_strided_slice %180 {offsets = [81, 0], sizes = [9, 32], strides = [1, 1]} : vector<144x32xf32> to vector<9x32xf32>
    %c45_172 = arith.constant 45 : index
    %c288_173 = arith.constant 288 : index
    %200 = vector.load %arg15[%c45_172, %c288_173] : memref<72x512xf32, #tpu.memory_space<vmem>>, vector<9x32xf32>
    tpu.vector_store %arg15[%c45_172, %c288_173], %199 {strides = array<i32>} : memref<72x512xf32, #tpu.memory_space<vmem>>, vector<9x32xf32>,
    %201 = vector.extract_strided_slice %180 {offsets = [90, 0], sizes = [9, 32], strides = [1, 1]} : vector<144x32xf32> to vector<9x32xf32>
    %c45_174 = arith.constant 45 : index
    %c320_175 = arith.constant 320 : index
    %202 = vector.load %arg15[%c45_174, %c320_175] : memref<72x512xf32, #tpu.memory_space<vmem>>, vector<9x32xf32>
    tpu.vector_store %arg15[%c45_174, %c320_175], %201 {strides = array<i32>} : memref<72x512xf32, #tpu.memory_space<vmem>>, vector<9x32xf32>,
    %203 = vector.extract_strided_slice %180 {offsets = [99, 0], sizes = [9, 32], strides = [1, 1]} : vector<144x32xf32> to vector<9x32xf32>
    %c45_176 = arith.constant 45 : index
    %c352_177 = arith.constant 352 : index
    %204 = vector.load %arg15[%c45_176, %c352_177] : memref<72x512xf32, #tpu.memory_space<vmem>>, vector<9x32xf32>
    tpu.vector_store %arg15[%c45_176, %c352_177], %203 {strides = array<i32>} : memref<72x512xf32, #tpu.memory_space<vmem>>, vector<9x32xf32>,
    %205 = vector.extract_strided_slice %180 {offsets = [108, 0], sizes = [9, 32], strides = [1, 1]} : vector<144x32xf32> to vector<9x32xf32>
    %c45_178 = arith.constant 45 : index
    %c384_179 = arith.constant 384 : index
    %206 = vector.load %arg15[%c45_178, %c384_179] : memref<72x512xf32, #tpu.memory_space<vmem>>, vector<9x32xf32>
    tpu.vector_store %arg15[%c45_178, %c384_179], %205 {strides = array<i32>} : memref<72x512xf32, #tpu.memory_space<vmem>>, vector<9x32xf32>,
    %207 = vector.extract_strided_slice %180 {offsets = [117, 0], sizes = [9, 32], strides = [1, 1]} : vector<144x32xf32> to vector<9x32xf32>
    %c45_180 = arith.constant 45 : index
    %c416_181 = arith.constant 416 : index
    %208 = vector.load %arg15[%c45_180, %c416_181] : memref<72x512xf32, #tpu.memory_space<vmem>>, vector<9x32xf32>
    tpu.vector_store %arg15[%c45_180, %c416_181], %207 {strides = array<i32>} : memref<72x512xf32, #tpu.memory_space<vmem>>, vector<9x32xf32>,
    %209 = vector.extract_strided_slice %180 {offsets = [126, 0], sizes = [9, 32], strides = [1, 1]} : vector<144x32xf32> to vector<9x32xf32>
    %c45_182 = arith.constant 45 : index
    %c448_183 = arith.constant 448 : index
    %210 = vector.load %arg15[%c45_182, %c448_183] : memref<72x512xf32, #tpu.memory_space<vmem>>, vector<9x32xf32>
    tpu.vector_store %arg15[%c45_182, %c448_183], %209 {strides = array<i32>} : memref<72x512xf32, #tpu.memory_space<vmem>>, vector<9x32xf32>,
    %211 = vector.extract_strided_slice %180 {offsets = [135, 0], sizes = [9, 32], strides = [1, 1]} : vector<144x32xf32> to vector<9x32xf32>
    %c45_184 = arith.constant 45 : index
    %c480_185 = arith.constant 480 : index
    %212 = vector.load %arg15[%c45_184, %c480_185] : memref<72x512xf32, #tpu.memory_space<vmem>>, vector<9x32xf32>
    tpu.vector_store %arg15[%c45_184, %c480_185], %211 {strides = array<i32>} : memref<72x512xf32, #tpu.memory_space<vmem>>, vector<9x32xf32>,
    %213 = vector.extract_strided_slice %7 {offsets = [384, 0], sizes = [64, 32], strides = [1, 1]} : vector<512x32xf32> to vector<64x32xf32>
    %cst_186 = arith.constant dense<0.000000e+00> : vector<144x32xf32>
    %214 = tpu.matmul %8, %213, %cst_186 {dimension_numbers = #tpu.dot_dimension_numbers<[1], [0], [0], [1], [0, 0, 1, 1], [], []>} : vector<144x64xf32>, vector<64x32xf32>, vector<144x32xf32> -> vector<144x32xf32>
    %215 = vector.extract_strided_slice %214 {offsets = [0, 0], sizes = [9, 32], strides = [1, 1]} : vector<144x32xf32> to vector<9x32xf32>
    %c54 = arith.constant 54 : index
    %c0_187 = arith.constant 0 : index
    %216 = vector.load %arg15[%c54, %c0_187] : memref<72x512xf32, #tpu.memory_space<vmem>>, vector<9x32xf32>
    tpu.vector_store %arg15[%c54, %c0_187], %215 {strides = array<i32>} : memref<72x512xf32, #tpu.memory_space<vmem>>, vector<9x32xf32>,
    %217 = vector.extract_strided_slice %214 {offsets = [9, 0], sizes = [9, 32], strides = [1, 1]} : vector<144x32xf32> to vector<9x32xf32>
    %c54_188 = arith.constant 54 : index
    %c32_189 = arith.constant 32 : index
    %218 = vector.load %arg15[%c54_188, %c32_189] : memref<72x512xf32, #tpu.memory_space<vmem>>, vector<9x32xf32>
    tpu.vector_store %arg15[%c54_188, %c32_189], %217 {strides = array<i32>} : memref<72x512xf32, #tpu.memory_space<vmem>>, vector<9x32xf32>,
    %219 = vector.extract_strided_slice %214 {offsets = [18, 0], sizes = [9, 32], strides = [1, 1]} : vector<144x32xf32> to vector<9x32xf32>
    %c54_190 = arith.constant 54 : index
    %c64_191 = arith.constant 64 : index
    %220 = vector.load %arg15[%c54_190, %c64_191] : memref<72x512xf32, #tpu.memory_space<vmem>>, vector<9x32xf32>
    tpu.vector_store %arg15[%c54_190, %c64_191], %219 {strides = array<i32>} : memref<72x512xf32, #tpu.memory_space<vmem>>, vector<9x32xf32>,
    %221 = vector.extract_strided_slice %214 {offsets = [27, 0], sizes = [9, 32], strides = [1, 1]} : vector<144x32xf32> to vector<9x32xf32>
    %c54_192 = arith.constant 54 : index
    %c96_193 = arith.constant 96 : index
    %222 = vector.load %arg15[%c54_192, %c96_193] : memref<72x512xf32, #tpu.memory_space<vmem>>, vector<9x32xf32>
    tpu.vector_store %arg15[%c54_192, %c96_193], %221 {strides = array<i32>} : memref<72x512xf32, #tpu.memory_space<vmem>>, vector<9x32xf32>,
    %223 = vector.extract_strided_slice %214 {offsets = [36, 0], sizes = [9, 32], strides = [1, 1]} : vector<144x32xf32> to vector<9x32xf32>
    %c54_194 = arith.constant 54 : index
    %c128_195 = arith.constant 128 : index
    %224 = vector.load %arg15[%c54_194, %c128_195] : memref<72x512xf32, #tpu.memory_space<vmem>>, vector<9x32xf32>
    tpu.vector_store %arg15[%c54_194, %c128_195], %223 {strides = array<i32>} : memref<72x512xf32, #tpu.memory_space<vmem>>, vector<9x32xf32>,
    %225 = vector.extract_strided_slice %214 {offsets = [45, 0], sizes = [9, 32], strides = [1, 1]} : vector<144x32xf32> to vector<9x32xf32>
    %c54_196 = arith.constant 54 : index
    %c160_197 = arith.constant 160 : index
    %226 = vector.load %arg15[%c54_196, %c160_197] : memref<72x512xf32, #tpu.memory_space<vmem>>, vector<9x32xf32>
    tpu.vector_store %arg15[%c54_196, %c160_197], %225 {strides = array<i32>} : memref<72x512xf32, #tpu.memory_space<vmem>>, vector<9x32xf32>,
    %227 = vector.extract_strided_slice %214 {offsets = [54, 0], sizes = [9, 32], strides = [1, 1]} : vector<144x32xf32> to vector<9x32xf32>
    %c54_198 = arith.constant 54 : index
    %c192_199 = arith.constant 192 : index
    %228 = vector.load %arg15[%c54_198, %c192_199] : memref<72x512xf32, #tpu.memory_space<vmem>>, vector<9x32xf32>
    tpu.vector_store %arg15[%c54_198, %c192_199], %227 {strides = array<i32>} : memref<72x512xf32, #tpu.memory_space<vmem>>, vector<9x32xf32>,
    %229 = vector.extract_strided_slice %214 {offsets = [63, 0], sizes = [9, 32], strides = [1, 1]} : vector<144x32xf32> to vector<9x32xf32>
    %c54_200 = arith.constant 54 : index
    %c224_201 = arith.constant 224 : index
    %230 = vector.load %arg15[%c54_200, %c224_201] : memref<72x512xf32, #tpu.memory_space<vmem>>, vector<9x32xf32>
    tpu.vector_store %arg15[%c54_200, %c224_201], %229 {strides = array<i32>} : memref<72x512xf32, #tpu.memory_space<vmem>>, vector<9x32xf32>,
    %231 = vector.extract_strided_slice %214 {offsets = [72, 0], sizes = [9, 32], strides = [1, 1]} : vector<144x32xf32> to vector<9x32xf32>
    %c54_202 = arith.constant 54 : index
    %c256_203 = arith.constant 256 : index
    %232 = vector.load %arg15[%c54_202, %c256_203] : memref<72x512xf32, #tpu.memory_space<vmem>>, vector<9x32xf32>
    tpu.vector_store %arg15[%c54_202, %c256_203], %231 {strides = array<i32>} : memref<72x512xf32, #tpu.memory_space<vmem>>, vector<9x32xf32>,
    %233 = vector.extract_strided_slice %214 {offsets = [81, 0], sizes = [9, 32], strides = [1, 1]} : vector<144x32xf32> to vector<9x32xf32>
    %c54_204 = arith.constant 54 : index
    %c288_205 = arith.constant 288 : index
    %234 = vector.load %arg15[%c54_204, %c288_205] : memref<72x512xf32, #tpu.memory_space<vmem>>, vector<9x32xf32>
    tpu.vector_store %arg15[%c54_204, %c288_205], %233 {strides = array<i32>} : memref<72x512xf32, #tpu.memory_space<vmem>>, vector<9x32xf32>,
    %235 = vector.extract_strided_slice %214 {offsets = [90, 0], sizes = [9, 32], strides = [1, 1]} : vector<144x32xf32> to vector<9x32xf32>
    %c54_206 = arith.constant 54 : index
    %c320_207 = arith.constant 320 : index
    %236 = vector.load %arg15[%c54_206, %c320_207] : memref<72x512xf32, #tpu.memory_space<vmem>>, vector<9x32xf32>
    tpu.vector_store %arg15[%c54_206, %c320_207], %235 {strides = array<i32>} : memref<72x512xf32, #tpu.memory_space<vmem>>, vector<9x32xf32>,
    %237 = vector.extract_strided_slice %214 {offsets = [99, 0], sizes = [9, 32], strides = [1, 1]} : vector<144x32xf32> to vector<9x32xf32>
    %c54_208 = arith.constant 54 : index
    %c352_209 = arith.constant 352 : index
    %238 = vector.load %arg15[%c54_208, %c352_209] : memref<72x512xf32, #tpu.memory_space<vmem>>, vector<9x32xf32>
    tpu.vector_store %arg15[%c54_208, %c352_209], %237 {strides = array<i32>} : memref<72x512xf32, #tpu.memory_space<vmem>>, vector<9x32xf32>,
    %239 = vector.extract_strided_slice %214 {offsets = [108, 0], sizes = [9, 32], strides = [1, 1]} : vector<144x32xf32> to vector<9x32xf32>
    %c54_210 = arith.constant 54 : index
    %c384_211 = arith.constant 384 : index
    %240 = vector.load %arg15[%c54_210, %c384_211] : memref<72x512xf32, #tpu.memory_space<vmem>>, vector<9x32xf32>
    tpu.vector_store %arg15[%c54_210, %c384_211], %239 {strides = array<i32>} : memref<72x512xf32, #tpu.memory_space<vmem>>, vector<9x32xf32>,
    %241 = vector.extract_strided_slice %214 {offsets = [117, 0], sizes = [9, 32], strides = [1, 1]} : vector<144x32xf32> to vector<9x32xf32>
    %c54_212 = arith.constant 54 : index
    %c416_213 = arith.constant 416 : index
    %242 = vector.load %arg15[%c54_212, %c416_213] : memref<72x512xf32, #tpu.memory_space<vmem>>, vector<9x32xf32>
    tpu.vector_store %arg15[%c54_212, %c416_213], %241 {strides = array<i32>} : memref<72x512xf32, #tpu.memory_space<vmem>>, vector<9x32xf32>,
    %243 = vector.extract_strided_slice %214 {offsets = [126, 0], sizes = [9, 32], strides = [1, 1]} : vector<144x32xf32> to vector<9x32xf32>
    %c54_214 = arith.constant 54 : index
    %c448_215 = arith.constant 448 : index
    %244 = vector.load %arg15[%c54_214, %c448_215] : memref<72x512xf32, #tpu.memory_space<vmem>>, vector<9x32xf32>
    tpu.vector_store %arg15[%c54_214, %c448_215], %243 {strides = array<i32>} : memref<72x512xf32, #tpu.memory_space<vmem>>, vector<9x32xf32>,
    %245 = vector.extract_strided_slice %214 {offsets = [135, 0], sizes = [9, 32], strides = [1, 1]} : vector<144x32xf32> to vector<9x32xf32>
    %c54_216 = arith.constant 54 : index
    %c480_217 = arith.constant 480 : index
    %246 = vector.load %arg15[%c54_216, %c480_217] : memref<72x512xf32, #tpu.memory_space<vmem>>, vector<9x32xf32>
    tpu.vector_store %arg15[%c54_216, %c480_217], %245 {strides = array<i32>} : memref<72x512xf32, #tpu.memory_space<vmem>>, vector<9x32xf32>,
    %247 = vector.extract_strided_slice %7 {offsets = [448, 0], sizes = [64, 32], strides = [1, 1]} : vector<512x32xf32> to vector<64x32xf32>
    %cst_218 = arith.constant dense<0.000000e+00> : vector<144x32xf32>
    %248 = tpu.matmul %8, %247, %cst_218 {dimension_numbers = #tpu.dot_dimension_numbers<[1], [0], [0], [1], [0, 0, 1, 1], [], []>} : vector<144x64xf32>, vector<64x32xf32>, vector<144x32xf32> -> vector<144x32xf32>
    %249 = vector.extract_strided_slice %248 {offsets = [0, 0], sizes = [9, 32], strides = [1, 1]} : vector<144x32xf32> to vector<9x32xf32>
    %c63 = arith.constant 63 : index
    %c0_219 = arith.constant 0 : index
    %250 = vector.load %arg15[%c63, %c0_219] : memref<72x512xf32, #tpu.memory_space<vmem>>, vector<9x32xf32>
    tpu.vector_store %arg15[%c63, %c0_219], %249 {strides = array<i32>} : memref<72x512xf32, #tpu.memory_space<vmem>>, vector<9x32xf32>,
    %251 = vector.extract_strided_slice %248 {offsets = [9, 0], sizes = [9, 32], strides = [1, 1]} : vector<144x32xf32> to vector<9x32xf32>
    %c63_220 = arith.constant 63 : index
    %c32_221 = arith.constant 32 : index
    %252 = vector.load %arg15[%c63_220, %c32_221] : memref<72x512xf32, #tpu.memory_space<vmem>>, vector<9x32xf32>
    tpu.vector_store %arg15[%c63_220, %c32_221], %251 {strides = array<i32>} : memref<72x512xf32, #tpu.memory_space<vmem>>, vector<9x32xf32>,
    %253 = vector.extract_strided_slice %248 {offsets = [18, 0], sizes = [9, 32], strides = [1, 1]} : vector<144x32xf32> to vector<9x32xf32>
    %c63_222 = arith.constant 63 : index
    %c64_223 = arith.constant 64 : index
    %254 = vector.load %arg15[%c63_222, %c64_223] : memref<72x512xf32, #tpu.memory_space<vmem>>, vector<9x32xf32>
    tpu.vector_store %arg15[%c63_222, %c64_223], %253 {strides = array<i32>} : memref<72x512xf32, #tpu.memory_space<vmem>>, vector<9x32xf32>,
    %255 = vector.extract_strided_slice %248 {offsets = [27, 0], sizes = [9, 32], strides = [1, 1]} : vector<144x32xf32> to vector<9x32xf32>
    %c63_224 = arith.constant 63 : index
    %c96_225 = arith.constant 96 : index
    %256 = vector.load %arg15[%c63_224, %c96_225] : memref<72x512xf32, #tpu.memory_space<vmem>>, vector<9x32xf32>
    tpu.vector_store %arg15[%c63_224, %c96_225], %255 {strides = array<i32>} : memref<72x512xf32, #tpu.memory_space<vmem>>, vector<9x32xf32>,
    %257 = vector.extract_strided_slice %248 {offsets = [36, 0], sizes = [9, 32], strides = [1, 1]} : vector<144x32xf32> to vector<9x32xf32>
    %c63_226 = arith.constant 63 : index
    %c128_227 = arith.constant 128 : index
    %258 = vector.load %arg15[%c63_226, %c128_227] : memref<72x512xf32, #tpu.memory_space<vmem>>, vector<9x32xf32>
    tpu.vector_store %arg15[%c63_226, %c128_227], %257 {strides = array<i32>} : memref<72x512xf32, #tpu.memory_space<vmem>>, vector<9x32xf32>,
    %259 = vector.extract_strided_slice %248 {offsets = [45, 0], sizes = [9, 32], strides = [1, 1]} : vector<144x32xf32> to vector<9x32xf32>
    %c63_228 = arith.constant 63 : index
    %c160_229 = arith.constant 160 : index
    %260 = vector.load %arg15[%c63_228, %c160_229] : memref<72x512xf32, #tpu.memory_space<vmem>>, vector<9x32xf32>
    tpu.vector_store %arg15[%c63_228, %c160_229], %259 {strides = array<i32>} : memref<72x512xf32, #tpu.memory_space<vmem>>, vector<9x32xf32>,
    %261 = vector.extract_strided_slice %248 {offsets = [54, 0], sizes = [9, 32], strides = [1, 1]} : vector<144x32xf32> to vector<9x32xf32>
    %c63_230 = arith.constant 63 : index
    %c192_231 = arith.constant 192 : index
    %262 = vector.load %arg15[%c63_230, %c192_231] : memref<72x512xf32, #tpu.memory_space<vmem>>, vector<9x32xf32>
    tpu.vector_store %arg15[%c63_230, %c192_231], %261 {strides = array<i32>} : memref<72x512xf32, #tpu.memory_space<vmem>>, vector<9x32xf32>,
    %263 = vector.extract_strided_slice %248 {offsets = [63, 0], sizes = [9, 32], strides = [1, 1]} : vector<144x32xf32> to vector<9x32xf32>
    %c63_232 = arith.constant 63 : index
    %c224_233 = arith.constant 224 : index
    %264 = vector.load %arg15[%c63_232, %c224_233] : memref<72x512xf32, #tpu.memory_space<vmem>>, vector<9x32xf32>
    tpu.vector_store %arg15[%c63_232, %c224_233], %263 {strides = array<i32>} : memref<72x512xf32, #tpu.memory_space<vmem>>, vector<9x32xf32>,
    %265 = vector.extract_strided_slice %248 {offsets = [72, 0], sizes = [9, 32], strides = [1, 1]} : vector<144x32xf32> to vector<9x32xf32>
    %c63_234 = arith.constant 63 : index
    %c256_235 = arith.constant 256 : index
    %266 = vector.load %arg15[%c63_234, %c256_235] : memref<72x512xf32, #tpu.memory_space<vmem>>, vector<9x32xf32>
    tpu.vector_store %arg15[%c63_234, %c256_235], %265 {strides = array<i32>} : memref<72x512xf32, #tpu.memory_space<vmem>>, vector<9x32xf32>,
    %267 = vector.extract_strided_slice %248 {offsets = [81, 0], sizes = [9, 32], strides = [1, 1]} : vector<144x32xf32> to vector<9x32xf32>
    %c63_236 = arith.constant 63 : index
    %c288_237 = arith.constant 288 : index
    %268 = vector.load %arg15[%c63_236, %c288_237] : memref<72x512xf32, #tpu.memory_space<vmem>>, vector<9x32xf32>
    tpu.vector_store %arg15[%c63_236, %c288_237], %267 {strides = array<i32>} : memref<72x512xf32, #tpu.memory_space<vmem>>, vector<9x32xf32>,
    %269 = vector.extract_strided_slice %248 {offsets = [90, 0], sizes = [9, 32], strides = [1, 1]} : vector<144x32xf32> to vector<9x32xf32>
    %c63_238 = arith.constant 63 : index
    %c320_239 = arith.constant 320 : index
    %270 = vector.load %arg15[%c63_238, %c320_239] : memref<72x512xf32, #tpu.memory_space<vmem>>, vector<9x32xf32>
    tpu.vector_store %arg15[%c63_238, %c320_239], %269 {strides = array<i32>} : memref<72x512xf32, #tpu.memory_space<vmem>>, vector<9x32xf32>,
    %271 = vector.extract_strided_slice %248 {offsets = [99, 0], sizes = [9, 32], strides = [1, 1]} : vector<144x32xf32> to vector<9x32xf32>
    %c63_240 = arith.constant 63 : index
    %c352_241 = arith.constant 352 : index
    %272 = vector.load %arg15[%c63_240, %c352_241] : memref<72x512xf32, #tpu.memory_space<vmem>>, vector<9x32xf32>
    tpu.vector_store %arg15[%c63_240, %c352_241], %271 {strides = array<i32>} : memref<72x512xf32, #tpu.memory_space<vmem>>, vector<9x32xf32>,
    %273 = vector.extract_strided_slice %248 {offsets = [108, 0], sizes = [9, 32], strides = [1, 1]} : vector<144x32xf32> to vector<9x32xf32>
    %c63_242 = arith.constant 63 : index
    %c384_243 = arith.constant 384 : index
    %274 = vector.load %arg15[%c63_242, %c384_243] : memref<72x512xf32, #tpu.memory_space<vmem>>, vector<9x32xf32>
    tpu.vector_store %arg15[%c63_242, %c384_243], %273 {strides = array<i32>} : memref<72x512xf32, #tpu.memory_space<vmem>>, vector<9x32xf32>,
    %275 = vector.extract_strided_slice %248 {offsets = [117, 0], sizes = [9, 32], strides = [1, 1]} : vector<144x32xf32> to vector<9x32xf32>
    %c63_244 = arith.constant 63 : index
    %c416_245 = arith.constant 416 : index
    %276 = vector.load %arg15[%c63_244, %c416_245] : memref<72x512xf32, #tpu.memory_space<vmem>>, vector<9x32xf32>
    tpu.vector_store %arg15[%c63_244, %c416_245], %275 {strides = array<i32>} : memref<72x512xf32, #tpu.memory_space<vmem>>, vector<9x32xf32>,
    %277 = vector.extract_strided_slice %248 {offsets = [126, 0], sizes = [9, 32], strides = [1, 1]} : vector<144x32xf32> to vector<9x32xf32>
    %c63_246 = arith.constant 63 : index
    %c448_247 = arith.constant 448 : index
    %278 = vector.load %arg15[%c63_246, %c448_247] : memref<72x512xf32, #tpu.memory_space<vmem>>, vector<9x32xf32>
    tpu.vector_store %arg15[%c63_246, %c448_247], %277 {strides = array<i32>} : memref<72x512xf32, #tpu.memory_space<vmem>>, vector<9x32xf32>,
    %279 = vector.extract_strided_slice %248 {offsets = [135, 0], sizes = [9, 32], strides = [1, 1]} : vector<144x32xf32> to vector<9x32xf32>
    %c63_248 = arith.constant 63 : index
    %c480_249 = arith.constant 480 : index
    %280 = vector.load %arg15[%c63_248, %c480_249] : memref<72x512xf32, #tpu.memory_space<vmem>>, vector<9x32xf32>
    tpu.vector_store %arg15[%c63_248, %c480_249], %279 {strides = array<i32>} : memref<72x512xf32, #tpu.memory_space<vmem>>, vector<9x32xf32>,
    %c0_250 = arith.constant 0 : index
    %c0_251 = arith.constant 0 : index
    %281 = vector.load %arg15[%c0_250, %c0_251] : memref<72x512xf32, #tpu.memory_space<vmem>>, vector<72x512xf32>
    %c0_252 = arith.constant 0 : index
    %c0_253 = arith.constant 0 : index
    %282 = vector.load %arg5[%c0_252, %c0_253] : memref<512x64xf32, #tpu.memory_space<vmem>>, vector<512x64xf32>
    %cst_254 = arith.constant dense<0.000000e+00> : vector<72x64xf32>
    %283 = tpu.matmul %281, %282, %cst_254 {dimension_numbers = #tpu.dot_dimension_numbers<[1], [0], [0], [1], [0, 0, 1, 1], [], []>} : vector<72x512xf32>, vector<512x64xf32>, vector<72x64xf32> -> vector<72x64xf32>
    %c0_255 = arith.constant 0 : index
    %c0_256 = arith.constant 0 : index
    %284 = vector.load %arg6[%c0_255, %c0_256] : memref<1x64xf32, #tpu.memory_space<vmem>>, vector<1x64xf32>
    %285 = vector.broadcast %284 : vector<1x64xf32> to vector<72x64xf32>
    %286 = arith.addf %283, %285 : vector<72x64xf32>
    %cst_257 = arith.constant 0.000000e+00 : f32
    %287 = vector.broadcast %cst_257 : f32 to vector<72x64xf32>
    %288 = arith.maximumf %286, %287 : vector<72x64xf32>
    %c0_258 = arith.constant 0 : index
    %c0_259 = arith.constant 0 : index
    %289 = vector.load %arg7[%c0_258, %c0_259] : memref<9x9xf32, #tpu.memory_space<vmem>>, vector<9x9xf32>
    %290 = vector.extract_strided_slice %288 {offsets = [0, 0], sizes = [9, 64], strides = [1, 1]} : vector<72x64xf32> to vector<9x64xf32>
    %cst_260 = arith.constant dense<0.000000e+00> : vector<9x64xf32>
    %291 = tpu.matmul %289, %290, %cst_260 {dimension_numbers = #tpu.dot_dimension_numbers<[1], [0], [0], [1], [0, 0, 1, 1], [], []>} : vector<9x9xf32>, vector<9x64xf32>, vector<9x64xf32> -> vector<9x64xf32>
    %292 = vector.extract_strided_slice %291 {offsets = [0, 0], sizes = [1, 64], strides = [1, 1]} : vector<9x64xf32> to vector<1x64xf32>
    %c0_261 = arith.constant 0 : index
    %c0_262 = arith.constant 0 : index
    %293 = vector.load %arg16[%c0_261, %c0_262] : memref<8x576xf32, #tpu.memory_space<vmem>>, vector<1x64xf32>
    tpu.vector_store %arg16[%c0_261, %c0_262], %292 {strides = array<i32>} : memref<8x576xf32, #tpu.memory_space<vmem>>, vector<1x64xf32>,
    %294 = vector.extract_strided_slice %291 {offsets = [1, 0], sizes = [1, 64], strides = [1, 1]} : vector<9x64xf32> to vector<1x64xf32>
    %c0_263 = arith.constant 0 : index
    %c64_264 = arith.constant 64 : index
    %295 = vector.load %arg16[%c0_263, %c64_264] : memref<8x576xf32, #tpu.memory_space<vmem>>, vector<1x64xf32>
    tpu.vector_store %arg16[%c0_263, %c64_264], %294 {strides = array<i32>} : memref<8x576xf32, #tpu.memory_space<vmem>>, vector<1x64xf32>,
    %296 = vector.extract_strided_slice %291 {offsets = [2, 0], sizes = [1, 64], strides = [1, 1]} : vector<9x64xf32> to vector<1x64xf32>
    %c0_265 = arith.constant 0 : index
    %c128_266 = arith.constant 128 : index
    %297 = vector.load %arg16[%c0_265, %c128_266] : memref<8x576xf32, #tpu.memory_space<vmem>>, vector<1x64xf32>
    tpu.vector_store %arg16[%c0_265, %c128_266], %296 {strides = array<i32>} : memref<8x576xf32, #tpu.memory_space<vmem>>, vector<1x64xf32>,
    %298 = vector.extract_strided_slice %291 {offsets = [3, 0], sizes = [1, 64], strides = [1, 1]} : vector<9x64xf32> to vector<1x64xf32>
    %c0_267 = arith.constant 0 : index
    %c192_268 = arith.constant 192 : index
    %299 = vector.load %arg16[%c0_267, %c192_268] : memref<8x576xf32, #tpu.memory_space<vmem>>, vector<1x64xf32>
    tpu.vector_store %arg16[%c0_267, %c192_268], %298 {strides = array<i32>} : memref<8x576xf32, #tpu.memory_space<vmem>>, vector<1x64xf32>,
    %300 = vector.extract_strided_slice %291 {offsets = [4, 0], sizes = [1, 64], strides = [1, 1]} : vector<9x64xf32> to vector<1x64xf32>
    %c0_269 = arith.constant 0 : index
    %c256_270 = arith.constant 256 : index
    %301 = vector.load %arg16[%c0_269, %c256_270] : memref<8x576xf32, #tpu.memory_space<vmem>>, vector<1x64xf32>
    tpu.vector_store %arg16[%c0_269, %c256_270], %300 {strides = array<i32>} : memref<8x576xf32, #tpu.memory_space<vmem>>, vector<1x64xf32>,
    %302 = vector.extract_strided_slice %291 {offsets = [5, 0], sizes = [1, 64], strides = [1, 1]} : vector<9x64xf32> to vector<1x64xf32>
    %c0_271 = arith.constant 0 : index
    %c320_272 = arith.constant 320 : index
    %303 = vector.load %arg16[%c0_271, %c320_272] : memref<8x576xf32, #tpu.memory_space<vmem>>, vector<1x64xf32>
    tpu.vector_store %arg16[%c0_271, %c320_272], %302 {strides = array<i32>} : memref<8x576xf32, #tpu.memory_space<vmem>>, vector<1x64xf32>,
    %304 = vector.extract_strided_slice %291 {offsets = [6, 0], sizes = [1, 64], strides = [1, 1]} : vector<9x64xf32> to vector<1x64xf32>
    %c0_273 = arith.constant 0 : index
    %c384_274 = arith.constant 384 : index
    %305 = vector.load %arg16[%c0_273, %c384_274] : memref<8x576xf32, #tpu.memory_space<vmem>>, vector<1x64xf32>
    tpu.vector_store %arg16[%c0_273, %c384_274], %304 {strides = array<i32>} : memref<8x576xf32, #tpu.memory_space<vmem>>, vector<1x64xf32>,
    %306 = vector.extract_strided_slice %291 {offsets = [7, 0], sizes = [1, 64], strides = [1, 1]} : vector<9x64xf32> to vector<1x64xf32>
    %c0_275 = arith.constant 0 : index
    %c448_276 = arith.constant 448 : index
    %307 = vector.load %arg16[%c0_275, %c448_276] : memref<8x576xf32, #tpu.memory_space<vmem>>, vector<1x64xf32>
    tpu.vector_store %arg16[%c0_275, %c448_276], %306 {strides = array<i32>} : memref<8x576xf32, #tpu.memory_space<vmem>>, vector<1x64xf32>,
    %308 = vector.extract_strided_slice %291 {offsets = [8, 0], sizes = [1, 64], strides = [1, 1]} : vector<9x64xf32> to vector<1x64xf32>
    %c0_277 = arith.constant 0 : index
    %c512 = arith.constant 512 : index
    %309 = vector.load %arg16[%c0_277, %c512] : memref<8x576xf32, #tpu.memory_space<vmem>>, vector<1x64xf32>
    tpu.vector_store %arg16[%c0_277, %c512], %308 {strides = array<i32>} : memref<8x576xf32, #tpu.memory_space<vmem>>, vector<1x64xf32>,
    %310 = vector.extract_strided_slice %288 {offsets = [9, 0], sizes = [9, 64], strides = [1, 1]} : vector<72x64xf32> to vector<9x64xf32>
    %cst_278 = arith.constant dense<0.000000e+00> : vector<9x64xf32>
    %311 = tpu.matmul %289, %310, %cst_278 {dimension_numbers = #tpu.dot_dimension_numbers<[1], [0], [0], [1], [0, 0, 1, 1], [], []>} : vector<9x9xf32>, vector<9x64xf32>, vector<9x64xf32> -> vector<9x64xf32>
    %312 = vector.extract_strided_slice %311 {offsets = [0, 0], sizes = [1, 64], strides = [1, 1]} : vector<9x64xf32> to vector<1x64xf32>
    %c1 = arith.constant 1 : index
    %c0_279 = arith.constant 0 : index
    %313 = vector.load %arg16[%c1, %c0_279] : memref<8x576xf32, #tpu.memory_space<vmem>>, vector<1x64xf32>
    tpu.vector_store %arg16[%c1, %c0_279], %312 {strides = array<i32>} : memref<8x576xf32, #tpu.memory_space<vmem>>, vector<1x64xf32>,
    %314 = vector.extract_strided_slice %311 {offsets = [1, 0], sizes = [1, 64], strides = [1, 1]} : vector<9x64xf32> to vector<1x64xf32>
    %c1_280 = arith.constant 1 : index
    %c64_281 = arith.constant 64 : index
    %315 = vector.load %arg16[%c1_280, %c64_281] : memref<8x576xf32, #tpu.memory_space<vmem>>, vector<1x64xf32>
    tpu.vector_store %arg16[%c1_280, %c64_281], %314 {strides = array<i32>} : memref<8x576xf32, #tpu.memory_space<vmem>>, vector<1x64xf32>,
    %316 = vector.extract_strided_slice %311 {offsets = [2, 0], sizes = [1, 64], strides = [1, 1]} : vector<9x64xf32> to vector<1x64xf32>
    %c1_282 = arith.constant 1 : index
    %c128_283 = arith.constant 128 : index
    %317 = vector.load %arg16[%c1_282, %c128_283] : memref<8x576xf32, #tpu.memory_space<vmem>>, vector<1x64xf32>
    tpu.vector_store %arg16[%c1_282, %c128_283], %316 {strides = array<i32>} : memref<8x576xf32, #tpu.memory_space<vmem>>, vector<1x64xf32>,
    %318 = vector.extract_strided_slice %311 {offsets = [3, 0], sizes = [1, 64], strides = [1, 1]} : vector<9x64xf32> to vector<1x64xf32>
    %c1_284 = arith.constant 1 : index
    %c192_285 = arith.constant 192 : index
    %319 = vector.load %arg16[%c1_284, %c192_285] : memref<8x576xf32, #tpu.memory_space<vmem>>, vector<1x64xf32>
    tpu.vector_store %arg16[%c1_284, %c192_285], %318 {strides = array<i32>} : memref<8x576xf32, #tpu.memory_space<vmem>>, vector<1x64xf32>,
    %320 = vector.extract_strided_slice %311 {offsets = [4, 0], sizes = [1, 64], strides = [1, 1]} : vector<9x64xf32> to vector<1x64xf32>
    %c1_286 = arith.constant 1 : index
    %c256_287 = arith.constant 256 : index
    %321 = vector.load %arg16[%c1_286, %c256_287] : memref<8x576xf32, #tpu.memory_space<vmem>>, vector<1x64xf32>
    tpu.vector_store %arg16[%c1_286, %c256_287], %320 {strides = array<i32>} : memref<8x576xf32, #tpu.memory_space<vmem>>, vector<1x64xf32>,
    %322 = vector.extract_strided_slice %311 {offsets = [5, 0], sizes = [1, 64], strides = [1, 1]} : vector<9x64xf32> to vector<1x64xf32>
    %c1_288 = arith.constant 1 : index
    %c320_289 = arith.constant 320 : index
    %323 = vector.load %arg16[%c1_288, %c320_289] : memref<8x576xf32, #tpu.memory_space<vmem>>, vector<1x64xf32>
    tpu.vector_store %arg16[%c1_288, %c320_289], %322 {strides = array<i32>} : memref<8x576xf32, #tpu.memory_space<vmem>>, vector<1x64xf32>,
    %324 = vector.extract_strided_slice %311 {offsets = [6, 0], sizes = [1, 64], strides = [1, 1]} : vector<9x64xf32> to vector<1x64xf32>
    %c1_290 = arith.constant 1 : index
    %c384_291 = arith.constant 384 : index
    %325 = vector.load %arg16[%c1_290, %c384_291] : memref<8x576xf32, #tpu.memory_space<vmem>>, vector<1x64xf32>
    tpu.vector_store %arg16[%c1_290, %c384_291], %324 {strides = array<i32>} : memref<8x576xf32, #tpu.memory_space<vmem>>, vector<1x64xf32>,
    %326 = vector.extract_strided_slice %311 {offsets = [7, 0], sizes = [1, 64], strides = [1, 1]} : vector<9x64xf32> to vector<1x64xf32>
    %c1_292 = arith.constant 1 : index
    %c448_293 = arith.constant 448 : index
    %327 = vector.load %arg16[%c1_292, %c448_293] : memref<8x576xf32, #tpu.memory_space<vmem>>, vector<1x64xf32>
    tpu.vector_store %arg16[%c1_292, %c448_293], %326 {strides = array<i32>} : memref<8x576xf32, #tpu.memory_space<vmem>>, vector<1x64xf32>,
    %328 = vector.extract_strided_slice %311 {offsets = [8, 0], sizes = [1, 64], strides = [1, 1]} : vector<9x64xf32> to vector<1x64xf32>
    %c1_294 = arith.constant 1 : index
    %c512_295 = arith.constant 512 : index
    %329 = vector.load %arg16[%c1_294, %c512_295] : memref<8x576xf32, #tpu.memory_space<vmem>>, vector<1x64xf32>
    tpu.vector_store %arg16[%c1_294, %c512_295], %328 {strides = array<i32>} : memref<8x576xf32, #tpu.memory_space<vmem>>, vector<1x64xf32>,
    %330 = vector.extract_strided_slice %288 {offsets = [18, 0], sizes = [9, 64], strides = [1, 1]} : vector<72x64xf32> to vector<9x64xf32>
    %cst_296 = arith.constant dense<0.000000e+00> : vector<9x64xf32>
    %331 = tpu.matmul %289, %330, %cst_296 {dimension_numbers = #tpu.dot_dimension_numbers<[1], [0], [0], [1], [0, 0, 1, 1], [], []>} : vector<9x9xf32>, vector<9x64xf32>, vector<9x64xf32> -> vector<9x64xf32>
    %332 = vector.extract_strided_slice %331 {offsets = [0, 0], sizes = [1, 64], strides = [1, 1]} : vector<9x64xf32> to vector<1x64xf32>
    %c2 = arith.constant 2 : index
    %c0_297 = arith.constant 0 : index
    %333 = vector.load %arg16[%c2, %c0_297] : memref<8x576xf32, #tpu.memory_space<vmem>>, vector<1x64xf32>
    tpu.vector_store %arg16[%c2, %c0_297], %332 {strides = array<i32>} : memref<8x576xf32, #tpu.memory_space<vmem>>, vector<1x64xf32>,
    %334 = vector.extract_strided_slice %331 {offsets = [1, 0], sizes = [1, 64], strides = [1, 1]} : vector<9x64xf32> to vector<1x64xf32>
    %c2_298 = arith.constant 2 : index
    %c64_299 = arith.constant 64 : index
    %335 = vector.load %arg16[%c2_298, %c64_299] : memref<8x576xf32, #tpu.memory_space<vmem>>, vector<1x64xf32>
    tpu.vector_store %arg16[%c2_298, %c64_299], %334 {strides = array<i32>} : memref<8x576xf32, #tpu.memory_space<vmem>>, vector<1x64xf32>,
    %336 = vector.extract_strided_slice %331 {offsets = [2, 0], sizes = [1, 64], strides = [1, 1]} : vector<9x64xf32> to vector<1x64xf32>
    %c2_300 = arith.constant 2 : index
    %c128_301 = arith.constant 128 : index
    %337 = vector.load %arg16[%c2_300, %c128_301] : memref<8x576xf32, #tpu.memory_space<vmem>>, vector<1x64xf32>
    tpu.vector_store %arg16[%c2_300, %c128_301], %336 {strides = array<i32>} : memref<8x576xf32, #tpu.memory_space<vmem>>, vector<1x64xf32>,
    %338 = vector.extract_strided_slice %331 {offsets = [3, 0], sizes = [1, 64], strides = [1, 1]} : vector<9x64xf32> to vector<1x64xf32>
    %c2_302 = arith.constant 2 : index
    %c192_303 = arith.constant 192 : index
    %339 = vector.load %arg16[%c2_302, %c192_303] : memref<8x576xf32, #tpu.memory_space<vmem>>, vector<1x64xf32>
    tpu.vector_store %arg16[%c2_302, %c192_303], %338 {strides = array<i32>} : memref<8x576xf32, #tpu.memory_space<vmem>>, vector<1x64xf32>,
    %340 = vector.extract_strided_slice %331 {offsets = [4, 0], sizes = [1, 64], strides = [1, 1]} : vector<9x64xf32> to vector<1x64xf32>
    %c2_304 = arith.constant 2 : index
    %c256_305 = arith.constant 256 : index
    %341 = vector.load %arg16[%c2_304, %c256_305] : memref<8x576xf32, #tpu.memory_space<vmem>>, vector<1x64xf32>
    tpu.vector_store %arg16[%c2_304, %c256_305], %340 {strides = array<i32>} : memref<8x576xf32, #tpu.memory_space<vmem>>, vector<1x64xf32>,
    %342 = vector.extract_strided_slice %331 {offsets = [5, 0], sizes = [1, 64], strides = [1, 1]} : vector<9x64xf32> to vector<1x64xf32>
    %c2_306 = arith.constant 2 : index
    %c320_307 = arith.constant 320 : index
    %343 = vector.load %arg16[%c2_306, %c320_307] : memref<8x576xf32, #tpu.memory_space<vmem>>, vector<1x64xf32>
    tpu.vector_store %arg16[%c2_306, %c320_307], %342 {strides = array<i32>} : memref<8x576xf32, #tpu.memory_space<vmem>>, vector<1x64xf32>,
    %344 = vector.extract_strided_slice %331 {offsets = [6, 0], sizes = [1, 64], strides = [1, 1]} : vector<9x64xf32> to vector<1x64xf32>
    %c2_308 = arith.constant 2 : index
    %c384_309 = arith.constant 384 : index
    %345 = vector.load %arg16[%c2_308, %c384_309] : memref<8x576xf32, #tpu.memory_space<vmem>>, vector<1x64xf32>
    tpu.vector_store %arg16[%c2_308, %c384_309], %344 {strides = array<i32>} : memref<8x576xf32, #tpu.memory_space<vmem>>, vector<1x64xf32>,
    %346 = vector.extract_strided_slice %331 {offsets = [7, 0], sizes = [1, 64], strides = [1, 1]} : vector<9x64xf32> to vector<1x64xf32>
    %c2_310 = arith.constant 2 : index
    %c448_311 = arith.constant 448 : index
    %347 = vector.load %arg16[%c2_310, %c448_311] : memref<8x576xf32, #tpu.memory_space<vmem>>, vector<1x64xf32>
    tpu.vector_store %arg16[%c2_310, %c448_311], %346 {strides = array<i32>} : memref<8x576xf32, #tpu.memory_space<vmem>>, vector<1x64xf32>,
    %348 = vector.extract_strided_slice %331 {offsets = [8, 0], sizes = [1, 64], strides = [1, 1]} : vector<9x64xf32> to vector<1x64xf32>
    %c2_312 = arith.constant 2 : index
    %c512_313 = arith.constant 512 : index
    %349 = vector.load %arg16[%c2_312, %c512_313] : memref<8x576xf32, #tpu.memory_space<vmem>>, vector<1x64xf32>
    tpu.vector_store %arg16[%c2_312, %c512_313], %348 {strides = array<i32>} : memref<8x576xf32, #tpu.memory_space<vmem>>, vector<1x64xf32>,
    %350 = vector.extract_strided_slice %288 {offsets = [27, 0], sizes = [9, 64], strides = [1, 1]} : vector<72x64xf32> to vector<9x64xf32>
    %cst_314 = arith.constant dense<0.000000e+00> : vector<9x64xf32>
    %351 = tpu.matmul %289, %350, %cst_314 {dimension_numbers = #tpu.dot_dimension_numbers<[1], [0], [0], [1], [0, 0, 1, 1], [], []>} : vector<9x9xf32>, vector<9x64xf32>, vector<9x64xf32> -> vector<9x64xf32>
    %352 = vector.extract_strided_slice %351 {offsets = [0, 0], sizes = [1, 64], strides = [1, 1]} : vector<9x64xf32> to vector<1x64xf32>
    %c3 = arith.constant 3 : index
    %c0_315 = arith.constant 0 : index
    %353 = vector.load %arg16[%c3, %c0_315] : memref<8x576xf32, #tpu.memory_space<vmem>>, vector<1x64xf32>
    tpu.vector_store %arg16[%c3, %c0_315], %352 {strides = array<i32>} : memref<8x576xf32, #tpu.memory_space<vmem>>, vector<1x64xf32>,
    %354 = vector.extract_strided_slice %351 {offsets = [1, 0], sizes = [1, 64], strides = [1, 1]} : vector<9x64xf32> to vector<1x64xf32>
    %c3_316 = arith.constant 3 : index
    %c64_317 = arith.constant 64 : index
    %355 = vector.load %arg16[%c3_316, %c64_317] : memref<8x576xf32, #tpu.memory_space<vmem>>, vector<1x64xf32>
    tpu.vector_store %arg16[%c3_316, %c64_317], %354 {strides = array<i32>} : memref<8x576xf32, #tpu.memory_space<vmem>>, vector<1x64xf32>,
    %356 = vector.extract_strided_slice %351 {offsets = [2, 0], sizes = [1, 64], strides = [1, 1]} : vector<9x64xf32> to vector<1x64xf32>
    %c3_318 = arith.constant 3 : index
    %c128_319 = arith.constant 128 : index
    %357 = vector.load %arg16[%c3_318, %c128_319] : memref<8x576xf32, #tpu.memory_space<vmem>>, vector<1x64xf32>
    tpu.vector_store %arg16[%c3_318, %c128_319], %356 {strides = array<i32>} : memref<8x576xf32, #tpu.memory_space<vmem>>, vector<1x64xf32>,
    %358 = vector.extract_strided_slice %351 {offsets = [3, 0], sizes = [1, 64], strides = [1, 1]} : vector<9x64xf32> to vector<1x64xf32>
    %c3_320 = arith.constant 3 : index
    %c192_321 = arith.constant 192 : index
    %359 = vector.load %arg16[%c3_320, %c192_321] : memref<8x576xf32, #tpu.memory_space<vmem>>, vector<1x64xf32>
    tpu.vector_store %arg16[%c3_320, %c192_321], %358 {strides = array<i32>} : memref<8x576xf32, #tpu.memory_space<vmem>>, vector<1x64xf32>,
    %360 = vector.extract_strided_slice %351 {offsets = [4, 0], sizes = [1, 64], strides = [1, 1]} : vector<9x64xf32> to vector<1x64xf32>
    %c3_322 = arith.constant 3 : index
    %c256_323 = arith.constant 256 : index
    %361 = vector.load %arg16[%c3_322, %c256_323] : memref<8x576xf32, #tpu.memory_space<vmem>>, vector<1x64xf32>
    tpu.vector_store %arg16[%c3_322, %c256_323], %360 {strides = array<i32>} : memref<8x576xf32, #tpu.memory_space<vmem>>, vector<1x64xf32>,
    %362 = vector.extract_strided_slice %351 {offsets = [5, 0], sizes = [1, 64], strides = [1, 1]} : vector<9x64xf32> to vector<1x64xf32>
    %c3_324 = arith.constant 3 : index
    %c320_325 = arith.constant 320 : index
    %363 = vector.load %arg16[%c3_324, %c320_325] : memref<8x576xf32, #tpu.memory_space<vmem>>, vector<1x64xf32>
    tpu.vector_store %arg16[%c3_324, %c320_325], %362 {strides = array<i32>} : memref<8x576xf32, #tpu.memory_space<vmem>>, vector<1x64xf32>,
    %364 = vector.extract_strided_slice %351 {offsets = [6, 0], sizes = [1, 64], strides = [1, 1]} : vector<9x64xf32> to vector<1x64xf32>
    %c3_326 = arith.constant 3 : index
    %c384_327 = arith.constant 384 : index
    %365 = vector.load %arg16[%c3_326, %c384_327] : memref<8x576xf32, #tpu.memory_space<vmem>>, vector<1x64xf32>
    tpu.vector_store %arg16[%c3_326, %c384_327], %364 {strides = array<i32>} : memref<8x576xf32, #tpu.memory_space<vmem>>, vector<1x64xf32>,
    %366 = vector.extract_strided_slice %351 {offsets = [7, 0], sizes = [1, 64], strides = [1, 1]} : vector<9x64xf32> to vector<1x64xf32>
    %c3_328 = arith.constant 3 : index
    %c448_329 = arith.constant 448 : index
    %367 = vector.load %arg16[%c3_328, %c448_329] : memref<8x576xf32, #tpu.memory_space<vmem>>, vector<1x64xf32>
    tpu.vector_store %arg16[%c3_328, %c448_329], %366 {strides = array<i32>} : memref<8x576xf32, #tpu.memory_space<vmem>>, vector<1x64xf32>,
    %368 = vector.extract_strided_slice %351 {offsets = [8, 0], sizes = [1, 64], strides = [1, 1]} : vector<9x64xf32> to vector<1x64xf32>
    %c3_330 = arith.constant 3 : index
    %c512_331 = arith.constant 512 : index
    %369 = vector.load %arg16[%c3_330, %c512_331] : memref<8x576xf32, #tpu.memory_space<vmem>>, vector<1x64xf32>
    tpu.vector_store %arg16[%c3_330, %c512_331], %368 {strides = array<i32>} : memref<8x576xf32, #tpu.memory_space<vmem>>, vector<1x64xf32>,
    %370 = vector.extract_strided_slice %288 {offsets = [36, 0], sizes = [9, 64], strides = [1, 1]} : vector<72x64xf32> to vector<9x64xf32>
    %cst_332 = arith.constant dense<0.000000e+00> : vector<9x64xf32>
    %371 = tpu.matmul %289, %370, %cst_332 {dimension_numbers = #tpu.dot_dimension_numbers<[1], [0], [0], [1], [0, 0, 1, 1], [], []>} : vector<9x9xf32>, vector<9x64xf32>, vector<9x64xf32> -> vector<9x64xf32>
    %372 = vector.extract_strided_slice %371 {offsets = [0, 0], sizes = [1, 64], strides = [1, 1]} : vector<9x64xf32> to vector<1x64xf32>
    %c4 = arith.constant 4 : index
    %c0_333 = arith.constant 0 : index
    %373 = vector.load %arg16[%c4, %c0_333] : memref<8x576xf32, #tpu.memory_space<vmem>>, vector<1x64xf32>
    tpu.vector_store %arg16[%c4, %c0_333], %372 {strides = array<i32>} : memref<8x576xf32, #tpu.memory_space<vmem>>, vector<1x64xf32>,
    %374 = vector.extract_strided_slice %371 {offsets = [1, 0], sizes = [1, 64], strides = [1, 1]} : vector<9x64xf32> to vector<1x64xf32>
    %c4_334 = arith.constant 4 : index
    %c64_335 = arith.constant 64 : index
    %375 = vector.load %arg16[%c4_334, %c64_335] : memref<8x576xf32, #tpu.memory_space<vmem>>, vector<1x64xf32>
    tpu.vector_store %arg16[%c4_334, %c64_335], %374 {strides = array<i32>} : memref<8x576xf32, #tpu.memory_space<vmem>>, vector<1x64xf32>,
    %376 = vector.extract_strided_slice %371 {offsets = [2, 0], sizes = [1, 64], strides = [1, 1]} : vector<9x64xf32> to vector<1x64xf32>
    %c4_336 = arith.constant 4 : index
    %c128_337 = arith.constant 128 : index
    %377 = vector.load %arg16[%c4_336, %c128_337] : memref<8x576xf32, #tpu.memory_space<vmem>>, vector<1x64xf32>
    tpu.vector_store %arg16[%c4_336, %c128_337], %376 {strides = array<i32>} : memref<8x576xf32, #tpu.memory_space<vmem>>, vector<1x64xf32>,
    %378 = vector.extract_strided_slice %371 {offsets = [3, 0], sizes = [1, 64], strides = [1, 1]} : vector<9x64xf32> to vector<1x64xf32>
    %c4_338 = arith.constant 4 : index
    %c192_339 = arith.constant 192 : index
    %379 = vector.load %arg16[%c4_338, %c192_339] : memref<8x576xf32, #tpu.memory_space<vmem>>, vector<1x64xf32>
    tpu.vector_store %arg16[%c4_338, %c192_339], %378 {strides = array<i32>} : memref<8x576xf32, #tpu.memory_space<vmem>>, vector<1x64xf32>,
    %380 = vector.extract_strided_slice %371 {offsets = [4, 0], sizes = [1, 64], strides = [1, 1]} : vector<9x64xf32> to vector<1x64xf32>
    %c4_340 = arith.constant 4 : index
    %c256_341 = arith.constant 256 : index
    %381 = vector.load %arg16[%c4_340, %c256_341] : memref<8x576xf32, #tpu.memory_space<vmem>>, vector<1x64xf32>
    tpu.vector_store %arg16[%c4_340, %c256_341], %380 {strides = array<i32>} : memref<8x576xf32, #tpu.memory_space<vmem>>, vector<1x64xf32>,
    %382 = vector.extract_strided_slice %371 {offsets = [5, 0], sizes = [1, 64], strides = [1, 1]} : vector<9x64xf32> to vector<1x64xf32>
    %c4_342 = arith.constant 4 : index
    %c320_343 = arith.constant 320 : index
    %383 = vector.load %arg16[%c4_342, %c320_343] : memref<8x576xf32, #tpu.memory_space<vmem>>, vector<1x64xf32>
    tpu.vector_store %arg16[%c4_342, %c320_343], %382 {strides = array<i32>} : memref<8x576xf32, #tpu.memory_space<vmem>>, vector<1x64xf32>,
    %384 = vector.extract_strided_slice %371 {offsets = [6, 0], sizes = [1, 64], strides = [1, 1]} : vector<9x64xf32> to vector<1x64xf32>
    %c4_344 = arith.constant 4 : index
    %c384_345 = arith.constant 384 : index
    %385 = vector.load %arg16[%c4_344, %c384_345] : memref<8x576xf32, #tpu.memory_space<vmem>>, vector<1x64xf32>
    tpu.vector_store %arg16[%c4_344, %c384_345], %384 {strides = array<i32>} : memref<8x576xf32, #tpu.memory_space<vmem>>, vector<1x64xf32>,
    %386 = vector.extract_strided_slice %371 {offsets = [7, 0], sizes = [1, 64], strides = [1, 1]} : vector<9x64xf32> to vector<1x64xf32>
    %c4_346 = arith.constant 4 : index
    %c448_347 = arith.constant 448 : index
    %387 = vector.load %arg16[%c4_346, %c448_347] : memref<8x576xf32, #tpu.memory_space<vmem>>, vector<1x64xf32>
    tpu.vector_store %arg16[%c4_346, %c448_347], %386 {strides = array<i32>} : memref<8x576xf32, #tpu.memory_space<vmem>>, vector<1x64xf32>,
    %388 = vector.extract_strided_slice %371 {offsets = [8, 0], sizes = [1, 64], strides = [1, 1]} : vector<9x64xf32> to vector<1x64xf32>
    %c4_348 = arith.constant 4 : index
    %c512_349 = arith.constant 512 : index
    %389 = vector.load %arg16[%c4_348, %c512_349] : memref<8x576xf32, #tpu.memory_space<vmem>>, vector<1x64xf32>
    tpu.vector_store %arg16[%c4_348, %c512_349], %388 {strides = array<i32>} : memref<8x576xf32, #tpu.memory_space<vmem>>, vector<1x64xf32>,
    %390 = vector.extract_strided_slice %288 {offsets = [45, 0], sizes = [9, 64], strides = [1, 1]} : vector<72x64xf32> to vector<9x64xf32>
    %cst_350 = arith.constant dense<0.000000e+00> : vector<9x64xf32>
    %391 = tpu.matmul %289, %390, %cst_350 {dimension_numbers = #tpu.dot_dimension_numbers<[1], [0], [0], [1], [0, 0, 1, 1], [], []>} : vector<9x9xf32>, vector<9x64xf32>, vector<9x64xf32> -> vector<9x64xf32>
    %392 = vector.extract_strided_slice %391 {offsets = [0, 0], sizes = [1, 64], strides = [1, 1]} : vector<9x64xf32> to vector<1x64xf32>
    %c5 = arith.constant 5 : index
    %c0_351 = arith.constant 0 : index
    %393 = vector.load %arg16[%c5, %c0_351] : memref<8x576xf32, #tpu.memory_space<vmem>>, vector<1x64xf32>
    tpu.vector_store %arg16[%c5, %c0_351], %392 {strides = array<i32>} : memref<8x576xf32, #tpu.memory_space<vmem>>, vector<1x64xf32>,
    %394 = vector.extract_strided_slice %391 {offsets = [1, 0], sizes = [1, 64], strides = [1, 1]} : vector<9x64xf32> to vector<1x64xf32>
    %c5_352 = arith.constant 5 : index
    %c64_353 = arith.constant 64 : index
    %395 = vector.load %arg16[%c5_352, %c64_353] : memref<8x576xf32, #tpu.memory_space<vmem>>, vector<1x64xf32>
    tpu.vector_store %arg16[%c5_352, %c64_353], %394 {strides = array<i32>} : memref<8x576xf32, #tpu.memory_space<vmem>>, vector<1x64xf32>,
    %396 = vector.extract_strided_slice %391 {offsets = [2, 0], sizes = [1, 64], strides = [1, 1]} : vector<9x64xf32> to vector<1x64xf32>
    %c5_354 = arith.constant 5 : index
    %c128_355 = arith.constant 128 : index
    %397 = vector.load %arg16[%c5_354, %c128_355] : memref<8x576xf32, #tpu.memory_space<vmem>>, vector<1x64xf32>
    tpu.vector_store %arg16[%c5_354, %c128_355], %396 {strides = array<i32>} : memref<8x576xf32, #tpu.memory_space<vmem>>, vector<1x64xf32>,
    %398 = vector.extract_strided_slice %391 {offsets = [3, 0], sizes = [1, 64], strides = [1, 1]} : vector<9x64xf32> to vector<1x64xf32>
    %c5_356 = arith.constant 5 : index
    %c192_357 = arith.constant 192 : index
    %399 = vector.load %arg16[%c5_356, %c192_357] : memref<8x576xf32, #tpu.memory_space<vmem>>, vector<1x64xf32>
    tpu.vector_store %arg16[%c5_356, %c192_357], %398 {strides = array<i32>} : memref<8x576xf32, #tpu.memory_space<vmem>>, vector<1x64xf32>,
    %400 = vector.extract_strided_slice %391 {offsets = [4, 0], sizes = [1, 64], strides = [1, 1]} : vector<9x64xf32> to vector<1x64xf32>
    %c5_358 = arith.constant 5 : index
    %c256_359 = arith.constant 256 : index
    %401 = vector.load %arg16[%c5_358, %c256_359] : memref<8x576xf32, #tpu.memory_space<vmem>>, vector<1x64xf32>
    tpu.vector_store %arg16[%c5_358, %c256_359], %400 {strides = array<i32>} : memref<8x576xf32, #tpu.memory_space<vmem>>, vector<1x64xf32>,
    %402 = vector.extract_strided_slice %391 {offsets = [5, 0], sizes = [1, 64], strides = [1, 1]} : vector<9x64xf32> to vector<1x64xf32>
    %c5_360 = arith.constant 5 : index
    %c320_361 = arith.constant 320 : index
    %403 = vector.load %arg16[%c5_360, %c320_361] : memref<8x576xf32, #tpu.memory_space<vmem>>, vector<1x64xf32>
    tpu.vector_store %arg16[%c5_360, %c320_361], %402 {strides = array<i32>} : memref<8x576xf32, #tpu.memory_space<vmem>>, vector<1x64xf32>,
    %404 = vector.extract_strided_slice %391 {offsets = [6, 0], sizes = [1, 64], strides = [1, 1]} : vector<9x64xf32> to vector<1x64xf32>
    %c5_362 = arith.constant 5 : index
    %c384_363 = arith.constant 384 : index
    %405 = vector.load %arg16[%c5_362, %c384_363] : memref<8x576xf32, #tpu.memory_space<vmem>>, vector<1x64xf32>
    tpu.vector_store %arg16[%c5_362, %c384_363], %404 {strides = array<i32>} : memref<8x576xf32, #tpu.memory_space<vmem>>, vector<1x64xf32>,
    %406 = vector.extract_strided_slice %391 {offsets = [7, 0], sizes = [1, 64], strides = [1, 1]} : vector<9x64xf32> to vector<1x64xf32>
    %c5_364 = arith.constant 5 : index
    %c448_365 = arith.constant 448 : index
    %407 = vector.load %arg16[%c5_364, %c448_365] : memref<8x576xf32, #tpu.memory_space<vmem>>, vector<1x64xf32>
    tpu.vector_store %arg16[%c5_364, %c448_365], %406 {strides = array<i32>} : memref<8x576xf32, #tpu.memory_space<vmem>>, vector<1x64xf32>,
    %408 = vector.extract_strided_slice %391 {offsets = [8, 0], sizes = [1, 64], strides = [1, 1]} : vector<9x64xf32> to vector<1x64xf32>
    %c5_366 = arith.constant 5 : index
    %c512_367 = arith.constant 512 : index
    %409 = vector.load %arg16[%c5_366, %c512_367] : memref<8x576xf32, #tpu.memory_space<vmem>>, vector<1x64xf32>
    tpu.vector_store %arg16[%c5_366, %c512_367], %408 {strides = array<i32>} : memref<8x576xf32, #tpu.memory_space<vmem>>, vector<1x64xf32>,
    %410 = vector.extract_strided_slice %288 {offsets = [54, 0], sizes = [9, 64], strides = [1, 1]} : vector<72x64xf32> to vector<9x64xf32>
    %cst_368 = arith.constant dense<0.000000e+00> : vector<9x64xf32>
    %411 = tpu.matmul %289, %410, %cst_368 {dimension_numbers = #tpu.dot_dimension_numbers<[1], [0], [0], [1], [0, 0, 1, 1], [], []>} : vector<9x9xf32>, vector<9x64xf32>, vector<9x64xf32> -> vector<9x64xf32>
    %412 = vector.extract_strided_slice %411 {offsets = [0, 0], sizes = [1, 64], strides = [1, 1]} : vector<9x64xf32> to vector<1x64xf32>
    %c6 = arith.constant 6 : index
    %c0_369 = arith.constant 0 : index
    %413 = vector.load %arg16[%c6, %c0_369] : memref<8x576xf32, #tpu.memory_space<vmem>>, vector<1x64xf32>
    tpu.vector_store %arg16[%c6, %c0_369], %412 {strides = array<i32>} : memref<8x576xf32, #tpu.memory_space<vmem>>, vector<1x64xf32>,
    %414 = vector.extract_strided_slice %411 {offsets = [1, 0], sizes = [1, 64], strides = [1, 1]} : vector<9x64xf32> to vector<1x64xf32>
    %c6_370 = arith.constant 6 : index
    %c64_371 = arith.constant 64 : index
    %415 = vector.load %arg16[%c6_370, %c64_371] : memref<8x576xf32, #tpu.memory_space<vmem>>, vector<1x64xf32>
    tpu.vector_store %arg16[%c6_370, %c64_371], %414 {strides = array<i32>} : memref<8x576xf32, #tpu.memory_space<vmem>>, vector<1x64xf32>,
    %416 = vector.extract_strided_slice %411 {offsets = [2, 0], sizes = [1, 64], strides = [1, 1]} : vector<9x64xf32> to vector<1x64xf32>
    %c6_372 = arith.constant 6 : index
    %c128_373 = arith.constant 128 : index
    %417 = vector.load %arg16[%c6_372, %c128_373] : memref<8x576xf32, #tpu.memory_space<vmem>>, vector<1x64xf32>
    tpu.vector_store %arg16[%c6_372, %c128_373], %416 {strides = array<i32>} : memref<8x576xf32, #tpu.memory_space<vmem>>, vector<1x64xf32>,
    %418 = vector.extract_strided_slice %411 {offsets = [3, 0], sizes = [1, 64], strides = [1, 1]} : vector<9x64xf32> to vector<1x64xf32>
    %c6_374 = arith.constant 6 : index
    %c192_375 = arith.constant 192 : index
    %419 = vector.load %arg16[%c6_374, %c192_375] : memref<8x576xf32, #tpu.memory_space<vmem>>, vector<1x64xf32>
    tpu.vector_store %arg16[%c6_374, %c192_375], %418 {strides = array<i32>} : memref<8x576xf32, #tpu.memory_space<vmem>>, vector<1x64xf32>,
    %420 = vector.extract_strided_slice %411 {offsets = [4, 0], sizes = [1, 64], strides = [1, 1]} : vector<9x64xf32> to vector<1x64xf32>
    %c6_376 = arith.constant 6 : index
    %c256_377 = arith.constant 256 : index
    %421 = vector.load %arg16[%c6_376, %c256_377] : memref<8x576xf32, #tpu.memory_space<vmem>>, vector<1x64xf32>
    tpu.vector_store %arg16[%c6_376, %c256_377], %420 {strides = array<i32>} : memref<8x576xf32, #tpu.memory_space<vmem>>, vector<1x64xf32>,
    %422 = vector.extract_strided_slice %411 {offsets = [5, 0], sizes = [1, 64], strides = [1, 1]} : vector<9x64xf32> to vector<1x64xf32>
    %c6_378 = arith.constant 6 : index
    %c320_379 = arith.constant 320 : index
    %423 = vector.load %arg16[%c6_378, %c320_379] : memref<8x576xf32, #tpu.memory_space<vmem>>, vector<1x64xf32>
    tpu.vector_store %arg16[%c6_378, %c320_379], %422 {strides = array<i32>} : memref<8x576xf32, #tpu.memory_space<vmem>>, vector<1x64xf32>,
    %424 = vector.extract_strided_slice %411 {offsets = [6, 0], sizes = [1, 64], strides = [1, 1]} : vector<9x64xf32> to vector<1x64xf32>
    %c6_380 = arith.constant 6 : index
    %c384_381 = arith.constant 384 : index
    %425 = vector.load %arg16[%c6_380, %c384_381] : memref<8x576xf32, #tpu.memory_space<vmem>>, vector<1x64xf32>
    tpu.vector_store %arg16[%c6_380, %c384_381], %424 {strides = array<i32>} : memref<8x576xf32, #tpu.memory_space<vmem>>, vector<1x64xf32>,
    %426 = vector.extract_strided_slice %411 {offsets = [7, 0], sizes = [1, 64], strides = [1, 1]} : vector<9x64xf32> to vector<1x64xf32>
    %c6_382 = arith.constant 6 : index
    %c448_383 = arith.constant 448 : index
    %427 = vector.load %arg16[%c6_382, %c448_383] : memref<8x576xf32, #tpu.memory_space<vmem>>, vector<1x64xf32>
    tpu.vector_store %arg16[%c6_382, %c448_383], %426 {strides = array<i32>} : memref<8x576xf32, #tpu.memory_space<vmem>>, vector<1x64xf32>,
    %428 = vector.extract_strided_slice %411 {offsets = [8, 0], sizes = [1, 64], strides = [1, 1]} : vector<9x64xf32> to vector<1x64xf32>
    %c6_384 = arith.constant 6 : index
    %c512_385 = arith.constant 512 : index
    %429 = vector.load %arg16[%c6_384, %c512_385] : memref<8x576xf32, #tpu.memory_space<vmem>>, vector<1x64xf32>
    tpu.vector_store %arg16[%c6_384, %c512_385], %428 {strides = array<i32>} : memref<8x576xf32, #tpu.memory_space<vmem>>, vector<1x64xf32>,
    %430 = vector.extract_strided_slice %288 {offsets = [63, 0], sizes = [9, 64], strides = [1, 1]} : vector<72x64xf32> to vector<9x64xf32>
    %cst_386 = arith.constant dense<0.000000e+00> : vector<9x64xf32>
    %431 = tpu.matmul %289, %430, %cst_386 {dimension_numbers = #tpu.dot_dimension_numbers<[1], [0], [0], [1], [0, 0, 1, 1], [], []>} : vector<9x9xf32>, vector<9x64xf32>, vector<9x64xf32> -> vector<9x64xf32>
    %432 = vector.extract_strided_slice %431 {offsets = [0, 0], sizes = [1, 64], strides = [1, 1]} : vector<9x64xf32> to vector<1x64xf32>
    %c7 = arith.constant 7 : index
    %c0_387 = arith.constant 0 : index
    %433 = vector.load %arg16[%c7, %c0_387] : memref<8x576xf32, #tpu.memory_space<vmem>>, vector<1x64xf32>
    tpu.vector_store %arg16[%c7, %c0_387], %432 {strides = array<i32>} : memref<8x576xf32, #tpu.memory_space<vmem>>, vector<1x64xf32>,
    %434 = vector.extract_strided_slice %431 {offsets = [1, 0], sizes = [1, 64], strides = [1, 1]} : vector<9x64xf32> to vector<1x64xf32>
    %c7_388 = arith.constant 7 : index
    %c64_389 = arith.constant 64 : index
    %435 = vector.load %arg16[%c7_388, %c64_389] : memref<8x576xf32, #tpu.memory_space<vmem>>, vector<1x64xf32>
    tpu.vector_store %arg16[%c7_388, %c64_389], %434 {strides = array<i32>} : memref<8x576xf32, #tpu.memory_space<vmem>>, vector<1x64xf32>,
    %436 = vector.extract_strided_slice %431 {offsets = [2, 0], sizes = [1, 64], strides = [1, 1]} : vector<9x64xf32> to vector<1x64xf32>
    %c7_390 = arith.constant 7 : index
    %c128_391 = arith.constant 128 : index
    %437 = vector.load %arg16[%c7_390, %c128_391] : memref<8x576xf32, #tpu.memory_space<vmem>>, vector<1x64xf32>
    tpu.vector_store %arg16[%c7_390, %c128_391], %436 {strides = array<i32>} : memref<8x576xf32, #tpu.memory_space<vmem>>, vector<1x64xf32>,
    %438 = vector.extract_strided_slice %431 {offsets = [3, 0], sizes = [1, 64], strides = [1, 1]} : vector<9x64xf32> to vector<1x64xf32>
    %c7_392 = arith.constant 7 : index
    %c192_393 = arith.constant 192 : index
    %439 = vector.load %arg16[%c7_392, %c192_393] : memref<8x576xf32, #tpu.memory_space<vmem>>, vector<1x64xf32>
    tpu.vector_store %arg16[%c7_392, %c192_393], %438 {strides = array<i32>} : memref<8x576xf32, #tpu.memory_space<vmem>>, vector<1x64xf32>,
    %440 = vector.extract_strided_slice %431 {offsets = [4, 0], sizes = [1, 64], strides = [1, 1]} : vector<9x64xf32> to vector<1x64xf32>
    %c7_394 = arith.constant 7 : index
    %c256_395 = arith.constant 256 : index
    %441 = vector.load %arg16[%c7_394, %c256_395] : memref<8x576xf32, #tpu.memory_space<vmem>>, vector<1x64xf32>
    tpu.vector_store %arg16[%c7_394, %c256_395], %440 {strides = array<i32>} : memref<8x576xf32, #tpu.memory_space<vmem>>, vector<1x64xf32>,
    %442 = vector.extract_strided_slice %431 {offsets = [5, 0], sizes = [1, 64], strides = [1, 1]} : vector<9x64xf32> to vector<1x64xf32>
    %c7_396 = arith.constant 7 : index
    %c320_397 = arith.constant 320 : index
    %443 = vector.load %arg16[%c7_396, %c320_397] : memref<8x576xf32, #tpu.memory_space<vmem>>, vector<1x64xf32>
    tpu.vector_store %arg16[%c7_396, %c320_397], %442 {strides = array<i32>} : memref<8x576xf32, #tpu.memory_space<vmem>>, vector<1x64xf32>,
    %444 = vector.extract_strided_slice %431 {offsets = [6, 0], sizes = [1, 64], strides = [1, 1]} : vector<9x64xf32> to vector<1x64xf32>
    %c7_398 = arith.constant 7 : index
    %c384_399 = arith.constant 384 : index
    %445 = vector.load %arg16[%c7_398, %c384_399] : memref<8x576xf32, #tpu.memory_space<vmem>>, vector<1x64xf32>
    tpu.vector_store %arg16[%c7_398, %c384_399], %444 {strides = array<i32>} : memref<8x576xf32, #tpu.memory_space<vmem>>, vector<1x64xf32>,
    %446 = vector.extract_strided_slice %431 {offsets = [7, 0], sizes = [1, 64], strides = [1, 1]} : vector<9x64xf32> to vector<1x64xf32>
    %c7_400 = arith.constant 7 : index
    %c448_401 = arith.constant 448 : index
    %447 = vector.load %arg16[%c7_400, %c448_401] : memref<8x576xf32, #tpu.memory_space<vmem>>, vector<1x64xf32>
    tpu.vector_store %arg16[%c7_400, %c448_401], %446 {strides = array<i32>} : memref<8x576xf32, #tpu.memory_space<vmem>>, vector<1x64xf32>,
    %448 = vector.extract_strided_slice %431 {offsets = [8, 0], sizes = [1, 64], strides = [1, 1]} : vector<9x64xf32> to vector<1x64xf32>
    %c7_402 = arith.constant 7 : index
    %c512_403 = arith.constant 512 : index
    %449 = vector.load %arg16[%c7_402, %c512_403] : memref<8x576xf32, #tpu.memory_space<vmem>>, vector<1x64xf32>
    tpu.vector_store %arg16[%c7_402, %c512_403], %448 {strides = array<i32>} : memref<8x576xf32, #tpu.memory_space<vmem>>, vector<1x64xf32>,
    %c0_404 = arith.constant 0 : index
    %c0_405 = arith.constant 0 : index
    %450 = vector.load %arg16[%c0_404, %c0_405] : memref<8x576xf32, #tpu.memory_space<vmem>>, vector<8x576xf32>
    %c0_406 = arith.constant 0 : index
    %c0_407 = arith.constant 0 : index
    %451 = vector.load %arg8[%c0_406, %c0_407] : memref<576x64xf32, #tpu.memory_space<vmem>>, vector<576x64xf32>
    %cst_408 = arith.constant dense<0.000000e+00> : vector<8x64xf32>
    %452 = tpu.matmul %450, %451, %cst_408 {dimension_numbers = #tpu.dot_dimension_numbers<[1], [0], [0], [1], [0, 0, 1, 1], [], []>} : vector<8x576xf32>, vector<576x64xf32>, vector<8x64xf32> -> vector<8x64xf32>
    %c0_409 = arith.constant 0 : index
    %c0_410 = arith.constant 0 : index
    %453 = vector.load %arg9[%c0_409, %c0_410] : memref<1x64xf32, #tpu.memory_space<vmem>>, vector<1x64xf32>
    %454 = vector.broadcast %453 : vector<1x64xf32> to vector<8x64xf32>
    %455 = arith.addf %452, %454 : vector<8x64xf32>
    %cst_411 = arith.constant 0.000000e+00 : f32
    %456 = vector.broadcast %cst_411 : f32 to vector<8x64xf32>
    %457 = arith.maximumf %455, %456 : vector<8x64xf32>
    %c0_412 = arith.constant 0 : index
    %c0_413 = arith.constant 0 : index
    %458 = vector.load %arg10[%c0_412, %c0_413] : memref<64x64xf32, #tpu.memory_space<vmem>>, vector<64x64xf32>
    %cst_414 = arith.constant dense<0.000000e+00> : vector<8x64xf32>
    %459 = tpu.matmul %457, %458, %cst_414 {dimension_numbers = #tpu.dot_dimension_numbers<[1], [0], [0], [1], [0, 0, 1, 1], [], []>} : vector<8x64xf32>, vector<64x64xf32>, vector<8x64xf32> -> vector<8x64xf32>
    %c0_415 = arith.constant 0 : index
    %c0_416 = arith.constant 0 : index
    %460 = vector.load %arg11[%c0_415, %c0_416] : memref<1x64xf32, #tpu.memory_space<vmem>>, vector<1x64xf32>
    %461 = vector.broadcast %460 : vector<1x64xf32> to vector<8x64xf32>
    %462 = arith.addf %459, %461 : vector<8x64xf32>
    %cst_417 = arith.constant 0.000000e+00 : f32
    %463 = vector.broadcast %cst_417 : f32 to vector<8x64xf32>
    %464 = arith.maximumf %462, %463 : vector<8x64xf32>
    %c0_418 = arith.constant 0 : index
    %c0_419 = arith.constant 0 : index
    %465 = vector.load %arg12[%c0_418, %c0_419] : memref<64x128xf32, #tpu.memory_space<vmem>>, vector<64x128xf32>
    %cst_420 = arith.constant dense<0.000000e+00> : vector<8x128xf32>
    %466 = tpu.matmul %464, %465, %cst_420 {dimension_numbers = #tpu.dot_dimension_numbers<[1], [0], [0], [1], [0, 0, 1, 1], [], []>} : vector<8x64xf32>, vector<64x128xf32>, vector<8x128xf32> -> vector<8x128xf32>
    %c0_421 = arith.constant 0 : index
    %c0_422 = arith.constant 0 : index
    %467 = vector.load %arg13[%c0_421, %c0_422] : memref<1x128xf32, #tpu.memory_space<vmem>>, vector<1x128xf32>
    %468 = vector.broadcast %467 : vector<1x128xf32> to vector<8x128xf32>
    %469 = arith.addf %466, %468 : vector<8x128xf32>
    %c0_423 = arith.constant 0 : index
    %c0_424 = arith.constant 0 : index
    %470 = vector.load %arg14[%c0_423, %c0_424] : memref<8x128xf32, #tpu.memory_space<vmem>>, vector<8x128xf32>
    tpu.vector_store %arg14[%c0_423, %c0_424], %469 {strides = array<i32>} : memref<8x128xf32, #tpu.memory_space<vmem>>, vector<8x128xf32>,
    return
  }
  func.func @transform_0(%arg0: i32) -> (i32, i32) {
    %c0_i32 = arith.constant 0 : i32
    %c0_i32_0 = arith.constant 0 : i32
    return %arg0, %c0_i32 : i32, i32
  }
  func.func @transform_1(%arg0: i32) -> (i32, i32) {
    %c0_i32 = arith.constant 0 : i32
    %c0_i32_0 = arith.constant 0 : i32
    %c0_i32_1 = arith.constant 0 : i32
    return %c0_i32, %c0_i32_0 : i32, i32
  }
  func.func @transform_2(%arg0: i32) -> (i32, i32) {
    %c0_i32 = arith.constant 0 : i32
    %c0_i32_0 = arith.constant 0 : i32
    %c0_i32_1 = arith.constant 0 : i32
    return %c0_i32, %c0_i32_0 : i32, i32
  }
  func.func @transform_3(%arg0: i32) -> (i32, i32) {
    %c0_i32 = arith.constant 0 : i32
    %c0_i32_0 = arith.constant 0 : i32
    %c0_i32_1 = arith.constant 0 : i32
    return %c0_i32, %c0_i32_0 : i32, i32
  }
  func.func @transform_4(%arg0: i32) -> (i32, i32) {
    %c0_i32 = arith.constant 0 : i32
    %c0_i32_0 = arith.constant 0 : i32
    %c0_i32_1 = arith.constant 0 : i32
    return %c0_i32, %c0_i32_0 : i32, i32
  }
  func.func @transform_5(%arg0: i32) -> (i32, i32) {
    %c0_i32 = arith.constant 0 : i32
    %c0_i32_0 = arith.constant 0 : i32
    %c0_i32_1 = arith.constant 0 : i32
    return %c0_i32, %c0_i32_0 : i32, i32
  }
  func.func @transform_6(%arg0: i32) -> (i32, i32) {
    %c0_i32 = arith.constant 0 : i32
    %c0_i32_0 = arith.constant 0 : i32
    %c0_i32_1 = arith.constant 0 : i32
    return %c0_i32, %c0_i32_0 : i32, i32
  }
  func.func @transform_7(%arg0: i32) -> (i32, i32) {
    %c0_i32 = arith.constant 0 : i32
    %c0_i32_0 = arith.constant 0 : i32
    %c0_i32_1 = arith.constant 0 : i32
    return %c0_i32, %c0_i32_0 : i32, i32
  }
  func.func @transform_8(%arg0: i32) -> (i32, i32) {
    %c0_i32 = arith.constant 0 : i32
    %c0_i32_0 = arith.constant 0 : i32
    %c0_i32_1 = arith.constant 0 : i32
    return %c0_i32, %c0_i32_0 : i32, i32
  }
  func.func @transform_9(%arg0: i32) -> (i32, i32) {
    %c0_i32 = arith.constant 0 : i32
    %c0_i32_0 = arith.constant 0 : i32
    %c0_i32_1 = arith.constant 0 : i32
    return %c0_i32, %c0_i32_0 : i32, i32
  }
  func.func @transform_10(%arg0: i32) -> (i32, i32) {
    %c0_i32 = arith.constant 0 : i32
    %c0_i32_0 = arith.constant 0 : i32
    %c0_i32_1 = arith.constant 0 : i32
    return %c0_i32, %c0_i32_0 : i32, i32
  }
  func.func @transform_11(%arg0: i32) -> (i32, i32) {
    %c0_i32 = arith.constant 0 : i32
    %c0_i32_0 = arith.constant 0 : i32
    %c0_i32_1 = arith.constant 0 : i32
    return %c0_i32, %c0_i32_0 : i32, i32
  }
  func.func @transform_12(%arg0: i32) -> (i32, i32) {
    %c0_i32 = arith.constant 0 : i32
    %c0_i32_0 = arith.constant 0 : i32
    %c0_i32_1 = arith.constant 0 : i32
    return %c0_i32, %c0_i32_0 : i32, i32
  }
  func.func @transform_13(%arg0: i32) -> (i32, i32) {
    %c0_i32 = arith.constant 0 : i32
    %c0_i32_0 = arith.constant 0 : i32
    return %arg0, %c0_i32 : i32, i32
  }
}

</mosaic_0001>

<llo_original>
// kernel: _lambda_.1
$region0: #{_lambda_.1}
  #allocation0 [shape = 'u32[]', space=smem, size = 0x4, offset = 0x4, fixed_abs, tag = 'smem constant byte address 0x4 - core index']
  #allocation1 [shape = 'u32[72,128]{1,0:T(1,128)}', space=vmem, size = 0x9000, scoped, tag = 'internal scratch']
  #allocation2 [shape = 'f32[72,512]{1,0:T(8,128)}', space=vmem, size = 0x24000, scoped, tag = 'scratch operand']
  #allocation3 [shape = 'f32[8,576]{1,0:T(8,128)}', space=vmem, size = 0x5000, scoped, tag = 'scratch operand']
  %s0 = inlined_call_operand.vmem [shape: f32[1024,192], index: 0, kind: input, shape index: {}]
  %s1 = inlined_call_operand.vmem [shape: f32[192,32], index: 1, kind: input, shape index: {}]
  %s2 = inlined_call_operand.vmem [shape: f32[1,32], index: 2, kind: input, shape index: {}]
  %s3 = inlined_call_operand.vmem [shape: f32[144,64], index: 3, kind: input, shape index: {}]
  %s4 = inlined_call_operand.vmem [shape: f32[512,64], index: 4, kind: input, shape index: {}]
  %s5 = inlined_call_operand.vmem [shape: f32[1,64], index: 5, kind: input, shape index: {}]
  %s6 = inlined_call_operand.vmem [shape: f32[9,9], index: 6, kind: input, shape index: {}]
  %s7 = inlined_call_operand.vmem [shape: f32[576,64], index: 7, kind: input, shape index: {}]
  %s8 = inlined_call_operand.vmem [shape: f32[1,64], index: 8, kind: input, shape index: {}]
  %s9 = inlined_call_operand.vmem [shape: f32[64,64], index: 9, kind: input, shape index: {}]
  %s10 = inlined_call_operand.vmem [shape: f32[1,64], index: 10, kind: input, shape index: {}]
  %s11 = inlined_call_operand.vmem [shape: f32[64,128], index: 11, kind: input, shape index: {}]
  %s12 = inlined_call_operand.vmem [shape: f32[1,128], index: 12, kind: input, shape index: {}]
  %s13 = inlined_call_operand.vmem [shape: f32[16,128], index: 13, kind: output, shape index: {}]
  %s14 = sld [smem:[#allocation0]]
  $region85: #{_lambda_.1} parent=0
    _
  %s16 = ssub.s32 1, %s14
  %s17 = scalar_select 0, %s16, %s14
  loop: start=0, step=1, limit=4
  $region2: #{_lambda_.1} parent=0 // loop_pre_header
    _
  $region3: #{_lambda_.1} parent=0 // loop_header
    %s19 = sphi 0, %s23
    %p20 = scmp.ge.s32.totalorder %s19, 4
    %s29 = sphi 0, %s31
    %s32 = sphi 0, %s29
    %s33 = sphi 0, %s32
    %s49 = sphi 0, %s33
    %s53 = sphi 0, %s53
    %s55 = sphi 0, %s53
    %s56 = sphi 0, %s55
    %s70 = sphi 0, %s56
    %s74 = sphi 0, %s74
    %s76 = sphi 0, %s74
    %s77 = sphi 0, %s76
    %s91 = sphi 0, %s77
    %s95 = sphi 0, %s95
    %s97 = sphi 0, %s95
    %s98 = sphi 0, %s97
    %s112 = sphi 0, %s98
    %s116 = sphi 0, %s116
    %s118 = sphi 0, %s116
    %s119 = sphi 0, %s118
    %s133 = sphi 0, %s119
    %s137 = sphi 0, %s137
    %s139 = sphi 0, %s137
    %s140 = sphi 0, %s139
    %s154 = sphi 0, %s140
    %s158 = sphi 0, %s158
    %s160 = sphi 0, %s158
    %s161 = sphi 0, %s160
    %s175 = sphi 0, %s161
    %s179 = sphi 0, %s179
    %s181 = sphi 0, %s179
    %s182 = sphi 0, %s181
    %s196 = sphi 0, %s182
    %s200 = sphi 0, %s200
    %s202 = sphi 0, %s200
    %s203 = sphi 0, %s202
    %s217 = sphi 0, %s203
    %s221 = sphi 0, %s221
    %s223 = sphi 0, %s221
    %s224 = sphi 0, %s223
    %s238 = sphi 0, %s224
    %s242 = sphi 0, %s242
    %s244 = sphi 0, %s242
    %s245 = sphi 0, %s244
    %s259 = sphi 0, %s245
    %s263 = sphi 0, %s263
    %s265 = sphi 0, %s263
    %s266 = sphi 0, %s265
    %s280 = sphi 0, %s266
    %s284 = sphi 0, %s284
    %s286 = sphi 0, %s284
    %s287 = sphi 0, %s286
    %s301 = sphi 0, %s287
    %s307 = sphi 0, %s309
    %s310 = sphi 0, %s307
    %s311 = sphi 0, %s310
    %s327 = sphi 0, %s311
  $region4: #{_lambda_.1} parent=0 // loop_header_branch
    %22 = sbr.rel (%p20) target = $region8
  $region5: #{_lambda_.1} parent=0 // loop_body
    %s24 = ssub.s32 %s19, 1
    %s25 = ssub.s32 %s19, 2
    %s26 = sadd.s32 %s19, 1
    %s27 = ssub.s32 %s19, %s26
    %p28 = scmp.eq.s32.totalorder %s27, 0
    %s30 = sadd.s32 %s29, 1
    %s31 = scalar_select %p28, %s29, %s30
    %p34 = pneg %p28
    %p35 = scmp.eq.s32.totalorder %s19, 1
    %p36 = por %p34, %p35
    %p37 = scmp.ne.s32.totalorder %s29, %s32
    %p38 = scmp.eq.s32.totalorder %s19, 0
    %p39 = por %p37, %p38
    %p40 = scmp.ne.s32.totalorder %s29, %s32
    %p41 = scmp.eq.s32.totalorder %s24, 1
    %p42 = por %p40, %p41
    %p43 = scmp.ne.s32.totalorder %s32, %s33
    %p44 = scmp.eq.s32.totalorder %s24, 0
    %p45 = por %p43, %p44
    %p46 = scmp.ne.s32.totalorder %s32, %s33
    %p47 = scmp.eq.s32.totalorder %s25, 1
    %p48 = por %p46, %p47
    %p50 = scmp.ne.s32.totalorder %s33, %s49
    %p51 = scmp.eq.s32.totalorder %s25, 0
    %p52 = por %p50, %p51
    %s54 = sadd.s32 %s53, 1
    %p57 = scmp.eq.s32.totalorder %s19, 1
    %p58 = scmp.ne.s32.totalorder %s53, %s55
    %p59 = scmp.eq.s32.totalorder %s19, 0
    %p60 = por %p58, %p59
    %p61 = scmp.ne.s32.totalorder %s53, %s55
    %p62 = scmp.eq.s32.totalorder %s24, 1
    %p63 = por %p61, %p62
    %p64 = scmp.ne.s32.totalorder %s55, %s56
    %p65 = scmp.eq.s32.totalorder %s24, 0
    %p66 = por %p64, %p65
    %p67 = scmp.ne.s32.totalorder %s55, %s56
    %p68 = scmp.eq.s32.totalorder %s25, 1
    %p69 = por %p67, %p68
    %p71 = scmp.ne.s32.totalorder %s56, %s70
    %p72 = scmp.eq.s32.totalorder %s25, 0
    %p73 = por %p71, %p72
    %s75 = sadd.s32 %s74, 1
    %p78 = scmp.eq.s32.totalorder %s19, 1
    %p79 = scmp.ne.s32.totalorder %s74, %s76
    %p80 = scmp.eq.s32.totalorder %s19, 0
    %p81 = por %p79, %p80
    %p82 = scmp.ne.s32.totalorder %s74, %s76
    %p83 = scmp.eq.s32.totalorder %s24, 1
    %p84 = por %p82, %p83
    %p85 = scmp.ne.s32.totalorder %s76, %s77
    %p86 = scmp.eq.s32.totalorder %s24, 0
    %p87 = por %p85, %p86
    %p88 = scmp.ne.s32.totalorder %s76, %s77
    %p89 = scmp.eq.s32.totalorder %s25, 1
    %p90 = por %p88, %p89
    %p92 = scmp.ne.s32.totalorder %s77, %s91
    %p93 = scmp.eq.s32.totalorder %s25, 0
    %p94 = por %p92, %p93
    %s96 = sadd.s32 %s95, 1
    %p99 = scmp.eq.s32.totalorder %s19, 1
    %p100 = scmp.ne.s32.totalorder %s95, %s97
    %p101 = scmp.eq.s32.totalorder %s19, 0
    %p102 = por %p100, %p101
    %p103 = scmp.ne.s32.totalorder %s95, %s97
    %p104 = scmp.eq.s32.totalorder %s24, 1
    %p105 = por %p103, %p104
    %p106 = scmp.ne.s32.totalorder %s97, %s98
    %p107 = scmp.eq.s32.totalorder %s24, 0
    %p108 = por %p106, %p107
    %p109 = scmp.ne.s32.totalorder %s97, %s98
    %p110 = scmp.eq.s32.totalorder %s25, 1
    %p111 = por %p109, %p110
    %p113 = scmp.ne.s32.totalorder %s98, %s112
    %p114 = scmp.eq.s32.totalorder %s25, 0
    %p115 = por %p113, %p114
    %s117 = sadd.s32 %s116, 1
    %p120 = scmp.eq.s32.totalorder %s19, 1
    %p121 = scmp.ne.s32.totalorder %s116, %s118
    %p122 = scmp.eq.s32.totalorder %s19, 0
    %p123 = por %p121, %p122
    %p124 = scmp.ne.s32.totalorder %s116, %s118
    %p125 = scmp.eq.s32.totalorder %s24, 1
    %p126 = por %p124, %p125
    %p127 = scmp.ne.s32.totalorder %s118, %s119
    %p128 = scmp.eq.s32.totalorder %s24, 0
    %p129 = por %p127, %p128
    %p130 = scmp.ne.s32.totalorder %s118, %s119
    %p131 = scmp.eq.s32.totalorder %s25, 1
    %p132 = por %p130, %p131
    %p134 = scmp.ne.s32.totalorder %s119, %s133
    %p135 = scmp.eq.s32.totalorder %s25, 0
    %p136 = por %p134, %p135
    %s138 = sadd.s32 %s137, 1
    %p141 = scmp.eq.s32.totalorder %s19, 1
    %p142 = scmp.ne.s32.totalorder %s137, %s139
    %p143 = scmp.eq.s32.totalorder %s19, 0
    %p144 = por %p142, %p143
    %p145 = scmp.ne.s32.totalorder %s137, %s139
    %p146 = scmp.eq.s32.totalorder %s24, 1
    %p147 = por %p145, %p146
    %p148 = scmp.ne.s32.totalorder %s139, %s140
    %p149 = scmp.eq.s32.totalorder %s24, 0
    %p150 = por %p148, %p149
    %p151 = scmp.ne.s32.totalorder %s139, %s140
    %p152 = scmp.eq.s32.totalorder %s25, 1
    %p153 = por %p151, %p152
    %p155 = scmp.ne.s32.totalorder %s140, %s154
    %p156 = scmp.eq.s32.totalorder %s25, 0
    %p157 = por %p155, %p156
    %s159 = sadd.s32 %s158, 1
    %p162 = scmp.eq.s32.totalorder %s19, 1
    %p163 = scmp.ne.s32.totalorder %s158, %s160
    %p164 = scmp.eq.s32.totalorder %s19, 0
    %p165 = por %p163, %p164
    %p166 = scmp.ne.s32.totalorder %s158, %s160
    %p167 = scmp.eq.s32.totalorder %s24, 1
    %p168 = por %p166, %p167
    %p169 = scmp.ne.s32.totalorder %s160, %s161
    %p170 = scmp.eq.s32.totalorder %s24, 0
    %p171 = por %p169, %p170
    %p172 = scmp.ne.s32.totalorder %s160, %s161
    %p173 = scmp.eq.s32.totalorder %s25, 1
    %p174 = por %p172, %p173
    %p176 = scmp.ne.s32.totalorder %s161, %s175
    %p177 = scmp.eq.s32.totalorder %s25, 0
    %p178 = por %p176, %p177
    %s180 = sadd.s32 %s179, 1
    %p183 = scmp.eq.s32.totalorder %s19, 1
    %p184 = scmp.ne.s32.totalorder %s179, %s181
    %p185 = scmp.eq.s32.totalorder %s19, 0
    %p186 = por %p184, %p185
    %p187 = scmp.ne.s32.totalorder %s179, %s181
    %p188 = scmp.eq.s32.totalorder %s24, 1
    %p189 = por %p187, %p188
    %p190 = scmp.ne.s32.totalorder %s181, %s182
    %p191 = scmp.eq.s32.totalorder %s24, 0
    %p192 = por %p190, %p191
    %p193 = scmp.ne.s32.totalorder %s181, %s182
    %p194 = scmp.eq.s32.totalorder %s25, 1
    %p195 = por %p193, %p194
    %p197 = scmp.ne.s32.totalorder %s182, %s196
    %p198 = scmp.eq.s32.totalorder %s25, 0
    %p199 = por %p197, %p198
    %s201 = sadd.s32 %s200, 1
    %p204 = scmp.eq.s32.totalorder %s19, 1
    %p205 = scmp.ne.s32.totalorder %s200, %s202
    %p206 = scmp.eq.s32.totalorder %s19, 0
    %p207 = por %p205, %p206
    %p208 = scmp.ne.s32.totalorder %s200, %s202
    %p209 = scmp.eq.s32.totalorder %s24, 1
    %p210 = por %p208, %p209
    %p211 = scmp.ne.s32.totalorder %s202, %s203
    %p212 = scmp.eq.s32.totalorder %s24, 0
    %p213 = por %p211, %p212
    %p214 = scmp.ne.s32.totalorder %s202, %s203
    %p215 = scmp.eq.s32.totalorder %s25, 1
    %p216 = por %p214, %p215
    %p218 = scmp.ne.s32.totalorder %s203, %s217
    %p219 = scmp.eq.s32.totalorder %s25, 0
    %p220 = por %p218, %p219
    %s222 = sadd.s32 %s221, 1
    %p225 = scmp.eq.s32.totalorder %s19, 1
    %p226 = scmp.ne.s32.totalorder %s221, %s223
    %p227 = scmp.eq.s32.totalorder %s19, 0
    %p228 = por %p226, %p227
    %p229 = scmp.ne.s32.totalorder %s221, %s223
    %p230 = scmp.eq.s32.totalorder %s24, 1
    %p231 = por %p229, %p230
    %p232 = scmp.ne.s32.totalorder %s223, %s224
    %p233 = scmp.eq.s32.totalorder %s24, 0
    %p234 = por %p232, %p233
    %p235 = scmp.ne.s32.totalorder %s223, %s224
    %p236 = scmp.eq.s32.totalorder %s25, 1
    %p237 = por %p235, %p236
    %p239 = scmp.ne.s32.totalorder %s224, %s238
    %p240 = scmp.eq.s32.totalorder %s25, 0
    %p241 = por %p239, %p240
    %s243 = sadd.s32 %s242, 1
    %p246 = scmp.eq.s32.totalorder %s19, 1
    %p247 = scmp.ne.s32.totalorder %s242, %s244
    %p248 = scmp.eq.s32.totalorder %s19, 0
    %p249 = por %p247, %p248
    %p250 = scmp.ne.s32.totalorder %s242, %s244
    %p251 = scmp.eq.s32.totalorder %s24, 1
    %p252 = por %p250, %p251
    %p253 = scmp.ne.s32.totalorder %s244, %s245
    %p254 = scmp.eq.s32.totalorder %s24, 0
    %p255 = por %p253, %p254
    %p256 = scmp.ne.s32.totalorder %s244, %s245
    %p257 = scmp.eq.s32.totalorder %s25, 1
    %p258 = por %p256, %p257
    %p260 = scmp.ne.s32.totalorder %s245, %s259
    %p261 = scmp.eq.s32.totalorder %s25, 0
    %p262 = por %p260, %p261
    %s264 = sadd.s32 %s263, 1
    %p267 = scmp.eq.s32.totalorder %s19, 1
    %p268 = scmp.ne.s32.totalorder %s263, %s265
    %p269 = scmp.eq.s32.totalorder %s19, 0
    %p270 = por %p268, %p269
    %p271 = scmp.ne.s32.totalorder %s263, %s265
    %p272 = scmp.eq.s32.totalorder %s24, 1
    %p273 = por %p271, %p272
    %p274 = scmp.ne.s32.totalorder %s265, %s266
    %p275 = scmp.eq.s32.totalorder %s24, 0
    %p276 = por %p274, %p275
    %p277 = scmp.ne.s32.totalorder %s265, %s266
    %p278 = scmp.eq.s32.totalorder %s25, 1
    %p279 = por %p277, %p278
    %p281 = scmp.ne.s32.totalorder %s266, %s280
    %p282 = scmp.eq.s32.totalorder %s25, 0
    %p283 = por %p281, %p282
    %s285 = sadd.s32 %s284, 1
    %p288 = scmp.eq.s32.totalorder %s19, 1
    %p289 = scmp.ne.s32.totalorder %s284, %s286
    %p290 = scmp.eq.s32.totalorder %s19, 0
    %p291 = por %p289, %p290
    %p292 = scmp.ne.s32.totalorder %s284, %s286
    %p293 = scmp.eq.s32.totalorder %s24, 1
    %p294 = por %p292, %p293
    %p295 = scmp.ne.s32.totalorder %s286, %s287
    %p296 = scmp.eq.s32.totalorder %s24, 0
    %p297 = por %p295, %p296
    %p298 = scmp.ne.s32.totalorder %s286, %s287
    %p299 = scmp.eq.s32.totalorder %s25, 1
    %p300 = por %p298, %p299
    %p302 = scmp.ne.s32.totalorder %s287, %s301
    %p303 = scmp.eq.s32.totalorder %s25, 0
    %p304 = por %p302, %p303
    %s305 = ssub.s32 %s19, %s26
    %p306 = scmp.eq.s32.totalorder %s305, 0
    %s308 = sadd.s32 %s307, 1
    %s309 = scalar_select %p306, %s307, %s308
    %p312 = pneg %p306
    %p313 = scmp.eq.s32.totalorder %s19, 1
    %p314 = por %p312, %p313
    %p315 = scmp.ne.s32.totalorder %s307, %s310
    %p316 = scmp.eq.s32.totalorder %s19, 0
    %p317 = por %p315, %p316
    %p318 = scmp.ne.s32.totalorder %s307, %s310
    %p319 = scmp.eq.s32.totalorder %s24, 1
    %p320 = por %p318, %p319
    %p321 = scmp.ne.s32.totalorder %s310, %s311
    %p322 = scmp.eq.s32.totalorder %s24, 0
    %p323 = por %p321, %p322
    %p324 = scmp.ne.s32.totalorder %s310, %s311
    %p325 = scmp.eq.s32.totalorder %s25, 1
    %p326 = por %p324, %p325
    %p328 = scmp.ne.s32.totalorder %s311, %s327
    %p329 = scmp.eq.s32.totalorder %s25, 0
    %p330 = por %p328, %p329
    %p331 = scmp.le.s32.totalorder 1, %s19
    %p332 = scmp.lt.s32.totalorder %s19, 3
    %p333 = pnand %p331, %p332
    %p334 = pneg %p333
    // Predicated region
    $region9: #{_lambda_.1} parent=5 // pred_check
      _
    $region10: #{_lambda_.1} parent=5 // pred_check_branch
      %336 = sbr.rel (%p333) target = $region12
    $region11: #{_lambda_.1} parent=5 // pred_region
      %s337 = ssub.s32 %s19, 1
      // Predicated region
      $region13: #{_lambda_.1} parent=11 // pred_check
        %p338 = pneg %p66
      $region14: #{_lambda_.1} parent=11 // pred_check_branch
        %340 = sbr.rel (%p338) target = $region16
      $region15: #{_lambda_.1} parent=11 // pred_region
        _
      $region16: #{_lambda_.1} parent=11 // pred_fallthru
        _
      // Predicated region
      $region17: #{_lambda_.1} parent=11 // pred_check
        %p341 = pneg %p87
      $region18: #{_lambda_.1} parent=11 // pred_check_branch
        %343 = sbr.rel (%p341) target = $region20
      $region19: #{_lambda_.1} parent=11 // pred_region
        _
      $region20: #{_lambda_.1} parent=11 // pred_fallthru
        _
      // Predicated region
      $region21: #{_lambda_.1} parent=11 // pred_check
        %p344 = pneg %p108
      $region22: #{_lambda_.1} parent=11 // pred_check_branch
        %346 = sbr.rel (%p344) target = $region24
      $region23: #{_lambda_.1} parent=11 // pred_region
        _
      $region24: #{_lambda_.1} parent=11 // pred_fallthru
        _
      // Predicated region
      $region25: #{_lambda_.1} parent=11 // pred_check
        %p347 = pneg %p129
      $region26: #{_lambda_.1} parent=11 // pred_check_branch
        %349 = sbr.rel (%p347) target = $region28
      $region27: #{_lambda_.1} parent=11 // pred_region
        _
      $region28: #{_lambda_.1} parent=11 // pred_fallthru
        _
      // Predicated region
      $region29: #{_lambda_.1} parent=11 // pred_check
        %p350 = pneg %p150
      $region30: #{_lambda_.1} parent=11 // pred_check_branch
        %352 = sbr.rel (%p350) target = $region32
      $region31: #{_lambda_.1} parent=11 // pred_region
        _
      $region32: #{_lambda_.1} parent=11 // pred_fallthru
        _
      // Predicated region
      $region33: #{_lambda_.1} parent=11 // pred_check
        %p353 = pneg %p171
      $region34: #{_lambda_.1} parent=11 // pred_check_branch
        %355 = sbr.rel (%p353) target = $region36
      $region35: #{_lambda_.1} parent=11 // pred_region
        _
      $region36: #{_lambda_.1} parent=11 // pred_fallthru
        _
      // Predicated region
      $region37: #{_lambda_.1} parent=11 // pred_check
        %p356 = pneg %p192
      $region38: #{_lambda_.1} parent=11 // pred_check_branch
        %358 = sbr.rel (%p356) target = $region40
      $region39: #{_lambda_.1} parent=11 // pred_region
        _
      $region40: #{_lambda_.1} parent=11 // pred_fallthru
        _
      // Predicated region
      $region41: #{_lambda_.1} parent=11 // pred_check
        %p359 = pneg %p213
      $region42: #{_lambda_.1} parent=11 // pred_check_branch
        %361 = sbr.rel (%p359) target = $region44
      $region43: #{_lambda_.1} parent=11 // pred_region
        _
      $region44: #{_lambda_.1} parent=11 // pred_fallthru
        _
      // Predicated region
      $region45: #{_lambda_.1} parent=11 // pred_check
        %p362 = pneg %p234
      $region46: #{_lambda_.1} parent=11 // pred_check_branch
        %364 = sbr.rel (%p362) target = $region48
      $region47: #{_lambda_.1} parent=11 // pred_region
        _
      $region48: #{_lambda_.1} parent=11 // pred_fallthru
        _
      // Predicated region
      $region49: #{_lambda_.1} parent=11 // pred_check
        %p365 = pneg %p255
      $region50: #{_lambda_.1} parent=11 // pred_check_branch
        %367 = sbr.rel (%p365) target = $region52
      $region51: #{_lambda_.1} parent=11 // pred_region
        _
      $region52: #{_lambda_.1} parent=11 // pred_fallthru
        _
      // Predicated region
      $region53: #{_lambda_.1} parent=11 // pred_check
        %p368 = pneg %p276
      $region54: #{_lambda_.1} parent=11 // pred_check_branch
        %370 = sbr.rel (%p368) target = $region56
      $region55: #{_lambda_.1} parent=11 // pred_region
        _
      $region56: #{_lambda_.1} parent=11 // pred_fallthru
        _
      // Predicated region
      $region57: #{_lambda_.1} parent=11 // pred_check
        %p371 = pneg %p297
      $region58: #{_lambda_.1} parent=11 // pred_check_branch
        %373 = sbr.rel (%p371) target = $region60
      $region59: #{_lambda_.1} parent=11 // pred_region
        _
      $region60: #{_lambda_.1} parent=11 // pred_fallthru
        _
    $region12: #{_lambda_.1} parent=5 // pred_fallthru
      _
    %p374 = scmp.lt.s32.totalorder %s19, 2
    // Predicated region
    $region61: #{_lambda_.1} parent=5 // pred_check
      %p375 = pneg %p374
    $region62: #{_lambda_.1} parent=5 // pred_check_branch
      %377 = sbr.rel (%p375) target = $region64
    $region63: #{_lambda_.1} parent=5 // pred_region
      // Predicated region
      $region65: #{_lambda_.1} parent=63 // pred_check
        %p378 = pneg %p39
      $region66: #{_lambda_.1} parent=63 // pred_check_branch
        %380 = sbr.rel (%p378) target = $region68
      $region67: #{_lambda_.1} parent=63 // pred_region
        %s381 = smul.u32 64, %s19
        %p382 = scmp.lt.s32.totalorder %s381, 127
        %s383 = scalar_select %p382, %s381, 127
        %s384 = smul.addr %s383, 2
        %s385 = smul.addr %s384, 8
        %s386 = scalar_lea.vmem %s0, %s385
        %s387 = smul.u32 64, %s19
      $region68: #{_lambda_.1} parent=63 // pred_fallthru
        _
    $region64: #{_lambda_.1} parent=5 // pred_fallthru
      _
    %p388 = scmp.le.s32.totalorder 1, %s19
    %p389 = scmp.lt.s32.totalorder %s19, 3
    %p390 = pnand %p388, %p389
    %p391 = pneg %p390
    // Predicated region
    $region69: #{_lambda_.1} parent=5 // pred_check
      _
    $region70: #{_lambda_.1} parent=5 // pred_check_branch
      %393 = sbr.rel (%p390) target = $region72
    $region71: #{_lambda_.1} parent=5 // pred_region
      %s394 = ssub.s32 %s19, 1
      %s395 = smul.u32 64, %s24
      %p396 = scmp.lt.s32.totalorder %s395, 127
      %s397 = scalar_select %p396, %s395, 127
      %s398 = smul.addr %s397, 2
      %s399 = smul.addr %s398, 8
      %s400 = scalar_lea.vmem %s0, %s399
      %p401 = pneg %p45
      %p402 = pneg %p42
      %p403 = pneg %p66
      %p404 = pneg %p63
      %p405 = pneg %p87
      %p406 = pneg %p84
      %p407 = pneg %p108
      %p408 = pneg %p105
      %p409 = pneg %p129
      %p410 = pneg %p126
      %p411 = pneg %p150
      %p412 = pneg %p147
      %p413 = pneg %p171
      %p414 = pneg %p168
      %p415 = pneg %p192
      %p416 = pneg %p189
      %p417 = pneg %p213
      %p418 = pneg %p210
      %p419 = pneg %p234
      %p420 = pneg %p231
      %p421 = pneg %p255
      %p422 = pneg %p252
      %p423 = pneg %p276
      %p424 = pneg %p273
      %p425 = pneg %p297
      %p426 = pneg %p294
      %p427 = pneg %p323
      %p428 = pneg %p320
      %p429 = scmp.lt.s32.totalorder %s24, 1
      %s430 = scalar_select %p429, %s24, 1
      %s431 = smul.addr %s430, 8
      %s432 = scalar_lea.vmem %s13, %s431
      %s433 = smul.u32 64, %s24
      %p434 = scmp.lt.s32.totalorder %s433, 127
      %s435 = scalar_select %p434, %s433, 127
      %s436 = smul.addr %s435, 2
      %s437 = smul.addr %s436, 8
      %s438 = scalar_lea.vmem %s0, %s437
      %s439 = smul.u32 64, %s24
      %p440 = scmp.lt.s32.totalorder %s24, 1
      %s441 = scalar_select %p440, %s24, 1
      %s442 = smul.addr %s441, 8
      %s443 = scalar_lea.vmem %s13, %s442
      %v444 = vld [vmem:[%s438] sm:$0xff]
      %v445 = vld [vmem:[%s438 + $0x8] sm:$0xff]
      %v446 = vld [vmem:[%s438 + $0x10] sm:$0xff]
      %v447 = vld [vmem:[%s438 + $0x18] sm:$0xff]
      %v448 = vld [vmem:[%s438 + $0x20] sm:$0xff]
      %v449 = vld [vmem:[%s438 + $0x28] sm:$0xff]
      %v450 = vld [vmem:[%s438 + $0x30] sm:$0xff]
      %v451 = vld [vmem:[%s438 + $0x38] sm:$0xff]
      %v452 = vld [vmem:[%s438 + $0x40] sm:$0xff]
      %v453 = vld [vmem:[%s438 + $0x48] sm:$0xff]
      %v454 = vld [vmem:[%s438 + $0x50] sm:$0xff]
      %v455 = vld [vmem:[%s438 + $0x58] sm:$0xff]
      %v456 = vld [vmem:[%s438 + $0x60] sm:$0xff]
      %v457 = vld [vmem:[%s438 + $0x68] sm:$0xff]
      %v458 = vld [vmem:[%s438 + $0x70] sm:$0xff]
      %v459 = vld [vmem:[%s438 + $0x78] sm:$0xff]
      %v460 = vld [vmem:[%s438 + $0x80] sm:$0xff]
      %v461 = vld [vmem:[%s438 + $0x88] sm:$0xff]
      %v462 = vld [vmem:[%s438 + $0x90] sm:$0xff]
      %v463 = vld [vmem:[%s438 + $0x98] sm:$0xff]
      %v464 = vld [vmem:[%s438 + $0xa0] sm:$0xff]
      %v465 = vld [vmem:[%s438 + $0xa8] sm:$0xff]
      %v466 = vld [vmem:[%s438 + $0xb0] sm:$0xff]
      %v467 = vld [vmem:[%s438 + $0xb8] sm:$0xff]
      %v468 = vld [vmem:[%s438 + $0xc0] sm:$0xff]
      %v469 = vld [vmem:[%s438 + $0xc8] sm:$0xff]
      %v470 = vld [vmem:[%s438 + $0xd0] sm:$0xff]
      %v471 = vld [vmem:[%s438 + $0xd8] sm:$0xff]
      %v472 = vld [vmem:[%s438 + $0xe0] sm:$0xff]
      %v473 = vld [vmem:[%s438 + $0xe8] sm:$0xff]
      %v474 = vld [vmem:[%s438 + $0xf0] sm:$0xff]
      %v475 = vld [vmem:[%s438 + $0xf8] sm:$0xff]
      %v476 = vld [vmem:[%s438 + $0x100] sm:$0xff]
      %v477 = vld [vmem:[%s438 + $0x108] sm:$0xff]
      %v478 = vld [vmem:[%s438 + $0x110] sm:$0xff]
      %v479 = vld [vmem:[%s438 + $0x118] sm:$0xff]
      %v480 = vld [vmem:[%s438 + $0x120] sm:$0xff]
      %v481 = vld [vmem:[%s438 + $0x128] sm:$0xff]
      %v482 = vld [vmem:[%s438 + $0x130] sm:$0xff]
      %v483 = vld [vmem:[%s438 + $0x138] sm:$0xff]
      %v484 = vld [vmem:[%s438 + $0x140] sm:$0xff]
      %v485 = vld [vmem:[%s438 + $0x148] sm:$0xff]
      %v486 = vld [vmem:[%s438 + $0x150] sm:$0xff]
      %v487 = vld [vmem:[%s438 + $0x158] sm:$0xff]
      %v488 = vld [vmem:[%s438 + $0x160] sm:$0xff]
      %v489 = vld [vmem:[%s438 + $0x168] sm:$0xff]
      %v490 = vld [vmem:[%s438 + $0x170] sm:$0xff]
      %v491 = vld [vmem:[%s438 + $0x178] sm:$0xff]
      %v492 = vld [vmem:[%s438 + $0x180] sm:$0xff]
      %v493 = vld [vmem:[%s438 + $0x188] sm:$0xff]
      %v494 = vld [vmem:[%s438 + $0x190] sm:$0xff]
      %v495 = vld [vmem:[%s438 + $0x198] sm:$0xff]
      %v496 = vld [vmem:[%s438 + $0x1a0] sm:$0xff]
      %v497 = vld [vmem:[%s438 + $0x1a8] sm:$0xff]
      %v498 = vld [vmem:[%s438 + $0x1b0] sm:$0xff]
      %v499 = vld [vmem:[%s438 + $0x1b8] sm:$0xff]
      %v500 = vld [vmem:[%s438 + $0x1c0] sm:$0xff]
      %v501 = vld [vmem:[%s438 + $0x1c8] sm:$0xff]
      %v502 = vld [vmem:[%s438 + $0x1d0] sm:$0xff]
      %v503 = vld [vmem:[%s438 + $0x1d8] sm:$0xff]
      %v504 = vld [vmem:[%s438 + $0x1e0] sm:$0xff]
      %v505 = vld [vmem:[%s438 + $0x1e8] sm:$0xff]
      %v506 = vld [vmem:[%s438 + $0x1f0] sm:$0xff]
      %v507 = vld [vmem:[%s438 + $0x1f8] sm:$0xff]
      %v508 = vld [vmem:[%s438 + $0x200] sm:$0xff]
      %v509 = vld [vmem:[%s438 + $0x208] sm:$0xff]
      %v510 = vld [vmem:[%s438 + $0x210] sm:$0xff]
      %v511 = vld [vmem:[%s438 + $0x218] sm:$0xff]
      %v512 = vld [vmem:[%s438 + $0x220] sm:$0xff]
      %v513 = vld [vmem:[%s438 + $0x228] sm:$0xff]
      %v514 = vld [vmem:[%s438 + $0x230] sm:$0xff]
      %v515 = vld [vmem:[%s438 + $0x238] sm:$0xff]
      %v516 = vld [vmem:[%s438 + $0x240] sm:$0xff]
      %v517 = vld [vmem:[%s438 + $0x248] sm:$0xff]
      %v518 = vld [vmem:[%s438 + $0x250] sm:$0xff]
      %v519 = vld [vmem:[%s438 + $0x258] sm:$0xff]
      %v520 = vld [vmem:[%s438 + $0x260] sm:$0xff]
      %v521 = vld [vmem:[%s438 + $0x268] sm:$0xff]
      %v522 = vld [vmem:[%s438 + $0x270] sm:$0xff]
      %v523 = vld [vmem:[%s438 + $0x278] sm:$0xff]
      %v524 = vld [vmem:[%s438 + $0x280] sm:$0xff]
      %v525 = vld [vmem:[%s438 + $0x288] sm:$0xff]
      %v526 = vld [vmem:[%s438 + $0x290] sm:$0xff]
      %v527 = vld [vmem:[%s438 + $0x298] sm:$0xff]
      %v528 = vld [vmem:[%s438 + $0x2a0] sm:$0xff]
      %v529 = vld [vmem:[%s438 + $0x2a8] sm:$0xff]
      %v530 = vld [vmem:[%s438 + $0x2b0] sm:$0xff]
      %v531 = vld [vmem:[%s438 + $0x2b8] sm:$0xff]
      %v532 = vld [vmem:[%s438 + $0x2c0] sm:$0xff]
      %v533 = vld [vmem:[%s438 + $0x2c8] sm:$0xff]
      %v534 = vld [vmem:[%s438 + $0x2d0] sm:$0xff]
      %v535 = vld [vmem:[%s438 + $0x2d8] sm:$0xff]
      %v536 = vld [vmem:[%s438 + $0x2e0] sm:$0xff]
      %v537 = vld [vmem:[%s438 + $0x2e8] sm:$0xff]
      %v538 = vld [vmem:[%s438 + $0x2f0] sm:$0xff]
      %v539 = vld [vmem:[%s438 + $0x2f8] sm:$0xff]
      %v540 = vld [vmem:[%s438 + $0x300] sm:$0xff]
      %v541 = vld [vmem:[%s438 + $0x308] sm:$0xff]
      %v542 = vld [vmem:[%s438 + $0x310] sm:$0xff]
      %v543 = vld [vmem:[%s438 + $0x318] sm:$0xff]
      %v544 = vld [vmem:[%s438 + $0x320] sm:$0xff]
      %v545 = vld [vmem:[%s438 + $0x328] sm:$0xff]
      %v546 = vld [vmem:[%s438 + $0x330] sm:$0xff]
      %v547 = vld [vmem:[%s438 + $0x338] sm:$0xff]
      %v548 = vld [vmem:[%s438 + $0x340] sm:$0xff]
      %v549 = vld [vmem:[%s438 + $0x348] sm:$0xff]
      %v550 = vld [vmem:[%s438 + $0x350] sm:$0xff]
      %v551 = vld [vmem:[%s438 + $0x358] sm:$0xff]
      %v552 = vld [vmem:[%s438 + $0x360] sm:$0xff]
      %v553 = vld [vmem:[%s438 + $0x368] sm:$0xff]
      %v554 = vld [vmem:[%s438 + $0x370] sm:$0xff]
      %v555 = vld [vmem:[%s438 + $0x378] sm:$0xff]
      %v556 = vld [vmem:[%s438 + $0x380] sm:$0xff]
      %v557 = vld [vmem:[%s438 + $0x388] sm:$0xff]
      %v558 = vld [vmem:[%s438 + $0x390] sm:$0xff]
      %v559 = vld [vmem:[%s438 + $0x398] sm:$0xff]
      %v560 = vld [vmem:[%s438 + $0x3a0] sm:$0xff]
      %v561 = vld [vmem:[%s438 + $0x3a8] sm:$0xff]
      %v562 = vld [vmem:[%s438 + $0x3b0] sm:$0xff]
      %v563 = vld [vmem:[%s438 + $0x3b8] sm:$0xff]
      %v564 = vld [vmem:[%s438 + $0x3c0] sm:$0xff]
      %v565 = vld [vmem:[%s438 + $0x3c8] sm:$0xff]
      %v566 = vld [vmem:[%s438 + $0x3d0] sm:$0xff]
      %v567 = vld [vmem:[%s438 + $0x3d8] sm:$0xff]
      %v568 = vld [vmem:[%s438 + $0x3e0] sm:$0xff]
      %v569 = vld [vmem:[%s438 + $0x3e8] sm:$0xff]
      %v570 = vld [vmem:[%s438 + $0x3f0] sm:$0xff]
      %v571 = vld [vmem:[%s438 + $0x3f8] sm:$0xff]
      %v572 = vld [vmem:[%s1] sm:$0xff]
      %v573 = vld [vmem:[%s1 + $0x8] sm:$0xff]
      %v574 = vld [vmem:[%s1 + $0x10] sm:$0xff]
      %v575 = vld [vmem:[%s1 + $0x18] sm:$0xff]
      %v576 = vld [vmem:[%s1 + $0x20] sm:$0xff]
      %v577 = vld [vmem:[%s1 + $0x28] sm:$0xff]
      %v578 = vld [vmem:[%s1 + $0x30] sm:$0xff]
      %v579 = vld [vmem:[%s1 + $0x38] sm:$0xff]
      %v580 = vld [vmem:[%s1 + $0x40] sm:$0xff]
      %v581 = vld [vmem:[%s1 + $0x48] sm:$0xff]
      %v582 = vld [vmem:[%s1 + $0x50] sm:$0xff]
      %v583 = vld [vmem:[%s1 + $0x58] sm:$0xff]
      %v584 = vld [vmem:[%s1 + $0x60] sm:$0xff]
      %v585 = vld [vmem:[%s1 + $0x68] sm:$0xff]
      %v586 = vld [vmem:[%s1 + $0x70] sm:$0xff]
      %v587 = vld [vmem:[%s1 + $0x78] sm:$0xff]
      %v588 = vld [vmem:[%s1 + $0x80] sm:$0xff]
      %v589 = vld [vmem:[%s1 + $0x88] sm:$0xff]
      %v590 = vld [vmem:[%s1 + $0x90] sm:$0xff]
      %v591 = vld [vmem:[%s1 + $0x98] sm:$0xff]
      %v592 = vld [vmem:[%s1 + $0xa0] sm:$0xff]
      %v593 = vld [vmem:[%s1 + $0xa8] sm:$0xff]
      %v594 = vld [vmem:[%s1 + $0xb0] sm:$0xff]
      %v595 = vld [vmem:[%s1 + $0xb8] sm:$0xff]
      %v596 = vld [vmem:[%s2] sm:$0x1]
      %v598 = vperm.slane %v596, 0
      %vm600 = vcmask 523264
      %v602 = vsel %vm600, %v445, 0
      %v605 = vsel %vm600, %v447, 0
      %v608 = vsel %vm600, %v449, 0
      %v611 = vsel %vm600, %v451, 0
      %v614 = vsel %vm600, %v453, 0
      %v617 = vsel %vm600, %v455, 0
      %v620 = vsel %vm600, %v457, 0
      %v623 = vsel %vm600, %v459, 0
      %v626 = vsel %vm600, %v461, 0
      %v629 = vsel %vm600, %v463, 0
      %v632 = vsel %vm600, %v465, 0
      %v635 = vsel %vm600, %v467, 0
      %v638 = vsel %vm600, %v469, 0
      %v641 = vsel %vm600, %v471, 0
      %v644 = vsel %vm600, %v473, 0
      %v647 = vsel %vm600, %v475, 0
      %v650 = vsel %vm600, %v477, 0
      %v653 = vsel %vm600, %v479, 0
      %v656 = vsel %vm600, %v481, 0
      %v659 = vsel %vm600, %v483, 0
      %v662 = vsel %vm600, %v485, 0
      %v665 = vsel %vm600, %v487, 0
      %v668 = vsel %vm600, %v489, 0
      %v671 = vsel %vm600, %v491, 0
      %v674 = vsel %vm600, %v493, 0
      %v677 = vsel %vm600, %v495, 0
      %v680 = vsel %vm600, %v497, 0
      %v683 = vsel %vm600, %v499, 0
      %v686 = vsel %vm600, %v501, 0
      %v689 = vsel %vm600, %v503, 0
      %v692 = vsel %vm600, %v505, 0
      %v695 = vsel %vm600, %v507, 0
      %v698 = vsel %vm600, %v509, 0
      %v701 = vsel %vm600, %v511, 0
      %v704 = vsel %vm600, %v513, 0
      %v707 = vsel %vm600, %v515, 0
      %v710 = vsel %vm600, %v517, 0
      %v713 = vsel %vm600, %v519, 0
      %v716 = vsel %vm600, %v521, 0
      %v719 = vsel %vm600, %v523, 0
      %v722 = vsel %vm600, %v525, 0
      %v725 = vsel %vm600, %v527, 0
      %v728 = vsel %vm600, %v529, 0
      %v731 = vsel %vm600, %v531, 0
      %v734 = vsel %vm600, %v533, 0
      %v737 = vsel %vm600, %v535, 0
      %v740 = vsel %vm600, %v537, 0
      %v743 = vsel %vm600, %v539, 0
      %v746 = vsel %vm600, %v541, 0
      %v749 = vsel %vm600, %v543, 0
      %v752 = vsel %vm600, %v545, 0
      %v755 = vsel %vm600, %v547, 0
      %v758 = vsel %vm600, %v549, 0
      %v761 = vsel %vm600, %v551, 0
      %v764 = vsel %vm600, %v553, 0
      %v767 = vsel %vm600, %v555, 0
      %v770 = vsel %vm600, %v557, 0
      %v773 = vsel %vm600, %v559, 0
      %v776 = vsel %vm600, %v561, 0
      %v779 = vsel %vm600, %v563, 0
      %v782 = vsel %vm600, %v565, 0
      %v785 = vsel %vm600, %v567, 0
      %v788 = vsel %vm600, %v569, 0
      %v791 = vsel %vm600, %v571, 0
      %793 = vmatpush.msra.mxu0 %v587
      %794 = vmatpush.msra.mxu0 %v586
      %795 = vmatpush.msra.mxu0 %v585
      %796 = vmatpush.msra.mxu0 %v584
      %797 = vmatpush.msra.mxu0 %v583
      %798 = vmatpush.msra.mxu0 %v582
      %799 = vmatpush.msra.mxu0 %v581
      %800 = vmatpush.msra.mxu0 %v580
      %801 = vmatpush.msra.mxu0 %v579
      %802 = vmatpush.msra.mxu0 %v578
      %803 = vmatpush.msra.mxu0 %v577
      %804 = vmatpush.msra.mxu0 %v576
      %805 = vmatpush.msra.mxu0 %v575
      %806 = vmatpush.msra.mxu0 %v574
      %807 = vmatpush.msra.mxu0 %v573
      %808 = vmatpush.msra.mxu0 %v572
      %809 = vmatmul.f32.gmra.mxu0 %v444
      %v810 = vpop.f32.mrf.mxu0
      %v811 = vadd.f32 %v598, %v810
      %812 = vmatmul.f32.gmra.mxu0 %v446
      %v813 = vpop.f32.mrf.mxu0
      %v814 = vadd.f32 %v598, %v813
      %815 = vmatmul.f32.gmra.mxu0 %v448
      %v816 = vpop.f32.mrf.mxu0
      %v817 = vadd.f32 %v598, %v816
      %818 = vmatmul.f32.gmra.mxu0 %v450
      %v819 = vpop.f32.mrf.mxu0
      %v820 = vadd.f32 %v598, %v819
      %821 = vmatmul.f32.gmra.mxu0 %v452
      %v822 = vpop.f32.mrf.mxu0
      %v823 = vadd.f32 %v598, %v822
      %824 = vmatmul.f32.gmra.mxu0 %v454
      %v825 = vpop.f32.mrf.mxu0
      %v826 = vadd.f32 %v598, %v825
      %827 = vmatmul.f32.gmra.mxu0 %v456
      %v828 = vpop.f32.mrf.mxu0
      %v829 = vadd.f32 %v598, %v828
      %830 = vmatmul.f32.gmra.mxu0 %v458
      %v831 = vpop.f32.mrf.mxu0
      %v832 = vadd.f32 %v598, %v831
      %833 = vmatmul.f32.gmra.mxu0 %v460
      %v834 = vpop.f32.mrf.mxu0
      %v835 = vadd.f32 %v598, %v834
      %836 = vmatmul.f32.gmra.mxu0 %v462
      %v837 = vpop.f32.mrf.mxu0
      %v838 = vadd.f32 %v598, %v837
      %839 = vmatmul.f32.gmra.mxu0 %v464
      %v840 = vpop.f32.mrf.mxu0
      %v841 = vadd.f32 %v598, %v840
      %842 = vmatmul.f32.gmra.mxu0 %v466
      %v843 = vpop.f32.mrf.mxu0
      %v844 = vadd.f32 %v598, %v843
      %845 = vmatmul.f32.gmra.mxu0 %v468
      %v846 = vpop.f32.mrf.mxu0
      %v847 = vadd.f32 %v598, %v846
      %848 = vmatmul.f32.gmra.mxu0 %v470
      %v849 = vpop.f32.mrf.mxu0
      %v850 = vadd.f32 %v598, %v849
      %851 = vmatmul.f32.gmra.mxu0 %v472
      %v852 = vpop.f32.mrf.mxu0
      %v853 = vadd.f32 %v598, %v852
      %854 = vmatmul.f32.gmra.mxu0 %v474
      %v855 = vpop.f32.mrf.mxu0
      %v856 = vadd.f32 %v598, %v855
      %857 = vmatmul.f32.gmra.mxu0 %v476
      %v858 = vpop.f32.mrf.mxu0
      %v859 = vadd.f32 %v598, %v858
      %860 = vmatmul.f32.gmra.mxu0 %v478
      %v861 = vpop.f32.mrf.mxu0
      %v862 = vadd.f32 %v598, %v861
      %863 = vmatmul.f32.gmra.mxu0 %v480
      %v864 = vpop.f32.mrf.mxu0
      %v865 = vadd.f32 %v598, %v864
      %866 = vmatmul.f32.gmra.mxu0 %v482
      %v867 = vpop.f32.mrf.mxu0
      %v868 = vadd.f32 %v598, %v867
      %869 = vmatmul.f32.gmra.mxu0 %v484
      %v870 = vpop.f32.mrf.mxu0
      %v871 = vadd.f32 %v598, %v870
      %872 = vmatmul.f32.gmra.mxu0 %v486
      %v873 = vpop.f32.mrf.mxu0
      %v874 = vadd.f32 %v598, %v873
      %875 = vmatmul.f32.gmra.mxu0 %v488
      %v876 = vpop.f32.mrf.mxu0
      %v877 = vadd.f32 %v598, %v876
      %878 = vmatmul.f32.gmra.mxu0 %v490
      %v879 = vpop.f32.mrf.mxu0
      %v880 = vadd.f32 %v598, %v879
      %881 = vmatmul.f32.gmra.mxu0 %v492
      %v882 = vpop.f32.mrf.mxu0
      %v883 = vadd.f32 %v598, %v882
      %884 = vmatmul.f32.gmra.mxu0 %v494
      %v885 = vpop.f32.mrf.mxu0
      %v886 = vadd.f32 %v598, %v885
      %887 = vmatmul.f32.gmra.mxu0 %v496
      %v888 = vpop.f32.mrf.mxu0
      %v889 = vadd.f32 %v598, %v888
      %890 = vmatmul.f32.gmra.mxu0 %v498
      %v891 = vpop.f32.mrf.mxu0
      %v892 = vadd.f32 %v598, %v891
      %893 = vmatmul.f32.gmra.mxu0 %v500
      %v894 = vpop.f32.mrf.mxu0
      %v895 = vadd.f32 %v598, %v894
      %896 = vmatmul.f32.gmra.mxu0 %v502
      %v897 = vpop.f32.mrf.mxu0
      %v898 = vadd.f32 %v598, %v897
      %899 = vmatmul.f32.gmra.mxu0 %v504
      %v900 = vpop.f32.mrf.mxu0
      %v901 = vadd.f32 %v598, %v900
      %902 = vmatmul.f32.gmra.mxu0 %v506
      %v903 = vpop.f32.mrf.mxu0
      %v904 = vadd.f32 %v598, %v903
      %905 = vmatmul.f32.gmra.mxu0 %v508
      %v906 = vpop.f32.mrf.mxu0
      %v907 = vadd.f32 %v598, %v906
      %908 = vmatmul.f32.gmra.mxu0 %v510
      %v909 = vpop.f32.mrf.mxu0
      %v910 = vadd.f32 %v598, %v909
      %911 = vmatmul.f32.gmra.mxu0 %v512
      %v912 = vpop.f32.mrf.mxu0
      %v913 = vadd.f32 %v598, %v912
      %914 = vmatmul.f32.gmra.mxu0 %v514
      %v915 = vpop.f32.mrf.mxu0
      %v916 = vadd.f32 %v598, %v915
      %917 = vmatmul.f32.gmra.mxu0 %v516
      %v918 = vpop.f32.mrf.mxu0
      %v919 = vadd.f32 %v598, %v918
      %920 = vmatmul.f32.gmra.mxu0 %v518
      %v921 = vpop.f32.mrf.mxu0
      %v922 = vadd.f32 %v598, %v921
      %923 = vmatmul.f32.gmra.mxu0 %v520
      %v924 = vpop.f32.mrf.mxu0
      %v925 = vadd.f32 %v598, %v924
      %926 = vmatmul.f32.gmra.mxu0 %v522
      %v927 = vpop.f32.mrf.mxu0
      %v928 = vadd.f32 %v598, %v927
      %929 = vmatmul.f32.gmra.mxu0 %v524
      %v930 = vpop.f32.mrf.mxu0
      %v931 = vadd.f32 %v598, %v930
      %932 = vmatmul.f32.gmra.mxu0 %v526
      %v933 = vpop.f32.mrf.mxu0
      %v934 = vadd.f32 %v598, %v933
      %935 = vmatmul.f32.gmra.mxu0 %v528
      %v936 = vpop.f32.mrf.mxu0
      %v937 = vadd.f32 %v598, %v936
      %938 = vmatmul.f32.gmra.mxu0 %v530
      %v939 = vpop.f32.mrf.mxu0
      %v940 = vadd.f32 %v598, %v939
      %941 = vmatmul.f32.gmra.mxu0 %v532
      %v942 = vpop.f32.mrf.mxu0
      %v943 = vadd.f32 %v598, %v942
      %944 = vmatmul.f32.gmra.mxu0 %v534
      %v945 = vpop.f32.mrf.mxu0
      %v946 = vadd.f32 %v598, %v945
      %947 = vmatmul.f32.gmra.mxu0 %v536
      %v948 = vpop.f32.mrf.mxu0
      %v949 = vadd.f32 %v598, %v948
      %950 = vmatmul.f32.gmra.mxu0 %v538
      %v951 = vpop.f32.mrf.mxu0
      %v952 = vadd.f32 %v598, %v951
      %953 = vmatmul.f32.gmra.mxu0 %v540
      %v954 = vpop.f32.mrf.mxu0
      %v955 = vadd.f32 %v598, %v954
      %956 = vmatmul.f32.gmra.mxu0 %v542
      %v957 = vpop.f32.mrf.mxu0
      %v958 = vadd.f32 %v598, %v957
      %959 = vmatmul.f32.gmra.mxu0 %v544
      %v960 = vpop.f32.mrf.mxu0
      %v961 = vadd.f32 %v598, %v960
      %962 = vmatmul.f32.gmra.mxu0 %v546
      %v963 = vpop.f32.mrf.mxu0
      %v964 = vadd.f32 %v598, %v963
      %965 = vmatmul.f32.gmra.mxu0 %v548
      %v966 = vpop.f32.mrf.mxu0
      %v967 = vadd.f32 %v598, %v966
      %968 = vmatmul.f32.gmra.mxu0 %v550
      %v969 = vpop.f32.mrf.mxu0
      %v970 = vadd.f32 %v598, %v969
      %971 = vmatmul.f32.gmra.mxu0 %v552
      %v972 = vpop.f32.mrf.mxu0
      %v973 = vadd.f32 %v598, %v972
      %974 = vmatmul.f32.gmra.mxu0 %v554
      %v975 = vpop.f32.mrf.mxu0
      %v976 = vadd.f32 %v598, %v975
      %977 = vmatmul.f32.gmra.mxu0 %v556
      %v978 = vpop.f32.mrf.mxu0
      %v979 = vadd.f32 %v598, %v978
      %980 = vmatmul.f32.gmra.mxu0 %v558
      %v981 = vpop.f32.mrf.mxu0
      %v982 = vadd.f32 %v598, %v981
      %983 = vmatmul.f32.gmra.mxu0 %v560
      %v984 = vpop.f32.mrf.mxu0
      %v985 = vadd.f32 %v598, %v984
      %986 = vmatmul.f32.gmra.mxu0 %v562
      %v987 = vpop.f32.mrf.mxu0
      %v988 = vadd.f32 %v598, %v987
      %989 = vmatmul.f32.gmra.mxu0 %v564
      %v990 = vpop.f32.mrf.mxu0
      %v991 = vadd.f32 %v598, %v990
      %992 = vmatmul.f32.gmra.mxu0 %v566
      %v993 = vpop.f32.mrf.mxu0
      %v994 = vadd.f32 %v598, %v993
      %995 = vmatmul.f32.gmra.mxu0 %v568
      %v996 = vpop.f32.mrf.mxu0
      %v997 = vadd.f32 %v598, %v996
      %998 = vmatmul.f32.gmra.mxu0 %v570
      %v999 = vpop.f32.mrf.mxu0
      %v1000 = vadd.f32 %v598, %v999
      %1001 = vdwg.mxu0
      %1002 = vmatpush.msra.mxu0 0.0
      %1003 = vmatpush.msra.mxu0 0.0
      %1004 = vmatpush.msra.mxu0 0.0
      %1005 = vmatpush.msra.mxu0 0.0
      %1006 = vmatpush.msra.mxu0 0.0
      %1007 = vmatpush.msra.mxu0 0.0
      %1008 = vmatpush.msra.mxu0 0.0
      %1009 = vmatpush.msra.mxu0 0.0
      %1010 = vmatpush.msra.mxu0 %v595
      %1011 = vmatpush.msra.mxu0 %v594
      %1012 = vmatpush.msra.mxu0 %v593
      %1013 = vmatpush.msra.mxu0 %v592
      %1014 = vmatpush.msra.mxu0 %v591
      %1015 = vmatpush.msra.mxu0 %v590
      %1016 = vmatpush.msra.mxu0 %v589
      %1017 = vmatpush.msra.mxu0 %v588
      %1018 = vmatmul.f32.gmra.mxu0 %v602
      %v1019 = vpop.f32.mrf.mxu0
      %v1020 = vadd.f32 %v811, %v1019
      %1021 = vmatmul.f32.gmra.mxu0 %v605
      %v1022 = vpop.f32.mrf.mxu0
      %v1023 = vadd.f32 %v814, %v1022
      %1024 = vmatmul.f32.gmra.mxu0 %v608
      %v1025 = vpop.f32.mrf.mxu0
      %v1026 = vadd.f32 %v817, %v1025
      %1027 = vmatmul.f32.gmra.mxu0 %v611
      %v1028 = vpop.f32.mrf.mxu0
      %v1029 = vadd.f32 %v820, %v1028
      %1030 = vmatmul.f32.gmra.mxu0 %v614
      %v1031 = vpop.f32.mrf.mxu0
      %v1032 = vadd.f32 %v823, %v1031
      %1033 = vmatmul.f32.gmra.mxu0 %v617
      %v1034 = vpop.f32.mrf.mxu0
      %v1035 = vadd.f32 %v826, %v1034
      %1036 = vmatmul.f32.gmra.mxu0 %v620
      %v1037 = vpop.f32.mrf.mxu0
      %v1038 = vadd.f32 %v829, %v1037
      %1039 = vmatmul.f32.gmra.mxu0 %v623
      %v1040 = vpop.f32.mrf.mxu0
      %v1041 = vadd.f32 %v832, %v1040
      %1042 = vmatmul.f32.gmra.mxu0 %v626
      %v1043 = vpop.f32.mrf.mxu0
      %v1044 = vadd.f32 %v835, %v1043
      %1045 = vmatmul.f32.gmra.mxu0 %v629
      %v1046 = vpop.f32.mrf.mxu0
      %v1047 = vadd.f32 %v838, %v1046
      %1048 = vmatmul.f32.gmra.mxu0 %v632
      %v1049 = vpop.f32.mrf.mxu0
      %v1050 = vadd.f32 %v841, %v1049
      %1051 = vmatmul.f32.gmra.mxu0 %v635
      %v1052 = vpop.f32.mrf.mxu0
      %v1053 = vadd.f32 %v844, %v1052
      %1054 = vmatmul.f32.gmra.mxu0 %v638
      %v1055 = vpop.f32.mrf.mxu0
      %v1056 = vadd.f32 %v847, %v1055
      %1057 = vmatmul.f32.gmra.mxu0 %v641
      %v1058 = vpop.f32.mrf.mxu0
      %v1059 = vadd.f32 %v850, %v1058
      %1060 = vmatmul.f32.gmra.mxu0 %v644
      %v1061 = vpop.f32.mrf.mxu0
      %v1062 = vadd.f32 %v853, %v1061
      %1063 = vmatmul.f32.gmra.mxu0 %v647
      %v1064 = vpop.f32.mrf.mxu0
      %v1065 = vadd.f32 %v856, %v1064
      %1066 = vmatmul.f32.gmra.mxu0 %v650
      %v1067 = vpop.f32.mrf.mxu0
      %v1068 = vadd.f32 %v859, %v1067
      %1069 = vmatmul.f32.gmra.mxu0 %v653
      %v1070 = vpop.f32.mrf.mxu0
      %v1071 = vadd.f32 %v862, %v1070
      %1072 = vmatmul.f32.gmra.mxu0 %v656
      %v1073 = vpop.f32.mrf.mxu0
      %v1074 = vadd.f32 %v865, %v1073
      %1075 = vmatmul.f32.gmra.mxu0 %v659
      %v1076 = vpop.f32.mrf.mxu0
      %v1077 = vadd.f32 %v868, %v1076
      %1078 = vmatmul.f32.gmra.mxu0 %v662
      %v1079 = vpop.f32.mrf.mxu0
      %v1080 = vadd.f32 %v871, %v1079
      %1081 = vmatmul.f32.gmra.mxu0 %v665
      %v1082 = vpop.f32.mrf.mxu0
      %v1083 = vadd.f32 %v874, %v1082
      %1084 = vmatmul.f32.gmra.mxu0 %v668
      %v1085 = vpop.f32.mrf.mxu0
      %v1086 = vadd.f32 %v877, %v1085
      %1087 = vmatmul.f32.gmra.mxu0 %v671
      %v1088 = vpop.f32.mrf.mxu0
      %v1089 = vadd.f32 %v880, %v1088
      %1090 = vmatmul.f32.gmra.mxu0 %v674
      %v1091 = vpop.f32.mrf.mxu0
      %v1092 = vadd.f32 %v883, %v1091
      %1093 = vmatmul.f32.gmra.mxu0 %v677
      %v1094 = vpop.f32.mrf.mxu0
      %v1095 = vadd.f32 %v886, %v1094
      %1096 = vmatmul.f32.gmra.mxu0 %v680
      %v1097 = vpop.f32.mrf.mxu0
      %v1098 = vadd.f32 %v889, %v1097
      %1099 = vmatmul.f32.gmra.mxu0 %v683
      %v1100 = vpop.f32.mrf.mxu0
      %v1101 = vadd.f32 %v892, %v1100
      %1102 = vmatmul.f32.gmra.mxu0 %v686
      %v1103 = vpop.f32.mrf.mxu0
      %v1104 = vadd.f32 %v895, %v1103
      %1105 = vmatmul.f32.gmra.mxu0 %v689
      %v1106 = vpop.f32.mrf.mxu0
      %v1107 = vadd.f32 %v898, %v1106
      %1108 = vmatmul.f32.gmra.mxu0 %v692
      %v1109 = vpop.f32.mrf.mxu0
      %v1110 = vadd.f32 %v901, %v1109
      %1111 = vmatmul.f32.gmra.mxu0 %v695
      %v1112 = vpop.f32.mrf.mxu0
      %v1113 = vadd.f32 %v904, %v1112
      %1114 = vmatmul.f32.gmra.mxu0 %v698
      %v1115 = vpop.f32.mrf.mxu0
      %v1116 = vadd.f32 %v907, %v1115
      %1117 = vmatmul.f32.gmra.mxu0 %v701
      %v1118 = vpop.f32.mrf.mxu0
      %v1119 = vadd.f32 %v910, %v1118
      %1120 = vmatmul.f32.gmra.mxu0 %v704
      %v1121 = vpop.f32.mrf.mxu0
      %v1122 = vadd.f32 %v913, %v1121
      %1123 = vmatmul.f32.gmra.mxu0 %v707
      %v1124 = vpop.f32.mrf.mxu0
      %v1125 = vadd.f32 %v916, %v1124
      %1126 = vmatmul.f32.gmra.mxu0 %v710
      %v1127 = vpop.f32.mrf.mxu0
      %v1128 = vadd.f32 %v919, %v1127
      %1129 = vmatmul.f32.gmra.mxu0 %v713
      %v1130 = vpop.f32.mrf.mxu0
      %v1131 = vadd.f32 %v922, %v1130
      %1132 = vmatmul.f32.gmra.mxu0 %v716
      %v1133 = vpop.f32.mrf.mxu0
      %v1134 = vadd.f32 %v925, %v1133
      %1135 = vmatmul.f32.gmra.mxu0 %v719
      %v1136 = vpop.f32.mrf.mxu0
      %v1137 = vadd.f32 %v928, %v1136
      %1138 = vmatmul.f32.gmra.mxu0 %v722
      %v1139 = vpop.f32.mrf.mxu0
      %v1140 = vadd.f32 %v931, %v1139
      %1141 = vmatmul.f32.gmra.mxu0 %v725
      %v1142 = vpop.f32.mrf.mxu0
      %v1143 = vadd.f32 %v934, %v1142
      %1144 = vmatmul.f32.gmra.mxu0 %v728
      %v1145 = vpop.f32.mrf.mxu0
      %v1146 = vadd.f32 %v937, %v1145
      %1147 = vmatmul.f32.gmra.mxu0 %v731
      %v1148 = vpop.f32.mrf.mxu0
      %v1149 = vadd.f32 %v940, %v1148
      %1150 = vmatmul.f32.gmra.mxu0 %v734
      %v1151 = vpop.f32.mrf.mxu0
      %v1152 = vadd.f32 %v943, %v1151
      %1153 = vmatmul.f32.gmra.mxu0 %v737
      %v1154 = vpop.f32.mrf.mxu0
      %v1155 = vadd.f32 %v946, %v1154
      %1156 = vmatmul.f32.gmra.mxu0 %v740
      %v1157 = vpop.f32.mrf.mxu0
      %v1158 = vadd.f32 %v949, %v1157
      %1159 = vmatmul.f32.gmra.mxu0 %v743
      %v1160 = vpop.f32.mrf.mxu0
      %v1161 = vadd.f32 %v952, %v1160
      %1162 = vmatmul.f32.gmra.mxu0 %v746
      %v1163 = vpop.f32.mrf.mxu0
      %v1164 = vadd.f32 %v955, %v1163
      %1165 = vmatmul.f32.gmra.mxu0 %v749
      %v1166 = vpop.f32.mrf.mxu0
      %v1167 = vadd.f32 %v958, %v1166
      %1168 = vmatmul.f32.gmra.mxu0 %v752
      %v1169 = vpop.f32.mrf.mxu0
      %v1170 = vadd.f32 %v961, %v1169
      %1171 = vmatmul.f32.gmra.mxu0 %v755
      %v1172 = vpop.f32.mrf.mxu0
      %v1173 = vadd.f32 %v964, %v1172
      %1174 = vmatmul.f32.gmra.mxu0 %v758
      %v1175 = vpop.f32.mrf.mxu0
      %v1176 = vadd.f32 %v967, %v1175
      %1177 = vmatmul.f32.gmra.mxu0 %v761
      %v1178 = vpop.f32.mrf.mxu0
      %v1179 = vadd.f32 %v970, %v1178
      %1180 = vmatmul.f32.gmra.mxu0 %v764
      %v1181 = vpop.f32.mrf.mxu0
      %v1182 = vadd.f32 %v973, %v1181
      %1183 = vmatmul.f32.gmra.mxu0 %v767
      %v1184 = vpop.f32.mrf.mxu0
      %v1185 = vadd.f32 %v976, %v1184
      %1186 = vmatmul.f32.gmra.mxu0 %v770
      %v1187 = vpop.f32.mrf.mxu0
      %v1188 = vadd.f32 %v979, %v1187
      %1189 = vmatmul.f32.gmra.mxu0 %v773
      %v1190 = vpop.f32.mrf.mxu0
      %v1191 = vadd.f32 %v982, %v1190
      %1192 = vmatmul.f32.gmra.mxu0 %v776
      %v1193 = vpop.f32.mrf.mxu0
      %v1194 = vadd.f32 %v985, %v1193
      %1195 = vmatmul.f32.gmra.mxu0 %v779
      %v1196 = vpop.f32.mrf.mxu0
      %v1197 = vadd.f32 %v988, %v1196
      %1198 = vmatmul.f32.gmra.mxu0 %v782
      %v1199 = vpop.f32.mrf.mxu0
      %v1200 = vadd.f32 %v991, %v1199
      %1201 = vmatmul.f32.gmra.mxu0 %v785
      %v1202 = vpop.f32.mrf.mxu0
      %v1203 = vadd.f32 %v994, %v1202
      %1204 = vmatmul.f32.gmra.mxu0 %v788
      %v1205 = vpop.f32.mrf.mxu0
      %v1206 = vadd.f32 %v997, %v1205
      %1207 = vmatmul.f32.gmra.mxu0 %v791
      %v1208 = vpop.f32.mrf.mxu0
      %v1209 = vadd.f32 %v1000, %v1208
      %1210 = vdwg.mxu0
      %v1211 = vmax.f32 %v1020, 0.0
      %v1212 = vmax.f32 %v1023, 0.0
      %v1213 = vmax.f32 %v1026, 0.0
      %v1214 = vmax.f32 %v1029, 0.0
      %v1215 = vmax.f32 %v1032, 0.0
      %v1216 = vmax.f32 %v1035, 0.0
      %v1217 = vmax.f32 %v1038, 0.0
      %v1218 = vmax.f32 %v1041, 0.0
      %v1219 = vmax.f32 %v1044, 0.0
      %v1220 = vmax.f32 %v1047, 0.0
      %v1221 = vmax.f32 %v1050, 0.0
      %v1222 = vmax.f32 %v1053, 0.0
      %v1223 = vmax.f32 %v1056, 0.0
      %v1224 = vmax.f32 %v1059, 0.0
      %v1225 = vmax.f32 %v1062, 0.0
      %v1226 = vmax.f32 %v1065, 0.0
      %v1227 = vmax.f32 %v1068, 0.0
      %v1228 = vmax.f32 %v1071, 0.0
      %v1229 = vmax.f32 %v1074, 0.0
      %v1230 = vmax.f32 %v1077, 0.0
      %v1231 = vmax.f32 %v1080, 0.0
      %v1232 = vmax.f32 %v1083, 0.0
      %v1233 = vmax.f32 %v1086, 0.0
      %v1234 = vmax.f32 %v1089, 0.0
      %v1235 = vmax.f32 %v1092, 0.0
      %v1236 = vmax.f32 %v1095, 0.0
      %v1237 = vmax.f32 %v1098, 0.0
      %v1238 = vmax.f32 %v1101, 0.0
      %v1239 = vmax.f32 %v1104, 0.0
      %v1240 = vmax.f32 %v1107, 0.0
      %v1241 = vmax.f32 %v1110, 0.0
      %v1242 = vmax.f32 %v1113, 0.0
      %v1243 = vmax.f32 %v1116, 0.0
      %v1244 = vmax.f32 %v1119, 0.0
      %v1245 = vmax.f32 %v1122, 0.0
      %v1246 = vmax.f32 %v1125, 0.0
      %v1247 = vmax.f32 %v1128, 0.0
      %v1248 = vmax.f32 %v1131, 0.0
      %v1249 = vmax.f32 %v1134, 0.0
      %v1250 = vmax.f32 %v1137, 0.0
      %v1251 = vmax.f32 %v1140, 0.0
      %v1252 = vmax.f32 %v1143, 0.0
      %v1253 = vmax.f32 %v1146, 0.0
      %v1254 = vmax.f32 %v1149, 0.0
      %v1255 = vmax.f32 %v1152, 0.0
      %v1256 = vmax.f32 %v1155, 0.0
      %v1257 = vmax.f32 %v1158, 0.0
      %v1258 = vmax.f32 %v1161, 0.0
      %v1259 = vmax.f32 %v1164, 0.0
      %v1260 = vmax.f32 %v1167, 0.0
      %v1261 = vmax.f32 %v1170, 0.0
      %v1262 = vmax.f32 %v1173, 0.0
      %v1263 = vmax.f32 %v1176, 0.0
      %v1264 = vmax.f32 %v1179, 0.0
      %v1265 = vmax.f32 %v1182, 0.0
      %v1266 = vmax.f32 %v1185, 0.0
      %v1267 = vmax.f32 %v1188, 0.0
      %v1268 = vmax.f32 %v1191, 0.0
      %v1269 = vmax.f32 %v1194, 0.0
      %v1270 = vmax.f32 %v1197, 0.0
      %v1271 = vmax.f32 %v1200, 0.0
      %v1272 = vmax.f32 %v1203, 0.0
      %v1273 = vmax.f32 %v1206, 0.0
      %v1274 = vmax.f32 %v1209, 0.0
      %v1275 = vld [vmem:[%s3] sm:$0xff]
      %v1276 = vld [vmem:[%s3 + $0x8] sm:$0xff]
      %v1277 = vld [vmem:[%s3 + $0x10] sm:$0xff]
      %v1278 = vld [vmem:[%s3 + $0x18] sm:$0xff]
      %v1279 = vld [vmem:[%s3 + $0x20] sm:$0xff]
      %v1280 = vld [vmem:[%s3 + $0x28] sm:$0xff]
      %v1281 = vld [vmem:[%s3 + $0x30] sm:$0xff]
      %v1282 = vld [vmem:[%s3 + $0x38] sm:$0xff]
      %v1283 = vld [vmem:[%s3 + $0x40] sm:$0xff]
      %v1284 = vld [vmem:[%s3 + $0x48] sm:$0xff]
      %v1285 = vld [vmem:[%s3 + $0x50] sm:$0xff]
      %v1286 = vld [vmem:[%s3 + $0x58] sm:$0xff]
      %v1287 = vld [vmem:[%s3 + $0x60] sm:$0xff]
      %v1288 = vld [vmem:[%s3 + $0x68] sm:$0xff]
      %v1289 = vld [vmem:[%s3 + $0x70] sm:$0xff]
      %v1290 = vld [vmem:[%s3 + $0x78] sm:$0xff]
      %v1291 = vld [vmem:[%s3 + $0x80] sm:$0xff]
      %v1292 = vld [vmem:[%s3 + $0x88] sm:$0xff]
      %v1294 = vsel %vm600, %v1275, 0
      %v1297 = vsel %vm600, %v1276, 0
      %v1300 = vsel %vm600, %v1277, 0
      %v1303 = vsel %vm600, %v1278, 0
      %v1306 = vsel %vm600, %v1279, 0
      %v1309 = vsel %vm600, %v1280, 0
      %v1312 = vsel %vm600, %v1281, 0
      %v1315 = vsel %vm600, %v1282, 0
      %v1318 = vsel %vm600, %v1283, 0
      %v1321 = vsel %vm600, %v1284, 0
      %v1324 = vsel %vm600, %v1285, 0
      %v1327 = vsel %vm600, %v1286, 0
      %v1330 = vsel %vm600, %v1287, 0
      %v1333 = vsel %vm600, %v1288, 0
      %v1336 = vsel %vm600, %v1289, 0
      %v1339 = vsel %vm600, %v1290, 0
      %v1342 = vsel %vm600, %v1291, 0
      %v1345 = vsel %vm600, %v1292, 0
      %1347 = vmatpush.msra.mxu0 0.0
      %1348 = vmatpush.msra.mxu0 0.0
      %1349 = vmatpush.msra.mxu0 0.0
      %1350 = vmatpush.msra.mxu0 0.0
      %1351 = vmatpush.msra.mxu0 0.0
      %1352 = vmatpush.msra.mxu0 0.0
      %1353 = vmatpush.msra.mxu0 0.0
      %1354 = vmatpush.msra.mxu0 0.0
      %1355 = vmatpush.msra.mxu0 %v1218
      %1356 = vmatpush.msra.mxu0 %v1217
      %1357 = vmatpush.msra.mxu0 %v1216
      %1358 = vmatpush.msra.mxu0 %v1215
      %1359 = vmatpush.msra.mxu0 %v1214
      %1360 = vmatpush.msra.mxu0 %v1213
      %1361 = vmatpush.msra.mxu0 %v1212
      %1362 = vmatpush.msra.mxu0 %v1211
      %1363 = vmatmul.f32.gmra.mxu0 %v1294
      %v1364 = vpop.f32.mrf.mxu0
      %v1365 = vadd.f32 0.0, %v1364
      %1366 = vmatmul.f32.gmra.mxu0 %v1297
      %v1367 = vpop.f32.mrf.mxu0
      %v1368 = vadd.f32 0.0, %v1367
      %1369 = vmatmul.f32.gmra.mxu0 %v1300
      %v1370 = vpop.f32.mrf.mxu0
      %v1371 = vadd.f32 0.0, %v1370
      %1372 = vmatmul.f32.gmra.mxu0 %v1303
      %v1373 = vpop.f32.mrf.mxu0
      %v1374 = vadd.f32 0.0, %v1373
      %1375 = vmatmul.f32.gmra.mxu0 %v1306
      %v1376 = vpop.f32.mrf.mxu0
      %v1377 = vadd.f32 0.0, %v1376
      %1378 = vmatmul.f32.gmra.mxu0 %v1309
      %v1379 = vpop.f32.mrf.mxu0
      %v1380 = vadd.f32 0.0, %v1379
      %1381 = vmatmul.f32.gmra.mxu0 %v1312
      %v1382 = vpop.f32.mrf.mxu0
      %v1383 = vadd.f32 0.0, %v1382
      %1384 = vmatmul.f32.gmra.mxu0 %v1315
      %v1385 = vpop.f32.mrf.mxu0
      %v1386 = vadd.f32 0.0, %v1385
      %1387 = vmatmul.f32.gmra.mxu0 %v1318
      %v1388 = vpop.f32.mrf.mxu0
      %v1389 = vadd.f32 0.0, %v1388
      %1390 = vmatmul.f32.gmra.mxu0 %v1321
      %v1391 = vpop.f32.mrf.mxu0
      %v1392 = vadd.f32 0.0, %v1391
      %1393 = vmatmul.f32.gmra.mxu0 %v1324
      %v1394 = vpop.f32.mrf.mxu0
      %v1395 = vadd.f32 0.0, %v1394
      %1396 = vmatmul.f32.gmra.mxu0 %v1327
      %v1397 = vpop.f32.mrf.mxu0
      %v1398 = vadd.f32 0.0, %v1397
      %1399 = vmatmul.f32.gmra.mxu0 %v1330
      %v1400 = vpop.f32.mrf.mxu0
      %v1401 = vadd.f32 0.0, %v1400
      %1402 = vmatmul.f32.gmra.mxu0 %v1333
      %v1403 = vpop.f32.mrf.mxu0
      %v1404 = vadd.f32 0.0, %v1403
      %1405 = vmatmul.f32.gmra.mxu0 %v1336
      %v1406 = vpop.f32.mrf.mxu0
      %v1407 = vadd.f32 0.0, %v1406
      %1408 = vmatmul.f32.gmra.mxu0 %v1339
      %v1409 = vpop.f32.mrf.mxu0
      %v1410 = vadd.f32 0.0, %v1409
      %1411 = vmatmul.f32.gmra.mxu0 %v1342
      %v1412 = vpop.f32.mrf.mxu0
      %v1413 = vadd.f32 0.0, %v1412
      %1414 = vmatmul.f32.gmra.mxu0 %v1345
      %v1415 = vpop.f32.mrf.mxu0
      %v1416 = vadd.f32 0.0, %v1415
      %1417 = vdwg.mxu0
      %vm1418 = vcmask 261120
      %1419 = vst.msk [vmem:[#allocation2] sm:$0xff] %vm1418, %v1365
      %vm1420 = vcmask 253952
      %1421 = vst.msk [vmem:[#allocation2 + $0x20] sm:$0x1] %vm1420, %v1368
      %vm1424 = vcmask 1046528
      %v1425 = vrot.slane %v1368, 1
      %v1426 = vrot.slane %v1371, 1
      %v1427 = vsel %vm1424, %v1425, %v1426
      %1428 = vrot.lane.b32.xlu0 %v1427, 32
      %v1429 = vpop.permute.xlu0 %1428
      %1430 = vrot.lane.b32.xlu0 %v1426, 32
      %v1431 = vpop.permute.xlu0 %1430
      %vm1434 = vcmask 523520
      %1435 = vst.msk [vmem:[#allocation2] sm:$0xff] %vm1434, %v1429
      %vm1436 = vcmask 516352
      %1437 = vst.msk [vmem:[#allocation2 + $0x20] sm:$0x1] %vm1436, %v1431
      %vm1439 = vcmask 1045504
      %v1440 = vrot.slane %v1371, 2
      %v1441 = vrot.slane %v1374, 2
      %v1442 = vsel %vm1439, %v1440, %v1441
      %1443 = vrot.lane.b32.xlu0 %v1442, 64
      %v1444 = vpop.permute.xlu0 %1443
      %1445 = vrot.lane.b32.xlu0 %v1441, 64
      %v1446 = vpop.permute.xlu0 %1445
      %vm1449 = vcmask 785920
      %1450 = vst.msk [vmem:[#allocation2] sm:$0xff] %vm1449, %v1444
      %vm1451 = vcmask 778752
      %1452 = vst.msk [vmem:[#allocation2 + $0x20] sm:$0x1] %vm1451, %v1446
      %vm1454 = vcmask 1044480
      %v1455 = vrot.slane %v1374, 3
      %v1456 = vrot.slane %v1377, 3
      %v1457 = vsel %vm1454, %v1455, %v1456
      %1458 = vrot.lane.b32.xlu0 %v1457, 96
      %v1459 = vpop.permute.xlu0 %1458
      %1460 = vrot.lane.b32.xlu0 %v1456, 96
      %v1461 = vpop.permute.xlu0 %1460
      %vm1464 = vcmask 1048320
      %1465 = vst.msk [vmem:[#allocation2] sm:$0xff] %vm1464, %v1459
      %vm1466 = vcmask 1041152
      %1467 = vst.msk [vmem:[#allocation2 + $0x20] sm:$0x1] %vm1466, %v1461
      %vm1469 = vcmask 1043456
      %v1470 = vrot.slane %v1377, 4
      %v1471 = vrot.slane %v1380, 4
      %v1472 = vsel %vm1469, %v1470, %v1471
      %1475 = vst.msk [vmem:[#allocation2 + $0x8] sm:$0xff] %vm1418, %v1472
      %1476 = vst.msk [vmem:[#allocation2 + $0x28] sm:$0x1] %vm1420, %v1471
      %vm1478 = vcmask 1042432
      %v1479 = vrot.slane %v1380, 5
      %v1480 = vrot.slane %v1383, 5
      %v1481 = vsel %vm1478, %v1479, %v1480
      %1482 = vrot.lane.b32.xlu0 %v1481, 32
      %v1483 = vpop.permute.xlu0 %1482
      %1484 = vrot.lane.b32.xlu0 %v1480, 32
      %v1485 = vpop.permute.xlu0 %1484
      %1488 = vst.msk [vmem:[#allocation2 + $0x8] sm:$0xff] %vm1434, %v1483
      %1489 = vst.msk [vmem:[#allocation2 + $0x28] sm:$0x1] %vm1436, %v1485
      %vm1491 = vcmask 1041408
      %v1492 = vrot.slane %v1383, 6
      %v1493 = vrot.slane %v1386, 6
      %v1494 = vsel %vm1491, %v1492, %v1493
      %1495 = vrot.lane.b32.xlu0 %v1494, 64
      %v1496 = vpop.permute.xlu0 %1495
      %1497 = vrot.lane.b32.xlu0 %v1493, 64
      %v1498 = vpop.permute.xlu0 %1497
      %1501 = vst.msk [vmem:[#allocation2 + $0x8] sm:$0xff] %vm1449, %v1496
      %1502 = vst.msk [vmem:[#allocation2 + $0x28] sm:$0x1] %vm1451, %v1498
      %vm1504 = vcmask 1040384
      %v1505 = vrot.slane %v1386, 7
      %v1506 = vrot.slane %v1389, 7
      %v1507 = vsel %vm1504, %v1505, %v1506
      %1508 = vrot.lane.b32.xlu0 %v1507, 96
      %v1509 = vpop.permute.xlu0 %1508
      %1510 = vrot.lane.b32.xlu0 %v1506, 96
      %v1511 = vpop.permute.xlu0 %1510
      %1514 = vst.msk [vmem:[#allocation2 + $0x8] sm:$0xff] %vm1464, %v1509
      %1515 = vst.msk [vmem:[#allocation2 + $0x28] sm:$0x1] %vm1466, %v1511
      %1516 = vst.msk [vmem:[#allocation2 + $0x10] sm:$0xff] %vm1418, %v1392
      %1517 = vst.msk [vmem:[#allocation2 + $0x30] sm:$0x1] %vm1420, %v1395
      %v1520 = vrot.slane %v1395, 1
      %v1521 = vrot.slane %v1398, 1
      %v1522 = vsel %vm1424, %v1520, %v1521
      %1523 = vrot.lane.b32.xlu0 %v1522, 32
      %v1524 = vpop.permute.xlu0 %1523
      %1525 = vrot.lane.b32.xlu0 %v1521, 32
      %v1526 = vpop.permute.xlu0 %1525
      %1529 = vst.msk [vmem:[#allocation2 + $0x10] sm:$0xff] %vm1434, %v1524
      %1530 = vst.msk [vmem:[#allocation2 + $0x30] sm:$0x1] %vm1436, %v1526
      %v1532 = vrot.slane %v1398, 2
      %v1533 = vrot.slane %v1401, 2
      %v1534 = vsel %vm1439, %v1532, %v1533
      %1535 = vrot.lane.b32.xlu0 %v1534, 64
      %v1536 = vpop.permute.xlu0 %1535
      %1537 = vrot.lane.b32.xlu0 %v1533, 64
      %v1538 = vpop.permute.xlu0 %1537
      %1541 = vst.msk [vmem:[#allocation2 + $0x10] sm:$0xff] %vm1449, %v1536
      %1542 = vst.msk [vmem:[#allocation2 + $0x30] sm:$0x1] %vm1451, %v1538
      %v1544 = vrot.slane %v1401, 3
      %v1545 = vrot.slane %v1404, 3
      %v1546 = vsel %vm1454, %v1544, %v1545
      %1547 = vrot.lane.b32.xlu0 %v1546, 96
      %v1548 = vpop.permute.xlu0 %1547
      %1549 = vrot.lane.b32.xlu0 %v1545, 96
      %v1550 = vpop.permute.xlu0 %1549
      %1553 = vst.msk [vmem:[#allocation2 + $0x10] sm:$0xff] %vm1464, %v1548
      %1554 = vst.msk [vmem:[#allocation2 + $0x30] sm:$0x1] %vm1466, %v1550
      %v1556 = vrot.slane %v1404, 4
      %v1557 = vrot.slane %v1407, 4
      %v1558 = vsel %vm1469, %v1556, %v1557
      %1561 = vst.msk [vmem:[#allocation2 + $0x18] sm:$0xff] %vm1418, %v1558
      %1562 = vst.msk [vmem:[#allocation2 + $0x38] sm:$0x1] %vm1420, %v1557
      %v1564 = vrot.slane %v1407, 5
      %v1565 = vrot.slane %v1410, 5
      %v1566 = vsel %vm1478, %v1564, %v1565
      %1567 = vrot.lane.b32.xlu0 %v1566, 32
      %v1568 = vpop.permute.xlu0 %1567
      %1569 = vrot.lane.b32.xlu0 %v1565, 32
      %v1570 = vpop.permute.xlu0 %1569
      %1573 = vst.msk [vmem:[#allocation2 + $0x18] sm:$0xff] %vm1434, %v1568
      %1574 = vst.msk [vmem:[#allocation2 + $0x38] sm:$0x1] %vm1436, %v1570
      %v1576 = vrot.slane %v1410, 6
      %v1577 = vrot.slane %v1413, 6
      %v1578 = vsel %vm1491, %v1576, %v1577
      %1579 = vrot.lane.b32.xlu0 %v1578, 64
      %v1580 = vpop.permute.xlu0 %1579
      %1581 = vrot.lane.b32.xlu0 %v1577, 64
      %v1582 = vpop.permute.xlu0 %1581
      %1585 = vst.msk [vmem:[#allocation2 + $0x18] sm:$0xff] %vm1449, %v1580
      %1586 = vst.msk [vmem:[#allocation2 + $0x38] sm:$0x1] %vm1451, %v1582
      %v1588 = vrot.slane %v1413, 7
      %v1589 = vrot.slane %v1416, 7
      %v1590 = vsel %vm1504, %v1588, %v1589
      %1591 = vrot.lane.b32.xlu0 %v1590, 96
      %v1592 = vpop.permute.xlu0 %1591
      %1593 = vrot.lane.b32.xlu0 %v1589, 96
      %v1594 = vpop.permute.xlu0 %1593
      %1597 = vst.msk [vmem:[#allocation2 + $0x18] sm:$0xff] %vm1464, %v1592
      %1598 = vst.msk [vmem:[#allocation2 + $0x38] sm:$0x1] %vm1466, %v1594
      %1599 = vmatpush.msra.mxu0 0.0
      %1600 = vmatpush.msra.mxu0 0.0
      %1601 = vmatpush.msra.mxu0 0.0
      %1602 = vmatpush.msra.mxu0 0.0
      %1603 = vmatpush.msra.mxu0 0.0
      %1604 = vmatpush.msra.mxu0 0.0
      %1605 = vmatpush.msra.mxu0 0.0
      %1606 = vmatpush.msra.mxu0 0.0
      %1607 = vmatpush.msra.mxu0 %v1226
      %1608 = vmatpush.msra.mxu0 %v1225
      %1609 = vmatpush.msra.mxu0 %v1224
      %1610 = vmatpush.msra.mxu0 %v1223
      %1611 = vmatpush.msra.mxu0 %v1222
      %1612 = vmatpush.msra.mxu0 %v1221
      %1613 = vmatpush.msra.mxu0 %v1220
      %1614 = vmatpush.msra.mxu0 %v1219
      %1615 = vmatmul.f32.gmra.mxu0 %v1294
      %v1616 = vpop.f32.mrf.mxu0
      %v1617 = vadd.f32 0.0, %v1616
      %1618 = vmatmul.f32.gmra.mxu0 %v1297
      %v1619 = vpop.f32.mrf.mxu0
      %v1620 = vadd.f32 0.0, %v1619
      %1621 = vmatmul.f32.gmra.mxu0 %v1300
      %v1622 = vpop.f32.mrf.mxu0
      %v1623 = vadd.f32 0.0, %v1622
      %1624 = vmatmul.f32.gmra.mxu0 %v1303
      %v1625 = vpop.f32.mrf.mxu0
      %v1626 = vadd.f32 0.0, %v1625
      %1627 = vmatmul.f32.gmra.mxu0 %v1306
      %v1628 = vpop.f32.mrf.mxu0
      %v1629 = vadd.f32 0.0, %v1628
      %1630 = vmatmul.f32.gmra.mxu0 %v1309
      %v1631 = vpop.f32.mrf.mxu0
      %v1632 = vadd.f32 0.0, %v1631
      %1633 = vmatmul.f32.gmra.mxu0 %v1312
      %v1634 = vpop.f32.mrf.mxu0
      %v1635 = vadd.f32 0.0, %v1634
      %1636 = vmatmul.f32.gmra.mxu0 %v1315
      %v1637 = vpop.f32.mrf.mxu0
      %v1638 = vadd.f32 0.0, %v1637
      %1639 = vmatmul.f32.gmra.mxu0 %v1318
      %v1640 = vpop.f32.mrf.mxu0
      %v1641 = vadd.f32 0.0, %v1640
      %1642 = vmatmul.f32.gmra.mxu0 %v1321
      %v1643 = vpop.f32.mrf.mxu0
      %v1644 = vadd.f32 0.0, %v1643
      %1645 = vmatmul.f32.gmra.mxu0 %v1324
      %v1646 = vpop.f32.mrf.mxu0
      %v1647 = vadd.f32 0.0, %v1646
      %1648 = vmatmul.f32.gmra.mxu0 %v1327
      %v1649 = vpop.f32.mrf.mxu0
      %v1650 = vadd.f32 0.0, %v1649
      %1651 = vmatmul.f32.gmra.mxu0 %v1330
      %v1652 = vpop.f32.mrf.mxu0
      %v1653 = vadd.f32 0.0, %v1652
      %1654 = vmatmul.f32.gmra.mxu0 %v1333
      %v1655 = vpop.f32.mrf.mxu0
      %v1656 = vadd.f32 0.0, %v1655
      %1657 = vmatmul.f32.gmra.mxu0 %v1336
      %v1658 = vpop.f32.mrf.mxu0
      %v1659 = vadd.f32 0.0, %v1658
      %1660 = vmatmul.f32.gmra.mxu0 %v1339
      %v1661 = vpop.f32.mrf.mxu0
      %v1662 = vadd.f32 0.0, %v1661
      %1663 = vmatmul.f32.gmra.mxu0 %v1342
      %v1664 = vpop.f32.mrf.mxu0
      %v1665 = vadd.f32 0.0, %v1664
      %1666 = vmatmul.f32.gmra.mxu0 %v1345
      %v1667 = vpop.f32.mrf.mxu0
      %v1668 = vadd.f32 0.0, %v1667
      %1669 = vdwg.mxu0
      %v1672 = vrot.slane %v1617, 7
      %v1673 = vrot.slane %v1620, 7
      %v1674 = vsel %vm1504, %v1672, %v1673
      %vm1677 = vcmask 261121
      %1678 = vst.msk [vmem:[#allocation2 + $0x20] sm:$0xfe] %vm1677, %v1672
      %vm1679 = vcmask 254976
      %1680 = vst.msk [vmem:[#allocation2 + $0x40] sm:$0x3] %vm1679, %v1674
      %1682 = vrot.lane.b32.xlu0 %v1620, 32
      %v1683 = vpop.permute.xlu0 %1682
      %1684 = vrot.lane.b32.xlu0 %v1623, 32
      %v1685 = vpop.permute.xlu0 %1684
      %vm1688 = vcmask 523521
      %1689 = vst.msk [vmem:[#allocation2 + $0x20] sm:$0xfe] %vm1688, %v1683
      %vm1690 = vcmask 517376
      %1691 = vst.msk [vmem:[#allocation2 + $0x40] sm:$0x3] %vm1690, %v1685
      %v1693 = vrot.slane %v1623, 1
      %v1694 = vrot.slane %v1626, 1
      %v1695 = vsel %vm1424, %v1693, %v1694
      %1696 = vrot.lane.b32.xlu0 %v1695, 64
      %v1697 = vpop.permute.xlu0 %1696
      %1698 = vrot.lane.b32.xlu0 %v1694, 64
      %v1699 = vpop.permute.xlu0 %1698
      %vm1702 = vcmask 785921
      %1703 = vst.msk [vmem:[#allocation2 + $0x20] sm:$0xfe] %vm1702, %v1697
      %vm1704 = vcmask 779776
      %1705 = vst.msk [vmem:[#allocation2 + $0x40] sm:$0x3] %vm1704, %v1699
      %v1707 = vrot.slane %v1626, 2
      %v1708 = vrot.slane %v1629, 2
      %v1709 = vsel %vm1439, %v1707, %v1708
      %1710 = vrot.lane.b32.xlu0 %v1709, 96
      %v1711 = vpop.permute.xlu0 %1710
      %1712 = vrot.lane.b32.xlu0 %v1708, 96
      %v1713 = vpop.permute.xlu0 %1712
      %vm1716 = vcmask 1048321
      %1717 = vst.msk [vmem:[#allocation2 + $0x20] sm:$0xfe] %vm1716, %v1711
      %vm1718 = vcmask 1042176
      %1719 = vst.msk [vmem:[#allocation2 + $0x40] sm:$0x3] %vm1718, %v1713
      %v1721 = vrot.slane %v1629, 3
      %v1722 = vrot.slane %v1632, 3
      %v1723 = vsel %vm1454, %v1721, %v1722
      %1726 = vst.msk [vmem:[#allocation2 + $0x28] sm:$0xfe] %vm1677, %v1723
      %1727 = vst.msk [vmem:[#allocation2 + $0x48] sm:$0x3] %vm1679, %v1722
      %v1729 = vrot.slane %v1632, 4
      %v1730 = vrot.slane %v1635, 4
      %v1731 = vsel %vm1469, %v1729, %v1730
      %1732 = vrot.lane.b32.xlu0 %v1731, 32
      %v1733 = vpop.permute.xlu0 %1732
      %1734 = vrot.lane.b32.xlu0 %v1730, 32
      %v1735 = vpop.permute.xlu0 %1734
      %1738 = vst.msk [vmem:[#allocation2 + $0x28] sm:$0xfe] %vm1688, %v1733
      %1739 = vst.msk [vmem:[#allocation2 + $0x48] sm:$0x3] %vm1690, %v1735
      %v1741 = vrot.slane %v1635, 5
      %v1742 = vrot.slane %v1638, 5
      %v1743 = vsel %vm1478, %v1741, %v1742
      %1744 = vrot.lane.b32.xlu0 %v1743, 64
      %v1745 = vpop.permute.xlu0 %1744
      %1746 = vrot.lane.b32.xlu0 %v1742, 64
      %v1747 = vpop.permute.xlu0 %1746
      %1750 = vst.msk [vmem:[#allocation2 + $0x28] sm:$0xfe] %vm1702, %v1745
      %1751 = vst.msk [vmem:[#allocation2 + $0x48] sm:$0x3] %vm1704, %v1747
      %v1753 = vrot.slane %v1638, 6
      %v1754 = vrot.slane %v1641, 6
      %v1755 = vsel %vm1491, %v1753, %v1754
      %1756 = vrot.lane.b32.xlu0 %v1755, 96
      %v1757 = vpop.permute.xlu0 %1756
      %1758 = vrot.lane.b32.xlu0 %v1754, 96
      %v1759 = vpop.permute.xlu0 %1758
      %1762 = vst.msk [vmem:[#allocation2 + $0x28] sm:$0xfe] %vm1716, %v1757
      %1763 = vst.msk [vmem:[#allocation2 + $0x48] sm:$0x3] %vm1718, %v1759
      %v1766 = vrot.slane %v1644, 7
      %v1767 = vrot.slane %v1647, 7
      %v1768 = vsel %vm1504, %v1766, %v1767
      %1771 = vst.msk [vmem:[#allocation2 + $0x30] sm:$0xfe] %vm1677, %v1766
      %1772 = vst.msk [vmem:[#allocation2 + $0x50] sm:$0x3] %vm1679, %v1768
      %1774 = vrot.lane.b32.xlu0 %v1647, 32
      %v1775 = vpop.permute.xlu0 %1774
      %1776 = vrot.lane.b32.xlu0 %v1650, 32
      %v1777 = vpop.permute.xlu0 %1776
      %1780 = vst.msk [vmem:[#allocation2 + $0x30] sm:$0xfe] %vm1688, %v1775
      %1781 = vst.msk [vmem:[#allocation2 + $0x50] sm:$0x3] %vm1690, %v1777
      %v1783 = vrot.slane %v1650, 1
      %v1784 = vrot.slane %v1653, 1
      %v1785 = vsel %vm1424, %v1783, %v1784
      %1786 = vrot.lane.b32.xlu0 %v1785, 64
      %v1787 = vpop.permute.xlu0 %1786
      %1788 = vrot.lane.b32.xlu0 %v1784, 64
      %v1789 = vpop.permute.xlu0 %1788
      %1792 = vst.msk [vmem:[#allocation2 + $0x30] sm:$0xfe] %vm1702, %v1787
      %1793 = vst.msk [vmem:[#allocation2 + $0x50] sm:$0x3] %vm1704, %v1789
      %v1795 = vrot.slane %v1653, 2
      %v1796 = vrot.slane %v1656, 2
      %v1797 = vsel %vm1439, %v1795, %v1796
      %1798 = vrot.lane.b32.xlu0 %v1797, 96
      %v1799 = vpop.permute.xlu0 %1798
      %1800 = vrot.lane.b32.xlu0 %v1796, 96
      %v1801 = vpop.permute.xlu0 %1800
      %1804 = vst.msk [vmem:[#allocation2 + $0x30] sm:$0xfe] %vm1716, %v1799
      %1805 = vst.msk [vmem:[#allocation2 + $0x50] sm:$0x3] %vm1718, %v1801
      %v1807 = vrot.slane %v1656, 3
      %v1808 = vrot.slane %v1659, 3
      %v1809 = vsel %vm1454, %v1807, %v1808
      %1812 = vst.msk [vmem:[#allocation2 + $0x38] sm:$0xfe] %vm1677, %v1809
      %1813 = vst.msk [vmem:[#allocation2 + $0x58] sm:$0x3] %vm1679, %v1808
      %v1815 = vrot.slane %v1659, 4
      %v1816 = vrot.slane %v1662, 4
      %v1817 = vsel %vm1469, %v1815, %v1816
      %1818 = vrot.lane.b32.xlu0 %v1817, 32
      %v1819 = vpop.permute.xlu0 %1818
      %1820 = vrot.lane.b32.xlu0 %v1816, 32
      %v1821 = vpop.permute.xlu0 %1820
      %1824 = vst.msk [vmem:[#allocation2 + $0x38] sm:$0xfe] %vm1688, %v1819
      %1825 = vst.msk [vmem:[#allocation2 + $0x58] sm:$0x3] %vm1690, %v1821
      %v1827 = vrot.slane %v1662, 5
      %v1828 = vrot.slane %v1665, 5
      %v1829 = vsel %vm1478, %v1827, %v1828
      %1830 = vrot.lane.b32.xlu0 %v1829, 64
      %v1831 = vpop.permute.xlu0 %1830
      %1832 = vrot.lane.b32.xlu0 %v1828, 64
      %v1833 = vpop.permute.xlu0 %1832
      %1836 = vst.msk [vmem:[#allocation2 + $0x38] sm:$0xfe] %vm1702, %v1831
      %1837 = vst.msk [vmem:[#allocation2 + $0x58] sm:$0x3] %vm1704, %v1833
      %v1839 = vrot.slane %v1665, 6
      %v1840 = vrot.slane %v1668, 6
      %v1841 = vsel %vm1491, %v1839, %v1840
      %1842 = vrot.lane.b32.xlu0 %v1841, 96
      %v1843 = vpop.permute.xlu0 %1842
      %1844 = vrot.lane.b32.xlu0 %v1840, 96
      %v1845 = vpop.permute.xlu0 %1844
      %1848 = vst.msk [vmem:[#allocation2 + $0x38] sm:$0xfe] %vm1716, %v1843
      %1849 = vst.msk [vmem:[#allocation2 + $0x58] sm:$0x3] %vm1718, %v1845
      %1850 = vmatpush.msra.mxu0 0.0
      %1851 = vmatpush.msra.mxu0 0.0
      %1852 = vmatpush.msra.mxu0 0.0
      %1853 = vmatpush.msra.mxu0 0.0
      %1854 = vmatpush.msra.mxu0 0.0
      %1855 = vmatpush.msra.mxu0 0.0
      %1856 = vmatpush.msra.mxu0 0.0
      %1857 = vmatpush.msra.mxu0 0.0
      %1858 = vmatpush.msra.mxu0 %v1234
      %1859 = vmatpush.msra.mxu0 %v1233
      %1860 = vmatpush.msra.mxu0 %v1232
      %1861 = vmatpush.msra.mxu0 %v1231
      %1862 = vmatpush.msra.mxu0 %v1230
      %1863 = vmatpush.msra.mxu0 %v1229
      %1864 = vmatpush.msra.mxu0 %v1228
      %1865 = vmatpush.msra.mxu0 %v1227
      %1866 = vmatmul.f32.gmra.mxu0 %v1294
      %v1867 = vpop.f32.mrf.mxu0
      %v1868 = vadd.f32 0.0, %v1867
      %1869 = vmatmul.f32.gmra.mxu0 %v1297
      %v1870 = vpop.f32.mrf.mxu0
      %v1871 = vadd.f32 0.0, %v1870
      %1872 = vmatmul.f32.gmra.mxu0 %v1300
      %v1873 = vpop.f32.mrf.mxu0
      %v1874 = vadd.f32 0.0, %v1873
      %1875 = vmatmul.f32.gmra.mxu0 %v1303
      %v1876 = vpop.f32.mrf.mxu0
      %v1877 = vadd.f32 0.0, %v1876
      %1878 = vmatmul.f32.gmra.mxu0 %v1306
      %v1879 = vpop.f32.mrf.mxu0
      %v1880 = vadd.f32 0.0, %v1879
      %1881 = vmatmul.f32.gmra.mxu0 %v1309
      %v1882 = vpop.f32.mrf.mxu0
      %v1883 = vadd.f32 0.0, %v1882
      %1884 = vmatmul.f32.gmra.mxu0 %v1312
      %v1885 = vpop.f32.mrf.mxu0
      %v1886 = vadd.f32 0.0, %v1885
      %1887 = vmatmul.f32.gmra.mxu0 %v1315
      %v1888 = vpop.f32.mrf.mxu0
      %v1889 = vadd.f32 0.0, %v1888
      %1890 = vmatmul.f32.gmra.mxu0 %v1318
      %v1891 = vpop.f32.mrf.mxu0
      %v1892 = vadd.f32 0.0, %v1891
      %1893 = vmatmul.f32.gmra.mxu0 %v1321
      %v1894 = vpop.f32.mrf.mxu0
      %v1895 = vadd.f32 0.0, %v1894
      %1896 = vmatmul.f32.gmra.mxu0 %v1324
      %v1897 = vpop.f32.mrf.mxu0
      %v1898 = vadd.f32 0.0, %v1897
      %1899 = vmatmul.f32.gmra.mxu0 %v1327
      %v1900 = vpop.f32.mrf.mxu0
      %v1901 = vadd.f32 0.0, %v1900
      %1902 = vmatmul.f32.gmra.mxu0 %v1330
      %v1903 = vpop.f32.mrf.mxu0
      %v1904 = vadd.f32 0.0, %v1903
      %1905 = vmatmul.f32.gmra.mxu0 %v1333
      %v1906 = vpop.f32.mrf.mxu0
      %v1907 = vadd.f32 0.0, %v1906
      %1908 = vmatmul.f32.gmra.mxu0 %v1336
      %v1909 = vpop.f32.mrf.mxu0
      %v1910 = vadd.f32 0.0, %v1909
      %1911 = vmatmul.f32.gmra.mxu0 %v1339
      %v1912 = vpop.f32.mrf.mxu0
      %v1913 = vadd.f32 0.0, %v1912
      %1914 = vmatmul.f32.gmra.mxu0 %v1342
      %v1915 = vpop.f32.mrf.mxu0
      %v1916 = vadd.f32 0.0, %v1915
      %1917 = vmatmul.f32.gmra.mxu0 %v1345
      %v1918 = vpop.f32.mrf.mxu0
      %v1919 = vadd.f32 0.0, %v1918
      %1920 = vdwg.mxu0
      %v1923 = vrot.slane %v1868, 6
      %v1924 = vrot.slane %v1871, 6
      %v1925 = vsel %vm1491, %v1923, %v1924
      %vm1928 = vcmask 261122
      %1929 = vst.msk [vmem:[#allocation2 + $0x40] sm:$0xfc] %vm1928, %v1923
      %vm1930 = vcmask 256000
      %1931 = vst.msk [vmem:[#allocation2 + $0x60] sm:$0x7] %vm1930, %v1925
      %v1933 = vrot.slane %v1871, 7
      %v1934 = vrot.slane %v1874, 7
      %v1935 = vsel %vm1504, %v1933, %v1934
      %1936 = vrot.lane.b32.xlu0 %v1933, 32
      %v1937 = vpop.permute.xlu0 %1936
      %1938 = vrot.lane.b32.xlu0 %v1935, 32
      %v1939 = vpop.permute.xlu0 %1938
      %vm1942 = vcmask 523522
      %1943 = vst.msk [vmem:[#allocation2 + $0x40] sm:$0xfc] %vm1942, %v1937
      %vm1944 = vcmask 518400
      %1945 = vst.msk [vmem:[#allocation2 + $0x60] sm:$0x7] %vm1944, %v1939
      %1947 = vrot.lane.b32.xlu0 %v1874, 64
      %v1948 = vpop.permute.xlu0 %1947
      %1949 = vrot.lane.b32.xlu0 %v1877, 64
      %v1950 = vpop.permute.xlu0 %1949
      %vm1953 = vcmask 785922
      %1954 = vst.msk [vmem:[#allocation2 + $0x40] sm:$0xfc] %vm1953, %v1948
      %vm1955 = vcmask 780800
      %1956 = vst.msk [vmem:[#allocation2 + $0x60] sm:$0x7] %vm1955, %v1950
      %v1958 = vrot.slane %v1877, 1
      %v1959 = vrot.slane %v1880, 1
      %v1960 = vsel %vm1424, %v1958, %v1959
      %1961 = vrot.lane.b32.xlu0 %v1960, 96
      %v1962 = vpop.permute.xlu0 %1961
      %1963 = vrot.lane.b32.xlu0 %v1959, 96
      %v1964 = vpop.permute.xlu0 %1963
      %vm1967 = vcmask 1048322
      %1968 = vst.msk [vmem:[#allocation2 + $0x40] sm:$0xfc] %vm1967, %v1962
      %vm1969 = vcmask 1043200
      %1970 = vst.msk [vmem:[#allocation2 + $0x60] sm:$0x7] %vm1969, %v1964
      %v1972 = vrot.slane %v1880, 2
      %v1973 = vrot.slane %v1883, 2
      %v1974 = vsel %vm1439, %v1972, %v1973
      %1977 = vst.msk [vmem:[#allocation2 + $0x48] sm:$0xfc] %vm1928, %v1974
      %1978 = vst.msk [vmem:[#allocation2 + $0x68] sm:$0x7] %vm1930, %v1973
      %v1980 = vrot.slane %v1883, 3
      %v1981 = vrot.slane %v1886, 3
      %v1982 = vsel %vm1454, %v1980, %v1981
      %1983 = vrot.lane.b32.xlu0 %v1982, 32
      %v1984 = vpop.permute.xlu0 %1983
      %1985 = vrot.lane.b32.xlu0 %v1981, 32
      %v1986 = vpop.permute.xlu0 %1985
      %1989 = vst.msk [vmem:[#allocation2 + $0x48] sm:$0xfc] %vm1942, %v1984
      %1990 = vst.msk [vmem:[#allocation2 + $0x68] sm:$0x7] %vm1944, %v1986
      %v1992 = vrot.slane %v1886, 4
      %v1993 = vrot.slane %v1889, 4
      %v1994 = vsel %vm1469, %v1992, %v1993
      %1995 = vrot.lane.b32.xlu0 %v1994, 64
      %v1996 = vpop.permute.xlu0 %1995
      %1997 = vrot.lane.b32.xlu0 %v1993, 64
      %v1998 = vpop.permute.xlu0 %1997
      %2001 = vst.msk [vmem:[#allocation2 + $0x48] sm:$0xfc] %vm1953, %v1996
      %2002 = vst.msk [vmem:[#allocation2 + $0x68] sm:$0x7] %vm1955, %v1998
      %v2004 = vrot.slane %v1889, 5
      %v2005 = vrot.slane %v1892, 5
      %v2006 = vsel %vm1478, %v2004, %v2005
      %2007 = vrot.lane.b32.xlu0 %v2006, 96
      %v2008 = vpop.permute.xlu0 %2007
      %2009 = vrot.lane.b32.xlu0 %v2005, 96
      %v2010 = vpop.permute.xlu0 %2009
      %2013 = vst.msk [vmem:[#allocation2 + $0x48] sm:$0xfc] %vm1967, %v2008
      %2014 = vst.msk [vmem:[#allocation2 + $0x68] sm:$0x7] %vm1969, %v2010
      %v2017 = vrot.slane %v1895, 6
      %v2018 = vrot.slane %v1898, 6
      %v2019 = vsel %vm1491, %v2017, %v2018
      %2022 = vst.msk [vmem:[#allocation2 + $0x50] sm:$0xfc] %vm1928, %v2017
      %2023 = vst.msk [vmem:[#allocation2 + $0x70] sm:$0x7] %vm1930, %v2019
      %v2025 = vrot.slane %v1898, 7
      %v2026 = vrot.slane %v1901, 7
      %v2027 = vsel %vm1504, %v2025, %v2026
      %2028 = vrot.lane.b32.xlu0 %v2025, 32
      %v2029 = vpop.permute.xlu0 %2028
      %2030 = vrot.lane.b32.xlu0 %v2027, 32
      %v2031 = vpop.permute.xlu0 %2030
      %2034 = vst.msk [vmem:[#allocation2 + $0x50] sm:$0xfc] %vm1942, %v2029
      %2035 = vst.msk [vmem:[#allocation2 + $0x70] sm:$0x7] %vm1944, %v2031
      %2037 = vrot.lane.b32.xlu0 %v1901, 64
      %v2038 = vpop.permute.xlu0 %2037
      %2039 = vrot.lane.b32.xlu0 %v1904, 64
      %v2040 = vpop.permute.xlu0 %2039
      %2043 = vst.msk [vmem:[#allocation2 + $0x50] sm:$0xfc] %vm1953, %v2038
      %2044 = vst.msk [vmem:[#allocation2 + $0x70] sm:$0x7] %vm1955, %v2040
      %v2046 = vrot.slane %v1904, 1
      %v2047 = vrot.slane %v1907, 1
      %v2048 = vsel %vm1424, %v2046, %v2047
      %2049 = vrot.lane.b32.xlu0 %v2048, 96
      %v2050 = vpop.permute.xlu0 %2049
      %2051 = vrot.lane.b32.xlu0 %v2047, 96
      %v2052 = vpop.permute.xlu0 %2051
      %2055 = vst.msk [vmem:[#allocation2 + $0x50] sm:$0xfc] %vm1967, %v2050
      %2056 = vst.msk [vmem:[#allocation2 + $0x70] sm:$0x7] %vm1969, %v2052
      %v2058 = vrot.slane %v1907, 2
      %v2059 = vrot.slane %v1910, 2
      %v2060 = vsel %vm1439, %v2058, %v2059
      %2063 = vst.msk [vmem:[#allocation2 + $0x58] sm:$0xfc] %vm1928, %v2060
      %2064 = vst.msk [vmem:[#allocation2 + $0x78] sm:$0x7] %vm1930, %v2059
      %v2066 = vrot.slane %v1910, 3
      %v2067 = vrot.slane %v1913, 3
      %v2068 = vsel %vm1454, %v2066, %v2067
      %2069 = vrot.lane.b32.xlu0 %v2068, 32
      %v2070 = vpop.permute.xlu0 %2069
      %2071 = vrot.lane.b32.xlu0 %v2067, 32
      %v2072 = vpop.permute.xlu0 %2071
      %2075 = vst.msk [vmem:[#allocation2 + $0x58] sm:$0xfc] %vm1942, %v2070
      %2076 = vst.msk [vmem:[#allocation2 + $0x78] sm:$0x7] %vm1944, %v2072
      %v2078 = vrot.slane %v1913, 4
      %v2079 = vrot.slane %v1916, 4
      %v2080 = vsel %vm1469, %v2078, %v2079
      %2081 = vrot.lane.b32.xlu0 %v2080, 64
      %v2082 = vpop.permute.xlu0 %2081
      %2083 = vrot.lane.b32.xlu0 %v2079, 64
      %v2084 = vpop.permute.xlu0 %2083
      %2087 = vst.msk [vmem:[#allocation2 + $0x58] sm:$0xfc] %vm1953, %v2082
      %2088 = vst.msk [vmem:[#allocation2 + $0x78] sm:$0x7] %vm1955, %v2084
      %v2090 = vrot.slane %v1916, 5
      %v2091 = vrot.slane %v1919, 5
      %v2092 = vsel %vm1478, %v2090, %v2091
      %2093 = vrot.lane.b32.xlu0 %v2092, 96
      %v2094 = vpop.permute.xlu0 %2093
      %2095 = vrot.lane.b32.xlu0 %v2091, 96
      %v2096 = vpop.permute.xlu0 %2095
      %2099 = vst.msk [vmem:[#allocation2 + $0x58] sm:$0xfc] %vm1967, %v2094
      %2100 = vst.msk [vmem:[#allocation2 + $0x78] sm:$0x7] %vm1969, %v2096
      %2101 = vmatpush.msra.mxu0 0.0
      %2102 = vmatpush.msra.mxu0 0.0
      %2103 = vmatpush.msra.mxu0 0.0
      %2104 = vmatpush.msra.mxu0 0.0
      %2105 = vmatpush.msra.mxu0 0.0
      %2106 = vmatpush.msra.mxu0 0.0
      %2107 = vmatpush.msra.mxu0 0.0
      %2108 = vmatpush.msra.mxu0 0.0
      %2109 = vmatpush.msra.mxu0 %v1242
      %2110 = vmatpush.msra.mxu0 %v1241
      %2111 = vmatpush.msra.mxu0 %v1240
      %2112 = vmatpush.msra.mxu0 %v1239
      %2113 = vmatpush.msra.mxu0 %v1238
      %2114 = vmatpush.msra.mxu0 %v1237
      %2115 = vmatpush.msra.mxu0 %v1236
      %2116 = vmatpush.msra.mxu0 %v1235
      %2117 = vmatmul.f32.gmra.mxu0 %v1294
      %v2118 = vpop.f32.mrf.mxu0
      %v2119 = vadd.f32 0.0, %v2118
      %2120 = vmatmul.f32.gmra.mxu0 %v1297
      %v2121 = vpop.f32.mrf.mxu0
      %v2122 = vadd.f32 0.0, %v2121
      %2123 = vmatmul.f32.gmra.mxu0 %v1300
      %v2124 = vpop.f32.mrf.mxu0
      %v2125 = vadd.f32 0.0, %v2124
      %2126 = vmatmul.f32.gmra.mxu0 %v1303
      %v2127 = vpop.f32.mrf.mxu0
      %v2128 = vadd.f32 0.0, %v2127
      %2129 = vmatmul.f32.gmra.mxu0 %v1306
      %v2130 = vpop.f32.mrf.mxu0
      %v2131 = vadd.f32 0.0, %v2130
      %2132 = vmatmul.f32.gmra.mxu0 %v1309
      %v2133 = vpop.f32.mrf.mxu0
      %v2134 = vadd.f32 0.0, %v2133
      %2135 = vmatmul.f32.gmra.mxu0 %v1312
      %v2136 = vpop.f32.mrf.mxu0
      %v2137 = vadd.f32 0.0, %v2136
      %2138 = vmatmul.f32.gmra.mxu0 %v1315
      %v2139 = vpop.f32.mrf.mxu0
      %v2140 = vadd.f32 0.0, %v2139
      %2141 = vmatmul.f32.gmra.mxu0 %v1318
      %v2142 = vpop.f32.mrf.mxu0
      %v2143 = vadd.f32 0.0, %v2142
      %2144 = vmatmul.f32.gmra.mxu0 %v1321
      %v2145 = vpop.f32.mrf.mxu0
      %v2146 = vadd.f32 0.0, %v2145
      %2147 = vmatmul.f32.gmra.mxu0 %v1324
      %v2148 = vpop.f32.mrf.mxu0
      %v2149 = vadd.f32 0.0, %v2148
      %2150 = vmatmul.f32.gmra.mxu0 %v1327
      %v2151 = vpop.f32.mrf.mxu0
      %v2152 = vadd.f32 0.0, %v2151
      %2153 = vmatmul.f32.gmra.mxu0 %v1330
      %v2154 = vpop.f32.mrf.mxu0
      %v2155 = vadd.f32 0.0, %v2154
      %2156 = vmatmul.f32.gmra.mxu0 %v1333
      %v2157 = vpop.f32.mrf.mxu0
      %v2158 = vadd.f32 0.0, %v2157
      %2159 = vmatmul.f32.gmra.mxu0 %v1336
      %v2160 = vpop.f32.mrf.mxu0
      %v2161 = vadd.f32 0.0, %v2160
      %2162 = vmatmul.f32.gmra.mxu0 %v1339
      %v2163 = vpop.f32.mrf.mxu0
      %v2164 = vadd.f32 0.0, %v2163
      %2165 = vmatmul.f32.gmra.mxu0 %v1342
      %v2166 = vpop.f32.mrf.mxu0
      %v2167 = vadd.f32 0.0, %v2166
      %2168 = vmatmul.f32.gmra.mxu0 %v1345
      %v2169 = vpop.f32.mrf.mxu0
      %v2170 = vadd.f32 0.0, %v2169
      %2171 = vdwg.mxu0
      %v2174 = vrot.slane %v2119, 5
      %v2175 = vrot.slane %v2122, 5
      %v2176 = vsel %vm1478, %v2174, %v2175
      %vm2179 = vcmask 261123
      %2180 = vst.msk [vmem:[#allocation2 + $0x60] sm:$0xf8] %vm2179, %v2174
      %vm2181 = vcmask 257024
      %2182 = vst.msk [vmem:[#allocation2 + $0x80] sm:$0xf] %vm2181, %v2176
      %v2184 = vrot.slane %v2122, 6
      %v2185 = vrot.slane %v2125, 6
      %v2186 = vsel %vm1491, %v2184, %v2185
      %2187 = vrot.lane.b32.xlu0 %v2184, 32
      %v2188 = vpop.permute.xlu0 %2187
      %2189 = vrot.lane.b32.xlu0 %v2186, 32
      %v2190 = vpop.permute.xlu0 %2189
      %vm2193 = vcmask 523523
      %2194 = vst.msk [vmem:[#allocation2 + $0x60] sm:$0xf8] %vm2193, %v2188
      %vm2195 = vcmask 519424
      %2196 = vst.msk [vmem:[#allocation2 + $0x80] sm:$0xf] %vm2195, %v2190
      %v2198 = vrot.slane %v2125, 7
      %v2199 = vrot.slane %v2128, 7
      %v2200 = vsel %vm1504, %v2198, %v2199
      %2201 = vrot.lane.b32.xlu0 %v2198, 64
      %v2202 = vpop.permute.xlu0 %2201
      %2203 = vrot.lane.b32.xlu0 %v2200, 64
      %v2204 = vpop.permute.xlu0 %2203
      %vm2207 = vcmask 785923
      %2208 = vst.msk [vmem:[#allocation2 + $0x60] sm:$0xf8] %vm2207, %v2202
      %vm2209 = vcmask 781824
      %2210 = vst.msk [vmem:[#allocation2 + $0x80] sm:$0xf] %vm2209, %v2204
      %2212 = vrot.lane.b32.xlu0 %v2128, 96
      %v2213 = vpop.permute.xlu0 %2212
      %2214 = vrot.lane.b32.xlu0 %v2131, 96
      %v2215 = vpop.permute.xlu0 %2214
      %vm2218 = vcmask 1048323
      %2219 = vst.msk [vmem:[#allocation2 + $0x60] sm:$0xf8] %vm2218, %v2213
      %vm2220 = vcmask 1044224
      %2221 = vst.msk [vmem:[#allocation2 + $0x80] sm:$0xf] %vm2220, %v2215
      %v2223 = vrot.slane %v2131, 1
      %v2224 = vrot.slane %v2134, 1
      %v2225 = vsel %vm1424, %v2223, %v2224
      %2228 = vst.msk [vmem:[#allocation2 + $0x68] sm:$0xf8] %vm2179, %v2225
      %2229 = vst.msk [vmem:[#allocation2 + $0x88] sm:$0xf] %vm2181, %v2224
      %v2231 = vrot.slane %v2134, 2
      %v2232 = vrot.slane %v2137, 2
      %v2233 = vsel %vm1439, %v2231, %v2232
      %2234 = vrot.lane.b32.xlu0 %v2233, 32
      %v2235 = vpop.permute.xlu0 %2234
      %2236 = vrot.lane.b32.xlu0 %v2232, 32
      %v2237 = vpop.permute.xlu0 %2236
      %2240 = vst.msk [vmem:[#allocation2 + $0x68] sm:$0xf8] %vm2193, %v2235
      %2241 = vst.msk [vmem:[#allocation2 + $0x88] sm:$0xf] %vm2195, %v2237
      %v2243 = vrot.slane %v2137, 3
      %v2244 = vrot.slane %v2140, 3
      %v2245 = vsel %vm1454, %v2243, %v2244
      %2246 = vrot.lane.b32.xlu0 %v2245, 64
      %v2247 = vpop.permute.xlu0 %2246
      %2248 = vrot.lane.b32.xlu0 %v2244, 64
      %v2249 = vpop.permute.xlu0 %2248
      %2252 = vst.msk [vmem:[#allocation2 + $0x68] sm:$0xf8] %vm2207, %v2247
      %2253 = vst.msk [vmem:[#allocation2 + $0x88] sm:$0xf] %vm2209, %v2249
      %v2255 = vrot.slane %v2140, 4
      %v2256 = vrot.slane %v2143, 4
      %v2257 = vsel %vm1469, %v2255, %v2256
      %2258 = vrot.lane.b32.xlu0 %v2257, 96
      %v2259 = vpop.permute.xlu0 %2258
      %2260 = vrot.lane.b32.xlu0 %v2256, 96
      %v2261 = vpop.permute.xlu0 %2260
      %2264 = vst.msk [vmem:[#allocation2 + $0x68] sm:$0xf8] %vm2218, %v2259
      %2265 = vst.msk [vmem:[#allocation2 + $0x88] sm:$0xf] %vm2220, %v2261
      %v2268 = vrot.slane %v2146, 5
      %v2269 = vrot.slane %v2149, 5
      %v2270 = vsel %vm1478, %v2268, %v2269
      %2273 = vst.msk [vmem:[#allocation2 + $0x70] sm:$0xf8] %vm2179, %v2268
      %2274 = vst.msk [vmem:[#allocation2 + $0x90] sm:$0xf] %vm2181, %v2270
      %v2276 = vrot.slane %v2149, 6
      %v2277 = vrot.slane %v2152, 6
      %v2278 = vsel %vm1491, %v2276, %v2277
      %2279 = vrot.lane.b32.xlu0 %v2276, 32
      %v2280 = vpop.permute.xlu0 %2279
      %2281 = vrot.lane.b32.xlu0 %v2278, 32
      %v2282 = vpop.permute.xlu0 %2281
      %2285 = vst.msk [vmem:[#allocation2 + $0x70] sm:$0xf8] %vm2193, %v2280
      %2286 = vst.msk [vmem:[#allocation2 + $0x90] sm:$0xf] %vm2195, %v2282
      %v2288 = vrot.slane %v2152, 7
      %v2289 = vrot.slane %v2155, 7
      %v2290 = vsel %vm1504, %v2288, %v2289
      %2291 = vrot.lane.b32.xlu0 %v2288, 64
      %v2292 = vpop.permute.xlu0 %2291
      %2293 = vrot.lane.b32.xlu0 %v2290, 64
      %v2294 = vpop.permute.xlu0 %2293
      %2297 = vst.msk [vmem:[#allocation2 + $0x70] sm:$0xf8] %vm2207, %v2292
      %2298 = vst.msk [vmem:[#allocation2 + $0x90] sm:$0xf] %vm2209, %v2294
      %2300 = vrot.lane.b32.xlu0 %v2155, 96
      %v2301 = vpop.permute.xlu0 %2300
      %2302 = vrot.lane.b32.xlu0 %v2158, 96
      %v2303 = vpop.permute.xlu0 %2302
      %2306 = vst.msk [vmem:[#allocation2 + $0x70] sm:$0xf8] %vm2218, %v2301
      %2307 = vst.msk [vmem:[#allocation2 + $0x90] sm:$0xf] %vm2220, %v2303
      %v2309 = vrot.slane %v2158, 1
      %v2310 = vrot.slane %v2161, 1
      %v2311 = vsel %vm1424, %v2309, %v2310
      %2314 = vst.msk [vmem:[#allocation2 + $0x78] sm:$0xf8] %vm2179, %v2311
      %2315 = vst.msk [vmem:[#allocation2 + $0x98] sm:$0xf] %vm2181, %v2310
      %v2317 = vrot.slane %v2161, 2
      %v2318 = vrot.slane %v2164, 2
      %v2319 = vsel %vm1439, %v2317, %v2318
      %2320 = vrot.lane.b32.xlu0 %v2319, 32
      %v2321 = vpop.permute.xlu0 %2320
      %2322 = vrot.lane.b32.xlu0 %v2318, 32
      %v2323 = vpop.permute.xlu0 %2322
      %2326 = vst.msk [vmem:[#allocation2 + $0x78] sm:$0xf8] %vm2193, %v2321
      %2327 = vst.msk [vmem:[#allocation2 + $0x98] sm:$0xf] %vm2195, %v2323
      %v2329 = vrot.slane %v2164, 3
      %v2330 = vrot.slane %v2167, 3
      %v2331 = vsel %vm1454, %v2329, %v2330
      %2332 = vrot.lane.b32.xlu0 %v2331, 64
      %v2333 = vpop.permute.xlu0 %2332
      %2334 = vrot.lane.b32.xlu0 %v2330, 64
      %v2335 = vpop.permute.xlu0 %2334
      %2338 = vst.msk [vmem:[#allocation2 + $0x78] sm:$0xf8] %vm2207, %v2333
      %2339 = vst.msk [vmem:[#allocation2 + $0x98] sm:$0xf] %vm2209, %v2335
      %v2341 = vrot.slane %v2167, 4
      %v2342 = vrot.slane %v2170, 4
      %v2343 = vsel %vm1469, %v2341, %v2342
      %2344 = vrot.lane.b32.xlu0 %v2343, 96
      %v2345 = vpop.permute.xlu0 %2344
      %2346 = vrot.lane.b32.xlu0 %v2342, 96
      %v2347 = vpop.permute.xlu0 %2346
      %2350 = vst.msk [vmem:[#allocation2 + $0x78] sm:$0xf8] %vm2218, %v2345
      %2351 = vst.msk [vmem:[#allocation2 + $0x98] sm:$0xf] %vm2220, %v2347
      %2352 = vmatpush.msra.mxu0 0.0
      %2353 = vmatpush.msra.mxu0 0.0
      %2354 = vmatpush.msra.mxu0 0.0
      %2355 = vmatpush.msra.mxu0 0.0
      %2356 = vmatpush.msra.mxu0 0.0
      %2357 = vmatpush.msra.mxu0 0.0
      %2358 = vmatpush.msra.mxu0 0.0
      %2359 = vmatpush.msra.mxu0 0.0
      %2360 = vmatpush.msra.mxu0 %v1250
      %2361 = vmatpush.msra.mxu0 %v1249
      %2362 = vmatpush.msra.mxu0 %v1248
      %2363 = vmatpush.msra.mxu0 %v1247
      %2364 = vmatpush.msra.mxu0 %v1246
      %2365 = vmatpush.msra.mxu0 %v1245
      %2366 = vmatpush.msra.mxu0 %v1244
      %2367 = vmatpush.msra.mxu0 %v1243
      %2368 = vmatmul.f32.gmra.mxu0 %v1294
      %v2369 = vpop.f32.mrf.mxu0
      %v2370 = vadd.f32 0.0, %v2369
      %2371 = vmatmul.f32.gmra.mxu0 %v1297
      %v2372 = vpop.f32.mrf.mxu0
      %v2373 = vadd.f32 0.0, %v2372
      %2374 = vmatmul.f32.gmra.mxu0 %v1300
      %v2375 = vpop.f32.mrf.mxu0
      %v2376 = vadd.f32 0.0, %v2375
      %2377 = vmatmul.f32.gmra.mxu0 %v1303
      %v2378 = vpop.f32.mrf.mxu0
      %v2379 = vadd.f32 0.0, %v2378
      %2380 = vmatmul.f32.gmra.mxu0 %v1306
      %v2381 = vpop.f32.mrf.mxu0
      %v2382 = vadd.f32 0.0, %v2381
      %2383 = vmatmul.f32.gmra.mxu0 %v1309
      %v2384 = vpop.f32.mrf.mxu0
      %v2385 = vadd.f32 0.0, %v2384
      %2386 = vmatmul.f32.gmra.mxu0 %v1312
      %v2387 = vpop.f32.mrf.mxu0
      %v2388 = vadd.f32 0.0, %v2387
      %2389 = vmatmul.f32.gmra.mxu0 %v1315
      %v2390 = vpop.f32.mrf.mxu0
      %v2391 = vadd.f32 0.0, %v2390
      %2392 = vmatmul.f32.gmra.mxu0 %v1318
      %v2393 = vpop.f32.mrf.mxu0
      %v2394 = vadd.f32 0.0, %v2393
      %2395 = vmatmul.f32.gmra.mxu0 %v1321
      %v2396 = vpop.f32.mrf.mxu0
      %v2397 = vadd.f32 0.0, %v2396
      %2398 = vmatmul.f32.gmra.mxu0 %v1324
      %v2399 = vpop.f32.mrf.mxu0
      %v2400 = vadd.f32 0.0, %v2399
      %2401 = vmatmul.f32.gmra.mxu0 %v1327
      %v2402 = vpop.f32.mrf.mxu0
      %v2403 = vadd.f32 0.0, %v2402
      %2404 = vmatmul.f32.gmra.mxu0 %v1330
      %v2405 = vpop.f32.mrf.mxu0
      %v2406 = vadd.f32 0.0, %v2405
      %2407 = vmatmul.f32.gmra.mxu0 %v1333
      %v2408 = vpop.f32.mrf.mxu0
      %v2409 = vadd.f32 0.0, %v2408
      %2410 = vmatmul.f32.gmra.mxu0 %v1336
      %v2411 = vpop.f32.mrf.mxu0
      %v2412 = vadd.f32 0.0, %v2411
      %2413 = vmatmul.f32.gmra.mxu0 %v1339
      %v2414 = vpop.f32.mrf.mxu0
      %v2415 = vadd.f32 0.0, %v2414
      %2416 = vmatmul.f32.gmra.mxu0 %v1342
      %v2417 = vpop.f32.mrf.mxu0
      %v2418 = vadd.f32 0.0, %v2417
      %2419 = vmatmul.f32.gmra.mxu0 %v1345
      %v2420 = vpop.f32.mrf.mxu0
      %v2421 = vadd.f32 0.0, %v2420
      %2422 = vdwg.mxu0
      %v2425 = vrot.slane %v2370, 4
      %v2426 = vrot.slane %v2373, 4
      %v2427 = vsel %vm1469, %v2425, %v2426
      %vm2430 = vcmask 261124
      %2431 = vst.msk [vmem:[#allocation2 + $0x80] sm:$0xf0] %vm2430, %v2425
      %vm2432 = vcmask 258048
      %2433 = vst.msk [vmem:[#allocation2 + $0xa0] sm:$0x1f] %vm2432, %v2427
      %v2435 = vrot.slane %v2373, 5
      %v2436 = vrot.slane %v2376, 5
      %v2437 = vsel %vm1478, %v2435, %v2436
      %2438 = vrot.lane.b32.xlu0 %v2435, 32
      %v2439 = vpop.permute.xlu0 %2438
      %2440 = vrot.lane.b32.xlu0 %v2437, 32
      %v2441 = vpop.permute.xlu0 %2440
      %vm2444 = vcmask 523524
      %2445 = vst.msk [vmem:[#allocation2 + $0x80] sm:$0xf0] %vm2444, %v2439
      %vm2446 = vcmask 520448
      %2447 = vst.msk [vmem:[#allocation2 + $0xa0] sm:$0x1f] %vm2446, %v2441
      %v2449 = vrot.slane %v2376, 6
      %v2450 = vrot.slane %v2379, 6
      %v2451 = vsel %vm1491, %v2449, %v2450
      %2452 = vrot.lane.b32.xlu0 %v2449, 64
      %v2453 = vpop.permute.xlu0 %2452
      %2454 = vrot.lane.b32.xlu0 %v2451, 64
      %v2455 = vpop.permute.xlu0 %2454
      %vm2458 = vcmask 785924
      %2459 = vst.msk [vmem:[#allocation2 + $0x80] sm:$0xf0] %vm2458, %v2453
      %vm2460 = vcmask 782848
      %2461 = vst.msk [vmem:[#allocation2 + $0xa0] sm:$0x1f] %vm2460, %v2455
      %v2463 = vrot.slane %v2379, 7
      %v2464 = vrot.slane %v2382, 7
      %v2465 = vsel %vm1504, %v2463, %v2464
      %2466 = vrot.lane.b32.xlu0 %v2463, 96
      %v2467 = vpop.permute.xlu0 %2466
      %2468 = vrot.lane.b32.xlu0 %v2465, 96
      %v2469 = vpop.permute.xlu0 %2468
      %vm2472 = vcmask 1048324
      %2473 = vst.msk [vmem:[#allocation2 + $0x80] sm:$0xf0] %vm2472, %v2467
      %vm2474 = vcmask 1045248
      %2475 = vst.msk [vmem:[#allocation2 + $0xa0] sm:$0x1f] %vm2474, %v2469
      %2476 = vst.msk [vmem:[#allocation2 + $0x88] sm:$0xf0] %vm2430, %v2382
      %2477 = vst.msk [vmem:[#allocation2 + $0xa8] sm:$0x1f] %vm2432, %v2385
      %v2480 = vrot.slane %v2385, 1
      %v2481 = vrot.slane %v2388, 1
      %v2482 = vsel %vm1424, %v2480, %v2481
      %2483 = vrot.lane.b32.xlu0 %v2482, 32
      %v2484 = vpop.permute.xlu0 %2483
      %2485 = vrot.lane.b32.xlu0 %v2481, 32
      %v2486 = vpop.permute.xlu0 %2485
      %2489 = vst.msk [vmem:[#allocation2 + $0x88] sm:$0xf0] %vm2444, %v2484
      %2490 = vst.msk [vmem:[#allocation2 + $0xa8] sm:$0x1f] %vm2446, %v2486
      %v2492 = vrot.slane %v2388, 2
      %v2493 = vrot.slane %v2391, 2
      %v2494 = vsel %vm1439, %v2492, %v2493
      %2495 = vrot.lane.b32.xlu0 %v2494, 64
      %v2496 = vpop.permute.xlu0 %2495
      %2497 = vrot.lane.b32.xlu0 %v2493, 64
      %v2498 = vpop.permute.xlu0 %2497
      %2501 = vst.msk [vmem:[#allocation2 + $0x88] sm:$0xf0] %vm2458, %v2496
      %2502 = vst.msk [vmem:[#allocation2 + $0xa8] sm:$0x1f] %vm2460, %v2498
      %v2504 = vrot.slane %v2391, 3
      %v2505 = vrot.slane %v2394, 3
      %v2506 = vsel %vm1454, %v2504, %v2505
      %2507 = vrot.lane.b32.xlu0 %v2506, 96
      %v2508 = vpop.permute.xlu0 %2507
      %2509 = vrot.lane.b32.xlu0 %v2505, 96
      %v2510 = vpop.permute.xlu0 %2509
      %2513 = vst.msk [vmem:[#allocation2 + $0x88] sm:$0xf0] %vm2472, %v2508
      %2514 = vst.msk [vmem:[#allocation2 + $0xa8] sm:$0x1f] %vm2474, %v2510
      %v2517 = vrot.slane %v2397, 4
      %v2518 = vrot.slane %v2400, 4
      %v2519 = vsel %vm1469, %v2517, %v2518
      %2522 = vst.msk [vmem:[#allocation2 + $0x90] sm:$0xf0] %vm2430, %v2517
      %2523 = vst.msk [vmem:[#allocation2 + $0xb0] sm:$0x1f] %vm2432, %v2519
      %v2525 = vrot.slane %v2400, 5
      %v2526 = vrot.slane %v2403, 5
      %v2527 = vsel %vm1478, %v2525, %v2526
      %2528 = vrot.lane.b32.xlu0 %v2525, 32
      %v2529 = vpop.permute.xlu0 %2528
      %2530 = vrot.lane.b32.xlu0 %v2527, 32
      %v2531 = vpop.permute.xlu0 %2530
      %2534 = vst.msk [vmem:[#allocation2 + $0x90] sm:$0xf0] %vm2444, %v2529
      %2535 = vst.msk [vmem:[#allocation2 + $0xb0] sm:$0x1f] %vm2446, %v2531
      %v2537 = vrot.slane %v2403, 6
      %v2538 = vrot.slane %v2406, 6
      %v2539 = vsel %vm1491, %v2537, %v2538
      %2540 = vrot.lane.b32.xlu0 %v2537, 64
      %v2541 = vpop.permute.xlu0 %2540
      %2542 = vrot.lane.b32.xlu0 %v2539, 64
      %v2543 = vpop.permute.xlu0 %2542
      %2546 = vst.msk [vmem:[#allocation2 + $0x90] sm:$0xf0] %vm2458, %v2541
      %2547 = vst.msk [vmem:[#allocation2 + $0xb0] sm:$0x1f] %vm2460, %v2543
      %v2549 = vrot.slane %v2406, 7
      %v2550 = vrot.slane %v2409, 7
      %v2551 = vsel %vm1504, %v2549, %v2550
      %2552 = vrot.lane.b32.xlu0 %v2549, 96
      %v2553 = vpop.permute.xlu0 %2552
      %2554 = vrot.lane.b32.xlu0 %v2551, 96
      %v2555 = vpop.permute.xlu0 %2554
      %2558 = vst.msk [vmem:[#allocation2 + $0x90] sm:$0xf0] %vm2472, %v2553
      %2559 = vst.msk [vmem:[#allocation2 + $0xb0] sm:$0x1f] %vm2474, %v2555
      %2560 = vst.msk [vmem:[#allocation2 + $0x98] sm:$0xf0] %vm2430, %v2409
      %2561 = vst.msk [vmem:[#allocation2 + $0xb8] sm:$0x1f] %vm2432, %v2412
      %v2564 = vrot.slane %v2412, 1
      %v2565 = vrot.slane %v2415, 1
      %v2566 = vsel %vm1424, %v2564, %v2565
      %2567 = vrot.lane.b32.xlu0 %v2566, 32
      %v2568 = vpop.permute.xlu0 %2567
      %2569 = vrot.lane.b32.xlu0 %v2565, 32
      %v2570 = vpop.permute.xlu0 %2569
      %2573 = vst.msk [vmem:[#allocation2 + $0x98] sm:$0xf0] %vm2444, %v2568
      %2574 = vst.msk [vmem:[#allocation2 + $0xb8] sm:$0x1f] %vm2446, %v2570
      %v2576 = vrot.slane %v2415, 2
      %v2577 = vrot.slane %v2418, 2
      %v2578 = vsel %vm1439, %v2576, %v2577
      %2579 = vrot.lane.b32.xlu0 %v2578, 64
      %v2580 = vpop.permute.xlu0 %2579
      %2581 = vrot.lane.b32.xlu0 %v2577, 64
      %v2582 = vpop.permute.xlu0 %2581
      %2585 = vst.msk [vmem:[#allocation2 + $0x98] sm:$0xf0] %vm2458, %v2580
      %2586 = vst.msk [vmem:[#allocation2 + $0xb8] sm:$0x1f] %vm2460, %v2582
      %v2588 = vrot.slane %v2418, 3
      %v2589 = vrot.slane %v2421, 3
      %v2590 = vsel %vm1454, %v2588, %v2589
      %2591 = vrot.lane.b32.xlu0 %v2590, 96
      %v2592 = vpop.permute.xlu0 %2591
      %2593 = vrot.lane.b32.xlu0 %v2589, 96
      %v2594 = vpop.permute.xlu0 %2593
      %2597 = vst.msk [vmem:[#allocation2 + $0x98] sm:$0xf0] %vm2472, %v2592
      %2598 = vst.msk [vmem:[#allocation2 + $0xb8] sm:$0x1f] %vm2474, %v2594
      %2599 = vmatpush.msra.mxu0 0.0
      %2600 = vmatpush.msra.mxu0 0.0
      %2601 = vmatpush.msra.mxu0 0.0
      %2602 = vmatpush.msra.mxu0 0.0
      %2603 = vmatpush.msra.mxu0 0.0
      %2604 = vmatpush.msra.mxu0 0.0
      %2605 = vmatpush.msra.mxu0 0.0
      %2606 = vmatpush.msra.mxu0 0.0
      %2607 = vmatpush.msra.mxu0 %v1258
      %2608 = vmatpush.msra.mxu0 %v1257
      %2609 = vmatpush.msra.mxu0 %v1256
      %2610 = vmatpush.msra.mxu0 %v1255
      %2611 = vmatpush.msra.mxu0 %v1254
      %2612 = vmatpush.msra.mxu0 %v1253
      %2613 = vmatpush.msra.mxu0 %v1252
      %2614 = vmatpush.msra.mxu0 %v1251
      %2615 = vmatmul.f32.gmra.mxu0 %v1294
      %v2616 = vpop.f32.mrf.mxu0
      %v2617 = vadd.f32 0.0, %v2616
      %2618 = vmatmul.f32.gmra.mxu0 %v1297
      %v2619 = vpop.f32.mrf.mxu0
      %v2620 = vadd.f32 0.0, %v2619
      %2621 = vmatmul.f32.gmra.mxu0 %v1300
      %v2622 = vpop.f32.mrf.mxu0
      %v2623 = vadd.f32 0.0, %v2622
      %2624 = vmatmul.f32.gmra.mxu0 %v1303
      %v2625 = vpop.f32.mrf.mxu0
      %v2626 = vadd.f32 0.0, %v2625
      %2627 = vmatmul.f32.gmra.mxu0 %v1306
      %v2628 = vpop.f32.mrf.mxu0
      %v2629 = vadd.f32 0.0, %v2628
      %2630 = vmatmul.f32.gmra.mxu0 %v1309
      %v2631 = vpop.f32.mrf.mxu0
      %v2632 = vadd.f32 0.0, %v2631
      %2633 = vmatmul.f32.gmra.mxu0 %v1312
      %v2634 = vpop.f32.mrf.mxu0
      %v2635 = vadd.f32 0.0, %v2634
      %2636 = vmatmul.f32.gmra.mxu0 %v1315
      %v2637 = vpop.f32.mrf.mxu0
      %v2638 = vadd.f32 0.0, %v2637
      %2639 = vmatmul.f32.gmra.mxu0 %v1318
      %v2640 = vpop.f32.mrf.mxu0
      %v2641 = vadd.f32 0.0, %v2640
      %2642 = vmatmul.f32.gmra.mxu0 %v1321
      %v2643 = vpop.f32.mrf.mxu0
      %v2644 = vadd.f32 0.0, %v2643
      %2645 = vmatmul.f32.gmra.mxu0 %v1324
      %v2646 = vpop.f32.mrf.mxu0
      %v2647 = vadd.f32 0.0, %v2646
      %2648 = vmatmul.f32.gmra.mxu0 %v1327
      %v2649 = vpop.f32.mrf.mxu0
      %v2650 = vadd.f32 0.0, %v2649
      %2651 = vmatmul.f32.gmra.mxu0 %v1330
      %v2652 = vpop.f32.mrf.mxu0
      %v2653 = vadd.f32 0.0, %v2652
      %2654 = vmatmul.f32.gmra.mxu0 %v1333
      %v2655 = vpop.f32.mrf.mxu0
      %v2656 = vadd.f32 0.0, %v2655
      %2657 = vmatmul.f32.gmra.mxu0 %v1336
      %v2658 = vpop.f32.mrf.mxu0
      %v2659 = vadd.f32 0.0, %v2658
      %2660 = vmatmul.f32.gmra.mxu0 %v1339
      %v2661 = vpop.f32.mrf.mxu0
      %v2662 = vadd.f32 0.0, %v2661
      %2663 = vmatmul.f32.gmra.mxu0 %v1342
      %v2664 = vpop.f32.mrf.mxu0
      %v2665 = vadd.f32 0.0, %v2664
      %2666 = vmatmul.f32.gmra.mxu0 %v1345
      %v2667 = vpop.f32.mrf.mxu0
      %v2668 = vadd.f32 0.0, %v2667
      %2669 = vdwg.mxu0
      %v2672 = vrot.slane %v2617, 3
      %v2673 = vrot.slane %v2620, 3
      %v2674 = vsel %vm1454, %v2672, %v2673
      %vm2677 = vcmask 261125
      %2678 = vst.msk [vmem:[#allocation2 + $0xa0] sm:$0xe0] %vm2677, %v2672
      %vm2679 = vcmask 259072
      %2680 = vst.msk [vmem:[#allocation2 + $0xc0] sm:$0x3f] %vm2679, %v2674
      %v2682 = vrot.slane %v2620, 4
      %v2683 = vrot.slane %v2623, 4
      %v2684 = vsel %vm1469, %v2682, %v2683
      %2685 = vrot.lane.b32.xlu0 %v2682, 32
      %v2686 = vpop.permute.xlu0 %2685
      %2687 = vrot.lane.b32.xlu0 %v2684, 32
      %v2688 = vpop.permute.xlu0 %2687
      %vm2691 = vcmask 523525
      %2692 = vst.msk [vmem:[#allocation2 + $0xa0] sm:$0xe0] %vm2691, %v2686
      %vm2693 = vcmask 521472
      %2694 = vst.msk [vmem:[#allocation2 + $0xc0] sm:$0x3f] %vm2693, %v2688
      %v2696 = vrot.slane %v2623, 5
      %v2697 = vrot.slane %v2626, 5
      %v2698 = vsel %vm1478, %v2696, %v2697
      %2699 = vrot.lane.b32.xlu0 %v2696, 64
      %v2700 = vpop.permute.xlu0 %2699
      %2701 = vrot.lane.b32.xlu0 %v2698, 64
      %v2702 = vpop.permute.xlu0 %2701
      %vm2705 = vcmask 785925
      %2706 = vst.msk [vmem:[#allocation2 + $0xa0] sm:$0xe0] %vm2705, %v2700
      %vm2707 = vcmask 783872
      %2708 = vst.msk [vmem:[#allocation2 + $0xc0] sm:$0x3f] %vm2707, %v2702
      %v2710 = vrot.slane %v2626, 6
      %v2711 = vrot.slane %v2629, 6
      %v2712 = vsel %vm1491, %v2710, %v2711
      %2713 = vrot.lane.b32.xlu0 %v2710, 96
      %v2714 = vpop.permute.xlu0 %2713
      %2715 = vrot.lane.b32.xlu0 %v2712, 96
      %v2716 = vpop.permute.xlu0 %2715
      %vm2719 = vcmask 1048325
      %2720 = vst.msk [vmem:[#allocation2 + $0xa0] sm:$0xe0] %vm2719, %v2714
      %vm2721 = vcmask 1046272
      %2722 = vst.msk [vmem:[#allocation2 + $0xc0] sm:$0x3f] %vm2721, %v2716
      %v2724 = vrot.slane %v2629, 7
      %v2725 = vrot.slane %v2632, 7
      %v2726 = vsel %vm1504, %v2724, %v2725
      %2729 = vst.msk [vmem:[#allocation2 + $0xa8] sm:$0xe0] %vm2677, %v2724
      %2730 = vst.msk [vmem:[#allocation2 + $0xc8] sm:$0x3f] %vm2679, %v2726
      %2732 = vrot.lane.b32.xlu0 %v2632, 32
      %v2733 = vpop.permute.xlu0 %2732
      %2734 = vrot.lane.b32.xlu0 %v2635, 32
      %v2735 = vpop.permute.xlu0 %2734
      %2738 = vst.msk [vmem:[#allocation2 + $0xa8] sm:$0xe0] %vm2691, %v2733
      %2739 = vst.msk [vmem:[#allocation2 + $0xc8] sm:$0x3f] %vm2693, %v2735
      %v2741 = vrot.slane %v2635, 1
      %v2742 = vrot.slane %v2638, 1
      %v2743 = vsel %vm1424, %v2741, %v2742
      %2744 = vrot.lane.b32.xlu0 %v2743, 64
      %v2745 = vpop.permute.xlu0 %2744
      %2746 = vrot.lane.b32.xlu0 %v2742, 64
      %v2747 = vpop.permute.xlu0 %2746
      %2750 = vst.msk [vmem:[#allocation2 + $0xa8] sm:$0xe0] %vm2705, %v2745
      %2751 = vst.msk [vmem:[#allocation2 + $0xc8] sm:$0x3f] %vm2707, %v2747
      %v2753 = vrot.slane %v2638, 2
      %v2754 = vrot.slane %v2641, 2
      %v2755 = vsel %vm1439, %v2753, %v2754
      %2756 = vrot.lane.b32.xlu0 %v2755, 96
      %v2757 = vpop.permute.xlu0 %2756
      %2758 = vrot.lane.b32.xlu0 %v2754, 96
      %v2759 = vpop.permute.xlu0 %2758
      %2762 = vst.msk [vmem:[#allocation2 + $0xa8] sm:$0xe0] %vm2719, %v2757
      %2763 = vst.msk [vmem:[#allocation2 + $0xc8] sm:$0x3f] %vm2721, %v2759
      %v2766 = vrot.slane %v2644, 3
      %v2767 = vrot.slane %v2647, 3
      %v2768 = vsel %vm1454, %v2766, %v2767
      %2771 = vst.msk [vmem:[#allocation2 + $0xb0] sm:$0xe0] %vm2677, %v2766
      %2772 = vst.msk [vmem:[#allocation2 + $0xd0] sm:$0x3f] %vm2679, %v2768
      %v2774 = vrot.slane %v2647, 4
      %v2775 = vrot.slane %v2650, 4
      %v2776 = vsel %vm1469, %v2774, %v2775
      %2777 = vrot.lane.b32.xlu0 %v2774, 32
      %v2778 = vpop.permute.xlu0 %2777
      %2779 = vrot.lane.b32.xlu0 %v2776, 32
      %v2780 = vpop.permute.xlu0 %2779
      %2783 = vst.msk [vmem:[#allocation2 + $0xb0] sm:$0xe0] %vm2691, %v2778
      %2784 = vst.msk [vmem:[#allocation2 + $0xd0] sm:$0x3f] %vm2693, %v2780
      %v2786 = vrot.slane %v2650, 5
      %v2787 = vrot.slane %v2653, 5
      %v2788 = vsel %vm1478, %v2786, %v2787
      %2789 = vrot.lane.b32.xlu0 %v2786, 64
      %v2790 = vpop.permute.xlu0 %2789
      %2791 = vrot.lane.b32.xlu0 %v2788, 64
      %v2792 = vpop.permute.xlu0 %2791
      %2795 = vst.msk [vmem:[#allocation2 + $0xb0] sm:$0xe0] %vm2705, %v2790
      %2796 = vst.msk [vmem:[#allocation2 + $0xd0] sm:$0x3f] %vm2707, %v2792
      %v2798 = vrot.slane %v2653, 6
      %v2799 = vrot.slane %v2656, 6
      %v2800 = vsel %vm1491, %v2798, %v2799
      %2801 = vrot.lane.b32.xlu0 %v2798, 96
      %v2802 = vpop.permute.xlu0 %2801
      %2803 = vrot.lane.b32.xlu0 %v2800, 96
      %v2804 = vpop.permute.xlu0 %2803
      %2807 = vst.msk [vmem:[#allocation2 + $0xb0] sm:$0xe0] %vm2719, %v2802
      %2808 = vst.msk [vmem:[#allocation2 + $0xd0] sm:$0x3f] %vm2721, %v2804
      %v2810 = vrot.slane %v2656, 7
      %v2811 = vrot.slane %v2659, 7
      %v2812 = vsel %vm1504, %v2810, %v2811
      %2815 = vst.msk [vmem:[#allocation2 + $0xb8] sm:$0xe0] %vm2677, %v2810
      %2816 = vst.msk [vmem:[#allocation2 + $0xd8] sm:$0x3f] %vm2679, %v2812
      %2818 = vrot.lane.b32.xlu0 %v2659, 32
      %v2819 = vpop.permute.xlu0 %2818
      %2820 = vrot.lane.b32.xlu0 %v2662, 32
      %v2821 = vpop.permute.xlu0 %2820
      %2824 = vst.msk [vmem:[#allocation2 + $0xb8] sm:$0xe0] %vm2691, %v2819
      %2825 = vst.msk [vmem:[#allocation2 + $0xd8] sm:$0x3f] %vm2693, %v2821
      %v2827 = vrot.slane %v2662, 1
      %v2828 = vrot.slane %v2665, 1
      %v2829 = vsel %vm1424, %v2827, %v2828
      %2830 = vrot.lane.b32.xlu0 %v2829, 64
      %v2831 = vpop.permute.xlu0 %2830
      %2832 = vrot.lane.b32.xlu0 %v2828, 64
      %v2833 = vpop.permute.xlu0 %2832
      %2836 = vst.msk [vmem:[#allocation2 + $0xb8] sm:$0xe0] %vm2705, %v2831
      %2837 = vst.msk [vmem:[#allocation2 + $0xd8] sm:$0x3f] %vm2707, %v2833
      %v2839 = vrot.slane %v2665, 2
      %v2840 = vrot.slane %v2668, 2
      %v2841 = vsel %vm1439, %v2839, %v2840
      %2842 = vrot.lane.b32.xlu0 %v2841, 96
      %v2843 = vpop.permute.xlu0 %2842
      %2844 = vrot.lane.b32.xlu0 %v2840, 96
      %v2845 = vpop.permute.xlu0 %2844
      %2848 = vst.msk [vmem:[#allocation2 + $0xb8] sm:$0xe0] %vm2719, %v2843
      %2849 = vst.msk [vmem:[#allocation2 + $0xd8] sm:$0x3f] %vm2721, %v2845
      %2850 = vmatpush.msra.mxu0 0.0
      %2851 = vmatpush.msra.mxu0 0.0
      %2852 = vmatpush.msra.mxu0 0.0
      %2853 = vmatpush.msra.mxu0 0.0
      %2854 = vmatpush.msra.mxu0 0.0
      %2855 = vmatpush.msra.mxu0 0.0
      %2856 = vmatpush.msra.mxu0 0.0
      %2857 = vmatpush.msra.mxu0 0.0
      %2858 = vmatpush.msra.mxu0 %v1266
      %2859 = vmatpush.msra.mxu0 %v1265
      %2860 = vmatpush.msra.mxu0 %v1264
      %2861 = vmatpush.msra.mxu0 %v1263
      %2862 = vmatpush.msra.mxu0 %v1262
      %2863 = vmatpush.msra.mxu0 %v1261
      %2864 = vmatpush.msra.mxu0 %v1260
      %2865 = vmatpush.msra.mxu0 %v1259
      %2866 = vmatmul.f32.gmra.mxu0 %v1294
      %v2867 = vpop.f32.mrf.mxu0
      %v2868 = vadd.f32 0.0, %v2867
      %2869 = vmatmul.f32.gmra.mxu0 %v1297
      %v2870 = vpop.f32.mrf.mxu0
      %v2871 = vadd.f32 0.0, %v2870
      %2872 = vmatmul.f32.gmra.mxu0 %v1300
      %v2873 = vpop.f32.mrf.mxu0
      %v2874 = vadd.f32 0.0, %v2873
      %2875 = vmatmul.f32.gmra.mxu0 %v1303
      %v2876 = vpop.f32.mrf.mxu0
      %v2877 = vadd.f32 0.0, %v2876
      %2878 = vmatmul.f32.gmra.mxu0 %v1306
      %v2879 = vpop.f32.mrf.mxu0
      %v2880 = vadd.f32 0.0, %v2879
      %2881 = vmatmul.f32.gmra.mxu0 %v1309
      %v2882 = vpop.f32.mrf.mxu0
      %v2883 = vadd.f32 0.0, %v2882
      %2884 = vmatmul.f32.gmra.mxu0 %v1312
      %v2885 = vpop.f32.mrf.mxu0
      %v2886 = vadd.f32 0.0, %v2885
      %2887 = vmatmul.f32.gmra.mxu0 %v1315
      %v2888 = vpop.f32.mrf.mxu0
      %v2889 = vadd.f32 0.0, %v2888
      %2890 = vmatmul.f32.gmra.mxu0 %v1318
      %v2891 = vpop.f32.mrf.mxu0
      %v2892 = vadd.f32 0.0, %v2891
      %2893 = vmatmul.f32.gmra.mxu0 %v1321
      %v2894 = vpop.f32.mrf.mxu0
      %v2895 = vadd.f32 0.0, %v2894
      %2896 = vmatmul.f32.gmra.mxu0 %v1324
      %v2897 = vpop.f32.mrf.mxu0
      %v2898 = vadd.f32 0.0, %v2897
      %2899 = vmatmul.f32.gmra.mxu0 %v1327
      %v2900 = vpop.f32.mrf.mxu0
      %v2901 = vadd.f32 0.0, %v2900
      %2902 = vmatmul.f32.gmra.mxu0 %v1330
      %v2903 = vpop.f32.mrf.mxu0
      %v2904 = vadd.f32 0.0, %v2903
      %2905 = vmatmul.f32.gmra.mxu0 %v1333
      %v2906 = vpop.f32.mrf.mxu0
      %v2907 = vadd.f32 0.0, %v2906
      %2908 = vmatmul.f32.gmra.mxu0 %v1336
      %v2909 = vpop.f32.mrf.mxu0
      %v2910 = vadd.f32 0.0, %v2909
      %2911 = vmatmul.f32.gmra.mxu0 %v1339
      %v2912 = vpop.f32.mrf.mxu0
      %v2913 = vadd.f32 0.0, %v2912
      %2914 = vmatmul.f32.gmra.mxu0 %v1342
      %v2915 = vpop.f32.mrf.mxu0
      %v2916 = vadd.f32 0.0, %v2915
      %2917 = vmatmul.f32.gmra.mxu0 %v1345
      %v2918 = vpop.f32.mrf.mxu0
      %v2919 = vadd.f32 0.0, %v2918
      %2920 = vdwg.mxu0
      %v2923 = vrot.slane %v2868, 2
      %v2924 = vrot.slane %v2871, 2
      %v2925 = vsel %vm1439, %v2923, %v2924
      %vm2928 = vcmask 261126
      %2929 = vst.msk [vmem:[#allocation2 + $0xc0] sm:$0xc0] %vm2928, %v2923
      %vm2930 = vcmask 260096
      %2931 = vst.msk [vmem:[#allocation2 + $0xe0] sm:$0x7f] %vm2930, %v2925
      %v2933 = vrot.slane %v2871, 3
      %v2934 = vrot.slane %v2874, 3
      %v2935 = vsel %vm1454, %v2933, %v2934
      %2936 = vrot.lane.b32.xlu0 %v2933, 32
      %v2937 = vpop.permute.xlu0 %2936
      %2938 = vrot.lane.b32.xlu0 %v2935, 32
      %v2939 = vpop.permute.xlu0 %2938
      %vm2942 = vcmask 523526
      %2943 = vst.msk [vmem:[#allocation2 + $0xc0] sm:$0xc0] %vm2942, %v2937
      %vm2944 = vcmask 522496
      %2945 = vst.msk [vmem:[#allocation2 + $0xe0] sm:$0x7f] %vm2944, %v2939
      %v2947 = vrot.slane %v2874, 4
      %v2948 = vrot.slane %v2877, 4
      %v2949 = vsel %vm1469, %v2947, %v2948
      %2950 = vrot.lane.b32.xlu0 %v2947, 64
      %v2951 = vpop.permute.xlu0 %2950
      %2952 = vrot.lane.b32.xlu0 %v2949, 64
      %v2953 = vpop.permute.xlu0 %2952
      %vm2956 = vcmask 785926
      %2957 = vst.msk [vmem:[#allocation2 + $0xc0] sm:$0xc0] %vm2956, %v2951
      %vm2958 = vcmask 784896
      %2959 = vst.msk [vmem:[#allocation2 + $0xe0] sm:$0x7f] %vm2958, %v2953
      %v2961 = vrot.slane %v2877, 5
      %v2962 = vrot.slane %v2880, 5
      %v2963 = vsel %vm1478, %v2961, %v2962
      %2964 = vrot.lane.b32.xlu0 %v2961, 96
      %v2965 = vpop.permute.xlu0 %2964
      %2966 = vrot.lane.b32.xlu0 %v2963, 96
      %v2967 = vpop.permute.xlu0 %2966
      %vm2970 = vcmask 1048326
      %2971 = vst.msk [vmem:[#allocation2 + $0xc0] sm:$0xc0] %vm2970, %v2965
      %vm2972 = vcmask 1047296
      %2973 = vst.msk [vmem:[#allocation2 + $0xe0] sm:$0x7f] %vm2972, %v2967
      %v2975 = vrot.slane %v2880, 6
      %v2976 = vrot.slane %v2883, 6
      %v2977 = vsel %vm1491, %v2975, %v2976
      %2980 = vst.msk [vmem:[#allocation2 + $0xc8] sm:$0xc0] %vm2928, %v2975
      %2981 = vst.msk [vmem:[#allocation2 + $0xe8] sm:$0x7f] %vm2930, %v2977
      %v2983 = vrot.slane %v2883, 7
      %v2984 = vrot.slane %v2886, 7
      %v2985 = vsel %vm1504, %v2983, %v2984
      %2986 = vrot.lane.b32.xlu0 %v2983, 32
      %v2987 = vpop.permute.xlu0 %2986
      %2988 = vrot.lane.b32.xlu0 %v2985, 32
      %v2989 = vpop.permute.xlu0 %2988
      %2992 = vst.msk [vmem:[#allocation2 + $0xc8] sm:$0xc0] %vm2942, %v2987
      %2993 = vst.msk [vmem:[#allocation2 + $0xe8] sm:$0x7f] %vm2944, %v2989
      %2995 = vrot.lane.b32.xlu0 %v2886, 64
      %v2996 = vpop.permute.xlu0 %2995
      %2997 = vrot.lane.b32.xlu0 %v2889, 64
      %v2998 = vpop.permute.xlu0 %2997
      %3001 = vst.msk [vmem:[#allocation2 + $0xc8] sm:$0xc0] %vm2956, %v2996
      %3002 = vst.msk [vmem:[#allocation2 + $0xe8] sm:$0x7f] %vm2958, %v2998
      %v3004 = vrot.slane %v2889, 1
      %v3005 = vrot.slane %v2892, 1
      %v3006 = vsel %vm1424, %v3004, %v3005
      %3007 = vrot.lane.b32.xlu0 %v3006, 96
      %v3008 = vpop.permute.xlu0 %3007
      %3009 = vrot.lane.b32.xlu0 %v3005, 96
      %v3010 = vpop.permute.xlu0 %3009
      %3013 = vst.msk [vmem:[#allocation2 + $0xc8] sm:$0xc0] %vm2970, %v3008
      %3014 = vst.msk [vmem:[#allocation2 + $0xe8] sm:$0x7f] %vm2972, %v3010
      %v3017 = vrot.slane %v2895, 2
      %v3018 = vrot.slane %v2898, 2
      %v3019 = vsel %vm1439, %v3017, %v3018
      %3022 = vst.msk [vmem:[#allocation2 + $0xd0] sm:$0xc0] %vm2928, %v3017
      %3023 = vst.msk [vmem:[#allocation2 + $0xf0] sm:$0x7f] %vm2930, %v3019
      %v3025 = vrot.slane %v2898, 3
      %v3026 = vrot.slane %v2901, 3
      %v3027 = vsel %vm1454, %v3025, %v3026
      %3028 = vrot.lane.b32.xlu0 %v3025, 32
      %v3029 = vpop.permute.xlu0 %3028
      %3030 = vrot.lane.b32.xlu0 %v3027, 32
      %v3031 = vpop.permute.xlu0 %3030
      %3034 = vst.msk [vmem:[#allocation2 + $0xd0] sm:$0xc0] %vm2942, %v3029
      %3035 = vst.msk [vmem:[#allocation2 + $0xf0] sm:$0x7f] %vm2944, %v3031
      %v3037 = vrot.slane %v2901, 4
      %v3038 = vrot.slane %v2904, 4
      %v3039 = vsel %vm1469, %v3037, %v3038
      %3040 = vrot.lane.b32.xlu0 %v3037, 64
      %v3041 = vpop.permute.xlu0 %3040
      %3042 = vrot.lane.b32.xlu0 %v3039, 64
      %v3043 = vpop.permute.xlu0 %3042
      %3046 = vst.msk [vmem:[#allocation2 + $0xd0] sm:$0xc0] %vm2956, %v3041
      %3047 = vst.msk [vmem:[#allocation2 + $0xf0] sm:$0x7f] %vm2958, %v3043
      %v3049 = vrot.slane %v2904, 5
      %v3050 = vrot.slane %v2907, 5
      %v3051 = vsel %vm1478, %v3049, %v3050
      %3052 = vrot.lane.b32.xlu0 %v3049, 96
      %v3053 = vpop.permute.xlu0 %3052
      %3054 = vrot.lane.b32.xlu0 %v3051, 96
      %v3055 = vpop.permute.xlu0 %3054
      %3058 = vst.msk [vmem:[#allocation2 + $0xd0] sm:$0xc0] %vm2970, %v3053
      %3059 = vst.msk [vmem:[#allocation2 + $0xf0] sm:$0x7f] %vm2972, %v3055
      %v3061 = vrot.slane %v2907, 6
      %v3062 = vrot.slane %v2910, 6
      %v3063 = vsel %vm1491, %v3061, %v3062
      %3066 = vst.msk [vmem:[#allocation2 + $0xd8] sm:$0xc0] %vm2928, %v3061
      %3067 = vst.msk [vmem:[#allocation2 + $0xf8] sm:$0x7f] %vm2930, %v3063
      %v3069 = vrot.slane %v2910, 7
      %v3070 = vrot.slane %v2913, 7
      %v3071 = vsel %vm1504, %v3069, %v3070
      %3072 = vrot.lane.b32.xlu0 %v3069, 32
      %v3073 = vpop.permute.xlu0 %3072
      %3074 = vrot.lane.b32.xlu0 %v3071, 32
      %v3075 = vpop.permute.xlu0 %3074
      %3078 = vst.msk [vmem:[#allocation2 + $0xd8] sm:$0xc0] %vm2942, %v3073
      %3079 = vst.msk [vmem:[#allocation2 + $0xf8] sm:$0x7f] %vm2944, %v3075
      %3081 = vrot.lane.b32.xlu0 %v2913, 64
      %v3082 = vpop.permute.xlu0 %3081
      %3083 = vrot.lane.b32.xlu0 %v2916, 64
      %v3084 = vpop.permute.xlu0 %3083
      %3087 = vst.msk [vmem:[#allocation2 + $0xd8] sm:$0xc0] %vm2956, %v3082
      %3088 = vst.msk [vmem:[#allocation2 + $0xf8] sm:$0x7f] %vm2958, %v3084
      %v3090 = vrot.slane %v2916, 1
      %v3091 = vrot.slane %v2919, 1
      %v3092 = vsel %vm1424, %v3090, %v3091
      %3093 = vrot.lane.b32.xlu0 %v3092, 96
      %v3094 = vpop.permute.xlu0 %3093
      %3095 = vrot.lane.b32.xlu0 %v3091, 96
      %v3096 = vpop.permute.xlu0 %3095
      %3099 = vst.msk [vmem:[#allocation2 + $0xd8] sm:$0xc0] %vm2970, %v3094
      %3100 = vst.msk [vmem:[#allocation2 + $0xf8] sm:$0x7f] %vm2972, %v3096
      %3101 = vmatpush.msra.mxu0 0.0
      %3102 = vmatpush.msra.mxu0 0.0
      %3103 = vmatpush.msra.mxu0 0.0
      %3104 = vmatpush.msra.mxu0 0.0
      %3105 = vmatpush.msra.mxu0 0.0
      %3106 = vmatpush.msra.mxu0 0.0
      %3107 = vmatpush.msra.mxu0 0.0
      %3108 = vmatpush.msra.mxu0 0.0
      %3109 = vmatpush.msra.mxu0 %v1274
      %3110 = vmatpush.msra.mxu0 %v1273
      %3111 = vmatpush.msra.mxu0 %v1272
      %3112 = vmatpush.msra.mxu0 %v1271
      %3113 = vmatpush.msra.mxu0 %v1270
      %3114 = vmatpush.msra.mxu0 %v1269
      %3115 = vmatpush.msra.mxu0 %v1268
      %3116 = vmatpush.msra.mxu0 %v1267
      %3117 = vmatmul.f32.gmra.mxu0 %v1294
      %v3118 = vpop.f32.mrf.mxu0
      %v3119 = vadd.f32 0.0, %v3118
      %3120 = vmatmul.f32.gmra.mxu0 %v1297
      %v3121 = vpop.f32.mrf.mxu0
      %v3122 = vadd.f32 0.0, %v3121
      %3123 = vmatmul.f32.gmra.mxu0 %v1300
      %v3124 = vpop.f32.mrf.mxu0
      %v3125 = vadd.f32 0.0, %v3124
      %3126 = vmatmul.f32.gmra.mxu0 %v1303
      %v3127 = vpop.f32.mrf.mxu0
      %v3128 = vadd.f32 0.0, %v3127
      %3129 = vmatmul.f32.gmra.mxu0 %v1306
      %v3130 = vpop.f32.mrf.mxu0
      %v3131 = vadd.f32 0.0, %v3130
      %3132 = vmatmul.f32.gmra.mxu0 %v1309
      %v3133 = vpop.f32.mrf.mxu0
      %v3134 = vadd.f32 0.0, %v3133
      %3135 = vmatmul.f32.gmra.mxu0 %v1312
      %v3136 = vpop.f32.mrf.mxu0
      %v3137 = vadd.f32 0.0, %v3136
      %3138 = vmatmul.f32.gmra.mxu0 %v1315
      %v3139 = vpop.f32.mrf.mxu0
      %v3140 = vadd.f32 0.0, %v3139
      %3141 = vmatmul.f32.gmra.mxu0 %v1318
      %v3142 = vpop.f32.mrf.mxu0
      %v3143 = vadd.f32 0.0, %v3142
      %3144 = vmatmul.f32.gmra.mxu0 %v1321
      %v3145 = vpop.f32.mrf.mxu0
      %v3146 = vadd.f32 0.0, %v3145
      %3147 = vmatmul.f32.gmra.mxu0 %v1324
      %v3148 = vpop.f32.mrf.mxu0
      %v3149 = vadd.f32 0.0, %v3148
      %3150 = vmatmul.f32.gmra.mxu0 %v1327
      %v3151 = vpop.f32.mrf.mxu0
      %v3152 = vadd.f32 0.0, %v3151
      %3153 = vmatmul.f32.gmra.mxu0 %v1330
      %v3154 = vpop.f32.mrf.mxu0
      %v3155 = vadd.f32 0.0, %v3154
      %3156 = vmatmul.f32.gmra.mxu0 %v1333
      %v3157 = vpop.f32.mrf.mxu0
      %v3158 = vadd.f32 0.0, %v3157
      %3159 = vmatmul.f32.gmra.mxu0 %v1336
      %v3160 = vpop.f32.mrf.mxu0
      %v3161 = vadd.f32 0.0, %v3160
      %3162 = vmatmul.f32.gmra.mxu0 %v1339
      %v3163 = vpop.f32.mrf.mxu0
      %v3164 = vadd.f32 0.0, %v3163
      %3165 = vmatmul.f32.gmra.mxu0 %v1342
      %v3166 = vpop.f32.mrf.mxu0
      %v3167 = vadd.f32 0.0, %v3166
      %3168 = vmatmul.f32.gmra.mxu0 %v1345
      %v3169 = vpop.f32.mrf.mxu0
      %v3170 = vadd.f32 0.0, %v3169
      %3171 = vdwg.mxu0
      %v3174 = vrot.slane %v3119, 1
      %v3175 = vrot.slane %v3122, 1
      %v3176 = vsel %vm1424, %v3174, %v3175
      %vm3179 = vcmask 261127
      %3180 = vst.msk [vmem:[#allocation2 + $0xe0] sm:$0x80] %vm3179, %v3174
      %3181 = vst.msk [vmem:[#allocation2 + $0x100] sm:$0xff] %vm1418, %v3176
      %v3183 = vrot.slane %v3122, 2
      %v3184 = vrot.slane %v3125, 2
      %v3185 = vsel %vm1439, %v3183, %v3184
      %3186 = vrot.lane.b32.xlu0 %v3183, 32
      %v3187 = vpop.permute.xlu0 %3186
      %3188 = vrot.lane.b32.xlu0 %v3185, 32
      %v3189 = vpop.permute.xlu0 %3188
      %vm3192 = vcmask 523527
      %3193 = vst.msk [vmem:[#allocation2 + $0xe0] sm:$0x80] %vm3192, %v3187
      %3194 = vst.msk [vmem:[#allocation2 + $0x100] sm:$0xff] %vm1434, %v3189
      %v3196 = vrot.slane %v3125, 3
      %v3197 = vrot.slane %v3128, 3
      %v3198 = vsel %vm1454, %v3196, %v3197
      %3199 = vrot.lane.b32.xlu0 %v3196, 64
      %v3200 = vpop.permute.xlu0 %3199
      %3201 = vrot.lane.b32.xlu0 %v3198, 64
      %v3202 = vpop.permute.xlu0 %3201
      %vm3205 = vcmask 785927
      %3206 = vst.msk [vmem:[#allocation2 + $0xe0] sm:$0x80] %vm3205, %v3200
      %3207 = vst.msk [vmem:[#allocation2 + $0x100] sm:$0xff] %vm1449, %v3202
      %v3209 = vrot.slane %v3128, 4
      %v3210 = vrot.slane %v3131, 4
      %v3211 = vsel %vm1469, %v3209, %v3210
      %3212 = vrot.lane.b32.xlu0 %v3209, 96
      %v3213 = vpop.permute.xlu0 %3212
      %3214 = vrot.lane.b32.xlu0 %v3211, 96
      %v3215 = vpop.permute.xlu0 %3214
      %vm3218 = vcmask 1048327
      %3219 = vst.msk [vmem:[#allocation2 + $0xe0] sm:$0x80] %vm3218, %v3213
      %3220 = vst.msk [vmem:[#allocation2 + $0x100] sm:$0xff] %vm1464, %v3215
      %v3222 = vrot.slane %v3131, 5
      %v3223 = vrot.slane %v3134, 5
      %v3224 = vsel %vm1478, %v3222, %v3223
      %3227 = vst.msk [vmem:[#allocation2 + $0xe8] sm:$0x80] %vm3179, %v3222
      %3228 = vst.msk [vmem:[#allocation2 + $0x108] sm:$0xff] %vm1418, %v3224
      %v3230 = vrot.slane %v3134, 6
      %v3231 = vrot.slane %v3137, 6
      %v3232 = vsel %vm1491, %v3230, %v3231
      %3233 = vrot.lane.b32.xlu0 %v3230, 32
      %v3234 = vpop.permute.xlu0 %3233
      %3235 = vrot.lane.b32.xlu0 %v3232, 32
      %v3236 = vpop.permute.xlu0 %3235
      %3239 = vst.msk [vmem:[#allocation2 + $0xe8] sm:$0x80] %vm3192, %v3234
      %3240 = vst.msk [vmem:[#allocation2 + $0x108] sm:$0xff] %vm1434, %v3236
      %v3242 = vrot.slane %v3137, 7
      %v3243 = vrot.slane %v3140, 7
      %v3244 = vsel %vm1504, %v3242, %v3243
      %3245 = vrot.lane.b32.xlu0 %v3242, 64
      %v3246 = vpop.permute.xlu0 %3245
      %3247 = vrot.lane.b32.xlu0 %v3244, 64
      %v3248 = vpop.permute.xlu0 %3247
      %3251 = vst.msk [vmem:[#allocation2 + $0xe8] sm:$0x80] %vm3205, %v3246
      %3252 = vst.msk [vmem:[#allocation2 + $0x108] sm:$0xff] %vm1449, %v3248
      %3254 = vrot.lane.b32.xlu0 %v3140, 96
      %v3255 = vpop.permute.xlu0 %3254
      %3256 = vrot.lane.b32.xlu0 %v3143, 96
      %v3257 = vpop.permute.xlu0 %3256
      %3260 = vst.msk [vmem:[#allocation2 + $0xe8] sm:$0x80] %vm3218, %v3255
      %3261 = vst.msk [vmem:[#allocation2 + $0x108] sm:$0xff] %vm1464, %v3257
      %v3264 = vrot.slane %v3146, 1
      %v3265 = vrot.slane %v3149, 1
      %v3266 = vsel %vm1424, %v3264, %v3265
      %3269 = vst.msk [vmem:[#allocation2 + $0xf0] sm:$0x80] %vm3179, %v3264
      %3270 = vst.msk [vmem:[#allocation2 + $0x110] sm:$0xff] %vm1418, %v3266
      %v3272 = vrot.slane %v3149, 2
      %v3273 = vrot.slane %v3152, 2
      %v3274 = vsel %vm1439, %v3272, %v3273
      %3275 = vrot.lane.b32.xlu0 %v3272, 32
      %v3276 = vpop.permute.xlu0 %3275
      %3277 = vrot.lane.b32.xlu0 %v3274, 32
      %v3278 = vpop.permute.xlu0 %3277
      %3281 = vst.msk [vmem:[#allocation2 + $0xf0] sm:$0x80] %vm3192, %v3276
      %3282 = vst.msk [vmem:[#allocation2 + $0x110] sm:$0xff] %vm1434, %v3278
      %v3284 = vrot.slane %v3152, 3
      %v3285 = vrot.slane %v3155, 3
      %v3286 = vsel %vm1454, %v3284, %v3285
      %3287 = vrot.lane.b32.xlu0 %v3284, 64
      %v3288 = vpop.permute.xlu0 %3287
      %3289 = vrot.lane.b32.xlu0 %v3286, 64
      %v3290 = vpop.permute.xlu0 %3289
      %3293 = vst.msk [vmem:[#allocation2 + $0xf0] sm:$0x80] %vm3205, %v3288
      %3294 = vst.msk [vmem:[#allocation2 + $0x110] sm:$0xff] %vm1449, %v3290
      %v3296 = vrot.slane %v3155, 4
      %v3297 = vrot.slane %v3158, 4
      %v3298 = vsel %vm1469, %v3296, %v3297
      %3299 = vrot.lane.b32.xlu0 %v3296, 96
      %v3300 = vpop.permute.xlu0 %3299
      %3301 = vrot.lane.b32.xlu0 %v3298, 96
      %v3302 = vpop.permute.xlu0 %3301
      %3305 = vst.msk [vmem:[#allocation2 + $0xf0] sm:$0x80] %vm3218, %v3300
      %3306 = vst.msk [vmem:[#allocation2 + $0x110] sm:$0xff] %vm1464, %v3302
      %v3308 = vrot.slane %v3158, 5
      %v3309 = vrot.slane %v3161, 5
      %v3310 = vsel %vm1478, %v3308, %v3309
      %3313 = vst.msk [vmem:[#allocation2 + $0xf8] sm:$0x80] %vm3179, %v3308
      %3314 = vst.msk [vmem:[#allocation2 + $0x118] sm:$0xff] %vm1418, %v3310
      %v3316 = vrot.slane %v3161, 6
      %v3317 = vrot.slane %v3164, 6
      %v3318 = vsel %vm1491, %v3316, %v3317
      %3319 = vrot.lane.b32.xlu0 %v3316, 32
      %v3320 = vpop.permute.xlu0 %3319
      %3321 = vrot.lane.b32.xlu0 %v3318, 32
      %v3322 = vpop.permute.xlu0 %3321
      %3325 = vst.msk [vmem:[#allocation2 + $0xf8] sm:$0x80] %vm3192, %v3320
      %3326 = vst.msk [vmem:[#allocation2 + $0x118] sm:$0xff] %vm1434, %v3322
      %v3328 = vrot.slane %v3164, 7
      %v3329 = vrot.slane %v3167, 7
      %v3330 = vsel %vm1504, %v3328, %v3329
      %3331 = vrot.lane.b32.xlu0 %v3328, 64
      %v3332 = vpop.permute.xlu0 %3331
      %3333 = vrot.lane.b32.xlu0 %v3330, 64
      %v3334 = vpop.permute.xlu0 %3333
      %3337 = vst.msk [vmem:[#allocation2 + $0xf8] sm:$0x80] %vm3205, %v3332
      %3338 = vst.msk [vmem:[#allocation2 + $0x118] sm:$0xff] %vm1449, %v3334
      %3340 = vrot.lane.b32.xlu0 %v3167, 96
      %v3341 = vpop.permute.xlu0 %3340
      %3342 = vrot.lane.b32.xlu0 %v3170, 96
      %v3343 = vpop.permute.xlu0 %3342
      %3346 = vst.msk [vmem:[#allocation2 + $0xf8] sm:$0x80] %vm3218, %v3341
      %3347 = vst.msk [vmem:[#allocation2 + $0x118] sm:$0xff] %vm1464, %v3343
      %v3348 = vld [vmem:[#allocation2] sm:$0xff]
      %v3349 = vld [vmem:[#allocation2 + $0x8] sm:$0xff]
      %v3350 = vld [vmem:[#allocation2 + $0x10] sm:$0xff]
      %v3351 = vld [vmem:[#allocation2 + $0x18] sm:$0xff]
      %v3352 = vld [vmem:[#allocation2 + $0x20] sm:$0xff]
      %v3353 = vld [vmem:[#allocation2 + $0x28] sm:$0xff]
      %v3354 = vld [vmem:[#allocation2 + $0x30] sm:$0xff]
      %v3355 = vld [vmem:[#allocation2 + $0x38] sm:$0xff]
      %v3356 = vld [vmem:[#allocation2 + $0x40] sm:$0xff]
      %v3357 = vld [vmem:[#allocation2 + $0x48] sm:$0xff]
      %v3358 = vld [vmem:[#allocation2 + $0x50] sm:$0xff]
      %v3359 = vld [vmem:[#allocation2 + $0x58] sm:$0xff]
      %v3360 = vld [vmem:[#allocation2 + $0x60] sm:$0xff]
      %v3361 = vld [vmem:[#allocation2 + $0x68] sm:$0xff]
      %v3362 = vld [vmem:[#allocation2 + $0x70] sm:$0xff]
      %v3363 = vld [vmem:[#allocation2 + $0x78] sm:$0xff]
      %v3364 = vld [vmem:[#allocation2 + $0x80] sm:$0xff]
      %v3365 = vld [vmem:[#allocation2 + $0x88] sm:$0xff]
      %v3366 = vld [vmem:[#allocation2 + $0x90] sm:$0xff]
      %v3367 = vld [vmem:[#allocation2 + $0x98] sm:$0xff]
      %v3368 = vld [vmem:[#allocation2 + $0xa0] sm:$0xff]
      %v3369 = vld [vmem:[#allocation2 + $0xa8] sm:$0xff]
      %v3370 = vld [vmem:[#allocation2 + $0xb0] sm:$0xff]
      %v3371 = vld [vmem:[#allocation2 + $0xb8] sm:$0xff]
      %v3372 = vld [vmem:[#allocation2 + $0xc0] sm:$0xff]
      %v3373 = vld [vmem:[#allocation2 + $0xc8] sm:$0xff]
      %v3374 = vld [vmem:[#allocation2 + $0xd0] sm:$0xff]
      %v3375 = vld [vmem:[#allocation2 + $0xd8] sm:$0xff]
      %v3376 = vld [vmem:[#allocation2 + $0xe0] sm:$0xff]
      %v3377 = vld [vmem:[#allocation2 + $0xe8] sm:$0xff]
      %v3378 = vld [vmem:[#allocation2 + $0xf0] sm:$0xff]
      %v3379 = vld [vmem:[#allocation2 + $0xf8] sm:$0xff]
      %v3380 = vld [vmem:[#allocation2 + $0x100] sm:$0xff]
      %v3381 = vld [vmem:[#allocation2 + $0x108] sm:$0xff]
      %v3382 = vld [vmem:[#allocation2 + $0x110] sm:$0xff]
      %v3383 = vld [vmem:[#allocation2 + $0x118] sm:$0xff]
      %v3384 = vld [vmem:[%s4] sm:$0xff]
      %v3385 = vld [vmem:[%s4 + $0x8] sm:$0xff]
      %v3386 = vld [vmem:[%s4 + $0x10] sm:$0xff]
      %v3387 = vld [vmem:[%s4 + $0x18] sm:$0xff]
      %v3388 = vld [vmem:[%s4 + $0x20] sm:$0xff]
      %v3389 = vld [vmem:[%s4 + $0x28] sm:$0xff]
      %v3390 = vld [vmem:[%s4 + $0x30] sm:$0xff]
      %v3391 = vld [vmem:[%s4 + $0x38] sm:$0xff]
      %v3392 = vld [vmem:[%s4 + $0x40] sm:$0xff]
      %v3393 = vld [vmem:[%s4 + $0x48] sm:$0xff]
      %v3394 = vld [vmem:[%s4 + $0x50] sm:$0xff]
      %v3395 = vld [vmem:[%s4 + $0x58] sm:$0xff]
      %v3396 = vld [vmem:[%s4 + $0x60] sm:$0xff]
      %v3397 = vld [vmem:[%s4 + $0x68] sm:$0xff]
      %v3398 = vld [vmem:[%s4 + $0x70] sm:$0xff]
      %v3399 = vld [vmem:[%s4 + $0x78] sm:$0xff]
      %v3400 = vld [vmem:[%s4 + $0x80] sm:$0xff]
      %v3401 = vld [vmem:[%s4 + $0x88] sm:$0xff]
      %v3402 = vld [vmem:[%s4 + $0x90] sm:$0xff]
      %v3403 = vld [vmem:[%s4 + $0x98] sm:$0xff]
      %v3404 = vld [vmem:[%s4 + $0xa0] sm:$0xff]
      %v3405 = vld [vmem:[%s4 + $0xa8] sm:$0xff]
      %v3406 = vld [vmem:[%s4 + $0xb0] sm:$0xff]
      %v3407 = vld [vmem:[%s4 + $0xb8] sm:$0xff]
      %v3408 = vld [vmem:[%s4 + $0xc0] sm:$0xff]
      %v3409 = vld [vmem:[%s4 + $0xc8] sm:$0xff]
      %v3410 = vld [vmem:[%s4 + $0xd0] sm:$0xff]
      %v3411 = vld [vmem:[%s4 + $0xd8] sm:$0xff]
      %v3412 = vld [vmem:[%s4 + $0xe0] sm:$0xff]
      %v3413 = vld [vmem:[%s4 + $0xe8] sm:$0xff]
      %v3414 = vld [vmem:[%s4 + $0xf0] sm:$0xff]
      %v3415 = vld [vmem:[%s4 + $0xf8] sm:$0xff]
      %v3416 = vld [vmem:[%s4 + $0x100] sm:$0xff]
      %v3417 = vld [vmem:[%s4 + $0x108] sm:$0xff]
      %v3418 = vld [vmem:[%s4 + $0x110] sm:$0xff]
      %v3419 = vld [vmem:[%s4 + $0x118] sm:$0xff]
      %v3420 = vld [vmem:[%s4 + $0x120] sm:$0xff]
      %v3421 = vld [vmem:[%s4 + $0x128] sm:$0xff]
      %v3422 = vld [vmem:[%s4 + $0x130] sm:$0xff]
      %v3423 = vld [vmem:[%s4 + $0x138] sm:$0xff]
      %v3424 = vld [vmem:[%s4 + $0x140] sm:$0xff]
      %v3425 = vld [vmem:[%s4 + $0x148] sm:$0xff]
      %v3426 = vld [vmem:[%s4 + $0x150] sm:$0xff]
      %v3427 = vld [vmem:[%s4 + $0x158] sm:$0xff]
      %v3428 = vld [vmem:[%s4 + $0x160] sm:$0xff]
      %v3429 = vld [vmem:[%s4 + $0x168] sm:$0xff]
      %v3430 = vld [vmem:[%s4 + $0x170] sm:$0xff]
      %v3431 = vld [vmem:[%s4 + $0x178] sm:$0xff]
      %v3432 = vld [vmem:[%s4 + $0x180] sm:$0xff]
      %v3433 = vld [vmem:[%s4 + $0x188] sm:$0xff]
      %v3434 = vld [vmem:[%s4 + $0x190] sm:$0xff]
      %v3435 = vld [vmem:[%s4 + $0x198] sm:$0xff]
      %v3436 = vld [vmem:[%s4 + $0x1a0] sm:$0xff]
      %v3437 = vld [vmem:[%s4 + $0x1a8] sm:$0xff]
      %v3438 = vld [vmem:[%s4 + $0x1b0] sm:$0xff]
      %v3439 = vld [vmem:[%s4 + $0x1b8] sm:$0xff]
      %v3440 = vld [vmem:[%s4 + $0x1c0] sm:$0xff]
      %v3441 = vld [vmem:[%s4 + $0x1c8] sm:$0xff]
      %v3442 = vld [vmem:[%s4 + $0x1d0] sm:$0xff]
      %v3443 = vld [vmem:[%s4 + $0x1d8] sm:$0xff]
      %v3444 = vld [vmem:[%s4 + $0x1e0] sm:$0xff]
      %v3445 = vld [vmem:[%s4 + $0x1e8] sm:$0xff]
      %v3446 = vld [vmem:[%s4 + $0x1f0] sm:$0xff]
      %v3447 = vld [vmem:[%s4 + $0x1f8] sm:$0xff]
      %v3448 = vld [vmem:[%s5] sm:$0x1]
      %v3450 = vperm.slane %v3448, 0
      %3452 = vmatpush.msra.mxu0 %v3399
      %3453 = vmatpush.msra.mxu0 %v3398
      %3454 = vmatpush.msra.mxu0 %v3397
      %3455 = vmatpush.msra.mxu0 %v3396
      %3456 = vmatpush.msra.mxu0 %v3395
      %3457 = vmatpush.msra.mxu0 %v3394
      %3458 = vmatpush.msra.mxu0 %v3393
      %3459 = vmatpush.msra.mxu0 %v3392
      %3460 = vmatpush.msra.mxu0 %v3391
      %3461 = vmatpush.msra.mxu0 %v3390
      %3462 = vmatpush.msra.mxu0 %v3389
      %3463 = vmatpush.msra.mxu0 %v3388
      %3464 = vmatpush.msra.mxu0 %v3387
      %3465 = vmatpush.msra.mxu0 %v3386
      %3466 = vmatpush.msra.mxu0 %v3385
      %3467 = vmatpush.msra.mxu0 %v3384
      %3468 = vmatmul.f32.gmra.mxu0 %v3348
      %v3469 = vpop.f32.mrf.mxu0
      %v3470 = vadd.f32 %v3450, %v3469
      %3471 = vmatmul.f32.gmra.mxu0 %v3352
      %v3472 = vpop.f32.mrf.mxu0
      %v3473 = vadd.f32 %v3450, %v3472
      %3474 = vmatmul.f32.gmra.mxu0 %v3356
      %v3475 = vpop.f32.mrf.mxu0
      %v3476 = vadd.f32 %v3450, %v3475
      %3477 = vmatmul.f32.gmra.mxu0 %v3360
      %v3478 = vpop.f32.mrf.mxu0
      %v3479 = vadd.f32 %v3450, %v3478
      %3480 = vmatmul.f32.gmra.mxu0 %v3364
      %v3481 = vpop.f32.mrf.mxu0
      %v3482 = vadd.f32 %v3450, %v3481
      %3483 = vmatmul.f32.gmra.mxu0 %v3368
      %v3484 = vpop.f32.mrf.mxu0
      %v3485 = vadd.f32 %v3450, %v3484
      %3486 = vmatmul.f32.gmra.mxu0 %v3372
      %v3487 = vpop.f32.mrf.mxu0
      %v3488 = vadd.f32 %v3450, %v3487
      %3489 = vmatmul.f32.gmra.mxu0 %v3376
      %v3490 = vpop.f32.mrf.mxu0
      %v3491 = vadd.f32 %v3450, %v3490
      %3492 = vmatmul.f32.gmra.mxu0 %v3380
      %v3493 = vpop.f32.mrf.mxu0
      %v3494 = vadd.f32 %v3450, %v3493
      %3495 = vdwg.mxu0
      %3496 = vmatpush.msra.mxu0 %v3415
      %3497 = vmatpush.msra.mxu0 %v3414
      %3498 = vmatpush.msra.mxu0 %v3413
      %3499 = vmatpush.msra.mxu0 %v3412
      %3500 = vmatpush.msra.mxu0 %v3411
      %3501 = vmatpush.msra.mxu0 %v3410
      %3502 = vmatpush.msra.mxu0 %v3409
      %3503 = vmatpush.msra.mxu0 %v3408
      %3504 = vmatpush.msra.mxu0 %v3407
      %3505 = vmatpush.msra.mxu0 %v3406
      %3506 = vmatpush.msra.mxu0 %v3405
      %3507 = vmatpush.msra.mxu0 %v3404
      %3508 = vmatpush.msra.mxu0 %v3403
      %3509 = vmatpush.msra.mxu0 %v3402
      %3510 = vmatpush.msra.mxu0 %v3401
      %3511 = vmatpush.msra.mxu0 %v3400
      %3512 = vmatmul.f32.gmra.mxu0 %v3349
      %v3513 = vpop.f32.mrf.mxu0
      %v3514 = vadd.f32 %v3470, %v3513
      %3515 = vmatmul.f32.gmra.mxu0 %v3353
      %v3516 = vpop.f32.mrf.mxu0
      %v3517 = vadd.f32 %v3473, %v3516
      %3518 = vmatmul.f32.gmra.mxu0 %v3357
      %v3519 = vpop.f32.mrf.mxu0
      %v3520 = vadd.f32 %v3476, %v3519
      %3521 = vmatmul.f32.gmra.mxu0 %v3361
      %v3522 = vpop.f32.mrf.mxu0
      %v3523 = vadd.f32 %v3479, %v3522
      %3524 = vmatmul.f32.gmra.mxu0 %v3365
      %v3525 = vpop.f32.mrf.mxu0
      %v3526 = vadd.f32 %v3482, %v3525
      %3527 = vmatmul.f32.gmra.mxu0 %v3369
      %v3528 = vpop.f32.mrf.mxu0
      %v3529 = vadd.f32 %v3485, %v3528
      %3530 = vmatmul.f32.gmra.mxu0 %v3373
      %v3531 = vpop.f32.mrf.mxu0
      %v3532 = vadd.f32 %v3488, %v3531
      %3533 = vmatmul.f32.gmra.mxu0 %v3377
      %v3534 = vpop.f32.mrf.mxu0
      %v3535 = vadd.f32 %v3491, %v3534
      %3536 = vmatmul.f32.gmra.mxu0 %v3381
      %v3537 = vpop.f32.mrf.mxu0
      %v3538 = vadd.f32 %v3494, %v3537
      %3539 = vdwg.mxu0
      %3540 = vmatpush.msra.mxu0 %v3431
      %3541 = vmatpush.msra.mxu0 %v3430
      %3542 = vmatpush.msra.mxu0 %v3429
      %3543 = vmatpush.msra.mxu0 %v3428
      %3544 = vmatpush.msra.mxu0 %v3427
      %3545 = vmatpush.msra.mxu0 %v3426
      %3546 = vmatpush.msra.mxu0 %v3425
      %3547 = vmatpush.msra.mxu0 %v3424
      %3548 = vmatpush.msra.mxu0 %v3423
      %3549 = vmatpush.msra.mxu0 %v3422
      %3550 = vmatpush.msra.mxu0 %v3421
      %3551 = vmatpush.msra.mxu0 %v3420
      %3552 = vmatpush.msra.mxu0 %v3419
      %3553 = vmatpush.msra.mxu0 %v3418
      %3554 = vmatpush.msra.mxu0 %v3417
      %3555 = vmatpush.msra.mxu0 %v3416
      %3556 = vmatmul.f32.gmra.mxu0 %v3350
      %v3557 = vpop.f32.mrf.mxu0
      %v3558 = vadd.f32 %v3514, %v3557
      %3559 = vmatmul.f32.gmra.mxu0 %v3354
      %v3560 = vpop.f32.mrf.mxu0
      %v3561 = vadd.f32 %v3517, %v3560
      %3562 = vmatmul.f32.gmra.mxu0 %v3358
      %v3563 = vpop.f32.mrf.mxu0
      %v3564 = vadd.f32 %v3520, %v3563
      %3565 = vmatmul.f32.gmra.mxu0 %v3362
      %v3566 = vpop.f32.mrf.mxu0
      %v3567 = vadd.f32 %v3523, %v3566
      %3568 = vmatmul.f32.gmra.mxu0 %v3366
      %v3569 = vpop.f32.mrf.mxu0
      %v3570 = vadd.f32 %v3526, %v3569
      %3571 = vmatmul.f32.gmra.mxu0 %v3370
      %v3572 = vpop.f32.mrf.mxu0
      %v3573 = vadd.f32 %v3529, %v3572
      %3574 = vmatmul.f32.gmra.mxu0 %v3374
      %v3575 = vpop.f32.mrf.mxu0
      %v3576 = vadd.f32 %v3532, %v3575
      %3577 = vmatmul.f32.gmra.mxu0 %v3378
      %v3578 = vpop.f32.mrf.mxu0
      %v3579 = vadd.f32 %v3535, %v3578
      %3580 = vmatmul.f32.gmra.mxu0 %v3382
      %v3581 = vpop.f32.mrf.mxu0
      %v3582 = vadd.f32 %v3538, %v3581
      %3583 = vdwg.mxu0
      %3584 = vmatpush.msra.mxu0 %v3447
      %3585 = vmatpush.msra.mxu0 %v3446
      %3586 = vmatpush.msra.mxu0 %v3445
      %3587 = vmatpush.msra.mxu0 %v3444
      %3588 = vmatpush.msra.mxu0 %v3443
      %3589 = vmatpush.msra.mxu0 %v3442
      %3590 = vmatpush.msra.mxu0 %v3441
      %3591 = vmatpush.msra.mxu0 %v3440
      %3592 = vmatpush.msra.mxu0 %v3439
      %3593 = vmatpush.msra.mxu0 %v3438
      %3594 = vmatpush.msra.mxu0 %v3437
      %3595 = vmatpush.msra.mxu0 %v3436
      %3596 = vmatpush.msra.mxu0 %v3435
      %3597 = vmatpush.msra.mxu0 %v3434
      %3598 = vmatpush.msra.mxu0 %v3433
      %3599 = vmatpush.msra.mxu0 %v3432
      %3600 = vmatmul.f32.gmra.mxu0 %v3351
      %v3601 = vpop.f32.mrf.mxu0
      %v3602 = vadd.f32 %v3558, %v3601
      %3603 = vmatmul.f32.gmra.mxu0 %v3355
      %v3604 = vpop.f32.mrf.mxu0
      %v3605 = vadd.f32 %v3561, %v3604
      %3606 = vmatmul.f32.gmra.mxu0 %v3359
      %v3607 = vpop.f32.mrf.mxu0
      %v3608 = vadd.f32 %v3564, %v3607
      %3609 = vmatmul.f32.gmra.mxu0 %v3363
      %v3610 = vpop.f32.mrf.mxu0
      %v3611 = vadd.f32 %v3567, %v3610
      %3612 = vmatmul.f32.gmra.mxu0 %v3367
      %v3613 = vpop.f32.mrf.mxu0
      %v3614 = vadd.f32 %v3570, %v3613
      %3615 = vmatmul.f32.gmra.mxu0 %v3371
      %v3616 = vpop.f32.mrf.mxu0
      %v3617 = vadd.f32 %v3573, %v3616
      %3618 = vmatmul.f32.gmra.mxu0 %v3375
      %v3619 = vpop.f32.mrf.mxu0
      %v3620 = vadd.f32 %v3576, %v3619
      %3621 = vmatmul.f32.gmra.mxu0 %v3379
      %v3622 = vpop.f32.mrf.mxu0
      %v3623 = vadd.f32 %v3579, %v3622
      %3624 = vmatmul.f32.gmra.mxu0 %v3383
      %v3625 = vpop.f32.mrf.mxu0
      %v3626 = vadd.f32 %v3582, %v3625
      %3627 = vdwg.mxu0
      %v3628 = vmax.f32 %v3602, 0.0
      %v3629 = vmax.f32 %v3605, 0.0
      %v3630 = vmax.f32 %v3608, 0.0
      %v3631 = vmax.f32 %v3611, 0.0
      %v3632 = vmax.f32 %v3614, 0.0
      %v3633 = vmax.f32 %v3617, 0.0
      %v3634 = vmax.f32 %v3620, 0.0
      %v3635 = vmax.f32 %v3623, 0.0
      %v3636 = vmax.f32 %v3626, 0.0
      %v3637 = vld [vmem:[%s6] sm:$0xff]
      %v3638 = vld [vmem:[%s6 + $0x8] sm:$0x1]
      %vm3639 = vcmask 72704
      %v3641 = vsel %vm3639, %v3637, 0
      %v3644 = vsel %vm3639, %v3638, 0
      %v3647 = vsel %vm1504, %v3629, 0
      %3649 = vmatpush.msra.mxu0 0.0
      %3650 = vmatpush.msra.mxu0 0.0
      %3651 = vmatpush.msra.mxu0 0.0
      %3652 = vmatpush.msra.mxu0 0.0
      %3653 = vmatpush.msra.mxu0 0.0
      %3654 = vmatpush.msra.mxu0 0.0
      %3655 = vmatpush.msra.mxu0 0.0
      %3656 = vmatpush.msra.mxu0 0.0
      %3657 = vmatpush.msra.mxu0 0.0
      %3658 = vmatpush.msra.mxu0 0.0
      %3659 = vmatpush.msra.mxu0 0.0
      %3660 = vmatpush.msra.mxu0 0.0
      %3661 = vmatpush.msra.mxu0 0.0
      %3662 = vmatpush.msra.mxu0 0.0
      %3663 = vmatpush.msra.mxu0 %v3647
      %3664 = vmatpush.msra.mxu0 %v3628
      %3665 = vmatmul.f32.gmra.mxu0 %v3641
      %v3666 = vpop.f32.mrf.mxu0
      %v3667 = vadd.f32 0.0, %v3666
      %3668 = vmatmul.f32.gmra.mxu0 %v3644
      %v3669 = vpop.f32.mrf.mxu0
      %v3670 = vadd.f32 0.0, %v3669
      %3671 = vdwg.mxu0
      %vm3672 = vcmask 516096
      %3673 = vst.msk [vmem:[#allocation3] sm:$0x1] %vm3672, %v3667
      %v3675 = vrot.slane %v3667, 1
      %3676 = vrot.lane.b32.xlu0 %v3675, 64
      %v3677 = vpop.permute.xlu0 %3676
      %vm3679 = vcmask 1040896
      %3680 = vst.msk [vmem:[#allocation3] sm:$0x1] %vm3679, %v3677
      %v3681 = vrot.slane %v3667, 2
      %3683 = vst.msk [vmem:[#allocation3 + $0x8] sm:$0x1] %vm3672, %v3681
      %v3684 = vrot.slane %v3667, 3
      %3685 = vrot.lane.b32.xlu0 %v3684, 64
      %v3686 = vpop.permute.xlu0 %3685
      %3688 = vst.msk [vmem:[#allocation3 + $0x8] sm:$0x1] %vm3679, %v3686
      %v3689 = vrot.slane %v3667, 4
      %3691 = vst.msk [vmem:[#allocation3 + $0x10] sm:$0x1] %vm3672, %v3689
      %v3692 = vrot.slane %v3667, 5
      %3693 = vrot.lane.b32.xlu0 %v3692, 64
      %v3694 = vpop.permute.xlu0 %3693
      %3696 = vst.msk [vmem:[#allocation3 + $0x10] sm:$0x1] %vm3679, %v3694
      %v3697 = vrot.slane %v3667, 6
      %3699 = vst.msk [vmem:[#allocation3 + $0x18] sm:$0x1] %vm3672, %v3697
      %v3700 = vrot.slane %v3667, 7
      %3701 = vrot.lane.b32.xlu0 %v3700, 64
      %v3702 = vpop.permute.xlu0 %3701
      %3704 = vst.msk [vmem:[#allocation3 + $0x18] sm:$0x1] %vm3679, %v3702
      %3705 = vst.msk [vmem:[#allocation3 + $0x20] sm:$0x1] %vm3672, %v3670
      %v3707 = vrot.slane %v3629, 1
      %v3708 = vrot.slane %v3630, 1
      %v3709 = vsel %vm1424, %v3707, %v3708
      %v3711 = vsel %vm1504, %v3708, 0
      %3713 = vmatpush.msra.mxu0 0.0
      %3714 = vmatpush.msra.mxu0 0.0
      %3715 = vmatpush.msra.mxu0 0.0
      %3716 = vmatpush.msra.mxu0 0.0
      %3717 = vmatpush.msra.mxu0 0.0
      %3718 = vmatpush.msra.mxu0 0.0
      %3719 = vmatpush.msra.mxu0 0.0
      %3720 = vmatpush.msra.mxu0 0.0
      %3721 = vmatpush.msra.mxu0 0.0
      %3722 = vmatpush.msra.mxu0 0.0
      %3723 = vmatpush.msra.mxu0 0.0
      %3724 = vmatpush.msra.mxu0 0.0
      %3725 = vmatpush.msra.mxu0 0.0
      %3726 = vmatpush.msra.mxu0 0.0
      %3727 = vmatpush.msra.mxu0 %v3711
      %3728 = vmatpush.msra.mxu0 %v3709
      %3729 = vmatmul.f32.gmra.mxu0 %v3641
      %v3730 = vpop.f32.mrf.mxu0
      %v3731 = vadd.f32 0.0, %v3730
      %3732 = vmatmul.f32.gmra.mxu0 %v3644
      %v3733 = vpop.f32.mrf.mxu0
      %v3734 = vadd.f32 0.0, %v3733
      %3735 = vdwg.mxu0
      %3736 = vst.msk [vmem:[#allocation3 + $0x1] sm:$0x1] %vm3672, %v3731
      %v3738 = vrot.slane %v3731, 1
      %3739 = vrot.lane.b32.xlu0 %v3738, 64
      %v3740 = vpop.permute.xlu0 %3739
      %3742 = vst.msk [vmem:[#allocation3 + $0x1] sm:$0x1] %vm3679, %v3740
      %v3743 = vrot.slane %v3731, 2
      %3745 = vst.msk [vmem:[#allocation3 + $0x9] sm:$0x1] %vm3672, %v3743
      %v3746 = vrot.slane %v3731, 3
      %3747 = vrot.lane.b32.xlu0 %v3746, 64
      %v3748 = vpop.permute.xlu0 %3747
      %3750 = vst.msk [vmem:[#allocation3 + $0x9] sm:$0x1] %vm3679, %v3748
      %v3751 = vrot.slane %v3731, 4
      %3753 = vst.msk [vmem:[#allocation3 + $0x11] sm:$0x1] %vm3672, %v3751
      %v3754 = vrot.slane %v3731, 5
      %3755 = vrot.lane.b32.xlu0 %v3754, 64
      %v3756 = vpop.permute.xlu0 %3755
      %3758 = vst.msk [vmem:[#allocation3 + $0x11] sm:$0x1] %vm3679, %v3756
      %v3759 = vrot.slane %v3731, 6
      %3761 = vst.msk [vmem:[#allocation3 + $0x19] sm:$0x1] %vm3672, %v3759
      %v3762 = vrot.slane %v3731, 7
      %3763 = vrot.lane.b32.xlu0 %v3762, 64
      %v3764 = vpop.permute.xlu0 %3763
      %3766 = vst.msk [vmem:[#allocation3 + $0x19] sm:$0x1] %vm3679, %v3764
      %3767 = vst.msk [vmem:[#allocation3 + $0x21] sm:$0x1] %vm3672, %v3734
      %v3769 = vrot.slane %v3630, 2
      %v3770 = vrot.slane %v3631, 2
      %v3771 = vsel %vm1439, %v3769, %v3770
      %v3773 = vsel %vm1504, %v3770, 0
      %3775 = vmatpush.msra.mxu0 0.0
      %3776 = vmatpush.msra.mxu0 0.0
      %3777 = vmatpush.msra.mxu0 0.0
      %3778 = vmatpush.msra.mxu0 0.0
      %3779 = vmatpush.msra.mxu0 0.0
      %3780 = vmatpush.msra.mxu0 0.0
      %3781 = vmatpush.msra.mxu0 0.0
      %3782 = vmatpush.msra.mxu0 0.0
      %3783 = vmatpush.msra.mxu0 0.0
      %3784 = vmatpush.msra.mxu0 0.0
      %3785 = vmatpush.msra.mxu0 0.0
      %3786 = vmatpush.msra.mxu0 0.0
      %3787 = vmatpush.msra.mxu0 0.0
      %3788 = vmatpush.msra.mxu0 0.0
      %3789 = vmatpush.msra.mxu0 %v3773
      %3790 = vmatpush.msra.mxu0 %v3771
      %3791 = vmatmul.f32.gmra.mxu0 %v3641
      %v3792 = vpop.f32.mrf.mxu0
      %v3793 = vadd.f32 0.0, %v3792
      %3794 = vmatmul.f32.gmra.mxu0 %v3644
      %v3795 = vpop.f32.mrf.mxu0
      %v3796 = vadd.f32 0.0, %v3795
      %3797 = vdwg.mxu0
      %3798 = vst.msk [vmem:[#allocation3 + $0x2] sm:$0x1] %vm3672, %v3793
      %v3800 = vrot.slane %v3793, 1
      %3801 = vrot.lane.b32.xlu0 %v3800, 64
      %v3802 = vpop.permute.xlu0 %3801
      %3804 = vst.msk [vmem:[#allocation3 + $0x2] sm:$0x1] %vm3679, %v3802
      %v3805 = vrot.slane %v3793, 2
      %3807 = vst.msk [vmem:[#allocation3 + $0xa] sm:$0x1] %vm3672, %v3805
      %v3808 = vrot.slane %v3793, 3
      %3809 = vrot.lane.b32.xlu0 %v3808, 64
      %v3810 = vpop.permute.xlu0 %3809
      %3812 = vst.msk [vmem:[#allocation3 + $0xa] sm:$0x1] %vm3679, %v3810
      %v3813 = vrot.slane %v3793, 4
      %3815 = vst.msk [vmem:[#allocation3 + $0x12] sm:$0x1] %vm3672, %v3813
      %v3816 = vrot.slane %v3793, 5
      %3817 = vrot.lane.b32.xlu0 %v3816, 64
      %v3818 = vpop.permute.xlu0 %3817
      %3820 = vst.msk [vmem:[#allocation3 + $0x12] sm:$0x1] %vm3679, %v3818
      %v3821 = vrot.slane %v3793, 6
      %3823 = vst.msk [vmem:[#allocation3 + $0x1a] sm:$0x1] %vm3672, %v3821
      %v3824 = vrot.slane %v3793, 7
      %3825 = vrot.lane.b32.xlu0 %v3824, 64
      %v3826 = vpop.permute.xlu0 %3825
      %3828 = vst.msk [vmem:[#allocation3 + $0x1a] sm:$0x1] %vm3679, %v3826
      %3829 = vst.msk [vmem:[#allocation3 + $0x22] sm:$0x1] %vm3672, %v3796
      %v3831 = vrot.slane %v3631, 3
      %v3832 = vrot.slane %v3632, 3
      %v3833 = vsel %vm1454, %v3831, %v3832
      %v3835 = vsel %vm1504, %v3832, 0
      %3837 = vmatpush.msra.mxu0 0.0
      %3838 = vmatpush.msra.mxu0 0.0
      %3839 = vmatpush.msra.mxu0 0.0
      %3840 = vmatpush.msra.mxu0 0.0
      %3841 = vmatpush.msra.mxu0 0.0
      %3842 = vmatpush.msra.mxu0 0.0
      %3843 = vmatpush.msra.mxu0 0.0
      %3844 = vmatpush.msra.mxu0 0.0
      %3845 = vmatpush.msra.mxu0 0.0
      %3846 = vmatpush.msra.mxu0 0.0
      %3847 = vmatpush.msra.mxu0 0.0
      %3848 = vmatpush.msra.mxu0 0.0
      %3849 = vmatpush.msra.mxu0 0.0
      %3850 = vmatpush.msra.mxu0 0.0
      %3851 = vmatpush.msra.mxu0 %v3835
      %3852 = vmatpush.msra.mxu0 %v3833
      %3853 = vmatmul.f32.gmra.mxu0 %v3641
      %v3854 = vpop.f32.mrf.mxu0
      %v3855 = vadd.f32 0.0, %v3854
      %3856 = vmatmul.f32.gmra.mxu0 %v3644
      %v3857 = vpop.f32.mrf.mxu0
      %v3858 = vadd.f32 0.0, %v3857
      %3859 = vdwg.mxu0
      %3860 = vst.msk [vmem:[#allocation3 + $0x3] sm:$0x1] %vm3672, %v3855
      %v3862 = vrot.slane %v3855, 1
      %3863 = vrot.lane.b32.xlu0 %v3862, 64
      %v3864 = vpop.permute.xlu0 %3863
      %3866 = vst.msk [vmem:[#allocation3 + $0x3] sm:$0x1] %vm3679, %v3864
      %v3867 = vrot.slane %v3855, 2
      %3869 = vst.msk [vmem:[#allocation3 + $0xb] sm:$0x1] %vm3672, %v3867
      %v3870 = vrot.slane %v3855, 3
      %3871 = vrot.lane.b32.xlu0 %v3870, 64
      %v3872 = vpop.permute.xlu0 %3871
      %3874 = vst.msk [vmem:[#allocation3 + $0xb] sm:$0x1] %vm3679, %v3872
      %v3875 = vrot.slane %v3855, 4
      %3877 = vst.msk [vmem:[#allocation3 + $0x13] sm:$0x1] %vm3672, %v3875
      %v3878 = vrot.slane %v3855, 5
      %3879 = vrot.lane.b32.xlu0 %v3878, 64
      %v3880 = vpop.permute.xlu0 %3879
      %3882 = vst.msk [vmem:[#allocation3 + $0x13] sm:$0x1] %vm3679, %v3880
      %v3883 = vrot.slane %v3855, 6
      %3885 = vst.msk [vmem:[#allocation3 + $0x1b] sm:$0x1] %vm3672, %v3883
      %v3886 = vrot.slane %v3855, 7
      %3887 = vrot.lane.b32.xlu0 %v3886, 64
      %v3888 = vpop.permute.xlu0 %3887
      %3890 = vst.msk [vmem:[#allocation3 + $0x1b] sm:$0x1] %vm3679, %v3888
      %3891 = vst.msk [vmem:[#allocation3 + $0x23] sm:$0x1] %vm3672, %v3858
      %v3893 = vrot.slane %v3632, 4
      %v3894 = vrot.slane %v3633, 4
      %v3895 = vsel %vm1469, %v3893, %v3894
      %v3897 = vsel %vm1504, %v3894, 0
      %3899 = vmatpush.msra.mxu0 0.0
      %3900 = vmatpush.msra.mxu0 0.0
      %3901 = vmatpush.msra.mxu0 0.0
      %3902 = vmatpush.msra.mxu0 0.0
      %3903 = vmatpush.msra.mxu0 0.0
      %3904 = vmatpush.msra.mxu0 0.0
      %3905 = vmatpush.msra.mxu0 0.0
      %3906 = vmatpush.msra.mxu0 0.0
      %3907 = vmatpush.msra.mxu0 0.0
      %3908 = vmatpush.msra.mxu0 0.0
      %3909 = vmatpush.msra.mxu0 0.0
      %3910 = vmatpush.msra.mxu0 0.0
      %3911 = vmatpush.msra.mxu0 0.0
      %3912 = vmatpush.msra.mxu0 0.0
      %3913 = vmatpush.msra.mxu0 %v3897
      %3914 = vmatpush.msra.mxu0 %v3895
      %3915 = vmatmul.f32.gmra.mxu0 %v3641
      %v3916 = vpop.f32.mrf.mxu0
      %v3917 = vadd.f32 0.0, %v3916
      %3918 = vmatmul.f32.gmra.mxu0 %v3644
      %v3919 = vpop.f32.mrf.mxu0
      %v3920 = vadd.f32 0.0, %v3919
      %3921 = vdwg.mxu0
      %3922 = vst.msk [vmem:[#allocation3 + $0x4] sm:$0x1] %vm3672, %v3917
      %v3924 = vrot.slane %v3917, 1
      %3925 = vrot.lane.b32.xlu0 %v3924, 64
      %v3926 = vpop.permute.xlu0 %3925
      %3928 = vst.msk [vmem:[#allocation3 + $0x4] sm:$0x1] %vm3679, %v3926
      %v3929 = vrot.slane %v3917, 2
      %3931 = vst.msk [vmem:[#allocation3 + $0xc] sm:$0x1] %vm3672, %v3929
      %v3932 = vrot.slane %v3917, 3
      %3933 = vrot.lane.b32.xlu0 %v3932, 64
      %v3934 = vpop.permute.xlu0 %3933
      %3936 = vst.msk [vmem:[#allocation3 + $0xc] sm:$0x1] %vm3679, %v3934
      %v3937 = vrot.slane %v3917, 4
      %3939 = vst.msk [vmem:[#allocation3 + $0x14] sm:$0x1] %vm3672, %v3937
      %v3940 = vrot.slane %v3917, 5
      %3941 = vrot.lane.b32.xlu0 %v3940, 64
      %v3942 = vpop.permute.xlu0 %3941
      %3944 = vst.msk [vmem:[#allocation3 + $0x14] sm:$0x1] %vm3679, %v3942
      %v3945 = vrot.slane %v3917, 6
      %3947 = vst.msk [vmem:[#allocation3 + $0x1c] sm:$0x1] %vm3672, %v3945
      %v3948 = vrot.slane %v3917, 7
      %3949 = vrot.lane.b32.xlu0 %v3948, 64
      %v3950 = vpop.permute.xlu0 %3949
      %3952 = vst.msk [vmem:[#allocation3 + $0x1c] sm:$0x1] %vm3679, %v3950
      %3953 = vst.msk [vmem:[#allocation3 + $0x24] sm:$0x1] %vm3672, %v3920
      %v3955 = vrot.slane %v3633, 5
      %v3956 = vrot.slane %v3634, 5
      %v3957 = vsel %vm1478, %v3955, %v3956
      %v3959 = vsel %vm1504, %v3956, 0
      %3961 = vmatpush.msra.mxu0 0.0
      %3962 = vmatpush.msra.mxu0 0.0
      %3963 = vmatpush.msra.mxu0 0.0
      %3964 = vmatpush.msra.mxu0 0.0
      %3965 = vmatpush.msra.mxu0 0.0
      %3966 = vmatpush.msra.mxu0 0.0
      %3967 = vmatpush.msra.mxu0 0.0
      %3968 = vmatpush.msra.mxu0 0.0
      %3969 = vmatpush.msra.mxu0 0.0
      %3970 = vmatpush.msra.mxu0 0.0
      %3971 = vmatpush.msra.mxu0 0.0
      %3972 = vmatpush.msra.mxu0 0.0
      %3973 = vmatpush.msra.mxu0 0.0
      %3974 = vmatpush.msra.mxu0 0.0
      %3975 = vmatpush.msra.mxu0 %v3959
      %3976 = vmatpush.msra.mxu0 %v3957
      %3977 = vmatmul.f32.gmra.mxu0 %v3641
      %v3978 = vpop.f32.mrf.mxu0
      %v3979 = vadd.f32 0.0, %v3978
      %3980 = vmatmul.f32.gmra.mxu0 %v3644
      %v3981 = vpop.f32.mrf.mxu0
      %v3982 = vadd.f32 0.0, %v3981
      %3983 = vdwg.mxu0
      %3984 = vst.msk [vmem:[#allocation3 + $0x5] sm:$0x1] %vm3672, %v3979
      %v3986 = vrot.slane %v3979, 1
      %3987 = vrot.lane.b32.xlu0 %v3986, 64
      %v3988 = vpop.permute.xlu0 %3987
      %3990 = vst.msk [vmem:[#allocation3 + $0x5] sm:$0x1] %vm3679, %v3988
      %v3991 = vrot.slane %v3979, 2
      %3993 = vst.msk [vmem:[#allocation3 + $0xd] sm:$0x1] %vm3672, %v3991
      %v3994 = vrot.slane %v3979, 3
      %3995 = vrot.lane.b32.xlu0 %v3994, 64
      %v3996 = vpop.permute.xlu0 %3995
      %3998 = vst.msk [vmem:[#allocation3 + $0xd] sm:$0x1] %vm3679, %v3996
      %v3999 = vrot.slane %v3979, 4
      %4001 = vst.msk [vmem:[#allocation3 + $0x15] sm:$0x1] %vm3672, %v3999
      %v4002 = vrot.slane %v3979, 5
      %4003 = vrot.lane.b32.xlu0 %v4002, 64
      %v4004 = vpop.permute.xlu0 %4003
      %4006 = vst.msk [vmem:[#allocation3 + $0x15] sm:$0x1] %vm3679, %v4004
      %v4007 = vrot.slane %v3979, 6
      %4009 = vst.msk [vmem:[#allocation3 + $0x1d] sm:$0x1] %vm3672, %v4007
      %v4010 = vrot.slane %v3979, 7
      %4011 = vrot.lane.b32.xlu0 %v4010, 64
      %v4012 = vpop.permute.xlu0 %4011
      %4014 = vst.msk [vmem:[#allocation3 + $0x1d] sm:$0x1] %vm3679, %v4012
      %4015 = vst.msk [vmem:[#allocation3 + $0x25] sm:$0x1] %vm3672, %v3982
      %v4017 = vrot.slane %v3634, 6
      %v4018 = vrot.slane %v3635, 6
      %v4019 = vsel %vm1491, %v4017, %v4018
      %v4021 = vsel %vm1504, %v4018, 0
      %4023 = vmatpush.msra.mxu0 0.0
      %4024 = vmatpush.msra.mxu0 0.0
      %4025 = vmatpush.msra.mxu0 0.0
      %4026 = vmatpush.msra.mxu0 0.0
      %4027 = vmatpush.msra.mxu0 0.0
      %4028 = vmatpush.msra.mxu0 0.0
      %4029 = vmatpush.msra.mxu0 0.0
      %4030 = vmatpush.msra.mxu0 0.0
      %4031 = vmatpush.msra.mxu0 0.0
      %4032 = vmatpush.msra.mxu0 0.0
      %4033 = vmatpush.msra.mxu0 0.0
      %4034 = vmatpush.msra.mxu0 0.0
      %4035 = vmatpush.msra.mxu0 0.0
      %4036 = vmatpush.msra.mxu0 0.0
      %4037 = vmatpush.msra.mxu0 %v4021
      %4038 = vmatpush.msra.mxu0 %v4019
      %4039 = vmatmul.f32.gmra.mxu0 %v3641
      %v4040 = vpop.f32.mrf.mxu0
      %v4041 = vadd.f32 0.0, %v4040
      %4042 = vmatmul.f32.gmra.mxu0 %v3644
      %v4043 = vpop.f32.mrf.mxu0
      %v4044 = vadd.f32 0.0, %v4043
      %4045 = vdwg.mxu0
      %4046 = vst.msk [vmem:[#allocation3 + $0x6] sm:$0x1] %vm3672, %v4041
      %v4048 = vrot.slane %v4041, 1
      %4049 = vrot.lane.b32.xlu0 %v4048, 64
      %v4050 = vpop.permute.xlu0 %4049
      %4052 = vst.msk [vmem:[#allocation3 + $0x6] sm:$0x1] %vm3679, %v4050
      %v4053 = vrot.slane %v4041, 2
      %4055 = vst.msk [vmem:[#allocation3 + $0xe] sm:$0x1] %vm3672, %v4053
      %v4056 = vrot.slane %v4041, 3
      %4057 = vrot.lane.b32.xlu0 %v4056, 64
      %v4058 = vpop.permute.xlu0 %4057
      %4060 = vst.msk [vmem:[#allocation3 + $0xe] sm:$0x1] %vm3679, %v4058
      %v4061 = vrot.slane %v4041, 4
      %4063 = vst.msk [vmem:[#allocation3 + $0x16] sm:$0x1] %vm3672, %v4061
      %v4064 = vrot.slane %v4041, 5
      %4065 = vrot.lane.b32.xlu0 %v4064, 64
      %v4066 = vpop.permute.xlu0 %4065
      %4068 = vst.msk [vmem:[#allocation3 + $0x16] sm:$0x1] %vm3679, %v4066
      %v4069 = vrot.slane %v4041, 6
      %4071 = vst.msk [vmem:[#allocation3 + $0x1e] sm:$0x1] %vm3672, %v4069
      %v4072 = vrot.slane %v4041, 7
      %4073 = vrot.lane.b32.xlu0 %v4072, 64
      %v4074 = vpop.permute.xlu0 %4073
      %4076 = vst.msk [vmem:[#allocation3 + $0x1e] sm:$0x1] %vm3679, %v4074
      %4077 = vst.msk [vmem:[#allocation3 + $0x26] sm:$0x1] %vm3672, %v4044
      %v4079 = vrot.slane %v3635, 7
      %v4080 = vrot.slane %v3636, 7
      %v4081 = vsel %vm1504, %v4079, %v4080
      %v4083 = vsel %vm1504, %v4080, 0
      %4085 = vmatpush.msra.mxu0 0.0
      %4086 = vmatpush.msra.mxu0 0.0
      %4087 = vmatpush.msra.mxu0 0.0
      %4088 = vmatpush.msra.mxu0 0.0
      %4089 = vmatpush.msra.mxu0 0.0
      %4090 = vmatpush.msra.mxu0 0.0
      %4091 = vmatpush.msra.mxu0 0.0
      %4092 = vmatpush.msra.mxu0 0.0
      %4093 = vmatpush.msra.mxu0 0.0
      %4094 = vmatpush.msra.mxu0 0.0
      %4095 = vmatpush.msra.mxu0 0.0
      %4096 = vmatpush.msra.mxu0 0.0
      %4097 = vmatpush.msra.mxu0 0.0
      %4098 = vmatpush.msra.mxu0 0.0
      %4099 = vmatpush.msra.mxu0 %v4083
      %4100 = vmatpush.msra.mxu0 %v4081
      %4101 = vmatmul.f32.gmra.mxu0 %v3641
      %v4102 = vpop.f32.mrf.mxu0
      %v4103 = vadd.f32 0.0, %v4102
      %4104 = vmatmul.f32.gmra.mxu0 %v3644
      %v4105 = vpop.f32.mrf.mxu0
      %v4106 = vadd.f32 0.0, %v4105
      %4107 = vdwg.mxu0
      %4108 = vst.msk [vmem:[#allocation3 + $0x7] sm:$0x1] %vm3672, %v4103
      %v4110 = vrot.slane %v4103, 1
      %4111 = vrot.lane.b32.xlu0 %v4110, 64
      %v4112 = vpop.permute.xlu0 %4111
      %4114 = vst.msk [vmem:[#allocation3 + $0x7] sm:$0x1] %vm3679, %v4112
      %v4115 = vrot.slane %v4103, 2
      %4117 = vst.msk [vmem:[#allocation3 + $0xf] sm:$0x1] %vm3672, %v4115
      %v4118 = vrot.slane %v4103, 3
      %4119 = vrot.lane.b32.xlu0 %v4118, 64
      %v4120 = vpop.permute.xlu0 %4119
      %4122 = vst.msk [vmem:[#allocation3 + $0xf] sm:$0x1] %vm3679, %v4120
      %v4123 = vrot.slane %v4103, 4
      %4125 = vst.msk [vmem:[#allocation3 + $0x17] sm:$0x1] %vm3672, %v4123
      %v4126 = vrot.slane %v4103, 5
      %4127 = vrot.lane.b32.xlu0 %v4126, 64
      %v4128 = vpop.permute.xlu0 %4127
      %4130 = vst.msk [vmem:[#allocation3 + $0x17] sm:$0x1] %vm3679, %v4128
      %v4131 = vrot.slane %v4103, 6
      %4133 = vst.msk [vmem:[#allocation3 + $0x1f] sm:$0x1] %vm3672, %v4131
      %v4134 = vrot.slane %v4103, 7
      %4135 = vrot.lane.b32.xlu0 %v4134, 64
      %v4136 = vpop.permute.xlu0 %4135
      %4138 = vst.msk [vmem:[#allocation3 + $0x1f] sm:$0x1] %vm3679, %v4136
      %4139 = vst.msk [vmem:[#allocation3 + $0x27] sm:$0x1] %vm3672, %v4106
      %v4140 = vld [vmem:[#allocation3] sm:$0xff]
      %v4141 = vld [vmem:[#allocation3 + $0x8] sm:$0xff]
      %v4142 = vld [vmem:[#allocation3 + $0x10] sm:$0xff]
      %v4143 = vld [vmem:[#allocation3 + $0x18] sm:$0xff]
      %v4144 = vld [vmem:[#allocation3 + $0x20] sm:$0xff]
      %v4145 = vld [vmem:[%s7] sm:$0xff]
      %v4146 = vld [vmem:[%s7 + $0x8] sm:$0xff]
      %v4147 = vld [vmem:[%s7 + $0x10] sm:$0xff]
      %v4148 = vld [vmem:[%s7 + $0x18] sm:$0xff]
      %v4149 = vld [vmem:[%s7 + $0x20] sm:$0xff]
      %v4150 = vld [vmem:[%s7 + $0x28] sm:$0xff]
      %v4151 = vld [vmem:[%s7 + $0x30] sm:$0xff]
      %v4152 = vld [vmem:[%s7 + $0x38] sm:$0xff]
      %v4153 = vld [vmem:[%s7 + $0x40] sm:$0xff]
      %v4154 = vld [vmem:[%s7 + $0x48] sm:$0xff]
      %v4155 = vld [vmem:[%s7 + $0x50] sm:$0xff]
      %v4156 = vld [vmem:[%s7 + $0x58] sm:$0xff]
      %v4157 = vld [vmem:[%s7 + $0x60] sm:$0xff]
      %v4158 = vld [vmem:[%s7 + $0x68] sm:$0xff]
      %v4159 = vld [vmem:[%s7 + $0x70] sm:$0xff]
      %v4160 = vld [vmem:[%s7 + $0x78] sm:$0xff]
      %v4161 = vld [vmem:[%s7 + $0x80] sm:$0xff]
      %v4162 = vld [vmem:[%s7 + $0x88] sm:$0xff]
      %v4163 = vld [vmem:[%s7 + $0x90] sm:$0xff]
      %v4164 = vld [vmem:[%s7 + $0x98] sm:$0xff]
      %v4165 = vld [vmem:[%s7 + $0xa0] sm:$0xff]
      %v4166 = vld [vmem:[%s7 + $0xa8] sm:$0xff]
      %v4167 = vld [vmem:[%s7 + $0xb0] sm:$0xff]
      %v4168 = vld [vmem:[%s7 + $0xb8] sm:$0xff]
      %v4169 = vld [vmem:[%s7 + $0xc0] sm:$0xff]
      %v4170 = vld [vmem:[%s7 + $0xc8] sm:$0xff]
      %v4171 = vld [vmem:[%s7 + $0xd0] sm:$0xff]
      %v4172 = vld [vmem:[%s7 + $0xd8] sm:$0xff]
      %v4173 = vld [vmem:[%s7 + $0xe0] sm:$0xff]
      %v4174 = vld [vmem:[%s7 + $0xe8] sm:$0xff]
      %v4175 = vld [vmem:[%s7 + $0xf0] sm:$0xff]
      %v4176 = vld [vmem:[%s7 + $0xf8] sm:$0xff]
      %v4177 = vld [vmem:[%s7 + $0x100] sm:$0xff]
      %v4178 = vld [vmem:[%s7 + $0x108] sm:$0xff]
      %v4179 = vld [vmem:[%s7 + $0x110] sm:$0xff]
      %v4180 = vld [vmem:[%s7 + $0x118] sm:$0xff]
      %v4181 = vld [vmem:[%s7 + $0x120] sm:$0xff]
      %v4182 = vld [vmem:[%s7 + $0x128] sm:$0xff]
      %v4183 = vld [vmem:[%s7 + $0x130] sm:$0xff]
      %v4184 = vld [vmem:[%s7 + $0x138] sm:$0xff]
      %v4185 = vld [vmem:[%s7 + $0x140] sm:$0xff]
      %v4186 = vld [vmem:[%s7 + $0x148] sm:$0xff]
      %v4187 = vld [vmem:[%s7 + $0x150] sm:$0xff]
      %v4188 = vld [vmem:[%s7 + $0x158] sm:$0xff]
      %v4189 = vld [vmem:[%s7 + $0x160] sm:$0xff]
      %v4190 = vld [vmem:[%s7 + $0x168] sm:$0xff]
      %v4191 = vld [vmem:[%s7 + $0x170] sm:$0xff]
      %v4192 = vld [vmem:[%s7 + $0x178] sm:$0xff]
      %v4193 = vld [vmem:[%s7 + $0x180] sm:$0xff]
      %v4194 = vld [vmem:[%s7 + $0x188] sm:$0xff]
      %v4195 = vld [vmem:[%s7 + $0x190] sm:$0xff]
      %v4196 = vld [vmem:[%s7 + $0x198] sm:$0xff]
      %v4197 = vld [vmem:[%s7 + $0x1a0] sm:$0xff]
      %v4198 = vld [vmem:[%s7 + $0x1a8] sm:$0xff]
      %v4199 = vld [vmem:[%s7 + $0x1b0] sm:$0xff]
      %v4200 = vld [vmem:[%s7 + $0x1b8] sm:$0xff]
      %v4201 = vld [vmem:[%s7 + $0x1c0] sm:$0xff]
      %v4202 = vld [vmem:[%s7 + $0x1c8] sm:$0xff]
      %v4203 = vld [vmem:[%s7 + $0x1d0] sm:$0xff]
      %v4204 = vld [vmem:[%s7 + $0x1d8] sm:$0xff]
      %v4205 = vld [vmem:[%s7 + $0x1e0] sm:$0xff]
      %v4206 = vld [vmem:[%s7 + $0x1e8] sm:$0xff]
      %v4207 = vld [vmem:[%s7 + $0x1f0] sm:$0xff]
      %v4208 = vld [vmem:[%s7 + $0x1f8] sm:$0xff]
      %v4209 = vld [vmem:[%s7 + $0x200] sm:$0xff]
      %v4210 = vld [vmem:[%s7 + $0x208] sm:$0xff]
      %v4211 = vld [vmem:[%s7 + $0x210] sm:$0xff]
      %v4212 = vld [vmem:[%s7 + $0x218] sm:$0xff]
      %v4213 = vld [vmem:[%s7 + $0x220] sm:$0xff]
      %v4214 = vld [vmem:[%s7 + $0x228] sm:$0xff]
      %v4215 = vld [vmem:[%s7 + $0x230] sm:$0xff]
      %v4216 = vld [vmem:[%s7 + $0x238] sm:$0xff]
      %v4217 = vld [vmem:[%s8] sm:$0x1]
      %v4219 = vperm.slane %v4217, 0
      %v4222 = vsel %vm600, %v4144, 0
      %4224 = vmatpush.msra.mxu0 %v4160
      %4225 = vmatpush.msra.mxu0 %v4159
      %4226 = vmatpush.msra.mxu0 %v4158
      %4227 = vmatpush.msra.mxu0 %v4157
      %4228 = vmatpush.msra.mxu0 %v4156
      %4229 = vmatpush.msra.mxu0 %v4155
      %4230 = vmatpush.msra.mxu0 %v4154
      %4231 = vmatpush.msra.mxu0 %v4153
      %4232 = vmatpush.msra.mxu0 %v4152
      %4233 = vmatpush.msra.mxu0 %v4151
      %4234 = vmatpush.msra.mxu0 %v4150
      %4235 = vmatpush.msra.mxu0 %v4149
      %4236 = vmatpush.msra.mxu0 %v4148
      %4237 = vmatpush.msra.mxu0 %v4147
      %4238 = vmatpush.msra.mxu0 %v4146
      %4239 = vmatpush.msra.mxu0 %v4145
      %4240 = vmatmul.f32.gmra.mxu0 %v4140
      %v4241 = vpop.f32.mrf.mxu0
      %v4242 = vadd.f32 %v4219, %v4241
      %4243 = vdwg.mxu0
      %4244 = vmatpush.msra.mxu0 %v4176
      %4245 = vmatpush.msra.mxu0 %v4175
      %4246 = vmatpush.msra.mxu0 %v4174
      %4247 = vmatpush.msra.mxu0 %v4173
      %4248 = vmatpush.msra.mxu0 %v4172
      %4249 = vmatpush.msra.mxu0 %v4171
      %4250 = vmatpush.msra.mxu0 %v4170
      %4251 = vmatpush.msra.mxu0 %v4169
      %4252 = vmatpush.msra.mxu0 %v4168
      %4253 = vmatpush.msra.mxu0 %v4167
      %4254 = vmatpush.msra.mxu0 %v4166
      %4255 = vmatpush.msra.mxu0 %v4165
      %4256 = vmatpush.msra.mxu0 %v4164
      %4257 = vmatpush.msra.mxu0 %v4163
      %4258 = vmatpush.msra.mxu0 %v4162
      %4259 = vmatpush.msra.mxu0 %v4161
      %4260 = vmatmul.f32.gmra.mxu0 %v4141
      %v4261 = vpop.f32.mrf.mxu0
      %v4262 = vadd.f32 %v4242, %v4261
      %4263 = vdwg.mxu0
      %4264 = vmatpush.msra.mxu0 %v4192
      %4265 = vmatpush.msra.mxu0 %v4191
      %4266 = vmatpush.msra.mxu0 %v4190
      %4267 = vmatpush.msra.mxu0 %v4189
      %4268 = vmatpush.msra.mxu0 %v4188
      %4269 = vmatpush.msra.mxu0 %v4187
      %4270 = vmatpush.msra.mxu0 %v4186
      %4271 = vmatpush.msra.mxu0 %v4185
      %4272 = vmatpush.msra.mxu0 %v4184
      %4273 = vmatpush.msra.mxu0 %v4183
      %4274 = vmatpush.msra.mxu0 %v4182
      %4275 = vmatpush.msra.mxu0 %v4181
      %4276 = vmatpush.msra.mxu0 %v4180
      %4277 = vmatpush.msra.mxu0 %v4179
      %4278 = vmatpush.msra.mxu0 %v4178
      %4279 = vmatpush.msra.mxu0 %v4177
      %4280 = vmatmul.f32.gmra.mxu0 %v4142
      %v4281 = vpop.f32.mrf.mxu0
      %v4282 = vadd.f32 %v4262, %v4281
      %4283 = vdwg.mxu0
      %4284 = vmatpush.msra.mxu0 %v4208
      %4285 = vmatpush.msra.mxu0 %v4207
      %4286 = vmatpush.msra.mxu0 %v4206
      %4287 = vmatpush.msra.mxu0 %v4205
      %4288 = vmatpush.msra.mxu0 %v4204
      %4289 = vmatpush.msra.mxu0 %v4203
      %4290 = vmatpush.msra.mxu0 %v4202
      %4291 = vmatpush.msra.mxu0 %v4201
      %4292 = vmatpush.msra.mxu0 %v4200
      %4293 = vmatpush.msra.mxu0 %v4199
      %4294 = vmatpush.msra.mxu0 %v4198
      %4295 = vmatpush.msra.mxu0 %v4197
      %4296 = vmatpush.msra.mxu0 %v4196
      %4297 = vmatpush.msra.mxu0 %v4195
      %4298 = vmatpush.msra.mxu0 %v4194
      %4299 = vmatpush.msra.mxu0 %v4193
      %4300 = vmatmul.f32.gmra.mxu0 %v4143
      %v4301 = vpop.f32.mrf.mxu0
      %v4302 = vadd.f32 %v4282, %v4301
      %4303 = vdwg.mxu0
      %4304 = vmatpush.msra.mxu0 0.0
      %4305 = vmatpush.msra.mxu0 0.0
      %4306 = vmatpush.msra.mxu0 0.0
      %4307 = vmatpush.msra.mxu0 0.0
      %4308 = vmatpush.msra.mxu0 0.0
      %4309 = vmatpush.msra.mxu0 0.0
      %4310 = vmatpush.msra.mxu0 0.0
      %4311 = vmatpush.msra.mxu0 0.0
      %4312 = vmatpush.msra.mxu0 %v4216
      %4313 = vmatpush.msra.mxu0 %v4215
      %4314 = vmatpush.msra.mxu0 %v4214
      %4315 = vmatpush.msra.mxu0 %v4213
      %4316 = vmatpush.msra.mxu0 %v4212
      %4317 = vmatpush.msra.mxu0 %v4211
      %4318 = vmatpush.msra.mxu0 %v4210
      %4319 = vmatpush.msra.mxu0 %v4209
      %4320 = vmatmul.f32.gmra.mxu0 %v4222
      %v4321 = vpop.f32.mrf.mxu0
      %v4322 = vadd.f32 %v4302, %v4321
      %4323 = vdwg.mxu0
      %v4324 = vmax.f32 %v4322, 0.0
      %v4325 = vld [vmem:[%s9] sm:$0xff]
      %v4326 = vld [vmem:[%s9 + $0x8] sm:$0xff]
      %v4327 = vld [vmem:[%s9 + $0x10] sm:$0xff]
      %v4328 = vld [vmem:[%s9 + $0x18] sm:$0xff]
      %v4329 = vld [vmem:[%s9 + $0x20] sm:$0xff]
      %v4330 = vld [vmem:[%s9 + $0x28] sm:$0xff]
      %v4331 = vld [vmem:[%s9 + $0x30] sm:$0xff]
      %v4332 = vld [vmem:[%s9 + $0x38] sm:$0xff]
      %v4333 = vld [vmem:[%s10] sm:$0x1]
      %v4335 = vperm.slane %v4333, 0
      %v4338 = vsel %vm600, %v4324, 0
      %4340 = vmatpush.msra.mxu0 0.0
      %4341 = vmatpush.msra.mxu0 0.0
      %4342 = vmatpush.msra.mxu0 0.0
      %4343 = vmatpush.msra.mxu0 0.0
      %4344 = vmatpush.msra.mxu0 0.0
      %4345 = vmatpush.msra.mxu0 0.0
      %4346 = vmatpush.msra.mxu0 0.0
      %4347 = vmatpush.msra.mxu0 0.0
      %4348 = vmatpush.msra.mxu0 %v4332
      %4349 = vmatpush.msra.mxu0 %v4331
      %4350 = vmatpush.msra.mxu0 %v4330
      %4351 = vmatpush.msra.mxu0 %v4329
      %4352 = vmatpush.msra.mxu0 %v4328
      %4353 = vmatpush.msra.mxu0 %v4327
      %4354 = vmatpush.msra.mxu0 %v4326
      %4355 = vmatpush.msra.mxu0 %v4325
      %4356 = vmatmul.f32.gmra.mxu0 %v4338
      %v4357 = vpop.f32.mrf.mxu0
      %v4358 = vadd.f32 %v4335, %v4357
      %4359 = vdwg.mxu0
      %v4360 = vmax.f32 %v4358, 0.0
      %v4361 = vld [vmem:[%s11] sm:$0xff]
      %v4362 = vld [vmem:[%s11 + $0x8] sm:$0xff]
      %v4363 = vld [vmem:[%s11 + $0x10] sm:$0xff]
      %v4364 = vld [vmem:[%s11 + $0x18] sm:$0xff]
      %v4365 = vld [vmem:[%s11 + $0x20] sm:$0xff]
      %v4366 = vld [vmem:[%s11 + $0x28] sm:$0xff]
      %v4367 = vld [vmem:[%s11 + $0x30] sm:$0xff]
      %v4368 = vld [vmem:[%s11 + $0x38] sm:$0xff]
      %v4369 = vld [vmem:[%s12] sm:$0x1]
      %v4371 = vperm.slane %v4369, 0
      %v4374 = vsel %vm600, %v4360, 0
      %4376 = vmatpush.msra.mxu0 0.0
      %4377 = vmatpush.msra.mxu0 0.0
      %4378 = vmatpush.msra.mxu0 0.0
      %4379 = vmatpush.msra.mxu0 0.0
      %4380 = vmatpush.msra.mxu0 0.0
      %4381 = vmatpush.msra.mxu0 0.0
      %4382 = vmatpush.msra.mxu0 0.0
      %4383 = vmatpush.msra.mxu0 0.0
      %4384 = vmatpush.msra.mxu0 %v4368
      %4385 = vmatpush.msra.mxu0 %v4367
      %4386 = vmatpush.msra.mxu0 %v4366
      %4387 = vmatpush.msra.mxu0 %v4365
      %4388 = vmatpush.msra.mxu0 %v4364
      %4389 = vmatpush.msra.mxu0 %v4363
      %4390 = vmatpush.msra.mxu0 %v4362
      %4391 = vmatpush.msra.mxu0 %v4361
      %4392 = vmatmul.f32.gmra.mxu0 %v4374
      %v4393 = vpop.f32.mrf.mxu0
      %v4394 = vadd.f32 %v4371, %v4393
      %4395 = vdwg.mxu0
      %4396 = vst [vmem:[%s443] sm:$0xff] %v4394
      %p4397 = scmp.lt.s32.totalorder %s24, 1
      %s4398 = scalar_select %p4397, %s24, 1
      %s4399 = smul.addr %s4398, 8
      %s4400 = scalar_lea.vmem %s13, %s4399
      // Predicated region
      $region73: #{_lambda_.1} parent=71 // pred_check
        %p4401 = pneg %p320
      $region74: #{_lambda_.1} parent=71 // pred_check_branch
        %4403 = sbr.rel (%p4401) target = $region76
      $region75: #{_lambda_.1} parent=71 // pred_region
        _
      $region76: #{_lambda_.1} parent=71 // pred_fallthru
        _
    $region72: #{_lambda_.1} parent=5 // pred_fallthru
      _
    %p4404 = scmp.le.s32.totalorder 2, %s19
    // Predicated region
    $region77: #{_lambda_.1} parent=5 // pred_check
      %p4405 = pneg %p4404
    $region78: #{_lambda_.1} parent=5 // pred_check_branch
      %4407 = sbr.rel (%p4405) target = $region80
    $region79: #{_lambda_.1} parent=5 // pred_region
      %s4408 = ssub.s32 %s19, 2
      // Predicated region
      $region81: #{_lambda_.1} parent=79 // pred_check
        %p4409 = pneg %p326
      $region82: #{_lambda_.1} parent=79 // pred_check_branch
        %4411 = sbr.rel (%p4409) target = $region84
      $region83: #{_lambda_.1} parent=79 // pred_region
        %p4412 = scmp.lt.s32.totalorder %s25, 1
        %s4413 = scalar_select %p4412, %s25, 1
        %s4414 = smul.addr %s4413, 8
        %s4415 = scalar_lea.vmem %s13, %s4414
      $region84: #{_lambda_.1} parent=79 // pred_fallthru
        _
    $region80: #{_lambda_.1} parent=5 // pred_fallthru
      _
  $region6: #{_lambda_.1} parent=0 // loop_footer
    %s23 = sadd.s32 1, %s19
  $region7: #{_lambda_.1} parent=0 // loop_footer_branch
    %18 = sbr.rel target = $region3
  $region8: #{_lambda_.1} parent=0 // loop_exit
    _

</llo_original>
